<compile_context>
chip_gen: v7x
topology: tpu7x:2x2x1
jax: 0.10.0
libtpu: 0.0.40
codegen_flags: <defaults>
</compile_context>

<pallas_src>
import functools

import jax
import jax.numpy as jnp
from jax.experimental import pallas as pl
from jax.experimental.pallas import tpu as pltpu

_LANE = 128

_CONV_SPECS = [  # (out_ch, kernel, stride)
    (32, 8, 4),
    (64, 4, 2),
    (64, 3, 1),
]


def _round_up(x, m):
    return (x + m - 1) // m * m


def _conv_out_hw(h, w):
    for (_, k, s) in _CONV_SPECS:
        h = (h - k) // s + 1
        w = (w - k) // s + 1
    return h, w


def _fused_geometry(input_shape):
    """Static per-layer geometry after folding conv1's stride-4 into space-to-depth."""
    C, H, W = input_shape
    _, k0, s0 = _CONV_SPECS[0]
    assert k0 % s0 == 0
    H4, W4 = H // s0, W // s0
    layers = []
    h, w, in_ch = H4, W4, s0 * s0 * C
    for li, (oc, k, s) in enumerate(_CONV_SPECS):
        if li == 0:
            k, s = k // s0, 1                    # stride folded into space-to-depth
        oh, ow = (h - k) // s + 1, (w - k) // s + 1
        assert oh >= 1 and ow >= 1, "input spatial size too small for NatureCNN"
        layers.append(dict(k=k, s=s, ic=in_ch, icp=_round_up(in_ch, _LANE),
                           oc=oc, ocp=_round_up(oc, _LANE),
                           ih=h, iw=w, oh=oh, ow=ow))
        h, w, in_ch = oh, ow, oc
    return H4, W4, layers


@functools.lru_cache(maxsize=1)
def _vmem_cap_bytes():
    # ~3/4 of physical VMEM: ~96 MiB on 128 MiB v5e/v6e, ~48 MiB on 64 MiB v7x.
    try:
        return max(32 << 20, int(pltpu.get_tpu_info().vmem_capacity_bytes) * 3 // 4)
    except Exception:  # pragma: no cover - conservative fallback (v7x-safe)
        return 48 << 20


# ----------------------------- parameters -----------------------------------

def init_params(key, input_shape, output_dim):
    """Deterministic synthetic parameters in the PyTorch layout (OIHW weights etc.)."""
    C, H, W = input_shape
    params = {"convs": []}
    in_ch = C
    for li, (oc, k, _) in enumerate(_CONV_SPECS):
        kk = jax.random.fold_in(key, li)
        k0, k1, k2, k3, k4, k5 = jax.random.split(kk, 6)
        params["convs"].append(dict(
            w=0.05 * jax.random.normal(k0, (oc, in_ch, k, k), jnp.float32),
            b=0.05 * jax.random.normal(k1, (oc,), jnp.float32),
            gamma=1.0 + 0.1 * jax.random.normal(k2, (oc,), jnp.float32),
            beta=0.1 * jax.random.normal(k3, (oc,), jnp.float32),
            run_mean=0.1 * jax.random.normal(k4, (oc,), jnp.float32),
            run_var=1.0 + 0.1 * jnp.abs(jax.random.normal(k5, (oc,), jnp.float32)),
        ))
        in_ch = oc

    oh, ow = _conv_out_hw(H, W)
    n_flatten = _CONV_SPECS[-1][0] * oh * ow
    kh = jax.random.fold_in(key, 100)
    h0, h1, h2, h3 = jax.random.split(kh, 4)
    params["linear"] = dict(
        w1=0.05 * jax.random.normal(h0, (64, n_flatten), jnp.float32),
        b1=0.05 * jax.random.normal(h1, (64,), jnp.float32),
        w2=0.05 * jax.random.normal(h2, (output_dim, 64), jnp.float32),
        b2=0.05 * jax.random.normal(h3, (output_dim,), jnp.float32),
    )
    return params


def prepare_params(params, input_shape, eps=1e-5):
    """One-time prep: stride/space-to-depth + flatten folding, BN folding, bf16 cast,
    128-lane padding (zero rows/cols so padded channels stay exactly zero)."""
    C, H, W = input_shape
    s0 = _CONV_SPECS[0][2]
    _, _, layers = _fused_geometry(input_shape)
    H3, W3 = layers[-1]["oh"], layers[-1]["ow"]

    conv_ws = []
    affine = jnp.zeros((len(_CONV_SPECS) + 1, 8, _LANE), jnp.float32)
    for li, (p, g) in enumerate(zip(params["convs"], layers)):
        oc, ic, icp, ocp = g["oc"], g["ic"], g["icp"], g["ocp"]
        w = p["w"]                                        # torch (oc, ic, K, K)
        if li == 0:
            # fold the stride-s0 space-to-depth: W'[a, b, (p*s0+q)*C + c, oc]
            #   = W[oc, c, s0*a + p, s0*b + q]
            K = w.shape[-1]
            kk = K // s0
            wt = jnp.transpose(w, (2, 3, 1, 0))           # (i, j, c, oc)
            wt = wt.reshape(kk, s0, kk, s0, C, w.shape[0])  # (a, p, b, q, c, oc)
            wt = jnp.transpose(wt, (0, 2, 1, 3, 4, 5))    # (a, b, p, q, c, oc)
            wt = wt.reshape(kk, kk, s0 * s0 * C, w.shape[0])
        else:
            wt = jnp.transpose(w, (2, 3, 1, 0))           # (k, k, ic, oc)
        k = wt.shape[0]
        wp = jnp.zeros((k, k, icp, ocp), jnp.float32)
        wp = wp.at[:, :, :ic, :oc].set(wt).astype(jnp.bfloat16)
        conv_ws.append(wp)

        inv = 1.0 / jnp.sqrt(p["run_var"] + eps)
        scale = p["gamma"] * inv
        shift = p["beta"] - p["run_mean"] * scale
        affine = affine.at[li, 0, :oc].set(p["b"])
        affine = affine.at[li, 1, :oc].set(scale)
        affine = affine.at[li, 2, :oc].set(shift)

    lp = params["linear"]
    hid = lp["w1"].shape[0]
    out_dim = lp["w2"].shape[0]
    c3 = _CONV_SPECS[-1][0]
    assert hid <= _LANE and out_dim <= _LANE, "head dims > 128 not supported"
    npos = H3 * W3
    # torch flattens conv output as (c, y, x): feature index = c*(H3*W3) + y*W3 + x.
    w1 = lp["w1"].reshape(hid, c3, npos)                  # (hid, c, pos)
    w1 = jnp.transpose(w1, (2, 1, 0))                     # (pos, c, hid)
    wl1 = jnp.zeros((npos, _round_up(c3, _LANE), _LANE), jnp.float32)
    wl1 = wl1.at[:, :c3, :hid].set(w1).astype(jnp.bfloat16)
    wl2 = jnp.zeros((_LANE, _LANE), jnp.float32)
    wl2 = wl2.at[:hid, :out_dim].set(jnp.transpose(lp["w2"])).astype(jnp.bfloat16)
    affine = affine.at[3, 0, :hid].set(lp["b1"])
    affine = affine.at[3, 1, :out_dim].set(lp["b2"])

    return dict(conv_ws=tuple(conv_ws), wl1=wl1, wl2=wl2, affine=affine)


# ------------------------------ forward pass ---------------------------------

@functools.partial(jax.jit, static_argnums=(2,))
def nature_cnn_forward(prepped, x_nchw, out_dim):
    assert out_dim <= _LANE
    B, C, H, W = x_nchw.shape
    s0 = _CONV_SPECS[0][2]
    H4, W4, layers = _fused_geometry((C, H, W))
    cin1p = layers[0]["icp"]
    H3, W3 = layers[-1]["oh"], layers[-1]["ow"]
    hidp = outp = _LANE

    # ---- static batch tiling (the only grid axis) ---------------------------
    wbytes = (sum(int(w.size) * 2 for w in prepped["conv_ws"])
              + int(prepped["wl1"].size) * 2 + int(prepped["wl2"].size) * 2
              + int(prepped["affine"].size) * 4)

    def _vmem_estimate(tb):
        b = 2 * H4 * W4 * tb * cin1p * 2                 # double-buffered input block
        b += 2 * wbytes                                  # resident weights (worst case)
        for g in layers:                                 # f32 acc + bf16 activation
            b += g["oh"] * g["ow"] * tb * g["ocp"] * (4 + 2)
        b += tb * (hidp + outp) * 4 + 2 * tb * outp * 4  # head + output block
        return b

    cap = _vmem_cap_bytes()
    # rows multiple of 16 (packed bf16 sublanes); >=2 grid steps once B is large
    # enough so both v7x TensorCores get work.
    tb = max(16, min(128, _round_up(pl.cdiv(B, 2), 16)))
    while tb > 16 and _vmem_estimate(tb) > cap * 3 // 4:
        tb //= 2
    Bp = _round_up(B, tb)
    vmem_limit = int(min(cap, max(32 << 20, 2 * _vmem_estimate(tb))))

    # ---- layout glue: NCHW f32 -> space-to-depth(s0), (H4, W4, Bp, 128) bf16 -----
    # One cheap pass over the raw input; folds conv1's stride-4 so every in-kernel
    # conv is stride-handled with leading-dim reshapes only.
    x = x_nchw[:, :, : H4 * s0, : W4 * s0]
    x = x.reshape(B, C, H4, s0, W4, s0)
    x = jnp.transpose(x, (2, 4, 0, 3, 5, 1))             # (H4, W4, B, p, q, c)
    x = x.reshape(H4, W4, B, s0 * s0 * C)
    x = jnp.pad(x, ((0, 0), (0, 0), (0, Bp - B), (0, cin1p - s0 * s0 * C)))
    x = x.astype(jnp.bfloat16)

    # ---- the fused kernel ----------------------------------------------------
    def kernel(x_ref, w0_ref, w1_ref, w2_ref, wl1_ref, wl2_ref, aff_ref, o_ref):
        conv_w_refs = (w0_ref, w1_ref, w2_ref)
        a = x_ref                                         # (H4, W4, tb, 128) in VMEM
        for li, g in enumerate(layers):
            k, s, OH, OW = g["k"], g["s"], g["oh"], g["ow"]
            icp, ocp = g["icp"], g["ocp"]
            w_ref = conv_w_refs[li]
            acc = jnp.zeros((OH * OW * tb, ocp), jnp.float32)
            if s == 1:
                for i in range(k):
                    for j in range(k):
                        patch = a[i:i + OH, j:j + OW].reshape(OH * OW * tb, icp)
                        acc = acc + jnp.dot(patch, w_ref[i, j, :, :],
                                            preferred_element_type=jnp.float32)
            else:
                # stride handled by leading-dim reshape + static phase index only
                eh = _round_up(s * (OH - 1) + k, s)
                ew = _round_up(s * (OW - 1) + k, s)
                ar = a[:eh, :ew].reshape(eh // s, s, ew, tb, icp)
                for i in range(k):
                    ai, p = divmod(i, s)
                    row = ar[ai:ai + OH, p].reshape(OH, ew // s, s, tb, icp)
                    for j in range(k):
                        bj, q = divmod(j, s)
                        patch = row[:, bj:bj + OW, q].reshape(OH * OW * tb, icp)
                        acc = acc + jnp.dot(patch, w_ref[i, j, :, :],
                                            preferred_element_type=jnp.float32)
            aff = aff_ref[li]                              # (8, 128) f32
            y = jnp.maximum(acc + aff[0:1, :], 0.0) * aff[1:2, :] + aff[2:3, :]
            a = y.astype(jnp.bfloat16).reshape(OH, OW, tb, ocp)

        # MLP head: Linear(n_flatten->64) -> ReLU -> Linear(64->out_dim)
        affl = aff_ref[len(layers)]
        hacc = jnp.zeros((tb, hidp), jnp.float32)
        for pos in range(H3 * W3):
            yy, xx = divmod(pos, W3)
            hacc = hacc + jnp.dot(a[yy, xx], wl1_ref[pos, :, :],
                                  preferred_element_type=jnp.float32)
        h = jnp.maximum(hacc + affl[0:1, :], 0.0).astype(jnp.bfloat16)
        o_ref[...] = (jnp.dot(h, wl2_ref[...], preferred_element_type=jnp.float32)
                      + affl[1:2, :])

    flops = 0
    for g in layers:
        flops += 2 * g["oh"] * g["ow"] * g["k"] * g["k"] * g["icp"] * g["ocp"]
    flops += 2 * (H3 * W3 * _LANE * hidp + hidp * outp)
    flops *= Bp
    bytes_accessed = int(x.size) * 2 + wbytes + Bp * outp * 4

    out = pl.pallas_call(
        kernel,
        out_shape=jax.ShapeDtypeStruct((Bp, outp), jnp.float32),
        grid_spec=pltpu.PrefetchScalarGridSpec(
            num_scalar_prefetch=0,
            grid=(Bp // tb,),
            in_specs=[
                pl.BlockSpec((H4, W4, tb, cin1p), lambda i: (0, 0, i, 0)),
                pl.BlockSpec(prepped["conv_ws"][0].shape, lambda i: (0, 0, 0, 0)),
                pl.BlockSpec(prepped["conv_ws"][1].shape, lambda i: (0, 0, 0, 0)),
                pl.BlockSpec(prepped["conv_ws"][2].shape, lambda i: (0, 0, 0, 0)),
                pl.BlockSpec(prepped["wl1"].shape, lambda i: (0, 0, 0)),
                pl.BlockSpec(prepped["wl2"].shape, lambda i: (0, 0)),
                pl.BlockSpec(prepped["affine"].shape, lambda i: (0, 0, 0)),
            ],
            out_specs=pl.BlockSpec((tb, outp), lambda i: (i, 0)),
        ),
        compiler_params=pltpu.CompilerParams(
            dimension_semantics=("parallel",),            # batch tiles -> megacore
            vmem_limit_bytes=vmem_limit,
        ),
        cost_estimate=pl.CostEstimate(flops=int(flops), transcendentals=0,
                                      bytes_accessed=int(bytes_accessed)),
    )(x, *prepped["conv_ws"], prepped["wl1"], prepped["wl2"], prepped["affine"])
    return out[:B, :out_dim]


# ------------------------------ reference (checking) --------------------------

def nature_cnn_reference(params, x_nchw, eps=1e-5):
    x = x_nchw
    for p, (_, _, stride) in zip(params["convs"], _CONV_SPECS):
        x = jax.lax.conv_general_dilated(
            x, p["w"], window_strides=(stride, stride), padding="VALID",
            dimension_numbers=("NCHW", "OIHW", "NCHW"))
        x = x + p["b"][None, :, None, None]
        x = jnp.maximum(x, 0.0)
        inv = 1.0 / jnp.sqrt(p["run_var"] + eps)
        x = (x - p["run_mean"][None, :, None, None]) * (p["gamma"] * inv)[None, :, None, None] \
            + p["beta"][None, :, None, None]
    x = x.reshape(x.shape[0], -1)
    lp = params["linear"]
    h = jnp.maximum(x @ lp["w1"].T + lp["b1"], 0.0)
    return h @ lp["w2"].T + lp["b2"]


# ---------------------------------- main -------------------------------------

if __name__ == "__main__":
    # Smallest spatial size the Nature CNN supports is 36x36 (k8s4 -> k4s2 -> k3s1).
    B, C, H, W = 2, 3, 36, 36
    OUT_DIM = 16

    key = jax.random.PRNGKey(0)
    params = init_params(jax.random.fold_in(key, 1), (C, H, W), OUT_DIM)
    prepped = prepare_params(params, (C, H, W))
    x = jax.random.normal(jax.random.fold_in(key, 2), (B, C, H, W), jnp.float32)

    out = nature_cnn_forward(prepped, x, OUT_DIM)
    out = jax.block_until_ready(out)
    assert out.shape == (B, OUT_DIM), out.shape

    ref = jax.block_until_ready(nature_cnn_reference(params, x))
    err = jnp.max(jnp.abs(out - ref))
    assert err < 5e-2, f"max abs err {err}"

    print("KERNEL_OK")
</pallas_src>

<mosaic_0001>
module attributes {stable_mosaic.version = 11 : i64} {
  func.func @kernel(%arg0: i32, %arg1: memref<9x9x16x128xbf16, #tpu.memory_space<vmem>>, %arg2: memref<2x2x128x128xbf16, #tpu.memory_space<vmem>>, %arg3: memref<4x4x128x128xbf16, #tpu.memory_space<vmem>>, %arg4: memref<3x3x128x128xbf16, #tpu.memory_space<vmem>>, %arg5: memref<1x128x128xbf16, #tpu.memory_space<vmem>>, %arg6: memref<128x128xbf16, #tpu.memory_space<vmem>>, %arg7: memref<4x8x128xf32, #tpu.memory_space<vmem>>, %arg8: memref<16x128xf32, #tpu.memory_space<vmem>>) attributes {dimension_semantics = [#tpu.dimension_semantics<parallel>], iteration_bounds = array<i64: 1>, scalar_prefetch = 0 : i64, scratch_operands = 0 : i64, tpu.core_type = #tpu.core_type<tc>, window_params = [{transform_indices = @transform_0, window_bounds = array<i64: 9, 9, 16, 128>}, {pipeline_mode = #tpu.pipeline_mode<synchronous>, transform_indices = @transform_1, window_bounds = array<i64: 2, 2, 128, 128>}, {pipeline_mode = #tpu.pipeline_mode<synchronous>, transform_indices = @transform_2, window_bounds = array<i64: 4, 4, 128, 128>}, {pipeline_mode = #tpu.pipeline_mode<synchronous>, transform_indices = @transform_3, window_bounds = array<i64: 3, 3, 128, 128>}, {pipeline_mode = #tpu.pipeline_mode<synchronous>, transform_indices = @transform_4, window_bounds = array<i64: 1, 128, 128>}, {pipeline_mode = #tpu.pipeline_mode<synchronous>, transform_indices = @transform_5, window_bounds = array<i64: 128, 128>}, {pipeline_mode = #tpu.pipeline_mode<synchronous>, transform_indices = @transform_6, window_bounds = array<i64: 4, 8, 128>}, {transform_indices = @transform_7, window_bounds = array<i64: 16, 128>}]} {
    %cst = arith.constant 0.000000e+00 : f32
    %0 = vector.broadcast %cst : f32 to vector<1024x128xf32>
    %c0 = arith.constant 0 : index
    %c0_0 = arith.constant 0 : index
    %c0_1 = arith.constant 0 : index
    %c0_2 = arith.constant 0 : index
    %1 = vector.load %arg1[%c0, %c0_0, %c0_1, %c0_2] : memref<9x9x16x128xbf16, #tpu.memory_space<vmem>>, vector<8x8x16x128xbf16>
    %2 = vector.shape_cast %1 : vector<8x8x16x128xbf16> to vector<1024x128xbf16>
    %c0_3 = arith.constant 0 : index
    %c0_4 = arith.constant 0 : index
    %c0_5 = arith.constant 0 : index
    %c0_6 = arith.constant 0 : index
    %3 = vector.load %arg2[%c0_3, %c0_4, %c0_5, %c0_6] : memref<2x2x128x128xbf16, #tpu.memory_space<vmem>>, vector<1x1x128x128xbf16>
    %4 = vector.shape_cast %3 : vector<1x1x128x128xbf16> to vector<128x128xbf16>
    %cst_7 = arith.constant dense<0.000000e+00> : vector<1024x128xf32>
    %5 = tpu.matmul %2, %4, %cst_7 {dimension_numbers = #tpu.dot_dimension_numbers<[1], [0], [0], [1], [0, 0, 1, 1], [], []>} : vector<1024x128xbf16>, vector<128x128xbf16>, vector<1024x128xf32> -> vector<1024x128xf32>
    %6 = arith.addf %0, %5 : vector<1024x128xf32>
    %c0_8 = arith.constant 0 : index
    %c1 = arith.constant 1 : index
    %c0_9 = arith.constant 0 : index
    %c0_10 = arith.constant 0 : index
    %7 = vector.load %arg1[%c0_8, %c1, %c0_9, %c0_10] : memref<9x9x16x128xbf16, #tpu.memory_space<vmem>>, vector<8x8x16x128xbf16>
    %8 = vector.shape_cast %7 : vector<8x8x16x128xbf16> to vector<1024x128xbf16>
    %c0_11 = arith.constant 0 : index
    %c1_12 = arith.constant 1 : index
    %c0_13 = arith.constant 0 : index
    %c0_14 = arith.constant 0 : index
    %9 = vector.load %arg2[%c0_11, %c1_12, %c0_13, %c0_14] : memref<2x2x128x128xbf16, #tpu.memory_space<vmem>>, vector<1x1x128x128xbf16>
    %10 = vector.shape_cast %9 : vector<1x1x128x128xbf16> to vector<128x128xbf16>
    %cst_15 = arith.constant dense<0.000000e+00> : vector<1024x128xf32>
    %11 = tpu.matmul %8, %10, %cst_15 {dimension_numbers = #tpu.dot_dimension_numbers<[1], [0], [0], [1], [0, 0, 1, 1], [], []>} : vector<1024x128xbf16>, vector<128x128xbf16>, vector<1024x128xf32> -> vector<1024x128xf32>
    %12 = arith.addf %6, %11 : vector<1024x128xf32>
    %c1_16 = arith.constant 1 : index
    %c0_17 = arith.constant 0 : index
    %c0_18 = arith.constant 0 : index
    %c0_19 = arith.constant 0 : index
    %13 = vector.load %arg1[%c1_16, %c0_17, %c0_18, %c0_19] : memref<9x9x16x128xbf16, #tpu.memory_space<vmem>>, vector<8x8x16x128xbf16>
    %14 = vector.shape_cast %13 : vector<8x8x16x128xbf16> to vector<1024x128xbf16>
    %c1_20 = arith.constant 1 : index
    %c0_21 = arith.constant 0 : index
    %c0_22 = arith.constant 0 : index
    %c0_23 = arith.constant 0 : index
    %15 = vector.load %arg2[%c1_20, %c0_21, %c0_22, %c0_23] : memref<2x2x128x128xbf16, #tpu.memory_space<vmem>>, vector<1x1x128x128xbf16>
    %16 = vector.shape_cast %15 : vector<1x1x128x128xbf16> to vector<128x128xbf16>
    %cst_24 = arith.constant dense<0.000000e+00> : vector<1024x128xf32>
    %17 = tpu.matmul %14, %16, %cst_24 {dimension_numbers = #tpu.dot_dimension_numbers<[1], [0], [0], [1], [0, 0, 1, 1], [], []>} : vector<1024x128xbf16>, vector<128x128xbf16>, vector<1024x128xf32> -> vector<1024x128xf32>
    %18 = arith.addf %12, %17 : vector<1024x128xf32>
    %c1_25 = arith.constant 1 : index
    %c1_26 = arith.constant 1 : index
    %c0_27 = arith.constant 0 : index
    %c0_28 = arith.constant 0 : index
    %19 = vector.load %arg1[%c1_25, %c1_26, %c0_27, %c0_28] : memref<9x9x16x128xbf16, #tpu.memory_space<vmem>>, vector<8x8x16x128xbf16>
    %20 = vector.shape_cast %19 : vector<8x8x16x128xbf16> to vector<1024x128xbf16>
    %c1_29 = arith.constant 1 : index
    %c1_30 = arith.constant 1 : index
    %c0_31 = arith.constant 0 : index
    %c0_32 = arith.constant 0 : index
    %21 = vector.load %arg2[%c1_29, %c1_30, %c0_31, %c0_32] : memref<2x2x128x128xbf16, #tpu.memory_space<vmem>>, vector<1x1x128x128xbf16>
    %22 = vector.shape_cast %21 : vector<1x1x128x128xbf16> to vector<128x128xbf16>
    %cst_33 = arith.constant dense<0.000000e+00> : vector<1024x128xf32>
    %23 = tpu.matmul %20, %22, %cst_33 {dimension_numbers = #tpu.dot_dimension_numbers<[1], [0], [0], [1], [0, 0, 1, 1], [], []>} : vector<1024x128xbf16>, vector<128x128xbf16>, vector<1024x128xf32> -> vector<1024x128xf32>
    %24 = arith.addf %18, %23 : vector<1024x128xf32>
    %c0_34 = arith.constant 0 : index
    %c0_35 = arith.constant 0 : index
    %c0_36 = arith.constant 0 : index
    %25 = vector.load %arg7[%c0_34, %c0_35, %c0_36] : memref<4x8x128xf32, #tpu.memory_space<vmem>>, vector<1x8x128xf32>
    %26 = vector.shape_cast %25 : vector<1x8x128xf32> to vector<8x128xf32>
    %27 = vector.extract_strided_slice %26 {offsets = [0, 0], sizes = [1, 128], strides = [1, 1]} : vector<8x128xf32> to vector<1x128xf32>
    %28 = vector.broadcast %27 : vector<1x128xf32> to vector<1024x128xf32>
    %29 = arith.addf %24, %28 : vector<1024x128xf32>
    %cst_37 = arith.constant 0.000000e+00 : f32
    %30 = vector.broadcast %cst_37 : f32 to vector<1024x128xf32>
    %31 = arith.maximumf %29, %30 : vector<1024x128xf32>
    %32 = vector.extract_strided_slice %26 {offsets = [1, 0], sizes = [1, 128], strides = [1, 1]} : vector<8x128xf32> to vector<1x128xf32>
    %33 = vector.broadcast %32 : vector<1x128xf32> to vector<1024x128xf32>
    %34 = arith.mulf %31, %33 : vector<1024x128xf32>
    %35 = vector.extract_strided_slice %26 {offsets = [2, 0], sizes = [1, 128], strides = [1, 1]} : vector<8x128xf32> to vector<1x128xf32>
    %36 = vector.broadcast %35 : vector<1x128xf32> to vector<1024x128xf32>
    %37 = arith.addf %34, %36 : vector<1024x128xf32>
    %38 = arith.truncf %37 : vector<1024x128xf32> to vector<1024x128xbf16>
    %39 = vector.shape_cast %38 : vector<1024x128xbf16> to vector<8x8x16x128xbf16>
    %cst_38 = arith.constant 0.000000e+00 : f32
    %40 = vector.broadcast %cst_38 : f32 to vector<144x128xf32>
    %41 = vector.shape_cast %39 : vector<8x8x16x128xbf16> to vector<4x2x8x16x128xbf16>
    %42 = vector.extract_strided_slice %41 {offsets = [0, 0, 0, 0, 0], sizes = [3, 1, 8, 16, 128], strides = [1, 1, 1, 1, 1]} : vector<4x2x8x16x128xbf16> to vector<3x1x8x16x128xbf16>
    %43 = vector.shape_cast %42 : vector<3x1x8x16x128xbf16> to vector<3x8x16x128xbf16>
    %44 = vector.shape_cast %43 : vector<3x8x16x128xbf16> to vector<3x4x2x16x128xbf16>
    %45 = vector.extract_strided_slice %44 {offsets = [0, 0, 0, 0, 0], sizes = [3, 3, 1, 16, 128], strides = [1, 1, 1, 1, 1]} : vector<3x4x2x16x128xbf16> to vector<3x3x1x16x128xbf16>
    %46 = vector.shape_cast %45 : vector<3x3x1x16x128xbf16> to vector<3x3x16x128xbf16>
    %47 = vector.shape_cast %46 : vector<3x3x16x128xbf16> to vector<144x128xbf16>
    %c0_39 = arith.constant 0 : index
    %c0_40 = arith.constant 0 : index
    %c0_41 = arith.constant 0 : index
    %c0_42 = arith.constant 0 : index
    %48 = vector.load %arg3[%c0_39, %c0_40, %c0_41, %c0_42] : memref<4x4x128x128xbf16, #tpu.memory_space<vmem>>, vector<1x1x128x128xbf16>
    %49 = vector.shape_cast %48 : vector<1x1x128x128xbf16> to vector<128x128xbf16>
    %cst_43 = arith.constant dense<0.000000e+00> : vector<144x128xf32>
    %50 = tpu.matmul %47, %49, %cst_43 {dimension_numbers = #tpu.dot_dimension_numbers<[1], [0], [0], [1], [0, 0, 1, 1], [], []>} : vector<144x128xbf16>, vector<128x128xbf16>, vector<144x128xf32> -> vector<144x128xf32>
    %51 = arith.addf %40, %50 : vector<144x128xf32>
    %52 = vector.extract_strided_slice %44 {offsets = [0, 0, 1, 0, 0], sizes = [3, 3, 1, 16, 128], strides = [1, 1, 1, 1, 1]} : vector<3x4x2x16x128xbf16> to vector<3x3x1x16x128xbf16>
    %53 = vector.shape_cast %52 : vector<3x3x1x16x128xbf16> to vector<3x3x16x128xbf16>
    %54 = vector.shape_cast %53 : vector<3x3x16x128xbf16> to vector<144x128xbf16>
    %c0_44 = arith.constant 0 : index
    %c1_45 = arith.constant 1 : index
    %c0_46 = arith.constant 0 : index
    %c0_47 = arith.constant 0 : index
    %55 = vector.load %arg3[%c0_44, %c1_45, %c0_46, %c0_47] : memref<4x4x128x128xbf16, #tpu.memory_space<vmem>>, vector<1x1x128x128xbf16>
    %56 = vector.shape_cast %55 : vector<1x1x128x128xbf16> to vector<128x128xbf16>
    %cst_48 = arith.constant dense<0.000000e+00> : vector<144x128xf32>
    %57 = tpu.matmul %54, %56, %cst_48 {dimension_numbers = #tpu.dot_dimension_numbers<[1], [0], [0], [1], [0, 0, 1, 1], [], []>} : vector<144x128xbf16>, vector<128x128xbf16>, vector<144x128xf32> -> vector<144x128xf32>
    %58 = arith.addf %51, %57 : vector<144x128xf32>
    %59 = vector.extract_strided_slice %44 {offsets = [0, 1, 0, 0, 0], sizes = [3, 3, 1, 16, 128], strides = [1, 1, 1, 1, 1]} : vector<3x4x2x16x128xbf16> to vector<3x3x1x16x128xbf16>
    %60 = vector.shape_cast %59 : vector<3x3x1x16x128xbf16> to vector<3x3x16x128xbf16>
    %61 = vector.shape_cast %60 : vector<3x3x16x128xbf16> to vector<144x128xbf16>
    %c0_49 = arith.constant 0 : index
    %c2 = arith.constant 2 : index
    %c0_50 = arith.constant 0 : index
    %c0_51 = arith.constant 0 : index
    %62 = vector.load %arg3[%c0_49, %c2, %c0_50, %c0_51] : memref<4x4x128x128xbf16, #tpu.memory_space<vmem>>, vector<1x1x128x128xbf16>
    %63 = vector.shape_cast %62 : vector<1x1x128x128xbf16> to vector<128x128xbf16>
    %cst_52 = arith.constant dense<0.000000e+00> : vector<144x128xf32>
    %64 = tpu.matmul %61, %63, %cst_52 {dimension_numbers = #tpu.dot_dimension_numbers<[1], [0], [0], [1], [0, 0, 1, 1], [], []>} : vector<144x128xbf16>, vector<128x128xbf16>, vector<144x128xf32> -> vector<144x128xf32>
    %65 = arith.addf %58, %64 : vector<144x128xf32>
    %66 = vector.extract_strided_slice %44 {offsets = [0, 1, 1, 0, 0], sizes = [3, 3, 1, 16, 128], strides = [1, 1, 1, 1, 1]} : vector<3x4x2x16x128xbf16> to vector<3x3x1x16x128xbf16>
    %67 = vector.shape_cast %66 : vector<3x3x1x16x128xbf16> to vector<3x3x16x128xbf16>
    %68 = vector.shape_cast %67 : vector<3x3x16x128xbf16> to vector<144x128xbf16>
    %c0_53 = arith.constant 0 : index
    %c3 = arith.constant 3 : index
    %c0_54 = arith.constant 0 : index
    %c0_55 = arith.constant 0 : index
    %69 = vector.load %arg3[%c0_53, %c3, %c0_54, %c0_55] : memref<4x4x128x128xbf16, #tpu.memory_space<vmem>>, vector<1x1x128x128xbf16>
    %70 = vector.shape_cast %69 : vector<1x1x128x128xbf16> to vector<128x128xbf16>
    %cst_56 = arith.constant dense<0.000000e+00> : vector<144x128xf32>
    %71 = tpu.matmul %68, %70, %cst_56 {dimension_numbers = #tpu.dot_dimension_numbers<[1], [0], [0], [1], [0, 0, 1, 1], [], []>} : vector<144x128xbf16>, vector<128x128xbf16>, vector<144x128xf32> -> vector<144x128xf32>
    %72 = arith.addf %65, %71 : vector<144x128xf32>
    %73 = vector.extract_strided_slice %41 {offsets = [0, 1, 0, 0, 0], sizes = [3, 1, 8, 16, 128], strides = [1, 1, 1, 1, 1]} : vector<4x2x8x16x128xbf16> to vector<3x1x8x16x128xbf16>
    %74 = vector.shape_cast %73 : vector<3x1x8x16x128xbf16> to vector<3x8x16x128xbf16>
    %75 = vector.shape_cast %74 : vector<3x8x16x128xbf16> to vector<3x4x2x16x128xbf16>
    %76 = vector.extract_strided_slice %75 {offsets = [0, 0, 0, 0, 0], sizes = [3, 3, 1, 16, 128], strides = [1, 1, 1, 1, 1]} : vector<3x4x2x16x128xbf16> to vector<3x3x1x16x128xbf16>
    %77 = vector.shape_cast %76 : vector<3x3x1x16x128xbf16> to vector<3x3x16x128xbf16>
    %78 = vector.shape_cast %77 : vector<3x3x16x128xbf16> to vector<144x128xbf16>
    %c1_57 = arith.constant 1 : index
    %c0_58 = arith.constant 0 : index
    %c0_59 = arith.constant 0 : index
    %c0_60 = arith.constant 0 : index
    %79 = vector.load %arg3[%c1_57, %c0_58, %c0_59, %c0_60] : memref<4x4x128x128xbf16, #tpu.memory_space<vmem>>, vector<1x1x128x128xbf16>
    %80 = vector.shape_cast %79 : vector<1x1x128x128xbf16> to vector<128x128xbf16>
    %cst_61 = arith.constant dense<0.000000e+00> : vector<144x128xf32>
    %81 = tpu.matmul %78, %80, %cst_61 {dimension_numbers = #tpu.dot_dimension_numbers<[1], [0], [0], [1], [0, 0, 1, 1], [], []>} : vector<144x128xbf16>, vector<128x128xbf16>, vector<144x128xf32> -> vector<144x128xf32>
    %82 = arith.addf %72, %81 : vector<144x128xf32>
    %83 = vector.extract_strided_slice %75 {offsets = [0, 0, 1, 0, 0], sizes = [3, 3, 1, 16, 128], strides = [1, 1, 1, 1, 1]} : vector<3x4x2x16x128xbf16> to vector<3x3x1x16x128xbf16>
    %84 = vector.shape_cast %83 : vector<3x3x1x16x128xbf16> to vector<3x3x16x128xbf16>
    %85 = vector.shape_cast %84 : vector<3x3x16x128xbf16> to vector<144x128xbf16>
    %c1_62 = arith.constant 1 : index
    %c1_63 = arith.constant 1 : index
    %c0_64 = arith.constant 0 : index
    %c0_65 = arith.constant 0 : index
    %86 = vector.load %arg3[%c1_62, %c1_63, %c0_64, %c0_65] : memref<4x4x128x128xbf16, #tpu.memory_space<vmem>>, vector<1x1x128x128xbf16>
    %87 = vector.shape_cast %86 : vector<1x1x128x128xbf16> to vector<128x128xbf16>
    %cst_66 = arith.constant dense<0.000000e+00> : vector<144x128xf32>
    %88 = tpu.matmul %85, %87, %cst_66 {dimension_numbers = #tpu.dot_dimension_numbers<[1], [0], [0], [1], [0, 0, 1, 1], [], []>} : vector<144x128xbf16>, vector<128x128xbf16>, vector<144x128xf32> -> vector<144x128xf32>
    %89 = arith.addf %82, %88 : vector<144x128xf32>
    %90 = vector.extract_strided_slice %75 {offsets = [0, 1, 0, 0, 0], sizes = [3, 3, 1, 16, 128], strides = [1, 1, 1, 1, 1]} : vector<3x4x2x16x128xbf16> to vector<3x3x1x16x128xbf16>
    %91 = vector.shape_cast %90 : vector<3x3x1x16x128xbf16> to vector<3x3x16x128xbf16>
    %92 = vector.shape_cast %91 : vector<3x3x16x128xbf16> to vector<144x128xbf16>
    %c1_67 = arith.constant 1 : index
    %c2_68 = arith.constant 2 : index
    %c0_69 = arith.constant 0 : index
    %c0_70 = arith.constant 0 : index
    %93 = vector.load %arg3[%c1_67, %c2_68, %c0_69, %c0_70] : memref<4x4x128x128xbf16, #tpu.memory_space<vmem>>, vector<1x1x128x128xbf16>
    %94 = vector.shape_cast %93 : vector<1x1x128x128xbf16> to vector<128x128xbf16>
    %cst_71 = arith.constant dense<0.000000e+00> : vector<144x128xf32>
    %95 = tpu.matmul %92, %94, %cst_71 {dimension_numbers = #tpu.dot_dimension_numbers<[1], [0], [0], [1], [0, 0, 1, 1], [], []>} : vector<144x128xbf16>, vector<128x128xbf16>, vector<144x128xf32> -> vector<144x128xf32>
    %96 = arith.addf %89, %95 : vector<144x128xf32>
    %97 = vector.extract_strided_slice %75 {offsets = [0, 1, 1, 0, 0], sizes = [3, 3, 1, 16, 128], strides = [1, 1, 1, 1, 1]} : vector<3x4x2x16x128xbf16> to vector<3x3x1x16x128xbf16>
    %98 = vector.shape_cast %97 : vector<3x3x1x16x128xbf16> to vector<3x3x16x128xbf16>
    %99 = vector.shape_cast %98 : vector<3x3x16x128xbf16> to vector<144x128xbf16>
    %c1_72 = arith.constant 1 : index
    %c3_73 = arith.constant 3 : index
    %c0_74 = arith.constant 0 : index
    %c0_75 = arith.constant 0 : index
    %100 = vector.load %arg3[%c1_72, %c3_73, %c0_74, %c0_75] : memref<4x4x128x128xbf16, #tpu.memory_space<vmem>>, vector<1x1x128x128xbf16>
    %101 = vector.shape_cast %100 : vector<1x1x128x128xbf16> to vector<128x128xbf16>
    %cst_76 = arith.constant dense<0.000000e+00> : vector<144x128xf32>
    %102 = tpu.matmul %99, %101, %cst_76 {dimension_numbers = #tpu.dot_dimension_numbers<[1], [0], [0], [1], [0, 0, 1, 1], [], []>} : vector<144x128xbf16>, vector<128x128xbf16>, vector<144x128xf32> -> vector<144x128xf32>
    %103 = arith.addf %96, %102 : vector<144x128xf32>
    %104 = vector.extract_strided_slice %41 {offsets = [1, 0, 0, 0, 0], sizes = [3, 1, 8, 16, 128], strides = [1, 1, 1, 1, 1]} : vector<4x2x8x16x128xbf16> to vector<3x1x8x16x128xbf16>
    %105 = vector.shape_cast %104 : vector<3x1x8x16x128xbf16> to vector<3x8x16x128xbf16>
    %106 = vector.shape_cast %105 : vector<3x8x16x128xbf16> to vector<3x4x2x16x128xbf16>
    %107 = vector.extract_strided_slice %106 {offsets = [0, 0, 0, 0, 0], sizes = [3, 3, 1, 16, 128], strides = [1, 1, 1, 1, 1]} : vector<3x4x2x16x128xbf16> to vector<3x3x1x16x128xbf16>
    %108 = vector.shape_cast %107 : vector<3x3x1x16x128xbf16> to vector<3x3x16x128xbf16>
    %109 = vector.shape_cast %108 : vector<3x3x16x128xbf16> to vector<144x128xbf16>
    %c2_77 = arith.constant 2 : index
    %c0_78 = arith.constant 0 : index
    %c0_79 = arith.constant 0 : index
    %c0_80 = arith.constant 0 : index
    %110 = vector.load %arg3[%c2_77, %c0_78, %c0_79, %c0_80] : memref<4x4x128x128xbf16, #tpu.memory_space<vmem>>, vector<1x1x128x128xbf16>
    %111 = vector.shape_cast %110 : vector<1x1x128x128xbf16> to vector<128x128xbf16>
    %cst_81 = arith.constant dense<0.000000e+00> : vector<144x128xf32>
    %112 = tpu.matmul %109, %111, %cst_81 {dimension_numbers = #tpu.dot_dimension_numbers<[1], [0], [0], [1], [0, 0, 1, 1], [], []>} : vector<144x128xbf16>, vector<128x128xbf16>, vector<144x128xf32> -> vector<144x128xf32>
    %113 = arith.addf %103, %112 : vector<144x128xf32>
    %114 = vector.extract_strided_slice %106 {offsets = [0, 0, 1, 0, 0], sizes = [3, 3, 1, 16, 128], strides = [1, 1, 1, 1, 1]} : vector<3x4x2x16x128xbf16> to vector<3x3x1x16x128xbf16>
    %115 = vector.shape_cast %114 : vector<3x3x1x16x128xbf16> to vector<3x3x16x128xbf16>
    %116 = vector.shape_cast %115 : vector<3x3x16x128xbf16> to vector<144x128xbf16>
    %c2_82 = arith.constant 2 : index
    %c1_83 = arith.constant 1 : index
    %c0_84 = arith.constant 0 : index
    %c0_85 = arith.constant 0 : index
    %117 = vector.load %arg3[%c2_82, %c1_83, %c0_84, %c0_85] : memref<4x4x128x128xbf16, #tpu.memory_space<vmem>>, vector<1x1x128x128xbf16>
    %118 = vector.shape_cast %117 : vector<1x1x128x128xbf16> to vector<128x128xbf16>
    %cst_86 = arith.constant dense<0.000000e+00> : vector<144x128xf32>
    %119 = tpu.matmul %116, %118, %cst_86 {dimension_numbers = #tpu.dot_dimension_numbers<[1], [0], [0], [1], [0, 0, 1, 1], [], []>} : vector<144x128xbf16>, vector<128x128xbf16>, vector<144x128xf32> -> vector<144x128xf32>
    %120 = arith.addf %113, %119 : vector<144x128xf32>
    %121 = vector.extract_strided_slice %106 {offsets = [0, 1, 0, 0, 0], sizes = [3, 3, 1, 16, 128], strides = [1, 1, 1, 1, 1]} : vector<3x4x2x16x128xbf16> to vector<3x3x1x16x128xbf16>
    %122 = vector.shape_cast %121 : vector<3x3x1x16x128xbf16> to vector<3x3x16x128xbf16>
    %123 = vector.shape_cast %122 : vector<3x3x16x128xbf16> to vector<144x128xbf16>
    %c2_87 = arith.constant 2 : index
    %c2_88 = arith.constant 2 : index
    %c0_89 = arith.constant 0 : index
    %c0_90 = arith.constant 0 : index
    %124 = vector.load %arg3[%c2_87, %c2_88, %c0_89, %c0_90] : memref<4x4x128x128xbf16, #tpu.memory_space<vmem>>, vector<1x1x128x128xbf16>
    %125 = vector.shape_cast %124 : vector<1x1x128x128xbf16> to vector<128x128xbf16>
    %cst_91 = arith.constant dense<0.000000e+00> : vector<144x128xf32>
    %126 = tpu.matmul %123, %125, %cst_91 {dimension_numbers = #tpu.dot_dimension_numbers<[1], [0], [0], [1], [0, 0, 1, 1], [], []>} : vector<144x128xbf16>, vector<128x128xbf16>, vector<144x128xf32> -> vector<144x128xf32>
    %127 = arith.addf %120, %126 : vector<144x128xf32>
    %128 = vector.extract_strided_slice %106 {offsets = [0, 1, 1, 0, 0], sizes = [3, 3, 1, 16, 128], strides = [1, 1, 1, 1, 1]} : vector<3x4x2x16x128xbf16> to vector<3x3x1x16x128xbf16>
    %129 = vector.shape_cast %128 : vector<3x3x1x16x128xbf16> to vector<3x3x16x128xbf16>
    %130 = vector.shape_cast %129 : vector<3x3x16x128xbf16> to vector<144x128xbf16>
    %c2_92 = arith.constant 2 : index
    %c3_93 = arith.constant 3 : index
    %c0_94 = arith.constant 0 : index
    %c0_95 = arith.constant 0 : index
    %131 = vector.load %arg3[%c2_92, %c3_93, %c0_94, %c0_95] : memref<4x4x128x128xbf16, #tpu.memory_space<vmem>>, vector<1x1x128x128xbf16>
    %132 = vector.shape_cast %131 : vector<1x1x128x128xbf16> to vector<128x128xbf16>
    %cst_96 = arith.constant dense<0.000000e+00> : vector<144x128xf32>
    %133 = tpu.matmul %130, %132, %cst_96 {dimension_numbers = #tpu.dot_dimension_numbers<[1], [0], [0], [1], [0, 0, 1, 1], [], []>} : vector<144x128xbf16>, vector<128x128xbf16>, vector<144x128xf32> -> vector<144x128xf32>
    %134 = arith.addf %127, %133 : vector<144x128xf32>
    %135 = vector.extract_strided_slice %41 {offsets = [1, 1, 0, 0, 0], sizes = [3, 1, 8, 16, 128], strides = [1, 1, 1, 1, 1]} : vector<4x2x8x16x128xbf16> to vector<3x1x8x16x128xbf16>
    %136 = vector.shape_cast %135 : vector<3x1x8x16x128xbf16> to vector<3x8x16x128xbf16>
    %137 = vector.shape_cast %136 : vector<3x8x16x128xbf16> to vector<3x4x2x16x128xbf16>
    %138 = vector.extract_strided_slice %137 {offsets = [0, 0, 0, 0, 0], sizes = [3, 3, 1, 16, 128], strides = [1, 1, 1, 1, 1]} : vector<3x4x2x16x128xbf16> to vector<3x3x1x16x128xbf16>
    %139 = vector.shape_cast %138 : vector<3x3x1x16x128xbf16> to vector<3x3x16x128xbf16>
    %140 = vector.shape_cast %139 : vector<3x3x16x128xbf16> to vector<144x128xbf16>
    %c3_97 = arith.constant 3 : index
    %c0_98 = arith.constant 0 : index
    %c0_99 = arith.constant 0 : index
    %c0_100 = arith.constant 0 : index
    %141 = vector.load %arg3[%c3_97, %c0_98, %c0_99, %c0_100] : memref<4x4x128x128xbf16, #tpu.memory_space<vmem>>, vector<1x1x128x128xbf16>
    %142 = vector.shape_cast %141 : vector<1x1x128x128xbf16> to vector<128x128xbf16>
    %cst_101 = arith.constant dense<0.000000e+00> : vector<144x128xf32>
    %143 = tpu.matmul %140, %142, %cst_101 {dimension_numbers = #tpu.dot_dimension_numbers<[1], [0], [0], [1], [0, 0, 1, 1], [], []>} : vector<144x128xbf16>, vector<128x128xbf16>, vector<144x128xf32> -> vector<144x128xf32>
    %144 = arith.addf %134, %143 : vector<144x128xf32>
    %145 = vector.extract_strided_slice %137 {offsets = [0, 0, 1, 0, 0], sizes = [3, 3, 1, 16, 128], strides = [1, 1, 1, 1, 1]} : vector<3x4x2x16x128xbf16> to vector<3x3x1x16x128xbf16>
    %146 = vector.shape_cast %145 : vector<3x3x1x16x128xbf16> to vector<3x3x16x128xbf16>
    %147 = vector.shape_cast %146 : vector<3x3x16x128xbf16> to vector<144x128xbf16>
    %c3_102 = arith.constant 3 : index
    %c1_103 = arith.constant 1 : index
    %c0_104 = arith.constant 0 : index
    %c0_105 = arith.constant 0 : index
    %148 = vector.load %arg3[%c3_102, %c1_103, %c0_104, %c0_105] : memref<4x4x128x128xbf16, #tpu.memory_space<vmem>>, vector<1x1x128x128xbf16>
    %149 = vector.shape_cast %148 : vector<1x1x128x128xbf16> to vector<128x128xbf16>
    %cst_106 = arith.constant dense<0.000000e+00> : vector<144x128xf32>
    %150 = tpu.matmul %147, %149, %cst_106 {dimension_numbers = #tpu.dot_dimension_numbers<[1], [0], [0], [1], [0, 0, 1, 1], [], []>} : vector<144x128xbf16>, vector<128x128xbf16>, vector<144x128xf32> -> vector<144x128xf32>
    %151 = arith.addf %144, %150 : vector<144x128xf32>
    %152 = vector.extract_strided_slice %137 {offsets = [0, 1, 0, 0, 0], sizes = [3, 3, 1, 16, 128], strides = [1, 1, 1, 1, 1]} : vector<3x4x2x16x128xbf16> to vector<3x3x1x16x128xbf16>
    %153 = vector.shape_cast %152 : vector<3x3x1x16x128xbf16> to vector<3x3x16x128xbf16>
    %154 = vector.shape_cast %153 : vector<3x3x16x128xbf16> to vector<144x128xbf16>
    %c3_107 = arith.constant 3 : index
    %c2_108 = arith.constant 2 : index
    %c0_109 = arith.constant 0 : index
    %c0_110 = arith.constant 0 : index
    %155 = vector.load %arg3[%c3_107, %c2_108, %c0_109, %c0_110] : memref<4x4x128x128xbf16, #tpu.memory_space<vmem>>, vector<1x1x128x128xbf16>
    %156 = vector.shape_cast %155 : vector<1x1x128x128xbf16> to vector<128x128xbf16>
    %cst_111 = arith.constant dense<0.000000e+00> : vector<144x128xf32>
    %157 = tpu.matmul %154, %156, %cst_111 {dimension_numbers = #tpu.dot_dimension_numbers<[1], [0], [0], [1], [0, 0, 1, 1], [], []>} : vector<144x128xbf16>, vector<128x128xbf16>, vector<144x128xf32> -> vector<144x128xf32>
    %158 = arith.addf %151, %157 : vector<144x128xf32>
    %159 = vector.extract_strided_slice %137 {offsets = [0, 1, 1, 0, 0], sizes = [3, 3, 1, 16, 128], strides = [1, 1, 1, 1, 1]} : vector<3x4x2x16x128xbf16> to vector<3x3x1x16x128xbf16>
    %160 = vector.shape_cast %159 : vector<3x3x1x16x128xbf16> to vector<3x3x16x128xbf16>
    %161 = vector.shape_cast %160 : vector<3x3x16x128xbf16> to vector<144x128xbf16>
    %c3_112 = arith.constant 3 : index
    %c3_113 = arith.constant 3 : index
    %c0_114 = arith.constant 0 : index
    %c0_115 = arith.constant 0 : index
    %162 = vector.load %arg3[%c3_112, %c3_113, %c0_114, %c0_115] : memref<4x4x128x128xbf16, #tpu.memory_space<vmem>>, vector<1x1x128x128xbf16>
    %163 = vector.shape_cast %162 : vector<1x1x128x128xbf16> to vector<128x128xbf16>
    %cst_116 = arith.constant dense<0.000000e+00> : vector<144x128xf32>
    %164 = tpu.matmul %161, %163, %cst_116 {dimension_numbers = #tpu.dot_dimension_numbers<[1], [0], [0], [1], [0, 0, 1, 1], [], []>} : vector<144x128xbf16>, vector<128x128xbf16>, vector<144x128xf32> -> vector<144x128xf32>
    %165 = arith.addf %158, %164 : vector<144x128xf32>
    %c1_117 = arith.constant 1 : index
    %c0_118 = arith.constant 0 : index
    %c0_119 = arith.constant 0 : index
    %166 = vector.load %arg7[%c1_117, %c0_118, %c0_119] : memref<4x8x128xf32, #tpu.memory_space<vmem>>, vector<1x8x128xf32>
    %167 = vector.shape_cast %166 : vector<1x8x128xf32> to vector<8x128xf32>
    %168 = vector.extract_strided_slice %167 {offsets = [0, 0], sizes = [1, 128], strides = [1, 1]} : vector<8x128xf32> to vector<1x128xf32>
    %169 = vector.broadcast %168 : vector<1x128xf32> to vector<144x128xf32>
    %170 = arith.addf %165, %169 : vector<144x128xf32>
    %cst_120 = arith.constant 0.000000e+00 : f32
    %171 = vector.broadcast %cst_120 : f32 to vector<144x128xf32>
    %172 = arith.maximumf %170, %171 : vector<144x128xf32>
    %173 = vector.extract_strided_slice %167 {offsets = [1, 0], sizes = [1, 128], strides = [1, 1]} : vector<8x128xf32> to vector<1x128xf32>
    %174 = vector.broadcast %173 : vector<1x128xf32> to vector<144x128xf32>
    %175 = arith.mulf %172, %174 : vector<144x128xf32>
    %176 = vector.extract_strided_slice %167 {offsets = [2, 0], sizes = [1, 128], strides = [1, 1]} : vector<8x128xf32> to vector<1x128xf32>
    %177 = vector.broadcast %176 : vector<1x128xf32> to vector<144x128xf32>
    %178 = arith.addf %175, %177 : vector<144x128xf32>
    %179 = arith.truncf %178 : vector<144x128xf32> to vector<144x128xbf16>
    %180 = vector.shape_cast %179 : vector<144x128xbf16> to vector<3x3x16x128xbf16>
    %cst_121 = arith.constant 0.000000e+00 : f32
    %181 = vector.broadcast %cst_121 : f32 to vector<16x128xf32>
    %182 = vector.extract_strided_slice %180 {offsets = [0, 0, 0, 0], sizes = [1, 1, 16, 128], strides = [1, 1, 1, 1]} : vector<3x3x16x128xbf16> to vector<1x1x16x128xbf16>
    %183 = vector.shape_cast %182 : vector<1x1x16x128xbf16> to vector<16x128xbf16>
    %c0_122 = arith.constant 0 : index
    %c0_123 = arith.constant 0 : index
    %c0_124 = arith.constant 0 : index
    %c0_125 = arith.constant 0 : index
    %184 = vector.load %arg4[%c0_122, %c0_123, %c0_124, %c0_125] : memref<3x3x128x128xbf16, #tpu.memory_space<vmem>>, vector<1x1x128x128xbf16>
    %185 = vector.shape_cast %184 : vector<1x1x128x128xbf16> to vector<128x128xbf16>
    %cst_126 = arith.constant dense<0.000000e+00> : vector<16x128xf32>
    %186 = tpu.matmul %183, %185, %cst_126 {dimension_numbers = #tpu.dot_dimension_numbers<[1], [0], [0], [1], [0, 0, 1, 1], [], []>} : vector<16x128xbf16>, vector<128x128xbf16>, vector<16x128xf32> -> vector<16x128xf32>
    %187 = arith.addf %181, %186 : vector<16x128xf32>
    %188 = vector.extract_strided_slice %180 {offsets = [0, 1, 0, 0], sizes = [1, 1, 16, 128], strides = [1, 1, 1, 1]} : vector<3x3x16x128xbf16> to vector<1x1x16x128xbf16>
    %189 = vector.shape_cast %188 : vector<1x1x16x128xbf16> to vector<16x128xbf16>
    %c0_127 = arith.constant 0 : index
    %c1_128 = arith.constant 1 : index
    %c0_129 = arith.constant 0 : index
    %c0_130 = arith.constant 0 : index
    %190 = vector.load %arg4[%c0_127, %c1_128, %c0_129, %c0_130] : memref<3x3x128x128xbf16, #tpu.memory_space<vmem>>, vector<1x1x128x128xbf16>
    %191 = vector.shape_cast %190 : vector<1x1x128x128xbf16> to vector<128x128xbf16>
    %cst_131 = arith.constant dense<0.000000e+00> : vector<16x128xf32>
    %192 = tpu.matmul %189, %191, %cst_131 {dimension_numbers = #tpu.dot_dimension_numbers<[1], [0], [0], [1], [0, 0, 1, 1], [], []>} : vector<16x128xbf16>, vector<128x128xbf16>, vector<16x128xf32> -> vector<16x128xf32>
    %193 = arith.addf %187, %192 : vector<16x128xf32>
    %194 = vector.extract_strided_slice %180 {offsets = [0, 2, 0, 0], sizes = [1, 1, 16, 128], strides = [1, 1, 1, 1]} : vector<3x3x16x128xbf16> to vector<1x1x16x128xbf16>
    %195 = vector.shape_cast %194 : vector<1x1x16x128xbf16> to vector<16x128xbf16>
    %c0_132 = arith.constant 0 : index
    %c2_133 = arith.constant 2 : index
    %c0_134 = arith.constant 0 : index
    %c0_135 = arith.constant 0 : index
    %196 = vector.load %arg4[%c0_132, %c2_133, %c0_134, %c0_135] : memref<3x3x128x128xbf16, #tpu.memory_space<vmem>>, vector<1x1x128x128xbf16>
    %197 = vector.shape_cast %196 : vector<1x1x128x128xbf16> to vector<128x128xbf16>
    %cst_136 = arith.constant dense<0.000000e+00> : vector<16x128xf32>
    %198 = tpu.matmul %195, %197, %cst_136 {dimension_numbers = #tpu.dot_dimension_numbers<[1], [0], [0], [1], [0, 0, 1, 1], [], []>} : vector<16x128xbf16>, vector<128x128xbf16>, vector<16x128xf32> -> vector<16x128xf32>
    %199 = arith.addf %193, %198 : vector<16x128xf32>
    %200 = vector.extract_strided_slice %180 {offsets = [1, 0, 0, 0], sizes = [1, 1, 16, 128], strides = [1, 1, 1, 1]} : vector<3x3x16x128xbf16> to vector<1x1x16x128xbf16>
    %201 = vector.shape_cast %200 : vector<1x1x16x128xbf16> to vector<16x128xbf16>
    %c1_137 = arith.constant 1 : index
    %c0_138 = arith.constant 0 : index
    %c0_139 = arith.constant 0 : index
    %c0_140 = arith.constant 0 : index
    %202 = vector.load %arg4[%c1_137, %c0_138, %c0_139, %c0_140] : memref<3x3x128x128xbf16, #tpu.memory_space<vmem>>, vector<1x1x128x128xbf16>
    %203 = vector.shape_cast %202 : vector<1x1x128x128xbf16> to vector<128x128xbf16>
    %cst_141 = arith.constant dense<0.000000e+00> : vector<16x128xf32>
    %204 = tpu.matmul %201, %203, %cst_141 {dimension_numbers = #tpu.dot_dimension_numbers<[1], [0], [0], [1], [0, 0, 1, 1], [], []>} : vector<16x128xbf16>, vector<128x128xbf16>, vector<16x128xf32> -> vector<16x128xf32>
    %205 = arith.addf %199, %204 : vector<16x128xf32>
    %206 = vector.extract_strided_slice %180 {offsets = [1, 1, 0, 0], sizes = [1, 1, 16, 128], strides = [1, 1, 1, 1]} : vector<3x3x16x128xbf16> to vector<1x1x16x128xbf16>
    %207 = vector.shape_cast %206 : vector<1x1x16x128xbf16> to vector<16x128xbf16>
    %c1_142 = arith.constant 1 : index
    %c1_143 = arith.constant 1 : index
    %c0_144 = arith.constant 0 : index
    %c0_145 = arith.constant 0 : index
    %208 = vector.load %arg4[%c1_142, %c1_143, %c0_144, %c0_145] : memref<3x3x128x128xbf16, #tpu.memory_space<vmem>>, vector<1x1x128x128xbf16>
    %209 = vector.shape_cast %208 : vector<1x1x128x128xbf16> to vector<128x128xbf16>
    %cst_146 = arith.constant dense<0.000000e+00> : vector<16x128xf32>
    %210 = tpu.matmul %207, %209, %cst_146 {dimension_numbers = #tpu.dot_dimension_numbers<[1], [0], [0], [1], [0, 0, 1, 1], [], []>} : vector<16x128xbf16>, vector<128x128xbf16>, vector<16x128xf32> -> vector<16x128xf32>
    %211 = arith.addf %205, %210 : vector<16x128xf32>
    %212 = vector.extract_strided_slice %180 {offsets = [1, 2, 0, 0], sizes = [1, 1, 16, 128], strides = [1, 1, 1, 1]} : vector<3x3x16x128xbf16> to vector<1x1x16x128xbf16>
    %213 = vector.shape_cast %212 : vector<1x1x16x128xbf16> to vector<16x128xbf16>
    %c1_147 = arith.constant 1 : index
    %c2_148 = arith.constant 2 : index
    %c0_149 = arith.constant 0 : index
    %c0_150 = arith.constant 0 : index
    %214 = vector.load %arg4[%c1_147, %c2_148, %c0_149, %c0_150] : memref<3x3x128x128xbf16, #tpu.memory_space<vmem>>, vector<1x1x128x128xbf16>
    %215 = vector.shape_cast %214 : vector<1x1x128x128xbf16> to vector<128x128xbf16>
    %cst_151 = arith.constant dense<0.000000e+00> : vector<16x128xf32>
    %216 = tpu.matmul %213, %215, %cst_151 {dimension_numbers = #tpu.dot_dimension_numbers<[1], [0], [0], [1], [0, 0, 1, 1], [], []>} : vector<16x128xbf16>, vector<128x128xbf16>, vector<16x128xf32> -> vector<16x128xf32>
    %217 = arith.addf %211, %216 : vector<16x128xf32>
    %218 = vector.extract_strided_slice %180 {offsets = [2, 0, 0, 0], sizes = [1, 1, 16, 128], strides = [1, 1, 1, 1]} : vector<3x3x16x128xbf16> to vector<1x1x16x128xbf16>
    %219 = vector.shape_cast %218 : vector<1x1x16x128xbf16> to vector<16x128xbf16>
    %c2_152 = arith.constant 2 : index
    %c0_153 = arith.constant 0 : index
    %c0_154 = arith.constant 0 : index
    %c0_155 = arith.constant 0 : index
    %220 = vector.load %arg4[%c2_152, %c0_153, %c0_154, %c0_155] : memref<3x3x128x128xbf16, #tpu.memory_space<vmem>>, vector<1x1x128x128xbf16>
    %221 = vector.shape_cast %220 : vector<1x1x128x128xbf16> to vector<128x128xbf16>
    %cst_156 = arith.constant dense<0.000000e+00> : vector<16x128xf32>
    %222 = tpu.matmul %219, %221, %cst_156 {dimension_numbers = #tpu.dot_dimension_numbers<[1], [0], [0], [1], [0, 0, 1, 1], [], []>} : vector<16x128xbf16>, vector<128x128xbf16>, vector<16x128xf32> -> vector<16x128xf32>
    %223 = arith.addf %217, %222 : vector<16x128xf32>
    %224 = vector.extract_strided_slice %180 {offsets = [2, 1, 0, 0], sizes = [1, 1, 16, 128], strides = [1, 1, 1, 1]} : vector<3x3x16x128xbf16> to vector<1x1x16x128xbf16>
    %225 = vector.shape_cast %224 : vector<1x1x16x128xbf16> to vector<16x128xbf16>
    %c2_157 = arith.constant 2 : index
    %c1_158 = arith.constant 1 : index
    %c0_159 = arith.constant 0 : index
    %c0_160 = arith.constant 0 : index
    %226 = vector.load %arg4[%c2_157, %c1_158, %c0_159, %c0_160] : memref<3x3x128x128xbf16, #tpu.memory_space<vmem>>, vector<1x1x128x128xbf16>
    %227 = vector.shape_cast %226 : vector<1x1x128x128xbf16> to vector<128x128xbf16>
    %cst_161 = arith.constant dense<0.000000e+00> : vector<16x128xf32>
    %228 = tpu.matmul %225, %227, %cst_161 {dimension_numbers = #tpu.dot_dimension_numbers<[1], [0], [0], [1], [0, 0, 1, 1], [], []>} : vector<16x128xbf16>, vector<128x128xbf16>, vector<16x128xf32> -> vector<16x128xf32>
    %229 = arith.addf %223, %228 : vector<16x128xf32>
    %230 = vector.extract_strided_slice %180 {offsets = [2, 2, 0, 0], sizes = [1, 1, 16, 128], strides = [1, 1, 1, 1]} : vector<3x3x16x128xbf16> to vector<1x1x16x128xbf16>
    %231 = vector.shape_cast %230 : vector<1x1x16x128xbf16> to vector<16x128xbf16>
    %c2_162 = arith.constant 2 : index
    %c2_163 = arith.constant 2 : index
    %c0_164 = arith.constant 0 : index
    %c0_165 = arith.constant 0 : index
    %232 = vector.load %arg4[%c2_162, %c2_163, %c0_164, %c0_165] : memref<3x3x128x128xbf16, #tpu.memory_space<vmem>>, vector<1x1x128x128xbf16>
    %233 = vector.shape_cast %232 : vector<1x1x128x128xbf16> to vector<128x128xbf16>
    %cst_166 = arith.constant dense<0.000000e+00> : vector<16x128xf32>
    %234 = tpu.matmul %231, %233, %cst_166 {dimension_numbers = #tpu.dot_dimension_numbers<[1], [0], [0], [1], [0, 0, 1, 1], [], []>} : vector<16x128xbf16>, vector<128x128xbf16>, vector<16x128xf32> -> vector<16x128xf32>
    %235 = arith.addf %229, %234 : vector<16x128xf32>
    %c2_167 = arith.constant 2 : index
    %c0_168 = arith.constant 0 : index
    %c0_169 = arith.constant 0 : index
    %236 = vector.load %arg7[%c2_167, %c0_168, %c0_169] : memref<4x8x128xf32, #tpu.memory_space<vmem>>, vector<1x8x128xf32>
    %237 = vector.shape_cast %236 : vector<1x8x128xf32> to vector<8x128xf32>
    %238 = vector.extract_strided_slice %237 {offsets = [0, 0], sizes = [1, 128], strides = [1, 1]} : vector<8x128xf32> to vector<1x128xf32>
    %239 = vector.broadcast %238 : vector<1x128xf32> to vector<16x128xf32>
    %240 = arith.addf %235, %239 : vector<16x128xf32>
    %cst_170 = arith.constant 0.000000e+00 : f32
    %241 = vector.broadcast %cst_170 : f32 to vector<16x128xf32>
    %242 = arith.maximumf %240, %241 : vector<16x128xf32>
    %243 = vector.extract_strided_slice %237 {offsets = [1, 0], sizes = [1, 128], strides = [1, 1]} : vector<8x128xf32> to vector<1x128xf32>
    %244 = vector.broadcast %243 : vector<1x128xf32> to vector<16x128xf32>
    %245 = arith.mulf %242, %244 : vector<16x128xf32>
    %246 = vector.extract_strided_slice %237 {offsets = [2, 0], sizes = [1, 128], strides = [1, 1]} : vector<8x128xf32> to vector<1x128xf32>
    %247 = vector.broadcast %246 : vector<1x128xf32> to vector<16x128xf32>
    %248 = arith.addf %245, %247 : vector<16x128xf32>
    %249 = arith.truncf %248 : vector<16x128xf32> to vector<16x128xbf16>
    %250 = vector.shape_cast %249 : vector<16x128xbf16> to vector<1x1x16x128xbf16>
    %c3_171 = arith.constant 3 : index
    %c0_172 = arith.constant 0 : index
    %c0_173 = arith.constant 0 : index
    %251 = vector.load %arg7[%c3_171, %c0_172, %c0_173] : memref<4x8x128xf32, #tpu.memory_space<vmem>>, vector<1x8x128xf32>
    %252 = vector.shape_cast %251 : vector<1x8x128xf32> to vector<8x128xf32>
    %cst_174 = arith.constant 0.000000e+00 : f32
    %253 = vector.broadcast %cst_174 : f32 to vector<16x128xf32>
    %254 = vector.shape_cast %250 : vector<1x1x16x128xbf16> to vector<16x128xbf16>
    %c0_175 = arith.constant 0 : index
    %c0_176 = arith.constant 0 : index
    %c0_177 = arith.constant 0 : index
    %255 = vector.load %arg5[%c0_175, %c0_176, %c0_177] : memref<1x128x128xbf16, #tpu.memory_space<vmem>>, vector<1x128x128xbf16>
    %256 = vector.shape_cast %255 : vector<1x128x128xbf16> to vector<128x128xbf16>
    %cst_178 = arith.constant dense<0.000000e+00> : vector<16x128xf32>
    %257 = tpu.matmul %254, %256, %cst_178 {dimension_numbers = #tpu.dot_dimension_numbers<[1], [0], [0], [1], [0, 0, 1, 1], [], []>} : vector<16x128xbf16>, vector<128x128xbf16>, vector<16x128xf32> -> vector<16x128xf32>
    %258 = arith.addf %253, %257 : vector<16x128xf32>
    %259 = vector.extract_strided_slice %252 {offsets = [0, 0], sizes = [1, 128], strides = [1, 1]} : vector<8x128xf32> to vector<1x128xf32>
    %260 = vector.broadcast %259 : vector<1x128xf32> to vector<16x128xf32>
    %261 = arith.addf %258, %260 : vector<16x128xf32>
    %cst_179 = arith.constant 0.000000e+00 : f32
    %262 = vector.broadcast %cst_179 : f32 to vector<16x128xf32>
    %263 = arith.maximumf %261, %262 : vector<16x128xf32>
    %264 = arith.truncf %263 : vector<16x128xf32> to vector<16x128xbf16>
    %c0_180 = arith.constant 0 : index
    %c0_181 = arith.constant 0 : index
    %265 = vector.load %arg6[%c0_180, %c0_181] : memref<128x128xbf16, #tpu.memory_space<vmem>>, vector<128x128xbf16>
    %cst_182 = arith.constant dense<0.000000e+00> : vector<16x128xf32>
    %266 = tpu.matmul %264, %265, %cst_182 {dimension_numbers = #tpu.dot_dimension_numbers<[1], [0], [0], [1], [0, 0, 1, 1], [], []>} : vector<16x128xbf16>, vector<128x128xbf16>, vector<16x128xf32> -> vector<16x128xf32>
    %267 = vector.extract_strided_slice %252 {offsets = [1, 0], sizes = [1, 128], strides = [1, 1]} : vector<8x128xf32> to vector<1x128xf32>
    %268 = vector.broadcast %267 : vector<1x128xf32> to vector<16x128xf32>
    %269 = arith.addf %266, %268 : vector<16x128xf32>
    %c0_183 = arith.constant 0 : index
    %c0_184 = arith.constant 0 : index
    %270 = vector.load %arg8[%c0_183, %c0_184] : memref<16x128xf32, #tpu.memory_space<vmem>>, vector<16x128xf32>
    tpu.vector_store %arg8[%c0_183, %c0_184], %269 {strides = array<i32>} : memref<16x128xf32, #tpu.memory_space<vmem>>, vector<16x128xf32>,
    return
  }
  func.func @transform_0(%arg0: i32) -> (i32, i32, i32, i32) {
    %c0_i32 = arith.constant 0 : i32
    %c0_i32_0 = arith.constant 0 : i32
    %c0_i32_1 = arith.constant 0 : i32
    %c0_i32_2 = arith.constant 0 : i32
    return %c0_i32, %c0_i32_0, %arg0, %c0_i32_1 : i32, i32, i32, i32
  }
  func.func @transform_1(%arg0: i32) -> (i32, i32, i32, i32) {
    %c0_i32 = arith.constant 0 : i32
    %c0_i32_0 = arith.constant 0 : i32
    %c0_i32_1 = arith.constant 0 : i32
    %c0_i32_2 = arith.constant 0 : i32
    %c0_i32_3 = arith.constant 0 : i32
    return %c0_i32, %c0_i32_0, %c0_i32_1, %c0_i32_2 : i32, i32, i32, i32
  }
  func.func @transform_2(%arg0: i32) -> (i32, i32, i32, i32) {
    %c0_i32 = arith.constant 0 : i32
    %c0_i32_0 = arith.constant 0 : i32
    %c0_i32_1 = arith.constant 0 : i32
    %c0_i32_2 = arith.constant 0 : i32
    %c0_i32_3 = arith.constant 0 : i32
    return %c0_i32, %c0_i32_0, %c0_i32_1, %c0_i32_2 : i32, i32, i32, i32
  }
  func.func @transform_3(%arg0: i32) -> (i32, i32, i32, i32) {
    %c0_i32 = arith.constant 0 : i32
    %c0_i32_0 = arith.constant 0 : i32
    %c0_i32_1 = arith.constant 0 : i32
    %c0_i32_2 = arith.constant 0 : i32
    %c0_i32_3 = arith.constant 0 : i32
    return %c0_i32, %c0_i32_0, %c0_i32_1, %c0_i32_2 : i32, i32, i32, i32
  }
  func.func @transform_4(%arg0: i32) -> (i32, i32, i32) {
    %c0_i32 = arith.constant 0 : i32
    %c0_i32_0 = arith.constant 0 : i32
    %c0_i32_1 = arith.constant 0 : i32
    %c0_i32_2 = arith.constant 0 : i32
    return %c0_i32, %c0_i32_0, %c0_i32_1 : i32, i32, i32
  }
  func.func @transform_5(%arg0: i32) -> (i32, i32) {
    %c0_i32 = arith.constant 0 : i32
    %c0_i32_0 = arith.constant 0 : i32
    %c0_i32_1 = arith.constant 0 : i32
    return %c0_i32, %c0_i32_0 : i32, i32
  }
  func.func @transform_6(%arg0: i32) -> (i32, i32, i32) {
    %c0_i32 = arith.constant 0 : i32
    %c0_i32_0 = arith.constant 0 : i32
    %c0_i32_1 = arith.constant 0 : i32
    %c0_i32_2 = arith.constant 0 : i32
    return %c0_i32, %c0_i32_0, %c0_i32_1 : i32, i32, i32
  }
  func.func @transform_7(%arg0: i32) -> (i32, i32) {
    %c0_i32 = arith.constant 0 : i32
    %c0_i32_0 = arith.constant 0 : i32
    return %arg0, %c0_i32 : i32, i32
  }
}

</mosaic_0001>

<llo_original>
// kernel: nature_cnn_forward.1
$region0: #{nature_cnn_forward.1}
  #allocation0 [shape = 'u32[]', space=smem, size = 0x4, offset = 0x4, fixed_abs, tag = 'smem constant byte address 0x4 - core index']
  #allocation1 [shape = 'u32[144,128]{1,0:T(1,128)}', space=vmem, size = 0x12000, scoped, tag = 'internal scratch']
  %s0 = inlined_call_operand.vmem [shape: bf16[9,9,16,128], index: 0, kind: input, shape index: {}]
  %s1 = inlined_call_operand.vmem [shape: bf16[2,2,128,128], index: 1, kind: input, shape index: {}]
  %s2 = inlined_call_operand.vmem [shape: bf16[4,4,128,128], index: 2, kind: input, shape index: {}]
  %s3 = inlined_call_operand.vmem [shape: bf16[3,3,128,128], index: 3, kind: input, shape index: {}]
  %s4 = inlined_call_operand.vmem [shape: bf16[1,128,128], index: 4, kind: input, shape index: {}]
  %s5 = inlined_call_operand.vmem [shape: bf16[128,128], index: 5, kind: input, shape index: {}]
  %s6 = inlined_call_operand.vmem [shape: f32[4,8,128], index: 6, kind: input, shape index: {}]
  %s7 = inlined_call_operand.vmem [shape: f32[16,128], index: 7, kind: output, shape index: {}]
  %s8 = sld [smem:[#allocation0]]
  $region38: #{nature_cnn_forward.1} parent=0
    _
  %s10 = ssub.s32 1, %s8
  %s11 = scalar_select 0, %s10, %s8
  // Predicated region
  $region2: #{nature_cnn_forward.1} parent=0 // pred_check
    _
  $region3: #{nature_cnn_forward.1} parent=0 // pred_check_branch
    %13 = sbr.rel (0) target = $region5
  $region4: #{nature_cnn_forward.1} parent=0 // pred_region
    _
  $region5: #{nature_cnn_forward.1} parent=0 // pred_fallthru
    _
  // Predicated region
  $region6: #{nature_cnn_forward.1} parent=0 // pred_check
    _
  $region7: #{nature_cnn_forward.1} parent=0 // pred_check_branch
    %15 = sbr.rel (0) target = $region9
  $region8: #{nature_cnn_forward.1} parent=0 // pred_region
    _
  $region9: #{nature_cnn_forward.1} parent=0 // pred_fallthru
    _
  // Predicated region
  $region10: #{nature_cnn_forward.1} parent=0 // pred_check
    _
  $region11: #{nature_cnn_forward.1} parent=0 // pred_check_branch
    %17 = sbr.rel (0) target = $region13
  $region12: #{nature_cnn_forward.1} parent=0 // pred_region
    _
  $region13: #{nature_cnn_forward.1} parent=0 // pred_fallthru
    _
  // Predicated region
  $region14: #{nature_cnn_forward.1} parent=0 // pred_check
    _
  $region15: #{nature_cnn_forward.1} parent=0 // pred_check_branch
    %19 = sbr.rel (0) target = $region17
  $region16: #{nature_cnn_forward.1} parent=0 // pred_region
    _
  $region17: #{nature_cnn_forward.1} parent=0 // pred_fallthru
    _
  // Predicated region
  $region18: #{nature_cnn_forward.1} parent=0 // pred_check
    _
  $region19: #{nature_cnn_forward.1} parent=0 // pred_check_branch
    %21 = sbr.rel (0) target = $region21
  $region20: #{nature_cnn_forward.1} parent=0 // pred_region
    _
  $region21: #{nature_cnn_forward.1} parent=0 // pred_fallthru
    _
  // Predicated region
  $region22: #{nature_cnn_forward.1} parent=0 // pred_check
    _
  $region23: #{nature_cnn_forward.1} parent=0 // pred_check_branch
    %23 = sbr.rel (0) target = $region25
  $region24: #{nature_cnn_forward.1} parent=0 // pred_region
    _
  $region25: #{nature_cnn_forward.1} parent=0 // pred_fallthru
    _
  // Predicated region
  $region26: #{nature_cnn_forward.1} parent=0 // pred_check
    _
  $region27: #{nature_cnn_forward.1} parent=0 // pred_check_branch
    %25 = sbr.rel (0) target = $region29
  $region28: #{nature_cnn_forward.1} parent=0 // pred_region
    _
  $region29: #{nature_cnn_forward.1} parent=0 // pred_fallthru
    _
  %v27 = vld [vmem:[%s0] sm:$0xf]
  %v28 = vld [vmem:[%s0 + $0x4] sm:$0xf]
  %v29 = vld [vmem:[%s0 + $0x8] sm:$0xf]
  %v30 = vld [vmem:[%s0 + $0xc] sm:$0xf]
  %v31 = vld [vmem:[%s0 + $0x10] sm:$0xf]
  %v32 = vld [vmem:[%s0 + $0x14] sm:$0xf]
  %v33 = vld [vmem:[%s0 + $0x18] sm:$0xf]
  %v34 = vld [vmem:[%s0 + $0x1c] sm:$0xf]
  %v35 = vld [vmem:[%s0 + $0x20] sm:$0xf]
  %v36 = vld [vmem:[%s0 + $0x24] sm:$0xf]
  %v37 = vld [vmem:[%s0 + $0x28] sm:$0xf]
  %v38 = vld [vmem:[%s0 + $0x2c] sm:$0xf]
  %v39 = vld [vmem:[%s0 + $0x30] sm:$0xf]
  %v40 = vld [vmem:[%s0 + $0x34] sm:$0xf]
  %v41 = vld [vmem:[%s0 + $0x38] sm:$0xf]
  %v42 = vld [vmem:[%s0 + $0x3c] sm:$0xf]
  %v43 = vld [vmem:[%s0 + $0x48] sm:$0xf]
  %v44 = vld [vmem:[%s0 + $0x4c] sm:$0xf]
  %v45 = vld [vmem:[%s0 + $0x50] sm:$0xf]
  %v46 = vld [vmem:[%s0 + $0x54] sm:$0xf]
  %v47 = vld [vmem:[%s0 + $0x58] sm:$0xf]
  %v48 = vld [vmem:[%s0 + $0x5c] sm:$0xf]
  %v49 = vld [vmem:[%s0 + $0x60] sm:$0xf]
  %v50 = vld [vmem:[%s0 + $0x64] sm:$0xf]
  %v51 = vld [vmem:[%s0 + $0x68] sm:$0xf]
  %v52 = vld [vmem:[%s0 + $0x6c] sm:$0xf]
  %v53 = vld [vmem:[%s0 + $0x70] sm:$0xf]
  %v54 = vld [vmem:[%s0 + $0x74] sm:$0xf]
  %v55 = vld [vmem:[%s0 + $0x78] sm:$0xf]
  %v56 = vld [vmem:[%s0 + $0x7c] sm:$0xf]
  %v57 = vld [vmem:[%s0 + $0x80] sm:$0xf]
  %v58 = vld [vmem:[%s0 + $0x84] sm:$0xf]
  %v59 = vld [vmem:[%s0 + $0x90] sm:$0xf]
  %v60 = vld [vmem:[%s0 + $0x94] sm:$0xf]
  %v61 = vld [vmem:[%s0 + $0x98] sm:$0xf]
  %v62 = vld [vmem:[%s0 + $0x9c] sm:$0xf]
  %v63 = vld [vmem:[%s0 + $0xa0] sm:$0xf]
  %v64 = vld [vmem:[%s0 + $0xa4] sm:$0xf]
  %v65 = vld [vmem:[%s0 + $0xa8] sm:$0xf]
  %v66 = vld [vmem:[%s0 + $0xac] sm:$0xf]
  %v67 = vld [vmem:[%s0 + $0xb0] sm:$0xf]
  %v68 = vld [vmem:[%s0 + $0xb4] sm:$0xf]
  %v69 = vld [vmem:[%s0 + $0xb8] sm:$0xf]
  %v70 = vld [vmem:[%s0 + $0xbc] sm:$0xf]
  %v71 = vld [vmem:[%s0 + $0xc0] sm:$0xf]
  %v72 = vld [vmem:[%s0 + $0xc4] sm:$0xf]
  %v73 = vld [vmem:[%s0 + $0xc8] sm:$0xf]
  %v74 = vld [vmem:[%s0 + $0xcc] sm:$0xf]
  %v75 = vld [vmem:[%s0 + $0xd8] sm:$0xf]
  %v76 = vld [vmem:[%s0 + $0xdc] sm:$0xf]
  %v77 = vld [vmem:[%s0 + $0xe0] sm:$0xf]
  %v78 = vld [vmem:[%s0 + $0xe4] sm:$0xf]
  %v79 = vld [vmem:[%s0 + $0xe8] sm:$0xf]
  %v80 = vld [vmem:[%s0 + $0xec] sm:$0xf]
  %v81 = vld [vmem:[%s0 + $0xf0] sm:$0xf]
  %v82 = vld [vmem:[%s0 + $0xf4] sm:$0xf]
  %v83 = vld [vmem:[%s0 + $0xf8] sm:$0xf]
  %v84 = vld [vmem:[%s0 + $0xfc] sm:$0xf]
  %v85 = vld [vmem:[%s0 + $0x100] sm:$0xf]
  %v86 = vld [vmem:[%s0 + $0x104] sm:$0xf]
  %v87 = vld [vmem:[%s0 + $0x108] sm:$0xf]
  %v88 = vld [vmem:[%s0 + $0x10c] sm:$0xf]
  %v89 = vld [vmem:[%s0 + $0x110] sm:$0xf]
  %v90 = vld [vmem:[%s0 + $0x114] sm:$0xf]
  %v91 = vld [vmem:[%s0 + $0x120] sm:$0xf]
  %v92 = vld [vmem:[%s0 + $0x124] sm:$0xf]
  %v93 = vld [vmem:[%s0 + $0x128] sm:$0xf]
  %v94 = vld [vmem:[%s0 + $0x12c] sm:$0xf]
  %v95 = vld [vmem:[%s0 + $0x130] sm:$0xf]
  %v96 = vld [vmem:[%s0 + $0x134] sm:$0xf]
  %v97 = vld [vmem:[%s0 + $0x138] sm:$0xf]
  %v98 = vld [vmem:[%s0 + $0x13c] sm:$0xf]
  %v99 = vld [vmem:[%s0 + $0x140] sm:$0xf]
  %v100 = vld [vmem:[%s0 + $0x144] sm:$0xf]
  %v101 = vld [vmem:[%s0 + $0x148] sm:$0xf]
  %v102 = vld [vmem:[%s0 + $0x14c] sm:$0xf]
  %v103 = vld [vmem:[%s0 + $0x150] sm:$0xf]
  %v104 = vld [vmem:[%s0 + $0x154] sm:$0xf]
  %v105 = vld [vmem:[%s0 + $0x158] sm:$0xf]
  %v106 = vld [vmem:[%s0 + $0x15c] sm:$0xf]
  %v107 = vld [vmem:[%s0 + $0x168] sm:$0xf]
  %v108 = vld [vmem:[%s0 + $0x16c] sm:$0xf]
  %v109 = vld [vmem:[%s0 + $0x170] sm:$0xf]
  %v110 = vld [vmem:[%s0 + $0x174] sm:$0xf]
  %v111 = vld [vmem:[%s0 + $0x178] sm:$0xf]
  %v112 = vld [vmem:[%s0 + $0x17c] sm:$0xf]
  %v113 = vld [vmem:[%s0 + $0x180] sm:$0xf]
  %v114 = vld [vmem:[%s0 + $0x184] sm:$0xf]
  %v115 = vld [vmem:[%s0 + $0x188] sm:$0xf]
  %v116 = vld [vmem:[%s0 + $0x18c] sm:$0xf]
  %v117 = vld [vmem:[%s0 + $0x190] sm:$0xf]
  %v118 = vld [vmem:[%s0 + $0x194] sm:$0xf]
  %v119 = vld [vmem:[%s0 + $0x198] sm:$0xf]
  %v120 = vld [vmem:[%s0 + $0x19c] sm:$0xf]
  %v121 = vld [vmem:[%s0 + $0x1a0] sm:$0xf]
  %v122 = vld [vmem:[%s0 + $0x1a4] sm:$0xf]
  %v123 = vld [vmem:[%s0 + $0x1b0] sm:$0xf]
  %v124 = vld [vmem:[%s0 + $0x1b4] sm:$0xf]
  %v125 = vld [vmem:[%s0 + $0x1b8] sm:$0xf]
  %v126 = vld [vmem:[%s0 + $0x1bc] sm:$0xf]
  %v127 = vld [vmem:[%s0 + $0x1c0] sm:$0xf]
  %v128 = vld [vmem:[%s0 + $0x1c4] sm:$0xf]
  %v129 = vld [vmem:[%s0 + $0x1c8] sm:$0xf]
  %v130 = vld [vmem:[%s0 + $0x1cc] sm:$0xf]
  %v131 = vld [vmem:[%s0 + $0x1d0] sm:$0xf]
  %v132 = vld [vmem:[%s0 + $0x1d4] sm:$0xf]
  %v133 = vld [vmem:[%s0 + $0x1d8] sm:$0xf]
  %v134 = vld [vmem:[%s0 + $0x1dc] sm:$0xf]
  %v135 = vld [vmem:[%s0 + $0x1e0] sm:$0xf]
  %v136 = vld [vmem:[%s0 + $0x1e4] sm:$0xf]
  %v137 = vld [vmem:[%s0 + $0x1e8] sm:$0xf]
  %v138 = vld [vmem:[%s0 + $0x1ec] sm:$0xf]
  %v139 = vld [vmem:[%s0 + $0x1f8] sm:$0xf]
  %v140 = vld [vmem:[%s0 + $0x1fc] sm:$0xf]
  %v141 = vld [vmem:[%s0 + $0x200] sm:$0xf]
  %v142 = vld [vmem:[%s0 + $0x204] sm:$0xf]
  %v143 = vld [vmem:[%s0 + $0x208] sm:$0xf]
  %v144 = vld [vmem:[%s0 + $0x20c] sm:$0xf]
  %v145 = vld [vmem:[%s0 + $0x210] sm:$0xf]
  %v146 = vld [vmem:[%s0 + $0x214] sm:$0xf]
  %v147 = vld [vmem:[%s0 + $0x218] sm:$0xf]
  %v148 = vld [vmem:[%s0 + $0x21c] sm:$0xf]
  %v149 = vld [vmem:[%s0 + $0x220] sm:$0xf]
  %v150 = vld [vmem:[%s0 + $0x224] sm:$0xf]
  %v151 = vld [vmem:[%s0 + $0x228] sm:$0xf]
  %v152 = vld [vmem:[%s0 + $0x22c] sm:$0xf]
  %v153 = vld [vmem:[%s0 + $0x230] sm:$0xf]
  %v154 = vld [vmem:[%s0 + $0x234] sm:$0xf]
  %v155 = vld [vmem:[%s1] sm:$0xf]
  %v156 = vld [vmem:[%s1 + $0x4] sm:$0xf]
  %v157 = vld [vmem:[%s1 + $0x8] sm:$0xf]
  %v158 = vld [vmem:[%s1 + $0xc] sm:$0xf]
  %v159 = vld [vmem:[%s1 + $0x10] sm:$0xf]
  %v160 = vld [vmem:[%s1 + $0x14] sm:$0xf]
  %v161 = vld [vmem:[%s1 + $0x18] sm:$0xf]
  %v162 = vld [vmem:[%s1 + $0x1c] sm:$0xf]
  %v163 = vld [vmem:[%s1 + $0x20] sm:$0xf]
  %v164 = vld [vmem:[%s1 + $0x24] sm:$0xf]
  %v165 = vld [vmem:[%s1 + $0x28] sm:$0xf]
  %v166 = vld [vmem:[%s1 + $0x2c] sm:$0xf]
  %v167 = vld [vmem:[%s1 + $0x30] sm:$0xf]
  %v168 = vld [vmem:[%s1 + $0x34] sm:$0xf]
  %v169 = vld [vmem:[%s1 + $0x38] sm:$0xf]
  %v170 = vld [vmem:[%s1 + $0x3c] sm:$0xf]
  %s171 = scalar_lea.vmem %s0, 8
  %v172 = vld [vmem:[%s171] sm:$0xf]
  %v173 = vld [vmem:[%s171 + $0x4] sm:$0xf]
  %v174 = vld [vmem:[%s171 + $0x8] sm:$0xf]
  %v175 = vld [vmem:[%s171 + $0xc] sm:$0xf]
  %v176 = vld [vmem:[%s171 + $0x10] sm:$0xf]
  %v177 = vld [vmem:[%s171 + $0x14] sm:$0xf]
  %v178 = vld [vmem:[%s171 + $0x18] sm:$0xf]
  %v179 = vld [vmem:[%s171 + $0x1c] sm:$0xf]
  %v180 = vld [vmem:[%s171 + $0x20] sm:$0xf]
  %v181 = vld [vmem:[%s171 + $0x24] sm:$0xf]
  %v182 = vld [vmem:[%s171 + $0x28] sm:$0xf]
  %v183 = vld [vmem:[%s171 + $0x2c] sm:$0xf]
  %v184 = vld [vmem:[%s171 + $0x30] sm:$0xf]
  %v185 = vld [vmem:[%s171 + $0x34] sm:$0xf]
  %v186 = vld [vmem:[%s171 + $0x38] sm:$0xf]
  %v187 = vld [vmem:[%s171 + $0x3c] sm:$0xf]
  %v188 = vld [vmem:[%s171 + $0x48] sm:$0xf]
  %v189 = vld [vmem:[%s171 + $0x4c] sm:$0xf]
  %v190 = vld [vmem:[%s171 + $0x50] sm:$0xf]
  %v191 = vld [vmem:[%s171 + $0x54] sm:$0xf]
  %v192 = vld [vmem:[%s171 + $0x58] sm:$0xf]
  %v193 = vld [vmem:[%s171 + $0x5c] sm:$0xf]
  %v194 = vld [vmem:[%s171 + $0x60] sm:$0xf]
  %v195 = vld [vmem:[%s171 + $0x64] sm:$0xf]
  %v196 = vld [vmem:[%s171 + $0x68] sm:$0xf]
  %v197 = vld [vmem:[%s171 + $0x6c] sm:$0xf]
  %v198 = vld [vmem:[%s171 + $0x70] sm:$0xf]
  %v199 = vld [vmem:[%s171 + $0x74] sm:$0xf]
  %v200 = vld [vmem:[%s171 + $0x78] sm:$0xf]
  %v201 = vld [vmem:[%s171 + $0x7c] sm:$0xf]
  %v202 = vld [vmem:[%s171 + $0x80] sm:$0xf]
  %v203 = vld [vmem:[%s171 + $0x84] sm:$0xf]
  %v204 = vld [vmem:[%s171 + $0x90] sm:$0xf]
  %v205 = vld [vmem:[%s171 + $0x94] sm:$0xf]
  %v206 = vld [vmem:[%s171 + $0x98] sm:$0xf]
  %v207 = vld [vmem:[%s171 + $0x9c] sm:$0xf]
  %v208 = vld [vmem:[%s171 + $0xa0] sm:$0xf]
  %v209 = vld [vmem:[%s171 + $0xa4] sm:$0xf]
  %v210 = vld [vmem:[%s171 + $0xa8] sm:$0xf]
  %v211 = vld [vmem:[%s171 + $0xac] sm:$0xf]
  %v212 = vld [vmem:[%s171 + $0xb0] sm:$0xf]
  %v213 = vld [vmem:[%s171 + $0xb4] sm:$0xf]
  %v214 = vld [vmem:[%s171 + $0xb8] sm:$0xf]
  %v215 = vld [vmem:[%s171 + $0xbc] sm:$0xf]
  %v216 = vld [vmem:[%s171 + $0xc0] sm:$0xf]
  %v217 = vld [vmem:[%s171 + $0xc4] sm:$0xf]
  %v218 = vld [vmem:[%s171 + $0xc8] sm:$0xf]
  %v219 = vld [vmem:[%s171 + $0xcc] sm:$0xf]
  %v220 = vld [vmem:[%s171 + $0xd8] sm:$0xf]
  %v221 = vld [vmem:[%s171 + $0xdc] sm:$0xf]
  %v222 = vld [vmem:[%s171 + $0xe0] sm:$0xf]
  %v223 = vld [vmem:[%s171 + $0xe4] sm:$0xf]
  %v224 = vld [vmem:[%s171 + $0xe8] sm:$0xf]
  %v225 = vld [vmem:[%s171 + $0xec] sm:$0xf]
  %v226 = vld [vmem:[%s171 + $0xf0] sm:$0xf]
  %v227 = vld [vmem:[%s171 + $0xf4] sm:$0xf]
  %v228 = vld [vmem:[%s171 + $0xf8] sm:$0xf]
  %v229 = vld [vmem:[%s171 + $0xfc] sm:$0xf]
  %v230 = vld [vmem:[%s171 + $0x100] sm:$0xf]
  %v231 = vld [vmem:[%s171 + $0x104] sm:$0xf]
  %v232 = vld [vmem:[%s171 + $0x108] sm:$0xf]
  %v233 = vld [vmem:[%s171 + $0x10c] sm:$0xf]
  %v234 = vld [vmem:[%s171 + $0x110] sm:$0xf]
  %v235 = vld [vmem:[%s171 + $0x114] sm:$0xf]
  %v236 = vld [vmem:[%s171 + $0x120] sm:$0xf]
  %v237 = vld [vmem:[%s171 + $0x124] sm:$0xf]
  %v238 = vld [vmem:[%s171 + $0x128] sm:$0xf]
  %v239 = vld [vmem:[%s171 + $0x12c] sm:$0xf]
  %v240 = vld [vmem:[%s171 + $0x130] sm:$0xf]
  %v241 = vld [vmem:[%s171 + $0x134] sm:$0xf]
  %v242 = vld [vmem:[%s171 + $0x138] sm:$0xf]
  %v243 = vld [vmem:[%s171 + $0x13c] sm:$0xf]
  %v244 = vld [vmem:[%s171 + $0x140] sm:$0xf]
  %v245 = vld [vmem:[%s171 + $0x144] sm:$0xf]
  %v246 = vld [vmem:[%s171 + $0x148] sm:$0xf]
  %v247 = vld [vmem:[%s171 + $0x14c] sm:$0xf]
  %v248 = vld [vmem:[%s171 + $0x150] sm:$0xf]
  %v249 = vld [vmem:[%s171 + $0x154] sm:$0xf]
  %v250 = vld [vmem:[%s171 + $0x158] sm:$0xf]
  %v251 = vld [vmem:[%s171 + $0x15c] sm:$0xf]
  %v252 = vld [vmem:[%s171 + $0x168] sm:$0xf]
  %v253 = vld [vmem:[%s171 + $0x16c] sm:$0xf]
  %v254 = vld [vmem:[%s171 + $0x170] sm:$0xf]
  %v255 = vld [vmem:[%s171 + $0x174] sm:$0xf]
  %v256 = vld [vmem:[%s171 + $0x178] sm:$0xf]
  %v257 = vld [vmem:[%s171 + $0x17c] sm:$0xf]
  %v258 = vld [vmem:[%s171 + $0x180] sm:$0xf]
  %v259 = vld [vmem:[%s171 + $0x184] sm:$0xf]
  %v260 = vld [vmem:[%s171 + $0x188] sm:$0xf]
  %v261 = vld [vmem:[%s171 + $0x18c] sm:$0xf]
  %v262 = vld [vmem:[%s171 + $0x190] sm:$0xf]
  %v263 = vld [vmem:[%s171 + $0x194] sm:$0xf]
  %v264 = vld [vmem:[%s171 + $0x198] sm:$0xf]
  %v265 = vld [vmem:[%s171 + $0x19c] sm:$0xf]
  %v266 = vld [vmem:[%s171 + $0x1a0] sm:$0xf]
  %v267 = vld [vmem:[%s171 + $0x1a4] sm:$0xf]
  %v268 = vld [vmem:[%s171 + $0x1b0] sm:$0xf]
  %v269 = vld [vmem:[%s171 + $0x1b4] sm:$0xf]
  %v270 = vld [vmem:[%s171 + $0x1b8] sm:$0xf]
  %v271 = vld [vmem:[%s171 + $0x1bc] sm:$0xf]
  %v272 = vld [vmem:[%s171 + $0x1c0] sm:$0xf]
  %v273 = vld [vmem:[%s171 + $0x1c4] sm:$0xf]
  %v274 = vld [vmem:[%s171 + $0x1c8] sm:$0xf]
  %v275 = vld [vmem:[%s171 + $0x1cc] sm:$0xf]
  %v276 = vld [vmem:[%s171 + $0x1d0] sm:$0xf]
  %v277 = vld [vmem:[%s171 + $0x1d4] sm:$0xf]
  %v278 = vld [vmem:[%s171 + $0x1d8] sm:$0xf]
  %v279 = vld [vmem:[%s171 + $0x1dc] sm:$0xf]
  %v280 = vld [vmem:[%s171 + $0x1e0] sm:$0xf]
  %v281 = vld [vmem:[%s171 + $0x1e4] sm:$0xf]
  %v282 = vld [vmem:[%s171 + $0x1e8] sm:$0xf]
  %v283 = vld [vmem:[%s171 + $0x1ec] sm:$0xf]
  %v284 = vld [vmem:[%s171 + $0x1f8] sm:$0xf]
  %v285 = vld [vmem:[%s171 + $0x1fc] sm:$0xf]
  %v286 = vld [vmem:[%s171 + $0x200] sm:$0xf]
  %v287 = vld [vmem:[%s171 + $0x204] sm:$0xf]
  %v288 = vld [vmem:[%s171 + $0x208] sm:$0xf]
  %v289 = vld [vmem:[%s171 + $0x20c] sm:$0xf]
  %v290 = vld [vmem:[%s171 + $0x210] sm:$0xf]
  %v291 = vld [vmem:[%s171 + $0x214] sm:$0xf]
  %v292 = vld [vmem:[%s171 + $0x218] sm:$0xf]
  %v293 = vld [vmem:[%s171 + $0x21c] sm:$0xf]
  %v294 = vld [vmem:[%s171 + $0x220] sm:$0xf]
  %v295 = vld [vmem:[%s171 + $0x224] sm:$0xf]
  %v296 = vld [vmem:[%s171 + $0x228] sm:$0xf]
  %v297 = vld [vmem:[%s171 + $0x22c] sm:$0xf]
  %v298 = vld [vmem:[%s171 + $0x230] sm:$0xf]
  %v299 = vld [vmem:[%s171 + $0x234] sm:$0xf]
  %s300 = scalar_lea.vmem %s1, 64
  %v301 = vld [vmem:[%s300] sm:$0xf]
  %v302 = vld [vmem:[%s300 + $0x4] sm:$0xf]
  %v303 = vld [vmem:[%s300 + $0x8] sm:$0xf]
  %v304 = vld [vmem:[%s300 + $0xc] sm:$0xf]
  %v305 = vld [vmem:[%s300 + $0x10] sm:$0xf]
  %v306 = vld [vmem:[%s300 + $0x14] sm:$0xf]
  %v307 = vld [vmem:[%s300 + $0x18] sm:$0xf]
  %v308 = vld [vmem:[%s300 + $0x1c] sm:$0xf]
  %v309 = vld [vmem:[%s300 + $0x20] sm:$0xf]
  %v310 = vld [vmem:[%s300 + $0x24] sm:$0xf]
  %v311 = vld [vmem:[%s300 + $0x28] sm:$0xf]
  %v312 = vld [vmem:[%s300 + $0x2c] sm:$0xf]
  %v313 = vld [vmem:[%s300 + $0x30] sm:$0xf]
  %v314 = vld [vmem:[%s300 + $0x34] sm:$0xf]
  %v315 = vld [vmem:[%s300 + $0x38] sm:$0xf]
  %v316 = vld [vmem:[%s300 + $0x3c] sm:$0xf]
  %v445 = vunpack.c.l.b16 %v172
  %v446 = vunpack.c.l.b16 %v173
  %v447 = vunpack.c.l.b16 %v174
  %v448 = vunpack.c.l.b16 %v175
  %v449 = vunpack.c.l.b16 %v176
  %v450 = vunpack.c.l.b16 %v177
  %v451 = vunpack.c.l.b16 %v178
  %v452 = vunpack.c.l.b16 %v179
  %v453 = vunpack.c.l.b16 %v180
  %v454 = vunpack.c.l.b16 %v181
  %v455 = vunpack.c.l.b16 %v182
  %v456 = vunpack.c.l.b16 %v183
  %v457 = vunpack.c.l.b16 %v184
  %v458 = vunpack.c.l.b16 %v185
  %v459 = vunpack.c.l.b16 %v186
  %v460 = vunpack.c.l.b16 %v187
  %v461 = vunpack.c.l.b16 %v188
  %v462 = vunpack.c.l.b16 %v189
  %v463 = vunpack.c.l.b16 %v190
  %v464 = vunpack.c.l.b16 %v191
  %v465 = vunpack.c.l.b16 %v192
  %v466 = vunpack.c.l.b16 %v193
  %v467 = vunpack.c.l.b16 %v194
  %v468 = vunpack.c.l.b16 %v195
  %v469 = vunpack.c.l.b16 %v196
  %v470 = vunpack.c.l.b16 %v197
  %v471 = vunpack.c.l.b16 %v198
  %v472 = vunpack.c.l.b16 %v199
  %v473 = vunpack.c.l.b16 %v200
  %v474 = vunpack.c.l.b16 %v201
  %v475 = vunpack.c.l.b16 %v202
  %v476 = vunpack.c.l.b16 %v203
  %v477 = vunpack.c.l.b16 %v204
  %v478 = vunpack.c.l.b16 %v205
  %v479 = vunpack.c.l.b16 %v206
  %v480 = vunpack.c.l.b16 %v207
  %v481 = vunpack.c.l.b16 %v208
  %v482 = vunpack.c.l.b16 %v209
  %v483 = vunpack.c.l.b16 %v210
  %v484 = vunpack.c.l.b16 %v211
  %v485 = vunpack.c.l.b16 %v212
  %v486 = vunpack.c.l.b16 %v213
  %v487 = vunpack.c.l.b16 %v214
  %v488 = vunpack.c.l.b16 %v215
  %v489 = vunpack.c.l.b16 %v216
  %v490 = vunpack.c.l.b16 %v217
  %v491 = vunpack.c.l.b16 %v218
  %v492 = vunpack.c.l.b16 %v219
  %v493 = vunpack.c.l.b16 %v220
  %v494 = vunpack.c.l.b16 %v221
  %v495 = vunpack.c.l.b16 %v222
  %v496 = vunpack.c.l.b16 %v223
  %v497 = vunpack.c.l.b16 %v224
  %v498 = vunpack.c.l.b16 %v225
  %v499 = vunpack.c.l.b16 %v226
  %v500 = vunpack.c.l.b16 %v227
  %v501 = vunpack.c.l.b16 %v228
  %v502 = vunpack.c.l.b16 %v229
  %v503 = vunpack.c.l.b16 %v230
  %v504 = vunpack.c.l.b16 %v231
  %v505 = vunpack.c.l.b16 %v232
  %v506 = vunpack.c.l.b16 %v233
  %v507 = vunpack.c.l.b16 %v234
  %v508 = vunpack.c.l.b16 %v235
  %v509 = vunpack.c.l.b16 %v236
  %v510 = vunpack.c.l.b16 %v237
  %v511 = vunpack.c.l.b16 %v238
  %v512 = vunpack.c.l.b16 %v239
  %v513 = vunpack.c.l.b16 %v240
  %v514 = vunpack.c.l.b16 %v241
  %v515 = vunpack.c.l.b16 %v242
  %v516 = vunpack.c.l.b16 %v243
  %v517 = vunpack.c.l.b16 %v244
  %v518 = vunpack.c.l.b16 %v245
  %v519 = vunpack.c.l.b16 %v246
  %v520 = vunpack.c.l.b16 %v247
  %v521 = vunpack.c.l.b16 %v248
  %v522 = vunpack.c.l.b16 %v249
  %v523 = vunpack.c.l.b16 %v250
  %v524 = vunpack.c.l.b16 %v251
  %v525 = vunpack.c.l.b16 %v252
  %v526 = vunpack.c.l.b16 %v253
  %v527 = vunpack.c.l.b16 %v254
  %v528 = vunpack.c.l.b16 %v255
  %v529 = vunpack.c.l.b16 %v256
  %v530 = vunpack.c.l.b16 %v257
  %v531 = vunpack.c.l.b16 %v258
  %v532 = vunpack.c.l.b16 %v259
  %v533 = vunpack.c.l.b16 %v260
  %v534 = vunpack.c.l.b16 %v261
  %v535 = vunpack.c.l.b16 %v262
  %v536 = vunpack.c.l.b16 %v263
  %v537 = vunpack.c.l.b16 %v264
  %v538 = vunpack.c.l.b16 %v265
  %v539 = vunpack.c.l.b16 %v266
  %v540 = vunpack.c.l.b16 %v267
  %v541 = vunpack.c.l.b16 %v268
  %v542 = vunpack.c.l.b16 %v269
  %v543 = vunpack.c.l.b16 %v270
  %v544 = vunpack.c.l.b16 %v271
  %v545 = vunpack.c.l.b16 %v272
  %v546 = vunpack.c.l.b16 %v273
  %v547 = vunpack.c.l.b16 %v274
  %v548 = vunpack.c.l.b16 %v275
  %v549 = vunpack.c.l.b16 %v276
  %v550 = vunpack.c.l.b16 %v277
  %v551 = vunpack.c.l.b16 %v278
  %v552 = vunpack.c.l.b16 %v279
  %v553 = vunpack.c.l.b16 %v280
  %v554 = vunpack.c.l.b16 %v281
  %v555 = vunpack.c.l.b16 %v282
  %v556 = vunpack.c.l.b16 %v283
  %v557 = vunpack.c.l.b16 %v284
  %v558 = vunpack.c.l.b16 %v285
  %v559 = vunpack.c.l.b16 %v286
  %v560 = vunpack.c.l.b16 %v287
  %v561 = vunpack.c.l.b16 %v288
  %v562 = vunpack.c.l.b16 %v289
  %v563 = vunpack.c.l.b16 %v290
  %v564 = vunpack.c.l.b16 %v291
  %v565 = vunpack.c.l.b16 %v292
  %v566 = vunpack.c.l.b16 %v293
  %v567 = vunpack.c.l.b16 %v294
  %v568 = vunpack.c.l.b16 %v295
  %v569 = vunpack.c.l.b16 %v296
  %v570 = vunpack.c.l.b16 %v297
  %v571 = vunpack.c.l.b16 %v298
  %v572 = vunpack.c.l.b16 %v299
  %v573 = vpack.c.b16 %v446, %v445
  %v574 = vpack.c.b16 %v448, %v447
  %v575 = vpack.c.b16 %v450, %v449
  %v576 = vpack.c.b16 %v452, %v451
  %v577 = vpack.c.b16 %v454, %v453
  %v578 = vpack.c.b16 %v456, %v455
  %v579 = vpack.c.b16 %v458, %v457
  %v580 = vpack.c.b16 %v460, %v459
  %v581 = vpack.c.b16 %v462, %v461
  %v582 = vpack.c.b16 %v464, %v463
  %v583 = vpack.c.b16 %v466, %v465
  %v584 = vpack.c.b16 %v468, %v467
  %v585 = vpack.c.b16 %v470, %v469
  %v586 = vpack.c.b16 %v472, %v471
  %v587 = vpack.c.b16 %v474, %v473
  %v588 = vpack.c.b16 %v476, %v475
  %v589 = vpack.c.b16 %v478, %v477
  %v590 = vpack.c.b16 %v480, %v479
  %v591 = vpack.c.b16 %v482, %v481
  %v592 = vpack.c.b16 %v484, %v483
  %v593 = vpack.c.b16 %v486, %v485
  %v594 = vpack.c.b16 %v488, %v487
  %v595 = vpack.c.b16 %v490, %v489
  %v596 = vpack.c.b16 %v492, %v491
  %v597 = vpack.c.b16 %v494, %v493
  %v598 = vpack.c.b16 %v496, %v495
  %v599 = vpack.c.b16 %v498, %v497
  %v600 = vpack.c.b16 %v500, %v499
  %v601 = vpack.c.b16 %v502, %v501
  %v602 = vpack.c.b16 %v504, %v503
  %v603 = vpack.c.b16 %v506, %v505
  %v604 = vpack.c.b16 %v508, %v507
  %v605 = vpack.c.b16 %v510, %v509
  %v606 = vpack.c.b16 %v512, %v511
  %v607 = vpack.c.b16 %v514, %v513
  %v608 = vpack.c.b16 %v516, %v515
  %v609 = vpack.c.b16 %v518, %v517
  %v610 = vpack.c.b16 %v520, %v519
  %v611 = vpack.c.b16 %v522, %v521
  %v612 = vpack.c.b16 %v524, %v523
  %v613 = vpack.c.b16 %v526, %v525
  %v614 = vpack.c.b16 %v528, %v527
  %v615 = vpack.c.b16 %v530, %v529
  %v616 = vpack.c.b16 %v532, %v531
  %v617 = vpack.c.b16 %v534, %v533
  %v618 = vpack.c.b16 %v536, %v535
  %v619 = vpack.c.b16 %v538, %v537
  %v620 = vpack.c.b16 %v540, %v539
  %v621 = vpack.c.b16 %v542, %v541
  %v622 = vpack.c.b16 %v544, %v543
  %v623 = vpack.c.b16 %v546, %v545
  %v624 = vpack.c.b16 %v548, %v547
  %v625 = vpack.c.b16 %v550, %v549
  %v626 = vpack.c.b16 %v552, %v551
  %v627 = vpack.c.b16 %v554, %v553
  %v628 = vpack.c.b16 %v556, %v555
  %v629 = vpack.c.b16 %v558, %v557
  %v630 = vpack.c.b16 %v560, %v559
  %v631 = vpack.c.b16 %v562, %v561
  %v632 = vpack.c.b16 %v564, %v563
  %v633 = vpack.c.b16 %v566, %v565
  %v634 = vpack.c.b16 %v568, %v567
  %v635 = vpack.c.b16 %v570, %v569
  %v636 = vpack.c.b16 %v572, %v571
  %v717 = vunpack.c.l.b16 %v301
  %v718 = vunpack.c.l.b16 %v302
  %v719 = vunpack.c.l.b16 %v303
  %v720 = vunpack.c.l.b16 %v304
  %v721 = vunpack.c.l.b16 %v305
  %v722 = vunpack.c.l.b16 %v306
  %v723 = vunpack.c.l.b16 %v307
  %v724 = vunpack.c.l.b16 %v308
  %v725 = vunpack.c.l.b16 %v309
  %v726 = vunpack.c.l.b16 %v310
  %v727 = vunpack.c.l.b16 %v311
  %v728 = vunpack.c.l.b16 %v312
  %v729 = vunpack.c.l.b16 %v313
  %v730 = vunpack.c.l.b16 %v314
  %v731 = vunpack.c.l.b16 %v315
  %v732 = vunpack.c.l.b16 %v316
  %v733 = vpack.c.b16 %v718, %v717
  %v734 = vpack.c.b16 %v720, %v719
  %v735 = vpack.c.b16 %v722, %v721
  %v736 = vpack.c.b16 %v724, %v723
  %v737 = vpack.c.b16 %v726, %v725
  %v738 = vpack.c.b16 %v728, %v727
  %v739 = vpack.c.b16 %v730, %v729
  %v740 = vpack.c.b16 %v732, %v731
  %749 = vmatprep.subr.bf16.mxu0 0
  %750 = vmatpush1.bf16.msra.mxu0 %v733
  %751 = vmatprep.subr.bf16.mxu0 0
  %752 = vmatpush1.bf16.msra.mxu0 %v734
  %753 = vmatprep.subr.bf16.mxu0 0
  %754 = vmatpush1.bf16.msra.mxu0 %v735
  %755 = vmatprep.subr.bf16.mxu0 0
  %756 = vmatpush1.bf16.msra.mxu0 %v736
  %757 = vmatprep.subr.bf16.mxu0 0
  %758 = vmatpush1.bf16.msra.mxu0 %v737
  %759 = vmatprep.subr.bf16.mxu0 0
  %760 = vmatpush1.bf16.msra.mxu0 %v738
  %761 = vmatprep.subr.bf16.mxu0 0
  %762 = vmatpush1.bf16.msra.mxu0 %v739
  %763 = vmatprep.subr.bf16.mxu0 0
  %764 = vmatpush1.bf16.msra.mxu0 %v740
  %765 = vmatprep.subr.bf16.mxu0 0
  %766 = vmatpush1.bf16.msra.mxu0 0
  %767 = vmatprep.subr.bf16.mxu0 0
  %768 = vmatpush1.bf16.msra.mxu0 0
  %769 = vmatprep.subr.bf16.mxu0 0
  %770 = vmatpush1.bf16.msra.mxu0 0
  %771 = vmatprep.subr.bf16.mxu0 0
  %772 = vmatpush1.bf16.msra.mxu0 0
  %773 = vmatprep.subr.bf16.mxu0 0
  %774 = vmatpush1.bf16.msra.mxu0 0
  %775 = vmatprep.subr.bf16.mxu0 0
  %776 = vmatpush1.bf16.msra.mxu0 0
  %777 = vmatprep.subr.bf16.mxu0 0
  %778 = vmatpush1.bf16.msra.mxu0 0
  %779 = vmatprep.subr.bf16.mxu0 0
  %780 = vmatpush1.bf16.msra.mxu0 0
  %781 = vmatprep.mubr.bf16.mxu0 0
  %782 = vmatmul.mubr.bf16.gmra.mrb[0].mxu0 %v573
  %v783 = vpop.f32.mrb[0].mxu0
  %v784 = vadd.f32 0.0, %v783
  %v785 = vpop.f32.mrb[0].mxu0
  %v786 = vpop.f32.mrb[0].mxu0
  %v787 = vadd.f32 0.0, %v786
  %v788 = vpop.f32.mrb[0].mxu0
  %789 = vmatprep.mubr.bf16.mxu0 0
  %790 = vmatmul.mubr.bf16.gmra.mrb[0].mxu0 %v574
  %v791 = vpop.f32.mrb[0].mxu0
  %v792 = vadd.f32 0.0, %v791
  %v793 = vpop.f32.mrb[0].mxu0
  %v794 = vpop.f32.mrb[0].mxu0
  %v795 = vadd.f32 0.0, %v794
  %v796 = vpop.f32.mrb[0].mxu0
  %797 = vmatprep.mubr.bf16.mxu0 0
  %798 = vmatmul.mubr.bf16.gmra.mrb[0].mxu0 %v575
  %v799 = vpop.f32.mrb[0].mxu0
  %v800 = vadd.f32 0.0, %v799
  %v801 = vpop.f32.mrb[0].mxu0
  %v802 = vpop.f32.mrb[0].mxu0
  %v803 = vadd.f32 0.0, %v802
  %v804 = vpop.f32.mrb[0].mxu0
  %805 = vmatprep.mubr.bf16.mxu0 0
  %806 = vmatmul.mubr.bf16.gmra.mrb[0].mxu0 %v576
  %v807 = vpop.f32.mrb[0].mxu0
  %v808 = vadd.f32 0.0, %v807
  %v809 = vpop.f32.mrb[0].mxu0
  %v810 = vpop.f32.mrb[0].mxu0
  %v811 = vadd.f32 0.0, %v810
  %v812 = vpop.f32.mrb[0].mxu0
  %813 = vmatprep.mubr.bf16.mxu0 0
  %814 = vmatmul.mubr.bf16.gmra.mrb[0].mxu0 %v577
  %v815 = vpop.f32.mrb[0].mxu0
  %v816 = vadd.f32 0.0, %v815
  %v817 = vpop.f32.mrb[0].mxu0
  %v818 = vpop.f32.mrb[0].mxu0
  %v819 = vadd.f32 0.0, %v818
  %v820 = vpop.f32.mrb[0].mxu0
  %821 = vmatprep.mubr.bf16.mxu0 0
  %822 = vmatmul.mubr.bf16.gmra.mrb[0].mxu0 %v578
  %v823 = vpop.f32.mrb[0].mxu0
  %v824 = vadd.f32 0.0, %v823
  %v825 = vpop.f32.mrb[0].mxu0
  %v826 = vpop.f32.mrb[0].mxu0
  %v827 = vadd.f32 0.0, %v826
  %v828 = vpop.f32.mrb[0].mxu0
  %829 = vmatprep.mubr.bf16.mxu0 0
  %830 = vmatmul.mubr.bf16.gmra.mrb[0].mxu0 %v579
  %v831 = vpop.f32.mrb[0].mxu0
  %v832 = vadd.f32 0.0, %v831
  %v833 = vpop.f32.mrb[0].mxu0
  %v834 = vpop.f32.mrb[0].mxu0
  %v835 = vadd.f32 0.0, %v834
  %v836 = vpop.f32.mrb[0].mxu0
  %837 = vmatprep.mubr.bf16.mxu0 0
  %838 = vmatmul.mubr.bf16.gmra.mrb[0].mxu0 %v580
  %v839 = vpop.f32.mrb[0].mxu0
  %v840 = vadd.f32 0.0, %v839
  %v841 = vpop.f32.mrb[0].mxu0
  %v842 = vpop.f32.mrb[0].mxu0
  %v843 = vadd.f32 0.0, %v842
  %v844 = vpop.f32.mrb[0].mxu0
  %845 = vmatprep.mubr.bf16.mxu0 0
  %846 = vmatmul.mubr.bf16.gmra.mrb[0].mxu0 %v581
  %v847 = vpop.f32.mrb[0].mxu0
  %v848 = vadd.f32 0.0, %v847
  %v849 = vpop.f32.mrb[0].mxu0
  %v850 = vpop.f32.mrb[0].mxu0
  %v851 = vadd.f32 0.0, %v850
  %v852 = vpop.f32.mrb[0].mxu0
  %853 = vmatprep.mubr.bf16.mxu0 0
  %854 = vmatmul.mubr.bf16.gmra.mrb[0].mxu0 %v582
  %v855 = vpop.f32.mrb[0].mxu0
  %v856 = vadd.f32 0.0, %v855
  %v857 = vpop.f32.mrb[0].mxu0
  %v858 = vpop.f32.mrb[0].mxu0
  %v859 = vadd.f32 0.0, %v858
  %v860 = vpop.f32.mrb[0].mxu0
  %861 = vmatprep.mubr.bf16.mxu0 0
  %862 = vmatmul.mubr.bf16.gmra.mrb[0].mxu0 %v583
  %v863 = vpop.f32.mrb[0].mxu0
  %v864 = vadd.f32 0.0, %v863
  %v865 = vpop.f32.mrb[0].mxu0
  %v866 = vpop.f32.mrb[0].mxu0
  %v867 = vadd.f32 0.0, %v866
  %v868 = vpop.f32.mrb[0].mxu0
  %869 = vmatprep.mubr.bf16.mxu0 0
  %870 = vmatmul.mubr.bf16.gmra.mrb[0].mxu0 %v584
  %v871 = vpop.f32.mrb[0].mxu0
  %v872 = vadd.f32 0.0, %v871
  %v873 = vpop.f32.mrb[0].mxu0
  %v874 = vpop.f32.mrb[0].mxu0
  %v875 = vadd.f32 0.0, %v874
  %v876 = vpop.f32.mrb[0].mxu0
  %877 = vmatprep.mubr.bf16.mxu0 0
  %878 = vmatmul.mubr.bf16.gmra.mrb[0].mxu0 %v585
  %v879 = vpop.f32.mrb[0].mxu0
  %v880 = vadd.f32 0.0, %v879
  %v881 = vpop.f32.mrb[0].mxu0
  %v882 = vpop.f32.mrb[0].mxu0
  %v883 = vadd.f32 0.0, %v882
  %v884 = vpop.f32.mrb[0].mxu0
  %885 = vmatprep.mubr.bf16.mxu0 0
  %886 = vmatmul.mubr.bf16.gmra.mrb[0].mxu0 %v586
  %v887 = vpop.f32.mrb[0].mxu0
  %v888 = vadd.f32 0.0, %v887
  %v889 = vpop.f32.mrb[0].mxu0
  %v890 = vpop.f32.mrb[0].mxu0
  %v891 = vadd.f32 0.0, %v890
  %v892 = vpop.f32.mrb[0].mxu0
  %893 = vmatprep.mubr.bf16.mxu0 0
  %894 = vmatmul.mubr.bf16.gmra.mrb[0].mxu0 %v587
  %v895 = vpop.f32.mrb[0].mxu0
  %v896 = vadd.f32 0.0, %v895
  %v897 = vpop.f32.mrb[0].mxu0
  %v898 = vpop.f32.mrb[0].mxu0
  %v899 = vadd.f32 0.0, %v898
  %v900 = vpop.f32.mrb[0].mxu0
  %901 = vmatprep.mubr.bf16.mxu0 0
  %902 = vmatmul.mubr.bf16.gmra.mrb[0].mxu0 %v588
  %v903 = vpop.f32.mrb[0].mxu0
  %v904 = vadd.f32 0.0, %v903
  %v905 = vpop.f32.mrb[0].mxu0
  %v906 = vpop.f32.mrb[0].mxu0
  %v907 = vadd.f32 0.0, %v906
  %v908 = vpop.f32.mrb[0].mxu0
  %909 = vmatprep.mubr.bf16.mxu0 0
  %910 = vmatmul.mubr.bf16.gmra.mrb[0].mxu0 %v589
  %v911 = vpop.f32.mrb[0].mxu0
  %v912 = vadd.f32 0.0, %v911
  %v913 = vpop.f32.mrb[0].mxu0
  %v914 = vpop.f32.mrb[0].mxu0
  %v915 = vadd.f32 0.0, %v914
  %v916 = vpop.f32.mrb[0].mxu0
  %917 = vmatprep.mubr.bf16.mxu0 0
  %918 = vmatmul.mubr.bf16.gmra.mrb[0].mxu0 %v590
  %v919 = vpop.f32.mrb[0].mxu0
  %v920 = vadd.f32 0.0, %v919
  %v921 = vpop.f32.mrb[0].mxu0
  %v922 = vpop.f32.mrb[0].mxu0
  %v923 = vadd.f32 0.0, %v922
  %v924 = vpop.f32.mrb[0].mxu0
  %925 = vmatprep.mubr.bf16.mxu0 0
  %926 = vmatmul.mubr.bf16.gmra.mrb[0].mxu0 %v591
  %v927 = vpop.f32.mrb[0].mxu0
  %v928 = vadd.f32 0.0, %v927
  %v929 = vpop.f32.mrb[0].mxu0
  %v930 = vpop.f32.mrb[0].mxu0
  %v931 = vadd.f32 0.0, %v930
  %v932 = vpop.f32.mrb[0].mxu0
  %933 = vmatprep.mubr.bf16.mxu0 0
  %934 = vmatmul.mubr.bf16.gmra.mrb[0].mxu0 %v592
  %v935 = vpop.f32.mrb[0].mxu0
  %v936 = vadd.f32 0.0, %v935
  %v937 = vpop.f32.mrb[0].mxu0
  %v938 = vpop.f32.mrb[0].mxu0
  %v939 = vadd.f32 0.0, %v938
  %v940 = vpop.f32.mrb[0].mxu0
  %941 = vmatprep.mubr.bf16.mxu0 0
  %942 = vmatmul.mubr.bf16.gmra.mrb[0].mxu0 %v593
  %v943 = vpop.f32.mrb[0].mxu0
  %v944 = vadd.f32 0.0, %v943
  %v945 = vpop.f32.mrb[0].mxu0
  %v946 = vpop.f32.mrb[0].mxu0
  %v947 = vadd.f32 0.0, %v946
  %v948 = vpop.f32.mrb[0].mxu0
  %949 = vmatprep.mubr.bf16.mxu0 0
  %950 = vmatmul.mubr.bf16.gmra.mrb[0].mxu0 %v594
  %v951 = vpop.f32.mrb[0].mxu0
  %v952 = vadd.f32 0.0, %v951
  %v953 = vpop.f32.mrb[0].mxu0
  %v954 = vpop.f32.mrb[0].mxu0
  %v955 = vadd.f32 0.0, %v954
  %v956 = vpop.f32.mrb[0].mxu0
  %957 = vmatprep.mubr.bf16.mxu0 0
  %958 = vmatmul.mubr.bf16.gmra.mrb[0].mxu0 %v595
  %v959 = vpop.f32.mrb[0].mxu0
  %v960 = vadd.f32 0.0, %v959
  %v961 = vpop.f32.mrb[0].mxu0
  %v962 = vpop.f32.mrb[0].mxu0
  %v963 = vadd.f32 0.0, %v962
  %v964 = vpop.f32.mrb[0].mxu0
  %965 = vmatprep.mubr.bf16.mxu0 0
  %966 = vmatmul.mubr.bf16.gmra.mrb[0].mxu0 %v596
  %v967 = vpop.f32.mrb[0].mxu0
  %v968 = vadd.f32 0.0, %v967
  %v969 = vpop.f32.mrb[0].mxu0
  %v970 = vpop.f32.mrb[0].mxu0
  %v971 = vadd.f32 0.0, %v970
  %v972 = vpop.f32.mrb[0].mxu0
  %973 = vmatprep.mubr.bf16.mxu0 0
  %974 = vmatmul.mubr.bf16.gmra.mrb[0].mxu0 %v597
  %v975 = vpop.f32.mrb[0].mxu0
  %v976 = vadd.f32 0.0, %v975
  %v977 = vpop.f32.mrb[0].mxu0
  %v978 = vpop.f32.mrb[0].mxu0
  %v979 = vadd.f32 0.0, %v978
  %v980 = vpop.f32.mrb[0].mxu0
  %981 = vmatprep.mubr.bf16.mxu0 0
  %982 = vmatmul.mubr.bf16.gmra.mrb[0].mxu0 %v598
  %v983 = vpop.f32.mrb[0].mxu0
  %v984 = vadd.f32 0.0, %v983
  %v985 = vpop.f32.mrb[0].mxu0
  %v986 = vpop.f32.mrb[0].mxu0
  %v987 = vadd.f32 0.0, %v986
  %v988 = vpop.f32.mrb[0].mxu0
  %989 = vmatprep.mubr.bf16.mxu0 0
  %990 = vmatmul.mubr.bf16.gmra.mrb[0].mxu0 %v599
  %v991 = vpop.f32.mrb[0].mxu0
  %v992 = vadd.f32 0.0, %v991
  %v993 = vpop.f32.mrb[0].mxu0
  %v994 = vpop.f32.mrb[0].mxu0
  %v995 = vadd.f32 0.0, %v994
  %v996 = vpop.f32.mrb[0].mxu0
  %997 = vmatprep.mubr.bf16.mxu0 0
  %998 = vmatmul.mubr.bf16.gmra.mrb[0].mxu0 %v600
  %v999 = vpop.f32.mrb[0].mxu0
  %v1000 = vadd.f32 0.0, %v999
  %v1001 = vpop.f32.mrb[0].mxu0
  %v1002 = vpop.f32.mrb[0].mxu0
  %v1003 = vadd.f32 0.0, %v1002
  %v1004 = vpop.f32.mrb[0].mxu0
  %1005 = vmatprep.mubr.bf16.mxu0 0
  %1006 = vmatmul.mubr.bf16.gmra.mrb[0].mxu0 %v601
  %v1007 = vpop.f32.mrb[0].mxu0
  %v1008 = vadd.f32 0.0, %v1007
  %v1009 = vpop.f32.mrb[0].mxu0
  %v1010 = vpop.f32.mrb[0].mxu0
  %v1011 = vadd.f32 0.0, %v1010
  %v1012 = vpop.f32.mrb[0].mxu0
  %1013 = vmatprep.mubr.bf16.mxu0 0
  %1014 = vmatmul.mubr.bf16.gmra.mrb[0].mxu0 %v602
  %v1015 = vpop.f32.mrb[0].mxu0
  %v1016 = vadd.f32 0.0, %v1015
  %v1017 = vpop.f32.mrb[0].mxu0
  %v1018 = vpop.f32.mrb[0].mxu0
  %v1019 = vadd.f32 0.0, %v1018
  %v1020 = vpop.f32.mrb[0].mxu0
  %1021 = vmatprep.mubr.bf16.mxu0 0
  %1022 = vmatmul.mubr.bf16.gmra.mrb[0].mxu0 %v603
  %v1023 = vpop.f32.mrb[0].mxu0
  %v1024 = vadd.f32 0.0, %v1023
  %v1025 = vpop.f32.mrb[0].mxu0
  %v1026 = vpop.f32.mrb[0].mxu0
  %v1027 = vadd.f32 0.0, %v1026
  %v1028 = vpop.f32.mrb[0].mxu0
  %1029 = vmatprep.mubr.bf16.mxu0 0
  %1030 = vmatmul.mubr.bf16.gmra.mrb[0].mxu0 %v604
  %v1031 = vpop.f32.mrb[0].mxu0
  %v1032 = vadd.f32 0.0, %v1031
  %v1033 = vpop.f32.mrb[0].mxu0
  %v1034 = vpop.f32.mrb[0].mxu0
  %v1035 = vadd.f32 0.0, %v1034
  %v1036 = vpop.f32.mrb[0].mxu0
  %1037 = vmatprep.mubr.bf16.mxu0 0
  %1038 = vmatmul.mubr.bf16.gmra.mrb[0].mxu0 %v605
  %v1039 = vpop.f32.mrb[0].mxu0
  %v1040 = vadd.f32 0.0, %v1039
  %v1041 = vpop.f32.mrb[0].mxu0
  %v1042 = vpop.f32.mrb[0].mxu0
  %v1043 = vadd.f32 0.0, %v1042
  %v1044 = vpop.f32.mrb[0].mxu0
  %1045 = vmatprep.mubr.bf16.mxu0 0
  %1046 = vmatmul.mubr.bf16.gmra.mrb[0].mxu0 %v606
  %v1047 = vpop.f32.mrb[0].mxu0
  %v1048 = vadd.f32 0.0, %v1047
  %v1049 = vpop.f32.mrb[0].mxu0
  %v1050 = vpop.f32.mrb[0].mxu0
  %v1051 = vadd.f32 0.0, %v1050
  %v1052 = vpop.f32.mrb[0].mxu0
  %1053 = vmatprep.mubr.bf16.mxu0 0
  %1054 = vmatmul.mubr.bf16.gmra.mrb[0].mxu0 %v607
  %v1055 = vpop.f32.mrb[0].mxu0
  %v1056 = vadd.f32 0.0, %v1055
  %v1057 = vpop.f32.mrb[0].mxu0
  %v1058 = vpop.f32.mrb[0].mxu0
  %v1059 = vadd.f32 0.0, %v1058
  %v1060 = vpop.f32.mrb[0].mxu0
  %1061 = vmatprep.mubr.bf16.mxu0 0
  %1062 = vmatmul.mubr.bf16.gmra.mrb[0].mxu0 %v608
  %v1063 = vpop.f32.mrb[0].mxu0
  %v1064 = vadd.f32 0.0, %v1063
  %v1065 = vpop.f32.mrb[0].mxu0
  %v1066 = vpop.f32.mrb[0].mxu0
  %v1067 = vadd.f32 0.0, %v1066
  %v1068 = vpop.f32.mrb[0].mxu0
  %1069 = vmatprep.mubr.bf16.mxu0 0
  %1070 = vmatmul.mubr.bf16.gmra.mrb[0].mxu0 %v609
  %v1071 = vpop.f32.mrb[0].mxu0
  %v1072 = vadd.f32 0.0, %v1071
  %v1073 = vpop.f32.mrb[0].mxu0
  %v1074 = vpop.f32.mrb[0].mxu0
  %v1075 = vadd.f32 0.0, %v1074
  %v1076 = vpop.f32.mrb[0].mxu0
  %1077 = vmatprep.mubr.bf16.mxu0 0
  %1078 = vmatmul.mubr.bf16.gmra.mrb[0].mxu0 %v610
  %v1079 = vpop.f32.mrb[0].mxu0
  %v1080 = vadd.f32 0.0, %v1079
  %v1081 = vpop.f32.mrb[0].mxu0
  %v1082 = vpop.f32.mrb[0].mxu0
  %v1083 = vadd.f32 0.0, %v1082
  %v1084 = vpop.f32.mrb[0].mxu0
  %1085 = vmatprep.mubr.bf16.mxu0 0
  %1086 = vmatmul.mubr.bf16.gmra.mrb[0].mxu0 %v611
  %v1087 = vpop.f32.mrb[0].mxu0
  %v1088 = vadd.f32 0.0, %v1087
  %v1089 = vpop.f32.mrb[0].mxu0
  %v1090 = vpop.f32.mrb[0].mxu0
  %v1091 = vadd.f32 0.0, %v1090
  %v1092 = vpop.f32.mrb[0].mxu0
  %1093 = vmatprep.mubr.bf16.mxu0 0
  %1094 = vmatmul.mubr.bf16.gmra.mrb[0].mxu0 %v612
  %v1095 = vpop.f32.mrb[0].mxu0
  %v1096 = vadd.f32 0.0, %v1095
  %v1097 = vpop.f32.mrb[0].mxu0
  %v1098 = vpop.f32.mrb[0].mxu0
  %v1099 = vadd.f32 0.0, %v1098
  %v1100 = vpop.f32.mrb[0].mxu0
  %1101 = vmatprep.mubr.bf16.mxu0 0
  %1102 = vmatmul.mubr.bf16.gmra.mrb[0].mxu0 %v613
  %v1103 = vpop.f32.mrb[0].mxu0
  %v1104 = vadd.f32 0.0, %v1103
  %v1105 = vpop.f32.mrb[0].mxu0
  %v1106 = vpop.f32.mrb[0].mxu0
  %v1107 = vadd.f32 0.0, %v1106
  %v1108 = vpop.f32.mrb[0].mxu0
  %1109 = vmatprep.mubr.bf16.mxu0 0
  %1110 = vmatmul.mubr.bf16.gmra.mrb[0].mxu0 %v614
  %v1111 = vpop.f32.mrb[0].mxu0
  %v1112 = vadd.f32 0.0, %v1111
  %v1113 = vpop.f32.mrb[0].mxu0
  %v1114 = vpop.f32.mrb[0].mxu0
  %v1115 = vadd.f32 0.0, %v1114
  %v1116 = vpop.f32.mrb[0].mxu0
  %1117 = vmatprep.mubr.bf16.mxu0 0
  %1118 = vmatmul.mubr.bf16.gmra.mrb[0].mxu0 %v615
  %v1119 = vpop.f32.mrb[0].mxu0
  %v1120 = vadd.f32 0.0, %v1119
  %v1121 = vpop.f32.mrb[0].mxu0
  %v1122 = vpop.f32.mrb[0].mxu0
  %v1123 = vadd.f32 0.0, %v1122
  %v1124 = vpop.f32.mrb[0].mxu0
  %1125 = vmatprep.mubr.bf16.mxu0 0
  %1126 = vmatmul.mubr.bf16.gmra.mrb[0].mxu0 %v616
  %v1127 = vpop.f32.mrb[0].mxu0
  %v1128 = vadd.f32 0.0, %v1127
  %v1129 = vpop.f32.mrb[0].mxu0
  %v1130 = vpop.f32.mrb[0].mxu0
  %v1131 = vadd.f32 0.0, %v1130
  %v1132 = vpop.f32.mrb[0].mxu0
  %1133 = vmatprep.mubr.bf16.mxu0 0
  %1134 = vmatmul.mubr.bf16.gmra.mrb[0].mxu0 %v617
  %v1135 = vpop.f32.mrb[0].mxu0
  %v1136 = vadd.f32 0.0, %v1135
  %v1137 = vpop.f32.mrb[0].mxu0
  %v1138 = vpop.f32.mrb[0].mxu0
  %v1139 = vadd.f32 0.0, %v1138
  %v1140 = vpop.f32.mrb[0].mxu0
  %1141 = vmatprep.mubr.bf16.mxu0 0
  %1142 = vmatmul.mubr.bf16.gmra.mrb[0].mxu0 %v618
  %v1143 = vpop.f32.mrb[0].mxu0
  %v1144 = vadd.f32 0.0, %v1143
  %v1145 = vpop.f32.mrb[0].mxu0
  %v1146 = vpop.f32.mrb[0].mxu0
  %v1147 = vadd.f32 0.0, %v1146
  %v1148 = vpop.f32.mrb[0].mxu0
  %1149 = vmatprep.mubr.bf16.mxu0 0
  %1150 = vmatmul.mubr.bf16.gmra.mrb[0].mxu0 %v619
  %v1151 = vpop.f32.mrb[0].mxu0
  %v1152 = vadd.f32 0.0, %v1151
  %v1153 = vpop.f32.mrb[0].mxu0
  %v1154 = vpop.f32.mrb[0].mxu0
  %v1155 = vadd.f32 0.0, %v1154
  %v1156 = vpop.f32.mrb[0].mxu0
  %1157 = vmatprep.mubr.bf16.mxu0 0
  %1158 = vmatmul.mubr.bf16.gmra.mrb[0].mxu0 %v620
  %v1159 = vpop.f32.mrb[0].mxu0
  %v1160 = vadd.f32 0.0, %v1159
  %v1161 = vpop.f32.mrb[0].mxu0
  %v1162 = vpop.f32.mrb[0].mxu0
  %v1163 = vadd.f32 0.0, %v1162
  %v1164 = vpop.f32.mrb[0].mxu0
  %1165 = vmatprep.mubr.bf16.mxu0 0
  %1166 = vmatmul.mubr.bf16.gmra.mrb[0].mxu0 %v621
  %v1167 = vpop.f32.mrb[0].mxu0
  %v1168 = vadd.f32 0.0, %v1167
  %v1169 = vpop.f32.mrb[0].mxu0
  %v1170 = vpop.f32.mrb[0].mxu0
  %v1171 = vadd.f32 0.0, %v1170
  %v1172 = vpop.f32.mrb[0].mxu0
  %1173 = vmatprep.mubr.bf16.mxu0 0
  %1174 = vmatmul.mubr.bf16.gmra.mrb[0].mxu0 %v622
  %v1175 = vpop.f32.mrb[0].mxu0
  %v1176 = vadd.f32 0.0, %v1175
  %v1177 = vpop.f32.mrb[0].mxu0
  %v1178 = vpop.f32.mrb[0].mxu0
  %v1179 = vadd.f32 0.0, %v1178
  %v1180 = vpop.f32.mrb[0].mxu0
  %1181 = vmatprep.mubr.bf16.mxu0 0
  %1182 = vmatmul.mubr.bf16.gmra.mrb[0].mxu0 %v623
  %v1183 = vpop.f32.mrb[0].mxu0
  %v1184 = vadd.f32 0.0, %v1183
  %v1185 = vpop.f32.mrb[0].mxu0
  %v1186 = vpop.f32.mrb[0].mxu0
  %v1187 = vadd.f32 0.0, %v1186
  %v1188 = vpop.f32.mrb[0].mxu0
  %1189 = vmatprep.mubr.bf16.mxu0 0
  %1190 = vmatmul.mubr.bf16.gmra.mrb[0].mxu0 %v624
  %v1191 = vpop.f32.mrb[0].mxu0
  %v1192 = vadd.f32 0.0, %v1191
  %v1193 = vpop.f32.mrb[0].mxu0
  %v1194 = vpop.f32.mrb[0].mxu0
  %v1195 = vadd.f32 0.0, %v1194
  %v1196 = vpop.f32.mrb[0].mxu0
  %1197 = vmatprep.mubr.bf16.mxu0 0
  %1198 = vmatmul.mubr.bf16.gmra.mrb[0].mxu0 %v625
  %v1199 = vpop.f32.mrb[0].mxu0
  %v1200 = vadd.f32 0.0, %v1199
  %v1201 = vpop.f32.mrb[0].mxu0
  %v1202 = vpop.f32.mrb[0].mxu0
  %v1203 = vadd.f32 0.0, %v1202
  %v1204 = vpop.f32.mrb[0].mxu0
  %1205 = vmatprep.mubr.bf16.mxu0 0
  %1206 = vmatmul.mubr.bf16.gmra.mrb[0].mxu0 %v626
  %v1207 = vpop.f32.mrb[0].mxu0
  %v1208 = vadd.f32 0.0, %v1207
  %v1209 = vpop.f32.mrb[0].mxu0
  %v1210 = vpop.f32.mrb[0].mxu0
  %v1211 = vadd.f32 0.0, %v1210
  %v1212 = vpop.f32.mrb[0].mxu0
  %1213 = vmatprep.mubr.bf16.mxu0 0
  %1214 = vmatmul.mubr.bf16.gmra.mrb[0].mxu0 %v627
  %v1215 = vpop.f32.mrb[0].mxu0
  %v1216 = vadd.f32 0.0, %v1215
  %v1217 = vpop.f32.mrb[0].mxu0
  %v1218 = vpop.f32.mrb[0].mxu0
  %v1219 = vadd.f32 0.0, %v1218
  %v1220 = vpop.f32.mrb[0].mxu0
  %1221 = vmatprep.mubr.bf16.mxu0 0
  %1222 = vmatmul.mubr.bf16.gmra.mrb[0].mxu0 %v628
  %v1223 = vpop.f32.mrb[0].mxu0
  %v1224 = vadd.f32 0.0, %v1223
  %v1225 = vpop.f32.mrb[0].mxu0
  %v1226 = vpop.f32.mrb[0].mxu0
  %v1227 = vadd.f32 0.0, %v1226
  %v1228 = vpop.f32.mrb[0].mxu0
  %1229 = vmatprep.mubr.bf16.mxu0 0
  %1230 = vmatmul.mubr.bf16.gmra.mrb[0].mxu0 %v629
  %v1231 = vpop.f32.mrb[0].mxu0
  %v1232 = vadd.f32 0.0, %v1231
  %v1233 = vpop.f32.mrb[0].mxu0
  %v1234 = vpop.f32.mrb[0].mxu0
  %v1235 = vadd.f32 0.0, %v1234
  %v1236 = vpop.f32.mrb[0].mxu0
  %1237 = vmatprep.mubr.bf16.mxu0 0
  %1238 = vmatmul.mubr.bf16.gmra.mrb[0].mxu0 %v630
  %v1239 = vpop.f32.mrb[0].mxu0
  %v1240 = vadd.f32 0.0, %v1239
  %v1241 = vpop.f32.mrb[0].mxu0
  %v1242 = vpop.f32.mrb[0].mxu0
  %v1243 = vadd.f32 0.0, %v1242
  %v1244 = vpop.f32.mrb[0].mxu0
  %1245 = vmatprep.mubr.bf16.mxu0 0
  %1246 = vmatmul.mubr.bf16.gmra.mrb[0].mxu0 %v631
  %v1247 = vpop.f32.mrb[0].mxu0
  %v1248 = vadd.f32 0.0, %v1247
  %v1249 = vpop.f32.mrb[0].mxu0
  %v1250 = vpop.f32.mrb[0].mxu0
  %v1251 = vadd.f32 0.0, %v1250
  %v1252 = vpop.f32.mrb[0].mxu0
  %1253 = vmatprep.mubr.bf16.mxu0 0
  %1254 = vmatmul.mubr.bf16.gmra.mrb[0].mxu0 %v632
  %v1255 = vpop.f32.mrb[0].mxu0
  %v1256 = vadd.f32 0.0, %v1255
  %v1257 = vpop.f32.mrb[0].mxu0
  %v1258 = vpop.f32.mrb[0].mxu0
  %v1259 = vadd.f32 0.0, %v1258
  %v1260 = vpop.f32.mrb[0].mxu0
  %1261 = vmatprep.mubr.bf16.mxu0 0
  %1262 = vmatmul.mubr.bf16.gmra.mrb[0].mxu0 %v633
  %v1263 = vpop.f32.mrb[0].mxu0
  %v1264 = vadd.f32 0.0, %v1263
  %v1265 = vpop.f32.mrb[0].mxu0
  %v1266 = vpop.f32.mrb[0].mxu0
  %v1267 = vadd.f32 0.0, %v1266
  %v1268 = vpop.f32.mrb[0].mxu0
  %1269 = vmatprep.mubr.bf16.mxu0 0
  %1270 = vmatmul.mubr.bf16.gmra.mrb[0].mxu0 %v634
  %v1271 = vpop.f32.mrb[0].mxu0
  %v1272 = vadd.f32 0.0, %v1271
  %v1273 = vpop.f32.mrb[0].mxu0
  %v1274 = vpop.f32.mrb[0].mxu0
  %v1275 = vadd.f32 0.0, %v1274
  %v1276 = vpop.f32.mrb[0].mxu0
  %1277 = vmatprep.mubr.bf16.mxu0 0
  %1278 = vmatmul.mubr.bf16.gmra.mrb[0].mxu0 %v635
  %v1279 = vpop.f32.mrb[0].mxu0
  %v1280 = vadd.f32 0.0, %v1279
  %v1281 = vpop.f32.mrb[0].mxu0
  %v1282 = vpop.f32.mrb[0].mxu0
  %v1283 = vadd.f32 0.0, %v1282
  %v1284 = vpop.f32.mrb[0].mxu0
  %1285 = vmatprep.mubr.bf16.mxu0 0
  %1286 = vmatmul.mubr.bf16.gmra.mrb[0].mxu0 %v636
  %v1287 = vpop.f32.mrb[0].mxu0
  %v1288 = vadd.f32 0.0, %v1287
  %v1289 = vpop.f32.mrb[0].mxu0
  %v1290 = vpop.f32.mrb[0].mxu0
  %v1291 = vadd.f32 0.0, %v1290
  %v1292 = vpop.f32.mrb[0].mxu0
  %1293 = vdwg.mxu0
  %v1422 = vunpack.c.l.b16 %v27
  %v1423 = vunpack.c.l.b16 %v28
  %v1424 = vunpack.c.l.b16 %v29
  %v1425 = vunpack.c.l.b16 %v30
  %v1426 = vunpack.c.l.b16 %v31
  %v1427 = vunpack.c.l.b16 %v32
  %v1428 = vunpack.c.l.b16 %v33
  %v1429 = vunpack.c.l.b16 %v34
  %v1430 = vunpack.c.l.b16 %v35
  %v1431 = vunpack.c.l.b16 %v36
  %v1432 = vunpack.c.l.b16 %v37
  %v1433 = vunpack.c.l.b16 %v38
  %v1434 = vunpack.c.l.b16 %v39
  %v1435 = vunpack.c.l.b16 %v40
  %v1436 = vunpack.c.l.b16 %v41
  %v1437 = vunpack.c.l.b16 %v42
  %v1438 = vunpack.c.l.b16 %v43
  %v1439 = vunpack.c.l.b16 %v44
  %v1440 = vunpack.c.l.b16 %v45
  %v1441 = vunpack.c.l.b16 %v46
  %v1442 = vunpack.c.l.b16 %v47
  %v1443 = vunpack.c.l.b16 %v48
  %v1444 = vunpack.c.l.b16 %v49
  %v1445 = vunpack.c.l.b16 %v50
  %v1446 = vunpack.c.l.b16 %v51
  %v1447 = vunpack.c.l.b16 %v52
  %v1448 = vunpack.c.l.b16 %v53
  %v1449 = vunpack.c.l.b16 %v54
  %v1450 = vunpack.c.l.b16 %v55
  %v1451 = vunpack.c.l.b16 %v56
  %v1452 = vunpack.c.l.b16 %v57
  %v1453 = vunpack.c.l.b16 %v58
  %v1454 = vunpack.c.l.b16 %v59
  %v1455 = vunpack.c.l.b16 %v60
  %v1456 = vunpack.c.l.b16 %v61
  %v1457 = vunpack.c.l.b16 %v62
  %v1458 = vunpack.c.l.b16 %v63
  %v1459 = vunpack.c.l.b16 %v64
  %v1460 = vunpack.c.l.b16 %v65
  %v1461 = vunpack.c.l.b16 %v66
  %v1462 = vunpack.c.l.b16 %v67
  %v1463 = vunpack.c.l.b16 %v68
  %v1464 = vunpack.c.l.b16 %v69
  %v1465 = vunpack.c.l.b16 %v70
  %v1466 = vunpack.c.l.b16 %v71
  %v1467 = vunpack.c.l.b16 %v72
  %v1468 = vunpack.c.l.b16 %v73
  %v1469 = vunpack.c.l.b16 %v74
  %v1470 = vunpack.c.l.b16 %v75
  %v1471 = vunpack.c.l.b16 %v76
  %v1472 = vunpack.c.l.b16 %v77
  %v1473 = vunpack.c.l.b16 %v78
  %v1474 = vunpack.c.l.b16 %v79
  %v1475 = vunpack.c.l.b16 %v80
  %v1476 = vunpack.c.l.b16 %v81
  %v1477 = vunpack.c.l.b16 %v82
  %v1478 = vunpack.c.l.b16 %v83
  %v1479 = vunpack.c.l.b16 %v84
  %v1480 = vunpack.c.l.b16 %v85
  %v1481 = vunpack.c.l.b16 %v86
  %v1482 = vunpack.c.l.b16 %v87
  %v1483 = vunpack.c.l.b16 %v88
  %v1484 = vunpack.c.l.b16 %v89
  %v1485 = vunpack.c.l.b16 %v90
  %v1486 = vunpack.c.l.b16 %v91
  %v1487 = vunpack.c.l.b16 %v92
  %v1488 = vunpack.c.l.b16 %v93
  %v1489 = vunpack.c.l.b16 %v94
  %v1490 = vunpack.c.l.b16 %v95
  %v1491 = vunpack.c.l.b16 %v96
  %v1492 = vunpack.c.l.b16 %v97
  %v1493 = vunpack.c.l.b16 %v98
  %v1494 = vunpack.c.l.b16 %v99
  %v1495 = vunpack.c.l.b16 %v100
  %v1496 = vunpack.c.l.b16 %v101
  %v1497 = vunpack.c.l.b16 %v102
  %v1498 = vunpack.c.l.b16 %v103
  %v1499 = vunpack.c.l.b16 %v104
  %v1500 = vunpack.c.l.b16 %v105
  %v1501 = vunpack.c.l.b16 %v106
  %v1502 = vunpack.c.l.b16 %v107
  %v1503 = vunpack.c.l.b16 %v108
  %v1504 = vunpack.c.l.b16 %v109
  %v1505 = vunpack.c.l.b16 %v110
  %v1506 = vunpack.c.l.b16 %v111
  %v1507 = vunpack.c.l.b16 %v112
  %v1508 = vunpack.c.l.b16 %v113
  %v1509 = vunpack.c.l.b16 %v114
  %v1510 = vunpack.c.l.b16 %v115
  %v1511 = vunpack.c.l.b16 %v116
  %v1512 = vunpack.c.l.b16 %v117
  %v1513 = vunpack.c.l.b16 %v118
  %v1514 = vunpack.c.l.b16 %v119
  %v1515 = vunpack.c.l.b16 %v120
  %v1516 = vunpack.c.l.b16 %v121
  %v1517 = vunpack.c.l.b16 %v122
  %v1518 = vunpack.c.l.b16 %v123
  %v1519 = vunpack.c.l.b16 %v124
  %v1520 = vunpack.c.l.b16 %v125
  %v1521 = vunpack.c.l.b16 %v126
  %v1522 = vunpack.c.l.b16 %v127
  %v1523 = vunpack.c.l.b16 %v128
  %v1524 = vunpack.c.l.b16 %v129
  %v1525 = vunpack.c.l.b16 %v130
  %v1526 = vunpack.c.l.b16 %v131
  %v1527 = vunpack.c.l.b16 %v132
  %v1528 = vunpack.c.l.b16 %v133
  %v1529 = vunpack.c.l.b16 %v134
  %v1530 = vunpack.c.l.b16 %v135
  %v1531 = vunpack.c.l.b16 %v136
  %v1532 = vunpack.c.l.b16 %v137
  %v1533 = vunpack.c.l.b16 %v138
  %v1534 = vunpack.c.l.b16 %v139
  %v1535 = vunpack.c.l.b16 %v140
  %v1536 = vunpack.c.l.b16 %v141
  %v1537 = vunpack.c.l.b16 %v142
  %v1538 = vunpack.c.l.b16 %v143
  %v1539 = vunpack.c.l.b16 %v144
  %v1540 = vunpack.c.l.b16 %v145
  %v1541 = vunpack.c.l.b16 %v146
  %v1542 = vunpack.c.l.b16 %v147
  %v1543 = vunpack.c.l.b16 %v148
  %v1544 = vunpack.c.l.b16 %v149
  %v1545 = vunpack.c.l.b16 %v150
  %v1546 = vunpack.c.l.b16 %v151
  %v1547 = vunpack.c.l.b16 %v152
  %v1548 = vunpack.c.l.b16 %v153
  %v1549 = vunpack.c.l.b16 %v154
  %v1550 = vpack.c.b16 %v1423, %v1422
  %v1551 = vpack.c.b16 %v1425, %v1424
  %v1552 = vpack.c.b16 %v1427, %v1426
  %v1553 = vpack.c.b16 %v1429, %v1428
  %v1554 = vpack.c.b16 %v1431, %v1430
  %v1555 = vpack.c.b16 %v1433, %v1432
  %v1556 = vpack.c.b16 %v1435, %v1434
  %v1557 = vpack.c.b16 %v1437, %v1436
  %v1558 = vpack.c.b16 %v1439, %v1438
  %v1559 = vpack.c.b16 %v1441, %v1440
  %v1560 = vpack.c.b16 %v1443, %v1442
  %v1561 = vpack.c.b16 %v1445, %v1444
  %v1562 = vpack.c.b16 %v1447, %v1446
  %v1563 = vpack.c.b16 %v1449, %v1448
  %v1564 = vpack.c.b16 %v1451, %v1450
  %v1565 = vpack.c.b16 %v1453, %v1452
  %v1566 = vpack.c.b16 %v1455, %v1454
  %v1567 = vpack.c.b16 %v1457, %v1456
  %v1568 = vpack.c.b16 %v1459, %v1458
  %v1569 = vpack.c.b16 %v1461, %v1460
  %v1570 = vpack.c.b16 %v1463, %v1462
  %v1571 = vpack.c.b16 %v1465, %v1464
  %v1572 = vpack.c.b16 %v1467, %v1466
  %v1573 = vpack.c.b16 %v1469, %v1468
  %v1574 = vpack.c.b16 %v1471, %v1470
  %v1575 = vpack.c.b16 %v1473, %v1472
  %v1576 = vpack.c.b16 %v1475, %v1474
  %v1577 = vpack.c.b16 %v1477, %v1476
  %v1578 = vpack.c.b16 %v1479, %v1478
  %v1579 = vpack.c.b16 %v1481, %v1480
  %v1580 = vpack.c.b16 %v1483, %v1482
  %v1581 = vpack.c.b16 %v1485, %v1484
  %v1582 = vpack.c.b16 %v1487, %v1486
  %v1583 = vpack.c.b16 %v1489, %v1488
  %v1584 = vpack.c.b16 %v1491, %v1490
  %v1585 = vpack.c.b16 %v1493, %v1492
  %v1586 = vpack.c.b16 %v1495, %v1494
  %v1587 = vpack.c.b16 %v1497, %v1496
  %v1588 = vpack.c.b16 %v1499, %v1498
  %v1589 = vpack.c.b16 %v1501, %v1500
  %v1590 = vpack.c.b16 %v1503, %v1502
  %v1591 = vpack.c.b16 %v1505, %v1504
  %v1592 = vpack.c.b16 %v1507, %v1506
  %v1593 = vpack.c.b16 %v1509, %v1508
  %v1594 = vpack.c.b16 %v1511, %v1510
  %v1595 = vpack.c.b16 %v1513, %v1512
  %v1596 = vpack.c.b16 %v1515, %v1514
  %v1597 = vpack.c.b16 %v1517, %v1516
  %v1598 = vpack.c.b16 %v1519, %v1518
  %v1599 = vpack.c.b16 %v1521, %v1520
  %v1600 = vpack.c.b16 %v1523, %v1522
  %v1601 = vpack.c.b16 %v1525, %v1524
  %v1602 = vpack.c.b16 %v1527, %v1526
  %v1603 = vpack.c.b16 %v1529, %v1528
  %v1604 = vpack.c.b16 %v1531, %v1530
  %v1605 = vpack.c.b16 %v1533, %v1532
  %v1606 = vpack.c.b16 %v1535, %v1534
  %v1607 = vpack.c.b16 %v1537, %v1536
  %v1608 = vpack.c.b16 %v1539, %v1538
  %v1609 = vpack.c.b16 %v1541, %v1540
  %v1610 = vpack.c.b16 %v1543, %v1542
  %v1611 = vpack.c.b16 %v1545, %v1544
  %v1612 = vpack.c.b16 %v1547, %v1546
  %v1613 = vpack.c.b16 %v1549, %v1548
  %v1694 = vunpack.c.l.b16 %v155
  %v1695 = vunpack.c.l.b16 %v156
  %v1696 = vunpack.c.l.b16 %v157
  %v1697 = vunpack.c.l.b16 %v158
  %v1698 = vunpack.c.l.b16 %v159
  %v1699 = vunpack.c.l.b16 %v160
  %v1700 = vunpack.c.l.b16 %v161
  %v1701 = vunpack.c.l.b16 %v162
  %v1702 = vunpack.c.l.b16 %v163
  %v1703 = vunpack.c.l.b16 %v164
  %v1704 = vunpack.c.l.b16 %v165
  %v1705 = vunpack.c.l.b16 %v166
  %v1706 = vunpack.c.l.b16 %v167
  %v1707 = vunpack.c.l.b16 %v168
  %v1708 = vunpack.c.l.b16 %v169
  %v1709 = vunpack.c.l.b16 %v170
  %v1710 = vpack.c.b16 %v1695, %v1694
  %v1711 = vpack.c.b16 %v1697, %v1696
  %v1712 = vpack.c.b16 %v1699, %v1698
  %v1713 = vpack.c.b16 %v1701, %v1700
  %v1714 = vpack.c.b16 %v1703, %v1702
  %v1715 = vpack.c.b16 %v1705, %v1704
  %v1716 = vpack.c.b16 %v1707, %v1706
  %v1717 = vpack.c.b16 %v1709, %v1708
  %1726 = vmatprep.subr.bf16.mxu0 0
  %1727 = vmatpush1.bf16.msra.mxu0 %v1710
  %1728 = vmatprep.subr.bf16.mxu0 0
  %1729 = vmatpush1.bf16.msra.mxu0 %v1711
  %1730 = vmatprep.subr.bf16.mxu0 0
  %1731 = vmatpush1.bf16.msra.mxu0 %v1712
  %1732 = vmatprep.subr.bf16.mxu0 0
  %1733 = vmatpush1.bf16.msra.mxu0 %v1713
  %1734 = vmatprep.subr.bf16.mxu0 0
  %1735 = vmatpush1.bf16.msra.mxu0 %v1714
  %1736 = vmatprep.subr.bf16.mxu0 0
  %1737 = vmatpush1.bf16.msra.mxu0 %v1715
  %1738 = vmatprep.subr.bf16.mxu0 0
  %1739 = vmatpush1.bf16.msra.mxu0 %v1716
  %1740 = vmatprep.subr.bf16.mxu0 0
  %1741 = vmatpush1.bf16.msra.mxu0 %v1717
  %1742 = vmatprep.subr.bf16.mxu0 0
  %1743 = vmatpush1.bf16.msra.mxu0 0
  %1744 = vmatprep.subr.bf16.mxu0 0
  %1745 = vmatpush1.bf16.msra.mxu0 0
  %1746 = vmatprep.subr.bf16.mxu0 0
  %1747 = vmatpush1.bf16.msra.mxu0 0
  %1748 = vmatprep.subr.bf16.mxu0 0
  %1749 = vmatpush1.bf16.msra.mxu0 0
  %1750 = vmatprep.subr.bf16.mxu0 0
  %1751 = vmatpush1.bf16.msra.mxu0 0
  %1752 = vmatprep.subr.bf16.mxu0 0
  %1753 = vmatpush1.bf16.msra.mxu0 0
  %1754 = vmatprep.subr.bf16.mxu0 0
  %1755 = vmatpush1.bf16.msra.mxu0 0
  %1756 = vmatprep.subr.bf16.mxu0 0
  %1757 = vmatpush1.bf16.msra.mxu0 0
  %1758 = vmatprep.mubr.bf16.mxu0 0
  %1759 = vmatmul.mubr.bf16.gmra.mrb[0].mxu0 %v1550
  %v1760 = vpop.f32.mrb[0].mxu0
  %v1761 = vadd.f32 %v784, %v1760
  %v1762 = vpop.f32.mrb[0].mxu0
  %v1763 = vpop.f32.mrb[0].mxu0
  %v1764 = vadd.f32 %v787, %v1763
  %v1765 = vpop.f32.mrb[0].mxu0
  %1766 = vmatprep.mubr.bf16.mxu0 0
  %1767 = vmatmul.mubr.bf16.gmra.mrb[0].mxu0 %v1551
  %v1768 = vpop.f32.mrb[0].mxu0
  %v1769 = vadd.f32 %v792, %v1768
  %v1770 = vpop.f32.mrb[0].mxu0
  %v1771 = vpop.f32.mrb[0].mxu0
  %v1772 = vadd.f32 %v795, %v1771
  %v1773 = vpop.f32.mrb[0].mxu0
  %1774 = vmatprep.mubr.bf16.mxu0 0
  %1775 = vmatmul.mubr.bf16.gmra.mrb[0].mxu0 %v1552
  %v1776 = vpop.f32.mrb[0].mxu0
  %v1777 = vadd.f32 %v800, %v1776
  %v1778 = vpop.f32.mrb[0].mxu0
  %v1779 = vpop.f32.mrb[0].mxu0
  %v1780 = vadd.f32 %v803, %v1779
  %v1781 = vpop.f32.mrb[0].mxu0
  %1782 = vmatprep.mubr.bf16.mxu0 0
  %1783 = vmatmul.mubr.bf16.gmra.mrb[0].mxu0 %v1553
  %v1784 = vpop.f32.mrb[0].mxu0
  %v1785 = vadd.f32 %v808, %v1784
  %v1786 = vpop.f32.mrb[0].mxu0
  %v1787 = vpop.f32.mrb[0].mxu0
  %v1788 = vadd.f32 %v811, %v1787
  %v1789 = vpop.f32.mrb[0].mxu0
  %1790 = vmatprep.mubr.bf16.mxu0 0
  %1791 = vmatmul.mubr.bf16.gmra.mrb[0].mxu0 %v1554
  %v1792 = vpop.f32.mrb[0].mxu0
  %v1793 = vadd.f32 %v816, %v1792
  %v1794 = vpop.f32.mrb[0].mxu0
  %v1795 = vpop.f32.mrb[0].mxu0
  %v1796 = vadd.f32 %v819, %v1795
  %v1797 = vpop.f32.mrb[0].mxu0
  %1798 = vmatprep.mubr.bf16.mxu0 0
  %1799 = vmatmul.mubr.bf16.gmra.mrb[0].mxu0 %v1555
  %v1800 = vpop.f32.mrb[0].mxu0
  %v1801 = vadd.f32 %v824, %v1800
  %v1802 = vpop.f32.mrb[0].mxu0
  %v1803 = vpop.f32.mrb[0].mxu0
  %v1804 = vadd.f32 %v827, %v1803
  %v1805 = vpop.f32.mrb[0].mxu0
  %1806 = vmatprep.mubr.bf16.mxu0 0
  %1807 = vmatmul.mubr.bf16.gmra.mrb[0].mxu0 %v1556
  %v1808 = vpop.f32.mrb[0].mxu0
  %v1809 = vadd.f32 %v832, %v1808
  %v1810 = vpop.f32.mrb[0].mxu0
  %v1811 = vpop.f32.mrb[0].mxu0
  %v1812 = vadd.f32 %v835, %v1811
  %v1813 = vpop.f32.mrb[0].mxu0
  %1814 = vmatprep.mubr.bf16.mxu0 0
  %1815 = vmatmul.mubr.bf16.gmra.mrb[0].mxu0 %v1557
  %v1816 = vpop.f32.mrb[0].mxu0
  %v1817 = vadd.f32 %v840, %v1816
  %v1818 = vpop.f32.mrb[0].mxu0
  %v1819 = vpop.f32.mrb[0].mxu0
  %v1820 = vadd.f32 %v843, %v1819
  %v1821 = vpop.f32.mrb[0].mxu0
  %1822 = vmatprep.mubr.bf16.mxu0 0
  %1823 = vmatmul.mubr.bf16.gmra.mrb[0].mxu0 %v1558
  %v1824 = vpop.f32.mrb[0].mxu0
  %v1825 = vadd.f32 %v848, %v1824
  %v1826 = vpop.f32.mrb[0].mxu0
  %v1827 = vpop.f32.mrb[0].mxu0
  %v1828 = vadd.f32 %v851, %v1827
  %v1829 = vpop.f32.mrb[0].mxu0
  %1830 = vmatprep.mubr.bf16.mxu0 0
  %1831 = vmatmul.mubr.bf16.gmra.mrb[0].mxu0 %v1559
  %v1832 = vpop.f32.mrb[0].mxu0
  %v1833 = vadd.f32 %v856, %v1832
  %v1834 = vpop.f32.mrb[0].mxu0
  %v1835 = vpop.f32.mrb[0].mxu0
  %v1836 = vadd.f32 %v859, %v1835
  %v1837 = vpop.f32.mrb[0].mxu0
  %1838 = vmatprep.mubr.bf16.mxu0 0
  %1839 = vmatmul.mubr.bf16.gmra.mrb[0].mxu0 %v1560
  %v1840 = vpop.f32.mrb[0].mxu0
  %v1841 = vadd.f32 %v864, %v1840
  %v1842 = vpop.f32.mrb[0].mxu0
  %v1843 = vpop.f32.mrb[0].mxu0
  %v1844 = vadd.f32 %v867, %v1843
  %v1845 = vpop.f32.mrb[0].mxu0
  %1846 = vmatprep.mubr.bf16.mxu0 0
  %1847 = vmatmul.mubr.bf16.gmra.mrb[0].mxu0 %v1561
  %v1848 = vpop.f32.mrb[0].mxu0
  %v1849 = vadd.f32 %v872, %v1848
  %v1850 = vpop.f32.mrb[0].mxu0
  %v1851 = vpop.f32.mrb[0].mxu0
  %v1852 = vadd.f32 %v875, %v1851
  %v1853 = vpop.f32.mrb[0].mxu0
  %1854 = vmatprep.mubr.bf16.mxu0 0
  %1855 = vmatmul.mubr.bf16.gmra.mrb[0].mxu0 %v1562
  %v1856 = vpop.f32.mrb[0].mxu0
  %v1857 = vadd.f32 %v880, %v1856
  %v1858 = vpop.f32.mrb[0].mxu0
  %v1859 = vpop.f32.mrb[0].mxu0
  %v1860 = vadd.f32 %v883, %v1859
  %v1861 = vpop.f32.mrb[0].mxu0
  %1862 = vmatprep.mubr.bf16.mxu0 0
  %1863 = vmatmul.mubr.bf16.gmra.mrb[0].mxu0 %v1563
  %v1864 = vpop.f32.mrb[0].mxu0
  %v1865 = vadd.f32 %v888, %v1864
  %v1866 = vpop.f32.mrb[0].mxu0
  %v1867 = vpop.f32.mrb[0].mxu0
  %v1868 = vadd.f32 %v891, %v1867
  %v1869 = vpop.f32.mrb[0].mxu0
  %1870 = vmatprep.mubr.bf16.mxu0 0
  %1871 = vmatmul.mubr.bf16.gmra.mrb[0].mxu0 %v1564
  %v1872 = vpop.f32.mrb[0].mxu0
  %v1873 = vadd.f32 %v896, %v1872
  %v1874 = vpop.f32.mrb[0].mxu0
  %v1875 = vpop.f32.mrb[0].mxu0
  %v1876 = vadd.f32 %v899, %v1875
  %v1877 = vpop.f32.mrb[0].mxu0
  %1878 = vmatprep.mubr.bf16.mxu0 0
  %1879 = vmatmul.mubr.bf16.gmra.mrb[0].mxu0 %v1565
  %v1880 = vpop.f32.mrb[0].mxu0
  %v1881 = vadd.f32 %v904, %v1880
  %v1882 = vpop.f32.mrb[0].mxu0
  %v1883 = vpop.f32.mrb[0].mxu0
  %v1884 = vadd.f32 %v907, %v1883
  %v1885 = vpop.f32.mrb[0].mxu0
  %1886 = vmatprep.mubr.bf16.mxu0 0
  %1887 = vmatmul.mubr.bf16.gmra.mrb[0].mxu0 %v1566
  %v1888 = vpop.f32.mrb[0].mxu0
  %v1889 = vadd.f32 %v912, %v1888
  %v1890 = vpop.f32.mrb[0].mxu0
  %v1891 = vpop.f32.mrb[0].mxu0
  %v1892 = vadd.f32 %v915, %v1891
  %v1893 = vpop.f32.mrb[0].mxu0
  %1894 = vmatprep.mubr.bf16.mxu0 0
  %1895 = vmatmul.mubr.bf16.gmra.mrb[0].mxu0 %v1567
  %v1896 = vpop.f32.mrb[0].mxu0
  %v1897 = vadd.f32 %v920, %v1896
  %v1898 = vpop.f32.mrb[0].mxu0
  %v1899 = vpop.f32.mrb[0].mxu0
  %v1900 = vadd.f32 %v923, %v1899
  %v1901 = vpop.f32.mrb[0].mxu0
  %1902 = vmatprep.mubr.bf16.mxu0 0
  %1903 = vmatmul.mubr.bf16.gmra.mrb[0].mxu0 %v1568
  %v1904 = vpop.f32.mrb[0].mxu0
  %v1905 = vadd.f32 %v928, %v1904
  %v1906 = vpop.f32.mrb[0].mxu0
  %v1907 = vpop.f32.mrb[0].mxu0
  %v1908 = vadd.f32 %v931, %v1907
  %v1909 = vpop.f32.mrb[0].mxu0
  %1910 = vmatprep.mubr.bf16.mxu0 0
  %1911 = vmatmul.mubr.bf16.gmra.mrb[0].mxu0 %v1569
  %v1912 = vpop.f32.mrb[0].mxu0
  %v1913 = vadd.f32 %v936, %v1912
  %v1914 = vpop.f32.mrb[0].mxu0
  %v1915 = vpop.f32.mrb[0].mxu0
  %v1916 = vadd.f32 %v939, %v1915
  %v1917 = vpop.f32.mrb[0].mxu0
  %1918 = vmatprep.mubr.bf16.mxu0 0
  %1919 = vmatmul.mubr.bf16.gmra.mrb[0].mxu0 %v1570
  %v1920 = vpop.f32.mrb[0].mxu0
  %v1921 = vadd.f32 %v944, %v1920
  %v1922 = vpop.f32.mrb[0].mxu0
  %v1923 = vpop.f32.mrb[0].mxu0
  %v1924 = vadd.f32 %v947, %v1923
  %v1925 = vpop.f32.mrb[0].mxu0
  %1926 = vmatprep.mubr.bf16.mxu0 0
  %1927 = vmatmul.mubr.bf16.gmra.mrb[0].mxu0 %v1571
  %v1928 = vpop.f32.mrb[0].mxu0
  %v1929 = vadd.f32 %v952, %v1928
  %v1930 = vpop.f32.mrb[0].mxu0
  %v1931 = vpop.f32.mrb[0].mxu0
  %v1932 = vadd.f32 %v955, %v1931
  %v1933 = vpop.f32.mrb[0].mxu0
  %1934 = vmatprep.mubr.bf16.mxu0 0
  %1935 = vmatmul.mubr.bf16.gmra.mrb[0].mxu0 %v1572
  %v1936 = vpop.f32.mrb[0].mxu0
  %v1937 = vadd.f32 %v960, %v1936
  %v1938 = vpop.f32.mrb[0].mxu0
  %v1939 = vpop.f32.mrb[0].mxu0
  %v1940 = vadd.f32 %v963, %v1939
  %v1941 = vpop.f32.mrb[0].mxu0
  %1942 = vmatprep.mubr.bf16.mxu0 0
  %1943 = vmatmul.mubr.bf16.gmra.mrb[0].mxu0 %v1573
  %v1944 = vpop.f32.mrb[0].mxu0
  %v1945 = vadd.f32 %v968, %v1944
  %v1946 = vpop.f32.mrb[0].mxu0
  %v1947 = vpop.f32.mrb[0].mxu0
  %v1948 = vadd.f32 %v971, %v1947
  %v1949 = vpop.f32.mrb[0].mxu0
  %1950 = vmatprep.mubr.bf16.mxu0 0
  %1951 = vmatmul.mubr.bf16.gmra.mrb[0].mxu0 %v1574
  %v1952 = vpop.f32.mrb[0].mxu0
  %v1953 = vadd.f32 %v976, %v1952
  %v1954 = vpop.f32.mrb[0].mxu0
  %v1955 = vpop.f32.mrb[0].mxu0
  %v1956 = vadd.f32 %v979, %v1955
  %v1957 = vpop.f32.mrb[0].mxu0
  %1958 = vmatprep.mubr.bf16.mxu0 0
  %1959 = vmatmul.mubr.bf16.gmra.mrb[0].mxu0 %v1575
  %v1960 = vpop.f32.mrb[0].mxu0
  %v1961 = vadd.f32 %v984, %v1960
  %v1962 = vpop.f32.mrb[0].mxu0
  %v1963 = vpop.f32.mrb[0].mxu0
  %v1964 = vadd.f32 %v987, %v1963
  %v1965 = vpop.f32.mrb[0].mxu0
  %1966 = vmatprep.mubr.bf16.mxu0 0
  %1967 = vmatmul.mubr.bf16.gmra.mrb[0].mxu0 %v1576
  %v1968 = vpop.f32.mrb[0].mxu0
  %v1969 = vadd.f32 %v992, %v1968
  %v1970 = vpop.f32.mrb[0].mxu0
  %v1971 = vpop.f32.mrb[0].mxu0
  %v1972 = vadd.f32 %v995, %v1971
  %v1973 = vpop.f32.mrb[0].mxu0
  %1974 = vmatprep.mubr.bf16.mxu0 0
  %1975 = vmatmul.mubr.bf16.gmra.mrb[0].mxu0 %v1577
  %v1976 = vpop.f32.mrb[0].mxu0
  %v1977 = vadd.f32 %v1000, %v1976
  %v1978 = vpop.f32.mrb[0].mxu0
  %v1979 = vpop.f32.mrb[0].mxu0
  %v1980 = vadd.f32 %v1003, %v1979
  %v1981 = vpop.f32.mrb[0].mxu0
  %1982 = vmatprep.mubr.bf16.mxu0 0
  %1983 = vmatmul.mubr.bf16.gmra.mrb[0].mxu0 %v1578
  %v1984 = vpop.f32.mrb[0].mxu0
  %v1985 = vadd.f32 %v1008, %v1984
  %v1986 = vpop.f32.mrb[0].mxu0
  %v1987 = vpop.f32.mrb[0].mxu0
  %v1988 = vadd.f32 %v1011, %v1987
  %v1989 = vpop.f32.mrb[0].mxu0
  %1990 = vmatprep.mubr.bf16.mxu0 0
  %1991 = vmatmul.mubr.bf16.gmra.mrb[0].mxu0 %v1579
  %v1992 = vpop.f32.mrb[0].mxu0
  %v1993 = vadd.f32 %v1016, %v1992
  %v1994 = vpop.f32.mrb[0].mxu0
  %v1995 = vpop.f32.mrb[0].mxu0
  %v1996 = vadd.f32 %v1019, %v1995
  %v1997 = vpop.f32.mrb[0].mxu0
  %1998 = vmatprep.mubr.bf16.mxu0 0
  %1999 = vmatmul.mubr.bf16.gmra.mrb[0].mxu0 %v1580
  %v2000 = vpop.f32.mrb[0].mxu0
  %v2001 = vadd.f32 %v1024, %v2000
  %v2002 = vpop.f32.mrb[0].mxu0
  %v2003 = vpop.f32.mrb[0].mxu0
  %v2004 = vadd.f32 %v1027, %v2003
  %v2005 = vpop.f32.mrb[0].mxu0
  %2006 = vmatprep.mubr.bf16.mxu0 0
  %2007 = vmatmul.mubr.bf16.gmra.mrb[0].mxu0 %v1581
  %v2008 = vpop.f32.mrb[0].mxu0
  %v2009 = vadd.f32 %v1032, %v2008
  %v2010 = vpop.f32.mrb[0].mxu0
  %v2011 = vpop.f32.mrb[0].mxu0
  %v2012 = vadd.f32 %v1035, %v2011
  %v2013 = vpop.f32.mrb[0].mxu0
  %2014 = vmatprep.mubr.bf16.mxu0 0
  %2015 = vmatmul.mubr.bf16.gmra.mrb[0].mxu0 %v1582
  %v2016 = vpop.f32.mrb[0].mxu0
  %v2017 = vadd.f32 %v1040, %v2016
  %v2018 = vpop.f32.mrb[0].mxu0
  %v2019 = vpop.f32.mrb[0].mxu0
  %v2020 = vadd.f32 %v1043, %v2019
  %v2021 = vpop.f32.mrb[0].mxu0
  %2022 = vmatprep.mubr.bf16.mxu0 0
  %2023 = vmatmul.mubr.bf16.gmra.mrb[0].mxu0 %v1583
  %v2024 = vpop.f32.mrb[0].mxu0
  %v2025 = vadd.f32 %v1048, %v2024
  %v2026 = vpop.f32.mrb[0].mxu0
  %v2027 = vpop.f32.mrb[0].mxu0
  %v2028 = vadd.f32 %v1051, %v2027
  %v2029 = vpop.f32.mrb[0].mxu0
  %2030 = vmatprep.mubr.bf16.mxu0 0
  %2031 = vmatmul.mubr.bf16.gmra.mrb[0].mxu0 %v1584
  %v2032 = vpop.f32.mrb[0].mxu0
  %v2033 = vadd.f32 %v1056, %v2032
  %v2034 = vpop.f32.mrb[0].mxu0
  %v2035 = vpop.f32.mrb[0].mxu0
  %v2036 = vadd.f32 %v1059, %v2035
  %v2037 = vpop.f32.mrb[0].mxu0
  %2038 = vmatprep.mubr.bf16.mxu0 0
  %2039 = vmatmul.mubr.bf16.gmra.mrb[0].mxu0 %v1585
  %v2040 = vpop.f32.mrb[0].mxu0
  %v2041 = vadd.f32 %v1064, %v2040
  %v2042 = vpop.f32.mrb[0].mxu0
  %v2043 = vpop.f32.mrb[0].mxu0
  %v2044 = vadd.f32 %v1067, %v2043
  %v2045 = vpop.f32.mrb[0].mxu0
  %2046 = vmatprep.mubr.bf16.mxu0 0
  %2047 = vmatmul.mubr.bf16.gmra.mrb[0].mxu0 %v1586
  %v2048 = vpop.f32.mrb[0].mxu0
  %v2049 = vadd.f32 %v1072, %v2048
  %v2050 = vpop.f32.mrb[0].mxu0
  %v2051 = vpop.f32.mrb[0].mxu0
  %v2052 = vadd.f32 %v1075, %v2051
  %v2053 = vpop.f32.mrb[0].mxu0
  %2054 = vmatprep.mubr.bf16.mxu0 0
  %2055 = vmatmul.mubr.bf16.gmra.mrb[0].mxu0 %v1587
  %v2056 = vpop.f32.mrb[0].mxu0
  %v2057 = vadd.f32 %v1080, %v2056
  %v2058 = vpop.f32.mrb[0].mxu0
  %v2059 = vpop.f32.mrb[0].mxu0
  %v2060 = vadd.f32 %v1083, %v2059
  %v2061 = vpop.f32.mrb[0].mxu0
  %2062 = vmatprep.mubr.bf16.mxu0 0
  %2063 = vmatmul.mubr.bf16.gmra.mrb[0].mxu0 %v1588
  %v2064 = vpop.f32.mrb[0].mxu0
  %v2065 = vadd.f32 %v1088, %v2064
  %v2066 = vpop.f32.mrb[0].mxu0
  %v2067 = vpop.f32.mrb[0].mxu0
  %v2068 = vadd.f32 %v1091, %v2067
  %v2069 = vpop.f32.mrb[0].mxu0
  %2070 = vmatprep.mubr.bf16.mxu0 0
  %2071 = vmatmul.mubr.bf16.gmra.mrb[0].mxu0 %v1589
  %v2072 = vpop.f32.mrb[0].mxu0
  %v2073 = vadd.f32 %v1096, %v2072
  %v2074 = vpop.f32.mrb[0].mxu0
  %v2075 = vpop.f32.mrb[0].mxu0
  %v2076 = vadd.f32 %v1099, %v2075
  %v2077 = vpop.f32.mrb[0].mxu0
  %2078 = vmatprep.mubr.bf16.mxu0 0
  %2079 = vmatmul.mubr.bf16.gmra.mrb[0].mxu0 %v1590
  %v2080 = vpop.f32.mrb[0].mxu0
  %v2081 = vadd.f32 %v1104, %v2080
  %v2082 = vpop.f32.mrb[0].mxu0
  %v2083 = vpop.f32.mrb[0].mxu0
  %v2084 = vadd.f32 %v1107, %v2083
  %v2085 = vpop.f32.mrb[0].mxu0
  %2086 = vmatprep.mubr.bf16.mxu0 0
  %2087 = vmatmul.mubr.bf16.gmra.mrb[0].mxu0 %v1591
  %v2088 = vpop.f32.mrb[0].mxu0
  %v2089 = vadd.f32 %v1112, %v2088
  %v2090 = vpop.f32.mrb[0].mxu0
  %v2091 = vpop.f32.mrb[0].mxu0
  %v2092 = vadd.f32 %v1115, %v2091
  %v2093 = vpop.f32.mrb[0].mxu0
  %2094 = vmatprep.mubr.bf16.mxu0 0
  %2095 = vmatmul.mubr.bf16.gmra.mrb[0].mxu0 %v1592
  %v2096 = vpop.f32.mrb[0].mxu0
  %v2097 = vadd.f32 %v1120, %v2096
  %v2098 = vpop.f32.mrb[0].mxu0
  %v2099 = vpop.f32.mrb[0].mxu0
  %v2100 = vadd.f32 %v1123, %v2099
  %v2101 = vpop.f32.mrb[0].mxu0
  %2102 = vmatprep.mubr.bf16.mxu0 0
  %2103 = vmatmul.mubr.bf16.gmra.mrb[0].mxu0 %v1593
  %v2104 = vpop.f32.mrb[0].mxu0
  %v2105 = vadd.f32 %v1128, %v2104
  %v2106 = vpop.f32.mrb[0].mxu0
  %v2107 = vpop.f32.mrb[0].mxu0
  %v2108 = vadd.f32 %v1131, %v2107
  %v2109 = vpop.f32.mrb[0].mxu0
  %2110 = vmatprep.mubr.bf16.mxu0 0
  %2111 = vmatmul.mubr.bf16.gmra.mrb[0].mxu0 %v1594
  %v2112 = vpop.f32.mrb[0].mxu0
  %v2113 = vadd.f32 %v1136, %v2112
  %v2114 = vpop.f32.mrb[0].mxu0
  %v2115 = vpop.f32.mrb[0].mxu0
  %v2116 = vadd.f32 %v1139, %v2115
  %v2117 = vpop.f32.mrb[0].mxu0
  %2118 = vmatprep.mubr.bf16.mxu0 0
  %2119 = vmatmul.mubr.bf16.gmra.mrb[0].mxu0 %v1595
  %v2120 = vpop.f32.mrb[0].mxu0
  %v2121 = vadd.f32 %v1144, %v2120
  %v2122 = vpop.f32.mrb[0].mxu0
  %v2123 = vpop.f32.mrb[0].mxu0
  %v2124 = vadd.f32 %v1147, %v2123
  %v2125 = vpop.f32.mrb[0].mxu0
  %2126 = vmatprep.mubr.bf16.mxu0 0
  %2127 = vmatmul.mubr.bf16.gmra.mrb[0].mxu0 %v1596
  %v2128 = vpop.f32.mrb[0].mxu0
  %v2129 = vadd.f32 %v1152, %v2128
  %v2130 = vpop.f32.mrb[0].mxu0
  %v2131 = vpop.f32.mrb[0].mxu0
  %v2132 = vadd.f32 %v1155, %v2131
  %v2133 = vpop.f32.mrb[0].mxu0
  %2134 = vmatprep.mubr.bf16.mxu0 0
  %2135 = vmatmul.mubr.bf16.gmra.mrb[0].mxu0 %v1597
  %v2136 = vpop.f32.mrb[0].mxu0
  %v2137 = vadd.f32 %v1160, %v2136
  %v2138 = vpop.f32.mrb[0].mxu0
  %v2139 = vpop.f32.mrb[0].mxu0
  %v2140 = vadd.f32 %v1163, %v2139
  %v2141 = vpop.f32.mrb[0].mxu0
  %2142 = vmatprep.mubr.bf16.mxu0 0
  %2143 = vmatmul.mubr.bf16.gmra.mrb[0].mxu0 %v1598
  %v2144 = vpop.f32.mrb[0].mxu0
  %v2145 = vadd.f32 %v1168, %v2144
  %v2146 = vpop.f32.mrb[0].mxu0
  %v2147 = vpop.f32.mrb[0].mxu0
  %v2148 = vadd.f32 %v1171, %v2147
  %v2149 = vpop.f32.mrb[0].mxu0
  %2150 = vmatprep.mubr.bf16.mxu0 0
  %2151 = vmatmul.mubr.bf16.gmra.mrb[0].mxu0 %v1599
  %v2152 = vpop.f32.mrb[0].mxu0
  %v2153 = vadd.f32 %v1176, %v2152
  %v2154 = vpop.f32.mrb[0].mxu0
  %v2155 = vpop.f32.mrb[0].mxu0
  %v2156 = vadd.f32 %v1179, %v2155
  %v2157 = vpop.f32.mrb[0].mxu0
  %2158 = vmatprep.mubr.bf16.mxu0 0
  %2159 = vmatmul.mubr.bf16.gmra.mrb[0].mxu0 %v1600
  %v2160 = vpop.f32.mrb[0].mxu0
  %v2161 = vadd.f32 %v1184, %v2160
  %v2162 = vpop.f32.mrb[0].mxu0
  %v2163 = vpop.f32.mrb[0].mxu0
  %v2164 = vadd.f32 %v1187, %v2163
  %v2165 = vpop.f32.mrb[0].mxu0
  %2166 = vmatprep.mubr.bf16.mxu0 0
  %2167 = vmatmul.mubr.bf16.gmra.mrb[0].mxu0 %v1601
  %v2168 = vpop.f32.mrb[0].mxu0
  %v2169 = vadd.f32 %v1192, %v2168
  %v2170 = vpop.f32.mrb[0].mxu0
  %v2171 = vpop.f32.mrb[0].mxu0
  %v2172 = vadd.f32 %v1195, %v2171
  %v2173 = vpop.f32.mrb[0].mxu0
  %2174 = vmatprep.mubr.bf16.mxu0 0
  %2175 = vmatmul.mubr.bf16.gmra.mrb[0].mxu0 %v1602
  %v2176 = vpop.f32.mrb[0].mxu0
  %v2177 = vadd.f32 %v1200, %v2176
  %v2178 = vpop.f32.mrb[0].mxu0
  %v2179 = vpop.f32.mrb[0].mxu0
  %v2180 = vadd.f32 %v1203, %v2179
  %v2181 = vpop.f32.mrb[0].mxu0
  %2182 = vmatprep.mubr.bf16.mxu0 0
  %2183 = vmatmul.mubr.bf16.gmra.mrb[0].mxu0 %v1603
  %v2184 = vpop.f32.mrb[0].mxu0
  %v2185 = vadd.f32 %v1208, %v2184
  %v2186 = vpop.f32.mrb[0].mxu0
  %v2187 = vpop.f32.mrb[0].mxu0
  %v2188 = vadd.f32 %v1211, %v2187
  %v2189 = vpop.f32.mrb[0].mxu0
  %2190 = vmatprep.mubr.bf16.mxu0 0
  %2191 = vmatmul.mubr.bf16.gmra.mrb[0].mxu0 %v1604
  %v2192 = vpop.f32.mrb[0].mxu0
  %v2193 = vadd.f32 %v1216, %v2192
  %v2194 = vpop.f32.mrb[0].mxu0
  %v2195 = vpop.f32.mrb[0].mxu0
  %v2196 = vadd.f32 %v1219, %v2195
  %v2197 = vpop.f32.mrb[0].mxu0
  %2198 = vmatprep.mubr.bf16.mxu0 0
  %2199 = vmatmul.mubr.bf16.gmra.mrb[0].mxu0 %v1605
  %v2200 = vpop.f32.mrb[0].mxu0
  %v2201 = vadd.f32 %v1224, %v2200
  %v2202 = vpop.f32.mrb[0].mxu0
  %v2203 = vpop.f32.mrb[0].mxu0
  %v2204 = vadd.f32 %v1227, %v2203
  %v2205 = vpop.f32.mrb[0].mxu0
  %2206 = vmatprep.mubr.bf16.mxu0 0
  %2207 = vmatmul.mubr.bf16.gmra.mrb[0].mxu0 %v1606
  %v2208 = vpop.f32.mrb[0].mxu0
  %v2209 = vadd.f32 %v1232, %v2208
  %v2210 = vpop.f32.mrb[0].mxu0
  %v2211 = vpop.f32.mrb[0].mxu0
  %v2212 = vadd.f32 %v1235, %v2211
  %v2213 = vpop.f32.mrb[0].mxu0
  %2214 = vmatprep.mubr.bf16.mxu0 0
  %2215 = vmatmul.mubr.bf16.gmra.mrb[0].mxu0 %v1607
  %v2216 = vpop.f32.mrb[0].mxu0
  %v2217 = vadd.f32 %v1240, %v2216
  %v2218 = vpop.f32.mrb[0].mxu0
  %v2219 = vpop.f32.mrb[0].mxu0
  %v2220 = vadd.f32 %v1243, %v2219
  %v2221 = vpop.f32.mrb[0].mxu0
  %2222 = vmatprep.mubr.bf16.mxu0 0
  %2223 = vmatmul.mubr.bf16.gmra.mrb[0].mxu0 %v1608
  %v2224 = vpop.f32.mrb[0].mxu0
  %v2225 = vadd.f32 %v1248, %v2224
  %v2226 = vpop.f32.mrb[0].mxu0
  %v2227 = vpop.f32.mrb[0].mxu0
  %v2228 = vadd.f32 %v1251, %v2227
  %v2229 = vpop.f32.mrb[0].mxu0
  %2230 = vmatprep.mubr.bf16.mxu0 0
  %2231 = vmatmul.mubr.bf16.gmra.mrb[0].mxu0 %v1609
  %v2232 = vpop.f32.mrb[0].mxu0
  %v2233 = vadd.f32 %v1256, %v2232
  %v2234 = vpop.f32.mrb[0].mxu0
  %v2235 = vpop.f32.mrb[0].mxu0
  %v2236 = vadd.f32 %v1259, %v2235
  %v2237 = vpop.f32.mrb[0].mxu0
  %2238 = vmatprep.mubr.bf16.mxu0 0
  %2239 = vmatmul.mubr.bf16.gmra.mrb[0].mxu0 %v1610
  %v2240 = vpop.f32.mrb[0].mxu0
  %v2241 = vadd.f32 %v1264, %v2240
  %v2242 = vpop.f32.mrb[0].mxu0
  %v2243 = vpop.f32.mrb[0].mxu0
  %v2244 = vadd.f32 %v1267, %v2243
  %v2245 = vpop.f32.mrb[0].mxu0
  %2246 = vmatprep.mubr.bf16.mxu0 0
  %2247 = vmatmul.mubr.bf16.gmra.mrb[0].mxu0 %v1611
  %v2248 = vpop.f32.mrb[0].mxu0
  %v2249 = vadd.f32 %v1272, %v2248
  %v2250 = vpop.f32.mrb[0].mxu0
  %v2251 = vpop.f32.mrb[0].mxu0
  %v2252 = vadd.f32 %v1275, %v2251
  %v2253 = vpop.f32.mrb[0].mxu0
  %2254 = vmatprep.mubr.bf16.mxu0 0
  %2255 = vmatmul.mubr.bf16.gmra.mrb[0].mxu0 %v1612
  %v2256 = vpop.f32.mrb[0].mxu0
  %v2257 = vadd.f32 %v1280, %v2256
  %v2258 = vpop.f32.mrb[0].mxu0
  %v2259 = vpop.f32.mrb[0].mxu0
  %v2260 = vadd.f32 %v1283, %v2259
  %v2261 = vpop.f32.mrb[0].mxu0
  %2262 = vmatprep.mubr.bf16.mxu0 0
  %2263 = vmatmul.mubr.bf16.gmra.mrb[0].mxu0 %v1613
  %v2264 = vpop.f32.mrb[0].mxu0
  %v2265 = vadd.f32 %v1288, %v2264
  %v2266 = vpop.f32.mrb[0].mxu0
  %v2267 = vpop.f32.mrb[0].mxu0
  %v2268 = vadd.f32 %v1291, %v2267
  %v2269 = vpop.f32.mrb[0].mxu0
  %2270 = vdwg.mxu0
  %s2271 = scalar_lea.vmem %s0, 72
  %v2272 = vld [vmem:[%s2271] sm:$0xf]
  %v2273 = vld [vmem:[%s2271 + $0x4] sm:$0xf]
  %v2274 = vld [vmem:[%s2271 + $0x8] sm:$0xf]
  %v2275 = vld [vmem:[%s2271 + $0xc] sm:$0xf]
  %v2276 = vld [vmem:[%s2271 + $0x10] sm:$0xf]
  %v2277 = vld [vmem:[%s2271 + $0x14] sm:$0xf]
  %v2278 = vld [vmem:[%s2271 + $0x18] sm:$0xf]
  %v2279 = vld [vmem:[%s2271 + $0x1c] sm:$0xf]
  %v2280 = vld [vmem:[%s2271 + $0x20] sm:$0xf]
  %v2281 = vld [vmem:[%s2271 + $0x24] sm:$0xf]
  %v2282 = vld [vmem:[%s2271 + $0x28] sm:$0xf]
  %v2283 = vld [vmem:[%s2271 + $0x2c] sm:$0xf]
  %v2284 = vld [vmem:[%s2271 + $0x30] sm:$0xf]
  %v2285 = vld [vmem:[%s2271 + $0x34] sm:$0xf]
  %v2286 = vld [vmem:[%s2271 + $0x38] sm:$0xf]
  %v2287 = vld [vmem:[%s2271 + $0x3c] sm:$0xf]
  %v2288 = vld [vmem:[%s2271 + $0x48] sm:$0xf]
  %v2289 = vld [vmem:[%s2271 + $0x4c] sm:$0xf]
  %v2290 = vld [vmem:[%s2271 + $0x50] sm:$0xf]
  %v2291 = vld [vmem:[%s2271 + $0x54] sm:$0xf]
  %v2292 = vld [vmem:[%s2271 + $0x58] sm:$0xf]
  %v2293 = vld [vmem:[%s2271 + $0x5c] sm:$0xf]
  %v2294 = vld [vmem:[%s2271 + $0x60] sm:$0xf]
  %v2295 = vld [vmem:[%s2271 + $0x64] sm:$0xf]
  %v2296 = vld [vmem:[%s2271 + $0x68] sm:$0xf]
  %v2297 = vld [vmem:[%s2271 + $0x6c] sm:$0xf]
  %v2298 = vld [vmem:[%s2271 + $0x70] sm:$0xf]
  %v2299 = vld [vmem:[%s2271 + $0x74] sm:$0xf]
  %v2300 = vld [vmem:[%s2271 + $0x78] sm:$0xf]
  %v2301 = vld [vmem:[%s2271 + $0x7c] sm:$0xf]
  %v2302 = vld [vmem:[%s2271 + $0x80] sm:$0xf]
  %v2303 = vld [vmem:[%s2271 + $0x84] sm:$0xf]
  %v2304 = vld [vmem:[%s2271 + $0x90] sm:$0xf]
  %v2305 = vld [vmem:[%s2271 + $0x94] sm:$0xf]
  %v2306 = vld [vmem:[%s2271 + $0x98] sm:$0xf]
  %v2307 = vld [vmem:[%s2271 + $0x9c] sm:$0xf]
  %v2308 = vld [vmem:[%s2271 + $0xa0] sm:$0xf]
  %v2309 = vld [vmem:[%s2271 + $0xa4] sm:$0xf]
  %v2310 = vld [vmem:[%s2271 + $0xa8] sm:$0xf]
  %v2311 = vld [vmem:[%s2271 + $0xac] sm:$0xf]
  %v2312 = vld [vmem:[%s2271 + $0xb0] sm:$0xf]
  %v2313 = vld [vmem:[%s2271 + $0xb4] sm:$0xf]
  %v2314 = vld [vmem:[%s2271 + $0xb8] sm:$0xf]
  %v2315 = vld [vmem:[%s2271 + $0xbc] sm:$0xf]
  %v2316 = vld [vmem:[%s2271 + $0xc0] sm:$0xf]
  %v2317 = vld [vmem:[%s2271 + $0xc4] sm:$0xf]
  %v2318 = vld [vmem:[%s2271 + $0xc8] sm:$0xf]
  %v2319 = vld [vmem:[%s2271 + $0xcc] sm:$0xf]
  %v2320 = vld [vmem:[%s2271 + $0xd8] sm:$0xf]
  %v2321 = vld [vmem:[%s2271 + $0xdc] sm:$0xf]
  %v2322 = vld [vmem:[%s2271 + $0xe0] sm:$0xf]
  %v2323 = vld [vmem:[%s2271 + $0xe4] sm:$0xf]
  %v2324 = vld [vmem:[%s2271 + $0xe8] sm:$0xf]
  %v2325 = vld [vmem:[%s2271 + $0xec] sm:$0xf]
  %v2326 = vld [vmem:[%s2271 + $0xf0] sm:$0xf]
  %v2327 = vld [vmem:[%s2271 + $0xf4] sm:$0xf]
  %v2328 = vld [vmem:[%s2271 + $0xf8] sm:$0xf]
  %v2329 = vld [vmem:[%s2271 + $0xfc] sm:$0xf]
  %v2330 = vld [vmem:[%s2271 + $0x100] sm:$0xf]
  %v2331 = vld [vmem:[%s2271 + $0x104] sm:$0xf]
  %v2332 = vld [vmem:[%s2271 + $0x108] sm:$0xf]
  %v2333 = vld [vmem:[%s2271 + $0x10c] sm:$0xf]
  %v2334 = vld [vmem:[%s2271 + $0x110] sm:$0xf]
  %v2335 = vld [vmem:[%s2271 + $0x114] sm:$0xf]
  %v2336 = vld [vmem:[%s2271 + $0x120] sm:$0xf]
  %v2337 = vld [vmem:[%s2271 + $0x124] sm:$0xf]
  %v2338 = vld [vmem:[%s2271 + $0x128] sm:$0xf]
  %v2339 = vld [vmem:[%s2271 + $0x12c] sm:$0xf]
  %v2340 = vld [vmem:[%s2271 + $0x130] sm:$0xf]
  %v2341 = vld [vmem:[%s2271 + $0x134] sm:$0xf]
  %v2342 = vld [vmem:[%s2271 + $0x138] sm:$0xf]
  %v2343 = vld [vmem:[%s2271 + $0x13c] sm:$0xf]
  %v2344 = vld [vmem:[%s2271 + $0x140] sm:$0xf]
  %v2345 = vld [vmem:[%s2271 + $0x144] sm:$0xf]
  %v2346 = vld [vmem:[%s2271 + $0x148] sm:$0xf]
  %v2347 = vld [vmem:[%s2271 + $0x14c] sm:$0xf]
  %v2348 = vld [vmem:[%s2271 + $0x150] sm:$0xf]
  %v2349 = vld [vmem:[%s2271 + $0x154] sm:$0xf]
  %v2350 = vld [vmem:[%s2271 + $0x158] sm:$0xf]
  %v2351 = vld [vmem:[%s2271 + $0x15c] sm:$0xf]
  %v2352 = vld [vmem:[%s2271 + $0x168] sm:$0xf]
  %v2353 = vld [vmem:[%s2271 + $0x16c] sm:$0xf]
  %v2354 = vld [vmem:[%s2271 + $0x170] sm:$0xf]
  %v2355 = vld [vmem:[%s2271 + $0x174] sm:$0xf]
  %v2356 = vld [vmem:[%s2271 + $0x178] sm:$0xf]
  %v2357 = vld [vmem:[%s2271 + $0x17c] sm:$0xf]
  %v2358 = vld [vmem:[%s2271 + $0x180] sm:$0xf]
  %v2359 = vld [vmem:[%s2271 + $0x184] sm:$0xf]
  %v2360 = vld [vmem:[%s2271 + $0x188] sm:$0xf]
  %v2361 = vld [vmem:[%s2271 + $0x18c] sm:$0xf]
  %v2362 = vld [vmem:[%s2271 + $0x190] sm:$0xf]
  %v2363 = vld [vmem:[%s2271 + $0x194] sm:$0xf]
  %v2364 = vld [vmem:[%s2271 + $0x198] sm:$0xf]
  %v2365 = vld [vmem:[%s2271 + $0x19c] sm:$0xf]
  %v2366 = vld [vmem:[%s2271 + $0x1a0] sm:$0xf]
  %v2367 = vld [vmem:[%s2271 + $0x1a4] sm:$0xf]
  %v2368 = vld [vmem:[%s2271 + $0x1b0] sm:$0xf]
  %v2369 = vld [vmem:[%s2271 + $0x1b4] sm:$0xf]
  %v2370 = vld [vmem:[%s2271 + $0x1b8] sm:$0xf]
  %v2371 = vld [vmem:[%s2271 + $0x1bc] sm:$0xf]
  %v2372 = vld [vmem:[%s2271 + $0x1c0] sm:$0xf]
  %v2373 = vld [vmem:[%s2271 + $0x1c4] sm:$0xf]
  %v2374 = vld [vmem:[%s2271 + $0x1c8] sm:$0xf]
  %v2375 = vld [vmem:[%s2271 + $0x1cc] sm:$0xf]
  %v2376 = vld [vmem:[%s2271 + $0x1d0] sm:$0xf]
  %v2377 = vld [vmem:[%s2271 + $0x1d4] sm:$0xf]
  %v2378 = vld [vmem:[%s2271 + $0x1d8] sm:$0xf]
  %v2379 = vld [vmem:[%s2271 + $0x1dc] sm:$0xf]
  %v2380 = vld [vmem:[%s2271 + $0x1e0] sm:$0xf]
  %v2381 = vld [vmem:[%s2271 + $0x1e4] sm:$0xf]
  %v2382 = vld [vmem:[%s2271 + $0x1e8] sm:$0xf]
  %v2383 = vld [vmem:[%s2271 + $0x1ec] sm:$0xf]
  %v2384 = vld [vmem:[%s2271 + $0x1f8] sm:$0xf]
  %v2385 = vld [vmem:[%s2271 + $0x1fc] sm:$0xf]
  %v2386 = vld [vmem:[%s2271 + $0x200] sm:$0xf]
  %v2387 = vld [vmem:[%s2271 + $0x204] sm:$0xf]
  %v2388 = vld [vmem:[%s2271 + $0x208] sm:$0xf]
  %v2389 = vld [vmem:[%s2271 + $0x20c] sm:$0xf]
  %v2390 = vld [vmem:[%s2271 + $0x210] sm:$0xf]
  %v2391 = vld [vmem:[%s2271 + $0x214] sm:$0xf]
  %v2392 = vld [vmem:[%s2271 + $0x218] sm:$0xf]
  %v2393 = vld [vmem:[%s2271 + $0x21c] sm:$0xf]
  %v2394 = vld [vmem:[%s2271 + $0x220] sm:$0xf]
  %v2395 = vld [vmem:[%s2271 + $0x224] sm:$0xf]
  %v2396 = vld [vmem:[%s2271 + $0x228] sm:$0xf]
  %v2397 = vld [vmem:[%s2271 + $0x22c] sm:$0xf]
  %v2398 = vld [vmem:[%s2271 + $0x230] sm:$0xf]
  %v2399 = vld [vmem:[%s2271 + $0x234] sm:$0xf]
  %s2400 = scalar_lea.vmem %s1, 128
  %v2401 = vld [vmem:[%s2400] sm:$0xf]
  %v2402 = vld [vmem:[%s2400 + $0x4] sm:$0xf]
  %v2403 = vld [vmem:[%s2400 + $0x8] sm:$0xf]
  %v2404 = vld [vmem:[%s2400 + $0xc] sm:$0xf]
  %v2405 = vld [vmem:[%s2400 + $0x10] sm:$0xf]
  %v2406 = vld [vmem:[%s2400 + $0x14] sm:$0xf]
  %v2407 = vld [vmem:[%s2400 + $0x18] sm:$0xf]
  %v2408 = vld [vmem:[%s2400 + $0x1c] sm:$0xf]
  %v2409 = vld [vmem:[%s2400 + $0x20] sm:$0xf]
  %v2410 = vld [vmem:[%s2400 + $0x24] sm:$0xf]
  %v2411 = vld [vmem:[%s2400 + $0x28] sm:$0xf]
  %v2412 = vld [vmem:[%s2400 + $0x2c] sm:$0xf]
  %v2413 = vld [vmem:[%s2400 + $0x30] sm:$0xf]
  %v2414 = vld [vmem:[%s2400 + $0x34] sm:$0xf]
  %v2415 = vld [vmem:[%s2400 + $0x38] sm:$0xf]
  %v2416 = vld [vmem:[%s2400 + $0x3c] sm:$0xf]
  %v2545 = vunpack.c.l.b16 %v2272
  %v2546 = vunpack.c.l.b16 %v2273
  %v2547 = vunpack.c.l.b16 %v2274
  %v2548 = vunpack.c.l.b16 %v2275
  %v2549 = vunpack.c.l.b16 %v2276
  %v2550 = vunpack.c.l.b16 %v2277
  %v2551 = vunpack.c.l.b16 %v2278
  %v2552 = vunpack.c.l.b16 %v2279
  %v2553 = vunpack.c.l.b16 %v2280
  %v2554 = vunpack.c.l.b16 %v2281
  %v2555 = vunpack.c.l.b16 %v2282
  %v2556 = vunpack.c.l.b16 %v2283
  %v2557 = vunpack.c.l.b16 %v2284
  %v2558 = vunpack.c.l.b16 %v2285
  %v2559 = vunpack.c.l.b16 %v2286
  %v2560 = vunpack.c.l.b16 %v2287
  %v2561 = vunpack.c.l.b16 %v2288
  %v2562 = vunpack.c.l.b16 %v2289
  %v2563 = vunpack.c.l.b16 %v2290
  %v2564 = vunpack.c.l.b16 %v2291
  %v2565 = vunpack.c.l.b16 %v2292
  %v2566 = vunpack.c.l.b16 %v2293
  %v2567 = vunpack.c.l.b16 %v2294
  %v2568 = vunpack.c.l.b16 %v2295
  %v2569 = vunpack.c.l.b16 %v2296
  %v2570 = vunpack.c.l.b16 %v2297
  %v2571 = vunpack.c.l.b16 %v2298
  %v2572 = vunpack.c.l.b16 %v2299
  %v2573 = vunpack.c.l.b16 %v2300
  %v2574 = vunpack.c.l.b16 %v2301
  %v2575 = vunpack.c.l.b16 %v2302
  %v2576 = vunpack.c.l.b16 %v2303
  %v2577 = vunpack.c.l.b16 %v2304
  %v2578 = vunpack.c.l.b16 %v2305
  %v2579 = vunpack.c.l.b16 %v2306
  %v2580 = vunpack.c.l.b16 %v2307
  %v2581 = vunpack.c.l.b16 %v2308
  %v2582 = vunpack.c.l.b16 %v2309
  %v2583 = vunpack.c.l.b16 %v2310
  %v2584 = vunpack.c.l.b16 %v2311
  %v2585 = vunpack.c.l.b16 %v2312
  %v2586 = vunpack.c.l.b16 %v2313
  %v2587 = vunpack.c.l.b16 %v2314
  %v2588 = vunpack.c.l.b16 %v2315
  %v2589 = vunpack.c.l.b16 %v2316
  %v2590 = vunpack.c.l.b16 %v2317
  %v2591 = vunpack.c.l.b16 %v2318
  %v2592 = vunpack.c.l.b16 %v2319
  %v2593 = vunpack.c.l.b16 %v2320
  %v2594 = vunpack.c.l.b16 %v2321
  %v2595 = vunpack.c.l.b16 %v2322
  %v2596 = vunpack.c.l.b16 %v2323
  %v2597 = vunpack.c.l.b16 %v2324
  %v2598 = vunpack.c.l.b16 %v2325
  %v2599 = vunpack.c.l.b16 %v2326
  %v2600 = vunpack.c.l.b16 %v2327
  %v2601 = vunpack.c.l.b16 %v2328
  %v2602 = vunpack.c.l.b16 %v2329
  %v2603 = vunpack.c.l.b16 %v2330
  %v2604 = vunpack.c.l.b16 %v2331
  %v2605 = vunpack.c.l.b16 %v2332
  %v2606 = vunpack.c.l.b16 %v2333
  %v2607 = vunpack.c.l.b16 %v2334
  %v2608 = vunpack.c.l.b16 %v2335
  %v2609 = vunpack.c.l.b16 %v2336
  %v2610 = vunpack.c.l.b16 %v2337
  %v2611 = vunpack.c.l.b16 %v2338
  %v2612 = vunpack.c.l.b16 %v2339
  %v2613 = vunpack.c.l.b16 %v2340
  %v2614 = vunpack.c.l.b16 %v2341
  %v2615 = vunpack.c.l.b16 %v2342
  %v2616 = vunpack.c.l.b16 %v2343
  %v2617 = vunpack.c.l.b16 %v2344
  %v2618 = vunpack.c.l.b16 %v2345
  %v2619 = vunpack.c.l.b16 %v2346
  %v2620 = vunpack.c.l.b16 %v2347
  %v2621 = vunpack.c.l.b16 %v2348
  %v2622 = vunpack.c.l.b16 %v2349
  %v2623 = vunpack.c.l.b16 %v2350
  %v2624 = vunpack.c.l.b16 %v2351
  %v2625 = vunpack.c.l.b16 %v2352
  %v2626 = vunpack.c.l.b16 %v2353
  %v2627 = vunpack.c.l.b16 %v2354
  %v2628 = vunpack.c.l.b16 %v2355
  %v2629 = vunpack.c.l.b16 %v2356
  %v2630 = vunpack.c.l.b16 %v2357
  %v2631 = vunpack.c.l.b16 %v2358
  %v2632 = vunpack.c.l.b16 %v2359
  %v2633 = vunpack.c.l.b16 %v2360
  %v2634 = vunpack.c.l.b16 %v2361
  %v2635 = vunpack.c.l.b16 %v2362
  %v2636 = vunpack.c.l.b16 %v2363
  %v2637 = vunpack.c.l.b16 %v2364
  %v2638 = vunpack.c.l.b16 %v2365
  %v2639 = vunpack.c.l.b16 %v2366
  %v2640 = vunpack.c.l.b16 %v2367
  %v2641 = vunpack.c.l.b16 %v2368
  %v2642 = vunpack.c.l.b16 %v2369
  %v2643 = vunpack.c.l.b16 %v2370
  %v2644 = vunpack.c.l.b16 %v2371
  %v2645 = vunpack.c.l.b16 %v2372
  %v2646 = vunpack.c.l.b16 %v2373
  %v2647 = vunpack.c.l.b16 %v2374
  %v2648 = vunpack.c.l.b16 %v2375
  %v2649 = vunpack.c.l.b16 %v2376
  %v2650 = vunpack.c.l.b16 %v2377
  %v2651 = vunpack.c.l.b16 %v2378
  %v2652 = vunpack.c.l.b16 %v2379
  %v2653 = vunpack.c.l.b16 %v2380
  %v2654 = vunpack.c.l.b16 %v2381
  %v2655 = vunpack.c.l.b16 %v2382
  %v2656 = vunpack.c.l.b16 %v2383
  %v2657 = vunpack.c.l.b16 %v2384
  %v2658 = vunpack.c.l.b16 %v2385
  %v2659 = vunpack.c.l.b16 %v2386
  %v2660 = vunpack.c.l.b16 %v2387
  %v2661 = vunpack.c.l.b16 %v2388
  %v2662 = vunpack.c.l.b16 %v2389
  %v2663 = vunpack.c.l.b16 %v2390
  %v2664 = vunpack.c.l.b16 %v2391
  %v2665 = vunpack.c.l.b16 %v2392
  %v2666 = vunpack.c.l.b16 %v2393
  %v2667 = vunpack.c.l.b16 %v2394
  %v2668 = vunpack.c.l.b16 %v2395
  %v2669 = vunpack.c.l.b16 %v2396
  %v2670 = vunpack.c.l.b16 %v2397
  %v2671 = vunpack.c.l.b16 %v2398
  %v2672 = vunpack.c.l.b16 %v2399
  %v2673 = vpack.c.b16 %v2546, %v2545
  %v2674 = vpack.c.b16 %v2548, %v2547
  %v2675 = vpack.c.b16 %v2550, %v2549
  %v2676 = vpack.c.b16 %v2552, %v2551
  %v2677 = vpack.c.b16 %v2554, %v2553
  %v2678 = vpack.c.b16 %v2556, %v2555
  %v2679 = vpack.c.b16 %v2558, %v2557
  %v2680 = vpack.c.b16 %v2560, %v2559
  %v2681 = vpack.c.b16 %v2562, %v2561
  %v2682 = vpack.c.b16 %v2564, %v2563
  %v2683 = vpack.c.b16 %v2566, %v2565
  %v2684 = vpack.c.b16 %v2568, %v2567
  %v2685 = vpack.c.b16 %v2570, %v2569
  %v2686 = vpack.c.b16 %v2572, %v2571
  %v2687 = vpack.c.b16 %v2574, %v2573
  %v2688 = vpack.c.b16 %v2576, %v2575
  %v2689 = vpack.c.b16 %v2578, %v2577
  %v2690 = vpack.c.b16 %v2580, %v2579
  %v2691 = vpack.c.b16 %v2582, %v2581
  %v2692 = vpack.c.b16 %v2584, %v2583
  %v2693 = vpack.c.b16 %v2586, %v2585
  %v2694 = vpack.c.b16 %v2588, %v2587
  %v2695 = vpack.c.b16 %v2590, %v2589
  %v2696 = vpack.c.b16 %v2592, %v2591
  %v2697 = vpack.c.b16 %v2594, %v2593
  %v2698 = vpack.c.b16 %v2596, %v2595
  %v2699 = vpack.c.b16 %v2598, %v2597
  %v2700 = vpack.c.b16 %v2600, %v2599
  %v2701 = vpack.c.b16 %v2602, %v2601
  %v2702 = vpack.c.b16 %v2604, %v2603
  %v2703 = vpack.c.b16 %v2606, %v2605
  %v2704 = vpack.c.b16 %v2608, %v2607
  %v2705 = vpack.c.b16 %v2610, %v2609
  %v2706 = vpack.c.b16 %v2612, %v2611
  %v2707 = vpack.c.b16 %v2614, %v2613
  %v2708 = vpack.c.b16 %v2616, %v2615
  %v2709 = vpack.c.b16 %v2618, %v2617
  %v2710 = vpack.c.b16 %v2620, %v2619
  %v2711 = vpack.c.b16 %v2622, %v2621
  %v2712 = vpack.c.b16 %v2624, %v2623
  %v2713 = vpack.c.b16 %v2626, %v2625
  %v2714 = vpack.c.b16 %v2628, %v2627
  %v2715 = vpack.c.b16 %v2630, %v2629
  %v2716 = vpack.c.b16 %v2632, %v2631
  %v2717 = vpack.c.b16 %v2634, %v2633
  %v2718 = vpack.c.b16 %v2636, %v2635
  %v2719 = vpack.c.b16 %v2638, %v2637
  %v2720 = vpack.c.b16 %v2640, %v2639
  %v2721 = vpack.c.b16 %v2642, %v2641
  %v2722 = vpack.c.b16 %v2644, %v2643
  %v2723 = vpack.c.b16 %v2646, %v2645
  %v2724 = vpack.c.b16 %v2648, %v2647
  %v2725 = vpack.c.b16 %v2650, %v2649
  %v2726 = vpack.c.b16 %v2652, %v2651
  %v2727 = vpack.c.b16 %v2654, %v2653
  %v2728 = vpack.c.b16 %v2656, %v2655
  %v2729 = vpack.c.b16 %v2658, %v2657
  %v2730 = vpack.c.b16 %v2660, %v2659
  %v2731 = vpack.c.b16 %v2662, %v2661
  %v2732 = vpack.c.b16 %v2664, %v2663
  %v2733 = vpack.c.b16 %v2666, %v2665
  %v2734 = vpack.c.b16 %v2668, %v2667
  %v2735 = vpack.c.b16 %v2670, %v2669
  %v2736 = vpack.c.b16 %v2672, %v2671
  %v2817 = vunpack.c.l.b16 %v2401
  %v2818 = vunpack.c.l.b16 %v2402
  %v2819 = vunpack.c.l.b16 %v2403
  %v2820 = vunpack.c.l.b16 %v2404
  %v2821 = vunpack.c.l.b16 %v2405
  %v2822 = vunpack.c.l.b16 %v2406
  %v2823 = vunpack.c.l.b16 %v2407
  %v2824 = vunpack.c.l.b16 %v2408
  %v2825 = vunpack.c.l.b16 %v2409
  %v2826 = vunpack.c.l.b16 %v2410
  %v2827 = vunpack.c.l.b16 %v2411
  %v2828 = vunpack.c.l.b16 %v2412
  %v2829 = vunpack.c.l.b16 %v2413
  %v2830 = vunpack.c.l.b16 %v2414
  %v2831 = vunpack.c.l.b16 %v2415
  %v2832 = vunpack.c.l.b16 %v2416
  %v2833 = vpack.c.b16 %v2818, %v2817
  %v2834 = vpack.c.b16 %v2820, %v2819
  %v2835 = vpack.c.b16 %v2822, %v2821
  %v2836 = vpack.c.b16 %v2824, %v2823
  %v2837 = vpack.c.b16 %v2826, %v2825
  %v2838 = vpack.c.b16 %v2828, %v2827
  %v2839 = vpack.c.b16 %v2830, %v2829
  %v2840 = vpack.c.b16 %v2832, %v2831
  %2849 = vmatprep.subr.bf16.mxu0 0
  %2850 = vmatpush1.bf16.msra.mxu0 %v2833
  %2851 = vmatprep.subr.bf16.mxu0 0
  %2852 = vmatpush1.bf16.msra.mxu0 %v2834
  %2853 = vmatprep.subr.bf16.mxu0 0
  %2854 = vmatpush1.bf16.msra.mxu0 %v2835
  %2855 = vmatprep.subr.bf16.mxu0 0
  %2856 = vmatpush1.bf16.msra.mxu0 %v2836
  %2857 = vmatprep.subr.bf16.mxu0 0
  %2858 = vmatpush1.bf16.msra.mxu0 %v2837
  %2859 = vmatprep.subr.bf16.mxu0 0
  %2860 = vmatpush1.bf16.msra.mxu0 %v2838
  %2861 = vmatprep.subr.bf16.mxu0 0
  %2862 = vmatpush1.bf16.msra.mxu0 %v2839
  %2863 = vmatprep.subr.bf16.mxu0 0
  %2864 = vmatpush1.bf16.msra.mxu0 %v2840
  %2865 = vmatprep.subr.bf16.mxu0 0
  %2866 = vmatpush1.bf16.msra.mxu0 0
  %2867 = vmatprep.subr.bf16.mxu0 0
  %2868 = vmatpush1.bf16.msra.mxu0 0
  %2869 = vmatprep.subr.bf16.mxu0 0
  %2870 = vmatpush1.bf16.msra.mxu0 0
  %2871 = vmatprep.subr.bf16.mxu0 0
  %2872 = vmatpush1.bf16.msra.mxu0 0
  %2873 = vmatprep.subr.bf16.mxu0 0
  %2874 = vmatpush1.bf16.msra.mxu0 0
  %2875 = vmatprep.subr.bf16.mxu0 0
  %2876 = vmatpush1.bf16.msra.mxu0 0
  %2877 = vmatprep.subr.bf16.mxu0 0
  %2878 = vmatpush1.bf16.msra.mxu0 0
  %2879 = vmatprep.subr.bf16.mxu0 0
  %2880 = vmatpush1.bf16.msra.mxu0 0
  %2881 = vmatprep.mubr.bf16.mxu0 0
  %2882 = vmatmul.mubr.bf16.gmra.mrb[0].mxu0 %v2673
  %v2883 = vpop.f32.mrb[0].mxu0
  %v2884 = vadd.f32 0.0, %v2883
  %v2885 = vpop.f32.mrb[0].mxu0
  %v2886 = vpop.f32.mrb[0].mxu0
  %v2887 = vadd.f32 0.0, %v2886
  %v2888 = vpop.f32.mrb[0].mxu0
  %2889 = vmatprep.mubr.bf16.mxu0 0
  %2890 = vmatmul.mubr.bf16.gmra.mrb[0].mxu0 %v2674
  %v2891 = vpop.f32.mrb[0].mxu0
  %v2892 = vadd.f32 0.0, %v2891
  %v2893 = vpop.f32.mrb[0].mxu0
  %v2894 = vpop.f32.mrb[0].mxu0
  %v2895 = vadd.f32 0.0, %v2894
  %v2896 = vpop.f32.mrb[0].mxu0
  %2897 = vmatprep.mubr.bf16.mxu0 0
  %2898 = vmatmul.mubr.bf16.gmra.mrb[0].mxu0 %v2675
  %v2899 = vpop.f32.mrb[0].mxu0
  %v2900 = vadd.f32 0.0, %v2899
  %v2901 = vpop.f32.mrb[0].mxu0
  %v2902 = vpop.f32.mrb[0].mxu0
  %v2903 = vadd.f32 0.0, %v2902
  %v2904 = vpop.f32.mrb[0].mxu0
  %2905 = vmatprep.mubr.bf16.mxu0 0
  %2906 = vmatmul.mubr.bf16.gmra.mrb[0].mxu0 %v2676
  %v2907 = vpop.f32.mrb[0].mxu0
  %v2908 = vadd.f32 0.0, %v2907
  %v2909 = vpop.f32.mrb[0].mxu0
  %v2910 = vpop.f32.mrb[0].mxu0
  %v2911 = vadd.f32 0.0, %v2910
  %v2912 = vpop.f32.mrb[0].mxu0
  %2913 = vmatprep.mubr.bf16.mxu0 0
  %2914 = vmatmul.mubr.bf16.gmra.mrb[0].mxu0 %v2677
  %v2915 = vpop.f32.mrb[0].mxu0
  %v2916 = vadd.f32 0.0, %v2915
  %v2917 = vpop.f32.mrb[0].mxu0
  %v2918 = vpop.f32.mrb[0].mxu0
  %v2919 = vadd.f32 0.0, %v2918
  %v2920 = vpop.f32.mrb[0].mxu0
  %2921 = vmatprep.mubr.bf16.mxu0 0
  %2922 = vmatmul.mubr.bf16.gmra.mrb[0].mxu0 %v2678
  %v2923 = vpop.f32.mrb[0].mxu0
  %v2924 = vadd.f32 0.0, %v2923
  %v2925 = vpop.f32.mrb[0].mxu0
  %v2926 = vpop.f32.mrb[0].mxu0
  %v2927 = vadd.f32 0.0, %v2926
  %v2928 = vpop.f32.mrb[0].mxu0
  %2929 = vmatprep.mubr.bf16.mxu0 0
  %2930 = vmatmul.mubr.bf16.gmra.mrb[0].mxu0 %v2679
  %v2931 = vpop.f32.mrb[0].mxu0
  %v2932 = vadd.f32 0.0, %v2931
  %v2933 = vpop.f32.mrb[0].mxu0
  %v2934 = vpop.f32.mrb[0].mxu0
  %v2935 = vadd.f32 0.0, %v2934
  %v2936 = vpop.f32.mrb[0].mxu0
  %2937 = vmatprep.mubr.bf16.mxu0 0
  %2938 = vmatmul.mubr.bf16.gmra.mrb[0].mxu0 %v2680
  %v2939 = vpop.f32.mrb[0].mxu0
  %v2940 = vadd.f32 0.0, %v2939
  %v2941 = vpop.f32.mrb[0].mxu0
  %v2942 = vpop.f32.mrb[0].mxu0
  %v2943 = vadd.f32 0.0, %v2942
  %v2944 = vpop.f32.mrb[0].mxu0
  %2945 = vmatprep.mubr.bf16.mxu0 0
  %2946 = vmatmul.mubr.bf16.gmra.mrb[0].mxu0 %v2681
  %v2947 = vpop.f32.mrb[0].mxu0
  %v2948 = vadd.f32 0.0, %v2947
  %v2949 = vpop.f32.mrb[0].mxu0
  %v2950 = vpop.f32.mrb[0].mxu0
  %v2951 = vadd.f32 0.0, %v2950
  %v2952 = vpop.f32.mrb[0].mxu0
  %2953 = vmatprep.mubr.bf16.mxu0 0
  %2954 = vmatmul.mubr.bf16.gmra.mrb[0].mxu0 %v2682
  %v2955 = vpop.f32.mrb[0].mxu0
  %v2956 = vadd.f32 0.0, %v2955
  %v2957 = vpop.f32.mrb[0].mxu0
  %v2958 = vpop.f32.mrb[0].mxu0
  %v2959 = vadd.f32 0.0, %v2958
  %v2960 = vpop.f32.mrb[0].mxu0
  %2961 = vmatprep.mubr.bf16.mxu0 0
  %2962 = vmatmul.mubr.bf16.gmra.mrb[0].mxu0 %v2683
  %v2963 = vpop.f32.mrb[0].mxu0
  %v2964 = vadd.f32 0.0, %v2963
  %v2965 = vpop.f32.mrb[0].mxu0
  %v2966 = vpop.f32.mrb[0].mxu0
  %v2967 = vadd.f32 0.0, %v2966
  %v2968 = vpop.f32.mrb[0].mxu0
  %2969 = vmatprep.mubr.bf16.mxu0 0
  %2970 = vmatmul.mubr.bf16.gmra.mrb[0].mxu0 %v2684
  %v2971 = vpop.f32.mrb[0].mxu0
  %v2972 = vadd.f32 0.0, %v2971
  %v2973 = vpop.f32.mrb[0].mxu0
  %v2974 = vpop.f32.mrb[0].mxu0
  %v2975 = vadd.f32 0.0, %v2974
  %v2976 = vpop.f32.mrb[0].mxu0
  %2977 = vmatprep.mubr.bf16.mxu0 0
  %2978 = vmatmul.mubr.bf16.gmra.mrb[0].mxu0 %v2685
  %v2979 = vpop.f32.mrb[0].mxu0
  %v2980 = vadd.f32 0.0, %v2979
  %v2981 = vpop.f32.mrb[0].mxu0
  %v2982 = vpop.f32.mrb[0].mxu0
  %v2983 = vadd.f32 0.0, %v2982
  %v2984 = vpop.f32.mrb[0].mxu0
  %2985 = vmatprep.mubr.bf16.mxu0 0
  %2986 = vmatmul.mubr.bf16.gmra.mrb[0].mxu0 %v2686
  %v2987 = vpop.f32.mrb[0].mxu0
  %v2988 = vadd.f32 0.0, %v2987
  %v2989 = vpop.f32.mrb[0].mxu0
  %v2990 = vpop.f32.mrb[0].mxu0
  %v2991 = vadd.f32 0.0, %v2990
  %v2992 = vpop.f32.mrb[0].mxu0
  %2993 = vmatprep.mubr.bf16.mxu0 0
  %2994 = vmatmul.mubr.bf16.gmra.mrb[0].mxu0 %v2687
  %v2995 = vpop.f32.mrb[0].mxu0
  %v2996 = vadd.f32 0.0, %v2995
  %v2997 = vpop.f32.mrb[0].mxu0
  %v2998 = vpop.f32.mrb[0].mxu0
  %v2999 = vadd.f32 0.0, %v2998
  %v3000 = vpop.f32.mrb[0].mxu0
  %3001 = vmatprep.mubr.bf16.mxu0 0
  %3002 = vmatmul.mubr.bf16.gmra.mrb[0].mxu0 %v2688
  %v3003 = vpop.f32.mrb[0].mxu0
  %v3004 = vadd.f32 0.0, %v3003
  %v3005 = vpop.f32.mrb[0].mxu0
  %v3006 = vpop.f32.mrb[0].mxu0
  %v3007 = vadd.f32 0.0, %v3006
  %v3008 = vpop.f32.mrb[0].mxu0
  %3009 = vmatprep.mubr.bf16.mxu0 0
  %3010 = vmatmul.mubr.bf16.gmra.mrb[0].mxu0 %v2689
  %v3011 = vpop.f32.mrb[0].mxu0
  %v3012 = vadd.f32 0.0, %v3011
  %v3013 = vpop.f32.mrb[0].mxu0
  %v3014 = vpop.f32.mrb[0].mxu0
  %v3015 = vadd.f32 0.0, %v3014
  %v3016 = vpop.f32.mrb[0].mxu0
  %3017 = vmatprep.mubr.bf16.mxu0 0
  %3018 = vmatmul.mubr.bf16.gmra.mrb[0].mxu0 %v2690
  %v3019 = vpop.f32.mrb[0].mxu0
  %v3020 = vadd.f32 0.0, %v3019
  %v3021 = vpop.f32.mrb[0].mxu0
  %v3022 = vpop.f32.mrb[0].mxu0
  %v3023 = vadd.f32 0.0, %v3022
  %v3024 = vpop.f32.mrb[0].mxu0
  %3025 = vmatprep.mubr.bf16.mxu0 0
  %3026 = vmatmul.mubr.bf16.gmra.mrb[0].mxu0 %v2691
  %v3027 = vpop.f32.mrb[0].mxu0
  %v3028 = vadd.f32 0.0, %v3027
  %v3029 = vpop.f32.mrb[0].mxu0
  %v3030 = vpop.f32.mrb[0].mxu0
  %v3031 = vadd.f32 0.0, %v3030
  %v3032 = vpop.f32.mrb[0].mxu0
  %3033 = vmatprep.mubr.bf16.mxu0 0
  %3034 = vmatmul.mubr.bf16.gmra.mrb[0].mxu0 %v2692
  %v3035 = vpop.f32.mrb[0].mxu0
  %v3036 = vadd.f32 0.0, %v3035
  %v3037 = vpop.f32.mrb[0].mxu0
  %v3038 = vpop.f32.mrb[0].mxu0
  %v3039 = vadd.f32 0.0, %v3038
  %v3040 = vpop.f32.mrb[0].mxu0
  %3041 = vmatprep.mubr.bf16.mxu0 0
  %3042 = vmatmul.mubr.bf16.gmra.mrb[0].mxu0 %v2693
  %v3043 = vpop.f32.mrb[0].mxu0
  %v3044 = vadd.f32 0.0, %v3043
  %v3045 = vpop.f32.mrb[0].mxu0
  %v3046 = vpop.f32.mrb[0].mxu0
  %v3047 = vadd.f32 0.0, %v3046
  %v3048 = vpop.f32.mrb[0].mxu0
  %3049 = vmatprep.mubr.bf16.mxu0 0
  %3050 = vmatmul.mubr.bf16.gmra.mrb[0].mxu0 %v2694
  %v3051 = vpop.f32.mrb[0].mxu0
  %v3052 = vadd.f32 0.0, %v3051
  %v3053 = vpop.f32.mrb[0].mxu0
  %v3054 = vpop.f32.mrb[0].mxu0
  %v3055 = vadd.f32 0.0, %v3054
  %v3056 = vpop.f32.mrb[0].mxu0
  %3057 = vmatprep.mubr.bf16.mxu0 0
  %3058 = vmatmul.mubr.bf16.gmra.mrb[0].mxu0 %v2695
  %v3059 = vpop.f32.mrb[0].mxu0
  %v3060 = vadd.f32 0.0, %v3059
  %v3061 = vpop.f32.mrb[0].mxu0
  %v3062 = vpop.f32.mrb[0].mxu0
  %v3063 = vadd.f32 0.0, %v3062
  %v3064 = vpop.f32.mrb[0].mxu0
  %3065 = vmatprep.mubr.bf16.mxu0 0
  %3066 = vmatmul.mubr.bf16.gmra.mrb[0].mxu0 %v2696
  %v3067 = vpop.f32.mrb[0].mxu0
  %v3068 = vadd.f32 0.0, %v3067
  %v3069 = vpop.f32.mrb[0].mxu0
  %v3070 = vpop.f32.mrb[0].mxu0
  %v3071 = vadd.f32 0.0, %v3070
  %v3072 = vpop.f32.mrb[0].mxu0
  %3073 = vmatprep.mubr.bf16.mxu0 0
  %3074 = vmatmul.mubr.bf16.gmra.mrb[0].mxu0 %v2697
  %v3075 = vpop.f32.mrb[0].mxu0
  %v3076 = vadd.f32 0.0, %v3075
  %v3077 = vpop.f32.mrb[0].mxu0
  %v3078 = vpop.f32.mrb[0].mxu0
  %v3079 = vadd.f32 0.0, %v3078
  %v3080 = vpop.f32.mrb[0].mxu0
  %3081 = vmatprep.mubr.bf16.mxu0 0
  %3082 = vmatmul.mubr.bf16.gmra.mrb[0].mxu0 %v2698
  %v3083 = vpop.f32.mrb[0].mxu0
  %v3084 = vadd.f32 0.0, %v3083
  %v3085 = vpop.f32.mrb[0].mxu0
  %v3086 = vpop.f32.mrb[0].mxu0
  %v3087 = vadd.f32 0.0, %v3086
  %v3088 = vpop.f32.mrb[0].mxu0
  %3089 = vmatprep.mubr.bf16.mxu0 0
  %3090 = vmatmul.mubr.bf16.gmra.mrb[0].mxu0 %v2699
  %v3091 = vpop.f32.mrb[0].mxu0
  %v3092 = vadd.f32 0.0, %v3091
  %v3093 = vpop.f32.mrb[0].mxu0
  %v3094 = vpop.f32.mrb[0].mxu0
  %v3095 = vadd.f32 0.0, %v3094
  %v3096 = vpop.f32.mrb[0].mxu0
  %3097 = vmatprep.mubr.bf16.mxu0 0
  %3098 = vmatmul.mubr.bf16.gmra.mrb[0].mxu0 %v2700
  %v3099 = vpop.f32.mrb[0].mxu0
  %v3100 = vadd.f32 0.0, %v3099
  %v3101 = vpop.f32.mrb[0].mxu0
  %v3102 = vpop.f32.mrb[0].mxu0
  %v3103 = vadd.f32 0.0, %v3102
  %v3104 = vpop.f32.mrb[0].mxu0
  %3105 = vmatprep.mubr.bf16.mxu0 0
  %3106 = vmatmul.mubr.bf16.gmra.mrb[0].mxu0 %v2701
  %v3107 = vpop.f32.mrb[0].mxu0
  %v3108 = vadd.f32 0.0, %v3107
  %v3109 = vpop.f32.mrb[0].mxu0
  %v3110 = vpop.f32.mrb[0].mxu0
  %v3111 = vadd.f32 0.0, %v3110
  %v3112 = vpop.f32.mrb[0].mxu0
  %3113 = vmatprep.mubr.bf16.mxu0 0
  %3114 = vmatmul.mubr.bf16.gmra.mrb[0].mxu0 %v2702
  %v3115 = vpop.f32.mrb[0].mxu0
  %v3116 = vadd.f32 0.0, %v3115
  %v3117 = vpop.f32.mrb[0].mxu0
  %v3118 = vpop.f32.mrb[0].mxu0
  %v3119 = vadd.f32 0.0, %v3118
  %v3120 = vpop.f32.mrb[0].mxu0
  %3121 = vmatprep.mubr.bf16.mxu0 0
  %3122 = vmatmul.mubr.bf16.gmra.mrb[0].mxu0 %v2703
  %v3123 = vpop.f32.mrb[0].mxu0
  %v3124 = vadd.f32 0.0, %v3123
  %v3125 = vpop.f32.mrb[0].mxu0
  %v3126 = vpop.f32.mrb[0].mxu0
  %v3127 = vadd.f32 0.0, %v3126
  %v3128 = vpop.f32.mrb[0].mxu0
  %3129 = vmatprep.mubr.bf16.mxu0 0
  %3130 = vmatmul.mubr.bf16.gmra.mrb[0].mxu0 %v2704
  %v3131 = vpop.f32.mrb[0].mxu0
  %v3132 = vadd.f32 0.0, %v3131
  %v3133 = vpop.f32.mrb[0].mxu0
  %v3134 = vpop.f32.mrb[0].mxu0
  %v3135 = vadd.f32 0.0, %v3134
  %v3136 = vpop.f32.mrb[0].mxu0
  %3137 = vmatprep.mubr.bf16.mxu0 0
  %3138 = vmatmul.mubr.bf16.gmra.mrb[0].mxu0 %v2705
  %v3139 = vpop.f32.mrb[0].mxu0
  %v3140 = vadd.f32 0.0, %v3139
  %v3141 = vpop.f32.mrb[0].mxu0
  %v3142 = vpop.f32.mrb[0].mxu0
  %v3143 = vadd.f32 0.0, %v3142
  %v3144 = vpop.f32.mrb[0].mxu0
  %3145 = vmatprep.mubr.bf16.mxu0 0
  %3146 = vmatmul.mubr.bf16.gmra.mrb[0].mxu0 %v2706
  %v3147 = vpop.f32.mrb[0].mxu0
  %v3148 = vadd.f32 0.0, %v3147
  %v3149 = vpop.f32.mrb[0].mxu0
  %v3150 = vpop.f32.mrb[0].mxu0
  %v3151 = vadd.f32 0.0, %v3150
  %v3152 = vpop.f32.mrb[0].mxu0
  %3153 = vmatprep.mubr.bf16.mxu0 0
  %3154 = vmatmul.mubr.bf16.gmra.mrb[0].mxu0 %v2707
  %v3155 = vpop.f32.mrb[0].mxu0
  %v3156 = vadd.f32 0.0, %v3155
  %v3157 = vpop.f32.mrb[0].mxu0
  %v3158 = vpop.f32.mrb[0].mxu0
  %v3159 = vadd.f32 0.0, %v3158
  %v3160 = vpop.f32.mrb[0].mxu0
  %3161 = vmatprep.mubr.bf16.mxu0 0
  %3162 = vmatmul.mubr.bf16.gmra.mrb[0].mxu0 %v2708
  %v3163 = vpop.f32.mrb[0].mxu0
  %v3164 = vadd.f32 0.0, %v3163
  %v3165 = vpop.f32.mrb[0].mxu0
  %v3166 = vpop.f32.mrb[0].mxu0
  %v3167 = vadd.f32 0.0, %v3166
  %v3168 = vpop.f32.mrb[0].mxu0
  %3169 = vmatprep.mubr.bf16.mxu0 0
  %3170 = vmatmul.mubr.bf16.gmra.mrb[0].mxu0 %v2709
  %v3171 = vpop.f32.mrb[0].mxu0
  %v3172 = vadd.f32 0.0, %v3171
  %v3173 = vpop.f32.mrb[0].mxu0
  %v3174 = vpop.f32.mrb[0].mxu0
  %v3175 = vadd.f32 0.0, %v3174
  %v3176 = vpop.f32.mrb[0].mxu0
  %3177 = vmatprep.mubr.bf16.mxu0 0
  %3178 = vmatmul.mubr.bf16.gmra.mrb[0].mxu0 %v2710
  %v3179 = vpop.f32.mrb[0].mxu0
  %v3180 = vadd.f32 0.0, %v3179
  %v3181 = vpop.f32.mrb[0].mxu0
  %v3182 = vpop.f32.mrb[0].mxu0
  %v3183 = vadd.f32 0.0, %v3182
  %v3184 = vpop.f32.mrb[0].mxu0
  %3185 = vmatprep.mubr.bf16.mxu0 0
  %3186 = vmatmul.mubr.bf16.gmra.mrb[0].mxu0 %v2711
  %v3187 = vpop.f32.mrb[0].mxu0
  %v3188 = vadd.f32 0.0, %v3187
  %v3189 = vpop.f32.mrb[0].mxu0
  %v3190 = vpop.f32.mrb[0].mxu0
  %v3191 = vadd.f32 0.0, %v3190
  %v3192 = vpop.f32.mrb[0].mxu0
  %3193 = vmatprep.mubr.bf16.mxu0 0
  %3194 = vmatmul.mubr.bf16.gmra.mrb[0].mxu0 %v2712
  %v3195 = vpop.f32.mrb[0].mxu0
  %v3196 = vadd.f32 0.0, %v3195
  %v3197 = vpop.f32.mrb[0].mxu0
  %v3198 = vpop.f32.mrb[0].mxu0
  %v3199 = vadd.f32 0.0, %v3198
  %v3200 = vpop.f32.mrb[0].mxu0
  %3201 = vmatprep.mubr.bf16.mxu0 0
  %3202 = vmatmul.mubr.bf16.gmra.mrb[0].mxu0 %v2713
  %v3203 = vpop.f32.mrb[0].mxu0
  %v3204 = vadd.f32 0.0, %v3203
  %v3205 = vpop.f32.mrb[0].mxu0
  %v3206 = vpop.f32.mrb[0].mxu0
  %v3207 = vadd.f32 0.0, %v3206
  %v3208 = vpop.f32.mrb[0].mxu0
  %3209 = vmatprep.mubr.bf16.mxu0 0
  %3210 = vmatmul.mubr.bf16.gmra.mrb[0].mxu0 %v2714
  %v3211 = vpop.f32.mrb[0].mxu0
  %v3212 = vadd.f32 0.0, %v3211
  %v3213 = vpop.f32.mrb[0].mxu0
  %v3214 = vpop.f32.mrb[0].mxu0
  %v3215 = vadd.f32 0.0, %v3214
  %v3216 = vpop.f32.mrb[0].mxu0
  %3217 = vmatprep.mubr.bf16.mxu0 0
  %3218 = vmatmul.mubr.bf16.gmra.mrb[0].mxu0 %v2715
  %v3219 = vpop.f32.mrb[0].mxu0
  %v3220 = vadd.f32 0.0, %v3219
  %v3221 = vpop.f32.mrb[0].mxu0
  %v3222 = vpop.f32.mrb[0].mxu0
  %v3223 = vadd.f32 0.0, %v3222
  %v3224 = vpop.f32.mrb[0].mxu0
  %3225 = vmatprep.mubr.bf16.mxu0 0
  %3226 = vmatmul.mubr.bf16.gmra.mrb[0].mxu0 %v2716
  %v3227 = vpop.f32.mrb[0].mxu0
  %v3228 = vadd.f32 0.0, %v3227
  %v3229 = vpop.f32.mrb[0].mxu0
  %v3230 = vpop.f32.mrb[0].mxu0
  %v3231 = vadd.f32 0.0, %v3230
  %v3232 = vpop.f32.mrb[0].mxu0
  %3233 = vmatprep.mubr.bf16.mxu0 0
  %3234 = vmatmul.mubr.bf16.gmra.mrb[0].mxu0 %v2717
  %v3235 = vpop.f32.mrb[0].mxu0
  %v3236 = vadd.f32 0.0, %v3235
  %v3237 = vpop.f32.mrb[0].mxu0
  %v3238 = vpop.f32.mrb[0].mxu0
  %v3239 = vadd.f32 0.0, %v3238
  %v3240 = vpop.f32.mrb[0].mxu0
  %3241 = vmatprep.mubr.bf16.mxu0 0
  %3242 = vmatmul.mubr.bf16.gmra.mrb[0].mxu0 %v2718
  %v3243 = vpop.f32.mrb[0].mxu0
  %v3244 = vadd.f32 0.0, %v3243
  %v3245 = vpop.f32.mrb[0].mxu0
  %v3246 = vpop.f32.mrb[0].mxu0
  %v3247 = vadd.f32 0.0, %v3246
  %v3248 = vpop.f32.mrb[0].mxu0
  %3249 = vmatprep.mubr.bf16.mxu0 0
  %3250 = vmatmul.mubr.bf16.gmra.mrb[0].mxu0 %v2719
  %v3251 = vpop.f32.mrb[0].mxu0
  %v3252 = vadd.f32 0.0, %v3251
  %v3253 = vpop.f32.mrb[0].mxu0
  %v3254 = vpop.f32.mrb[0].mxu0
  %v3255 = vadd.f32 0.0, %v3254
  %v3256 = vpop.f32.mrb[0].mxu0
  %3257 = vmatprep.mubr.bf16.mxu0 0
  %3258 = vmatmul.mubr.bf16.gmra.mrb[0].mxu0 %v2720
  %v3259 = vpop.f32.mrb[0].mxu0
  %v3260 = vadd.f32 0.0, %v3259
  %v3261 = vpop.f32.mrb[0].mxu0
  %v3262 = vpop.f32.mrb[0].mxu0
  %v3263 = vadd.f32 0.0, %v3262
  %v3264 = vpop.f32.mrb[0].mxu0
  %3265 = vmatprep.mubr.bf16.mxu0 0
  %3266 = vmatmul.mubr.bf16.gmra.mrb[0].mxu0 %v2721
  %v3267 = vpop.f32.mrb[0].mxu0
  %v3268 = vadd.f32 0.0, %v3267
  %v3269 = vpop.f32.mrb[0].mxu0
  %v3270 = vpop.f32.mrb[0].mxu0
  %v3271 = vadd.f32 0.0, %v3270
  %v3272 = vpop.f32.mrb[0].mxu0
  %3273 = vmatprep.mubr.bf16.mxu0 0
  %3274 = vmatmul.mubr.bf16.gmra.mrb[0].mxu0 %v2722
  %v3275 = vpop.f32.mrb[0].mxu0
  %v3276 = vadd.f32 0.0, %v3275
  %v3277 = vpop.f32.mrb[0].mxu0
  %v3278 = vpop.f32.mrb[0].mxu0
  %v3279 = vadd.f32 0.0, %v3278
  %v3280 = vpop.f32.mrb[0].mxu0
  %3281 = vmatprep.mubr.bf16.mxu0 0
  %3282 = vmatmul.mubr.bf16.gmra.mrb[0].mxu0 %v2723
  %v3283 = vpop.f32.mrb[0].mxu0
  %v3284 = vadd.f32 0.0, %v3283
  %v3285 = vpop.f32.mrb[0].mxu0
  %v3286 = vpop.f32.mrb[0].mxu0
  %v3287 = vadd.f32 0.0, %v3286
  %v3288 = vpop.f32.mrb[0].mxu0
  %3289 = vmatprep.mubr.bf16.mxu0 0
  %3290 = vmatmul.mubr.bf16.gmra.mrb[0].mxu0 %v2724
  %v3291 = vpop.f32.mrb[0].mxu0
  %v3292 = vadd.f32 0.0, %v3291
  %v3293 = vpop.f32.mrb[0].mxu0
  %v3294 = vpop.f32.mrb[0].mxu0
  %v3295 = vadd.f32 0.0, %v3294
  %v3296 = vpop.f32.mrb[0].mxu0
  %3297 = vmatprep.mubr.bf16.mxu0 0
  %3298 = vmatmul.mubr.bf16.gmra.mrb[0].mxu0 %v2725
  %v3299 = vpop.f32.mrb[0].mxu0
  %v3300 = vadd.f32 0.0, %v3299
  %v3301 = vpop.f32.mrb[0].mxu0
  %v3302 = vpop.f32.mrb[0].mxu0
  %v3303 = vadd.f32 0.0, %v3302
  %v3304 = vpop.f32.mrb[0].mxu0
  %3305 = vmatprep.mubr.bf16.mxu0 0
  %3306 = vmatmul.mubr.bf16.gmra.mrb[0].mxu0 %v2726
  %v3307 = vpop.f32.mrb[0].mxu0
  %v3308 = vadd.f32 0.0, %v3307
  %v3309 = vpop.f32.mrb[0].mxu0
  %v3310 = vpop.f32.mrb[0].mxu0
  %v3311 = vadd.f32 0.0, %v3310
  %v3312 = vpop.f32.mrb[0].mxu0
  %3313 = vmatprep.mubr.bf16.mxu0 0
  %3314 = vmatmul.mubr.bf16.gmra.mrb[0].mxu0 %v2727
  %v3315 = vpop.f32.mrb[0].mxu0
  %v3316 = vadd.f32 0.0, %v3315
  %v3317 = vpop.f32.mrb[0].mxu0
  %v3318 = vpop.f32.mrb[0].mxu0
  %v3319 = vadd.f32 0.0, %v3318
  %v3320 = vpop.f32.mrb[0].mxu0
  %3321 = vmatprep.mubr.bf16.mxu0 0
  %3322 = vmatmul.mubr.bf16.gmra.mrb[0].mxu0 %v2728
  %v3323 = vpop.f32.mrb[0].mxu0
  %v3324 = vadd.f32 0.0, %v3323
  %v3325 = vpop.f32.mrb[0].mxu0
  %v3326 = vpop.f32.mrb[0].mxu0
  %v3327 = vadd.f32 0.0, %v3326
  %v3328 = vpop.f32.mrb[0].mxu0
  %3329 = vmatprep.mubr.bf16.mxu0 0
  %3330 = vmatmul.mubr.bf16.gmra.mrb[0].mxu0 %v2729
  %v3331 = vpop.f32.mrb[0].mxu0
  %v3332 = vadd.f32 0.0, %v3331
  %v3333 = vpop.f32.mrb[0].mxu0
  %v3334 = vpop.f32.mrb[0].mxu0
  %v3335 = vadd.f32 0.0, %v3334
  %v3336 = vpop.f32.mrb[0].mxu0
  %3337 = vmatprep.mubr.bf16.mxu0 0
  %3338 = vmatmul.mubr.bf16.gmra.mrb[0].mxu0 %v2730
  %v3339 = vpop.f32.mrb[0].mxu0
  %v3340 = vadd.f32 0.0, %v3339
  %v3341 = vpop.f32.mrb[0].mxu0
  %v3342 = vpop.f32.mrb[0].mxu0
  %v3343 = vadd.f32 0.0, %v3342
  %v3344 = vpop.f32.mrb[0].mxu0
  %3345 = vmatprep.mubr.bf16.mxu0 0
  %3346 = vmatmul.mubr.bf16.gmra.mrb[0].mxu0 %v2731
  %v3347 = vpop.f32.mrb[0].mxu0
  %v3348 = vadd.f32 0.0, %v3347
  %v3349 = vpop.f32.mrb[0].mxu0
  %v3350 = vpop.f32.mrb[0].mxu0
  %v3351 = vadd.f32 0.0, %v3350
  %v3352 = vpop.f32.mrb[0].mxu0
  %3353 = vmatprep.mubr.bf16.mxu0 0
  %3354 = vmatmul.mubr.bf16.gmra.mrb[0].mxu0 %v2732
  %v3355 = vpop.f32.mrb[0].mxu0
  %v3356 = vadd.f32 0.0, %v3355
  %v3357 = vpop.f32.mrb[0].mxu0
  %v3358 = vpop.f32.mrb[0].mxu0
  %v3359 = vadd.f32 0.0, %v3358
  %v3360 = vpop.f32.mrb[0].mxu0
  %3361 = vmatprep.mubr.bf16.mxu0 0
  %3362 = vmatmul.mubr.bf16.gmra.mrb[0].mxu0 %v2733
  %v3363 = vpop.f32.mrb[0].mxu0
  %v3364 = vadd.f32 0.0, %v3363
  %v3365 = vpop.f32.mrb[0].mxu0
  %v3366 = vpop.f32.mrb[0].mxu0
  %v3367 = vadd.f32 0.0, %v3366
  %v3368 = vpop.f32.mrb[0].mxu0
  %3369 = vmatprep.mubr.bf16.mxu0 0
  %3370 = vmatmul.mubr.bf16.gmra.mrb[0].mxu0 %v2734
  %v3371 = vpop.f32.mrb[0].mxu0
  %v3372 = vadd.f32 0.0, %v3371
  %v3373 = vpop.f32.mrb[0].mxu0
  %v3374 = vpop.f32.mrb[0].mxu0
  %v3375 = vadd.f32 0.0, %v3374
  %v3376 = vpop.f32.mrb[0].mxu0
  %3377 = vmatprep.mubr.bf16.mxu0 0
  %3378 = vmatmul.mubr.bf16.gmra.mrb[0].mxu0 %v2735
  %v3379 = vpop.f32.mrb[0].mxu0
  %v3380 = vadd.f32 0.0, %v3379
  %v3381 = vpop.f32.mrb[0].mxu0
  %v3382 = vpop.f32.mrb[0].mxu0
  %v3383 = vadd.f32 0.0, %v3382
  %v3384 = vpop.f32.mrb[0].mxu0
  %3385 = vmatprep.mubr.bf16.mxu0 0
  %3386 = vmatmul.mubr.bf16.gmra.mrb[0].mxu0 %v2736
  %v3387 = vpop.f32.mrb[0].mxu0
  %v3388 = vadd.f32 0.0, %v3387
  %v3389 = vpop.f32.mrb[0].mxu0
  %v3390 = vpop.f32.mrb[0].mxu0
  %v3391 = vadd.f32 0.0, %v3390
  %v3392 = vpop.f32.mrb[0].mxu0
  %3393 = vdwg.mxu0
  %v3394 = vadd.f32 %v1761, %v2884
  %v3395 = vadd.f32 %v1764, %v2887
  %v3396 = vadd.f32 %v1769, %v2892
  %v3397 = vadd.f32 %v1772, %v2895
  %v3398 = vadd.f32 %v1777, %v2900
  %v3399 = vadd.f32 %v1780, %v2903
  %v3400 = vadd.f32 %v1785, %v2908
  %v3401 = vadd.f32 %v1788, %v2911
  %v3402 = vadd.f32 %v1793, %v2916
  %v3403 = vadd.f32 %v1796, %v2919
  %v3404 = vadd.f32 %v1801, %v2924
  %v3405 = vadd.f32 %v1804, %v2927
  %v3406 = vadd.f32 %v1809, %v2932
  %v3407 = vadd.f32 %v1812, %v2935
  %v3408 = vadd.f32 %v1817, %v2940
  %v3409 = vadd.f32 %v1820, %v2943
  %v3410 = vadd.f32 %v1825, %v2948
  %v3411 = vadd.f32 %v1828, %v2951
  %v3412 = vadd.f32 %v1833, %v2956
  %v3413 = vadd.f32 %v1836, %v2959
  %v3414 = vadd.f32 %v1841, %v2964
  %v3415 = vadd.f32 %v1844, %v2967
  %v3416 = vadd.f32 %v1849, %v2972
  %v3417 = vadd.f32 %v1852, %v2975
  %v3418 = vadd.f32 %v1857, %v2980
  %v3419 = vadd.f32 %v1860, %v2983
  %v3420 = vadd.f32 %v1865, %v2988
  %v3421 = vadd.f32 %v1868, %v2991
  %v3422 = vadd.f32 %v1873, %v2996
  %v3423 = vadd.f32 %v1876, %v2999
  %v3424 = vadd.f32 %v1881, %v3004
  %v3425 = vadd.f32 %v1884, %v3007
  %v3426 = vadd.f32 %v1889, %v3012
  %v3427 = vadd.f32 %v1892, %v3015
  %v3428 = vadd.f32 %v1897, %v3020
  %v3429 = vadd.f32 %v1900, %v3023
  %v3430 = vadd.f32 %v1905, %v3028
  %v3431 = vadd.f32 %v1908, %v3031
  %v3432 = vadd.f32 %v1913, %v3036
  %v3433 = vadd.f32 %v1916, %v3039
  %v3434 = vadd.f32 %v1921, %v3044
  %v3435 = vadd.f32 %v1924, %v3047
  %v3436 = vadd.f32 %v1929, %v3052
  %v3437 = vadd.f32 %v1932, %v3055
  %v3438 = vadd.f32 %v1937, %v3060
  %v3439 = vadd.f32 %v1940, %v3063
  %v3440 = vadd.f32 %v1945, %v3068
  %v3441 = vadd.f32 %v1948, %v3071
  %v3442 = vadd.f32 %v1953, %v3076
  %v3443 = vadd.f32 %v1956, %v3079
  %v3444 = vadd.f32 %v1961, %v3084
  %v3445 = vadd.f32 %v1964, %v3087
  %v3446 = vadd.f32 %v1969, %v3092
  %v3447 = vadd.f32 %v1972, %v3095
  %v3448 = vadd.f32 %v1977, %v3100
  %v3449 = vadd.f32 %v1980, %v3103
  %v3450 = vadd.f32 %v1985, %v3108
  %v3451 = vadd.f32 %v1988, %v3111
  %v3452 = vadd.f32 %v1993, %v3116
  %v3453 = vadd.f32 %v1996, %v3119
  %v3454 = vadd.f32 %v2001, %v3124
  %v3455 = vadd.f32 %v2004, %v3127
  %v3456 = vadd.f32 %v2009, %v3132
  %v3457 = vadd.f32 %v2012, %v3135
  %v3458 = vadd.f32 %v2017, %v3140
  %v3459 = vadd.f32 %v2020, %v3143
  %v3460 = vadd.f32 %v2025, %v3148
  %v3461 = vadd.f32 %v2028, %v3151
  %v3462 = vadd.f32 %v2033, %v3156
  %v3463 = vadd.f32 %v2036, %v3159
  %v3464 = vadd.f32 %v2041, %v3164
  %v3465 = vadd.f32 %v2044, %v3167
  %v3466 = vadd.f32 %v2049, %v3172
  %v3467 = vadd.f32 %v2052, %v3175
  %v3468 = vadd.f32 %v2057, %v3180
  %v3469 = vadd.f32 %v2060, %v3183
  %v3470 = vadd.f32 %v2065, %v3188
  %v3471 = vadd.f32 %v2068, %v3191
  %v3472 = vadd.f32 %v2073, %v3196
  %v3473 = vadd.f32 %v2076, %v3199
  %v3474 = vadd.f32 %v2081, %v3204
  %v3475 = vadd.f32 %v2084, %v3207
  %v3476 = vadd.f32 %v2089, %v3212
  %v3477 = vadd.f32 %v2092, %v3215
  %v3478 = vadd.f32 %v2097, %v3220
  %v3479 = vadd.f32 %v2100, %v3223
  %v3480 = vadd.f32 %v2105, %v3228
  %v3481 = vadd.f32 %v2108, %v3231
  %v3482 = vadd.f32 %v2113, %v3236
  %v3483 = vadd.f32 %v2116, %v3239
  %v3484 = vadd.f32 %v2121, %v3244
  %v3485 = vadd.f32 %v2124, %v3247
  %v3486 = vadd.f32 %v2129, %v3252
  %v3487 = vadd.f32 %v2132, %v3255
  %v3488 = vadd.f32 %v2137, %v3260
  %v3489 = vadd.f32 %v2140, %v3263
  %v3490 = vadd.f32 %v2145, %v3268
  %v3491 = vadd.f32 %v2148, %v3271
  %v3492 = vadd.f32 %v2153, %v3276
  %v3493 = vadd.f32 %v2156, %v3279
  %v3494 = vadd.f32 %v2161, %v3284
  %v3495 = vadd.f32 %v2164, %v3287
  %v3496 = vadd.f32 %v2169, %v3292
  %v3497 = vadd.f32 %v2172, %v3295
  %v3498 = vadd.f32 %v2177, %v3300
  %v3499 = vadd.f32 %v2180, %v3303
  %v3500 = vadd.f32 %v2185, %v3308
  %v3501 = vadd.f32 %v2188, %v3311
  %v3502 = vadd.f32 %v2193, %v3316
  %v3503 = vadd.f32 %v2196, %v3319
  %v3504 = vadd.f32 %v2201, %v3324
  %v3505 = vadd.f32 %v2204, %v3327
  %v3506 = vadd.f32 %v2209, %v3332
  %v3507 = vadd.f32 %v2212, %v3335
  %v3508 = vadd.f32 %v2217, %v3340
  %v3509 = vadd.f32 %v2220, %v3343
  %v3510 = vadd.f32 %v2225, %v3348
  %v3511 = vadd.f32 %v2228, %v3351
  %v3512 = vadd.f32 %v2233, %v3356
  %v3513 = vadd.f32 %v2236, %v3359
  %v3514 = vadd.f32 %v2241, %v3364
  %v3515 = vadd.f32 %v2244, %v3367
  %v3516 = vadd.f32 %v2249, %v3372
  %v3517 = vadd.f32 %v2252, %v3375
  %v3518 = vadd.f32 %v2257, %v3380
  %v3519 = vadd.f32 %v2260, %v3383
  %v3520 = vadd.f32 %v2265, %v3388
  %v3521 = vadd.f32 %v2268, %v3391
  %s3522 = scalar_lea.vmem %s0, 80
  %v3523 = vld [vmem:[%s3522] sm:$0xf]
  %v3524 = vld [vmem:[%s3522 + $0x4] sm:$0xf]
  %v3525 = vld [vmem:[%s3522 + $0x8] sm:$0xf]
  %v3526 = vld [vmem:[%s3522 + $0xc] sm:$0xf]
  %v3527 = vld [vmem:[%s3522 + $0x10] sm:$0xf]
  %v3528 = vld [vmem:[%s3522 + $0x14] sm:$0xf]
  %v3529 = vld [vmem:[%s3522 + $0x18] sm:$0xf]
  %v3530 = vld [vmem:[%s3522 + $0x1c] sm:$0xf]
  %v3531 = vld [vmem:[%s3522 + $0x20] sm:$0xf]
  %v3532 = vld [vmem:[%s3522 + $0x24] sm:$0xf]
  %v3533 = vld [vmem:[%s3522 + $0x28] sm:$0xf]
  %v3534 = vld [vmem:[%s3522 + $0x2c] sm:$0xf]
  %v3535 = vld [vmem:[%s3522 + $0x30] sm:$0xf]
  %v3536 = vld [vmem:[%s3522 + $0x34] sm:$0xf]
  %v3537 = vld [vmem:[%s3522 + $0x38] sm:$0xf]
  %v3538 = vld [vmem:[%s3522 + $0x3c] sm:$0xf]
  %v3539 = vld [vmem:[%s3522 + $0x48] sm:$0xf]
  %v3540 = vld [vmem:[%s3522 + $0x4c] sm:$0xf]
  %v3541 = vld [vmem:[%s3522 + $0x50] sm:$0xf]
  %v3542 = vld [vmem:[%s3522 + $0x54] sm:$0xf]
  %v3543 = vld [vmem:[%s3522 + $0x58] sm:$0xf]
  %v3544 = vld [vmem:[%s3522 + $0x5c] sm:$0xf]
  %v3545 = vld [vmem:[%s3522 + $0x60] sm:$0xf]
  %v3546 = vld [vmem:[%s3522 + $0x64] sm:$0xf]
  %v3547 = vld [vmem:[%s3522 + $0x68] sm:$0xf]
  %v3548 = vld [vmem:[%s3522 + $0x6c] sm:$0xf]
  %v3549 = vld [vmem:[%s3522 + $0x70] sm:$0xf]
  %v3550 = vld [vmem:[%s3522 + $0x74] sm:$0xf]
  %v3551 = vld [vmem:[%s3522 + $0x78] sm:$0xf]
  %v3552 = vld [vmem:[%s3522 + $0x7c] sm:$0xf]
  %v3553 = vld [vmem:[%s3522 + $0x80] sm:$0xf]
  %v3554 = vld [vmem:[%s3522 + $0x84] sm:$0xf]
  %v3555 = vld [vmem:[%s3522 + $0x90] sm:$0xf]
  %v3556 = vld [vmem:[%s3522 + $0x94] sm:$0xf]
  %v3557 = vld [vmem:[%s3522 + $0x98] sm:$0xf]
  %v3558 = vld [vmem:[%s3522 + $0x9c] sm:$0xf]
  %v3559 = vld [vmem:[%s3522 + $0xa0] sm:$0xf]
  %v3560 = vld [vmem:[%s3522 + $0xa4] sm:$0xf]
  %v3561 = vld [vmem:[%s3522 + $0xa8] sm:$0xf]
  %v3562 = vld [vmem:[%s3522 + $0xac] sm:$0xf]
  %v3563 = vld [vmem:[%s3522 + $0xb0] sm:$0xf]
  %v3564 = vld [vmem:[%s3522 + $0xb4] sm:$0xf]
  %v3565 = vld [vmem:[%s3522 + $0xb8] sm:$0xf]
  %v3566 = vld [vmem:[%s3522 + $0xbc] sm:$0xf]
  %v3567 = vld [vmem:[%s3522 + $0xc0] sm:$0xf]
  %v3568 = vld [vmem:[%s3522 + $0xc4] sm:$0xf]
  %v3569 = vld [vmem:[%s3522 + $0xc8] sm:$0xf]
  %v3570 = vld [vmem:[%s3522 + $0xcc] sm:$0xf]
  %v3571 = vld [vmem:[%s3522 + $0xd8] sm:$0xf]
  %v3572 = vld [vmem:[%s3522 + $0xdc] sm:$0xf]
  %v3573 = vld [vmem:[%s3522 + $0xe0] sm:$0xf]
  %v3574 = vld [vmem:[%s3522 + $0xe4] sm:$0xf]
  %v3575 = vld [vmem:[%s3522 + $0xe8] sm:$0xf]
  %v3576 = vld [vmem:[%s3522 + $0xec] sm:$0xf]
  %v3577 = vld [vmem:[%s3522 + $0xf0] sm:$0xf]
  %v3578 = vld [vmem:[%s3522 + $0xf4] sm:$0xf]
  %v3579 = vld [vmem:[%s3522 + $0xf8] sm:$0xf]
  %v3580 = vld [vmem:[%s3522 + $0xfc] sm:$0xf]
  %v3581 = vld [vmem:[%s3522 + $0x100] sm:$0xf]
  %v3582 = vld [vmem:[%s3522 + $0x104] sm:$0xf]
  %v3583 = vld [vmem:[%s3522 + $0x108] sm:$0xf]
  %v3584 = vld [vmem:[%s3522 + $0x10c] sm:$0xf]
  %v3585 = vld [vmem:[%s3522 + $0x110] sm:$0xf]
  %v3586 = vld [vmem:[%s3522 + $0x114] sm:$0xf]
  %v3587 = vld [vmem:[%s3522 + $0x120] sm:$0xf]
  %v3588 = vld [vmem:[%s3522 + $0x124] sm:$0xf]
  %v3589 = vld [vmem:[%s3522 + $0x128] sm:$0xf]
  %v3590 = vld [vmem:[%s3522 + $0x12c] sm:$0xf]
  %v3591 = vld [vmem:[%s3522 + $0x130] sm:$0xf]
  %v3592 = vld [vmem:[%s3522 + $0x134] sm:$0xf]
  %v3593 = vld [vmem:[%s3522 + $0x138] sm:$0xf]
  %v3594 = vld [vmem:[%s3522 + $0x13c] sm:$0xf]
  %v3595 = vld [vmem:[%s3522 + $0x140] sm:$0xf]
  %v3596 = vld [vmem:[%s3522 + $0x144] sm:$0xf]
  %v3597 = vld [vmem:[%s3522 + $0x148] sm:$0xf]
  %v3598 = vld [vmem:[%s3522 + $0x14c] sm:$0xf]
  %v3599 = vld [vmem:[%s3522 + $0x150] sm:$0xf]
  %v3600 = vld [vmem:[%s3522 + $0x154] sm:$0xf]
  %v3601 = vld [vmem:[%s3522 + $0x158] sm:$0xf]
  %v3602 = vld [vmem:[%s3522 + $0x15c] sm:$0xf]
  %v3603 = vld [vmem:[%s3522 + $0x168] sm:$0xf]
  %v3604 = vld [vmem:[%s3522 + $0x16c] sm:$0xf]
  %v3605 = vld [vmem:[%s3522 + $0x170] sm:$0xf]
  %v3606 = vld [vmem:[%s3522 + $0x174] sm:$0xf]
  %v3607 = vld [vmem:[%s3522 + $0x178] sm:$0xf]
  %v3608 = vld [vmem:[%s3522 + $0x17c] sm:$0xf]
  %v3609 = vld [vmem:[%s3522 + $0x180] sm:$0xf]
  %v3610 = vld [vmem:[%s3522 + $0x184] sm:$0xf]
  %v3611 = vld [vmem:[%s3522 + $0x188] sm:$0xf]
  %v3612 = vld [vmem:[%s3522 + $0x18c] sm:$0xf]
  %v3613 = vld [vmem:[%s3522 + $0x190] sm:$0xf]
  %v3614 = vld [vmem:[%s3522 + $0x194] sm:$0xf]
  %v3615 = vld [vmem:[%s3522 + $0x198] sm:$0xf]
  %v3616 = vld [vmem:[%s3522 + $0x19c] sm:$0xf]
  %v3617 = vld [vmem:[%s3522 + $0x1a0] sm:$0xf]
  %v3618 = vld [vmem:[%s3522 + $0x1a4] sm:$0xf]
  %v3619 = vld [vmem:[%s3522 + $0x1b0] sm:$0xf]
  %v3620 = vld [vmem:[%s3522 + $0x1b4] sm:$0xf]
  %v3621 = vld [vmem:[%s3522 + $0x1b8] sm:$0xf]
  %v3622 = vld [vmem:[%s3522 + $0x1bc] sm:$0xf]
  %v3623 = vld [vmem:[%s3522 + $0x1c0] sm:$0xf]
  %v3624 = vld [vmem:[%s3522 + $0x1c4] sm:$0xf]
  %v3625 = vld [vmem:[%s3522 + $0x1c8] sm:$0xf]
  %v3626 = vld [vmem:[%s3522 + $0x1cc] sm:$0xf]
  %v3627 = vld [vmem:[%s3522 + $0x1d0] sm:$0xf]
  %v3628 = vld [vmem:[%s3522 + $0x1d4] sm:$0xf]
  %v3629 = vld [vmem:[%s3522 + $0x1d8] sm:$0xf]
  %v3630 = vld [vmem:[%s3522 + $0x1dc] sm:$0xf]
  %v3631 = vld [vmem:[%s3522 + $0x1e0] sm:$0xf]
  %v3632 = vld [vmem:[%s3522 + $0x1e4] sm:$0xf]
  %v3633 = vld [vmem:[%s3522 + $0x1e8] sm:$0xf]
  %v3634 = vld [vmem:[%s3522 + $0x1ec] sm:$0xf]
  %v3635 = vld [vmem:[%s3522 + $0x1f8] sm:$0xf]
  %v3636 = vld [vmem:[%s3522 + $0x1fc] sm:$0xf]
  %v3637 = vld [vmem:[%s3522 + $0x200] sm:$0xf]
  %v3638 = vld [vmem:[%s3522 + $0x204] sm:$0xf]
  %v3639 = vld [vmem:[%s3522 + $0x208] sm:$0xf]
  %v3640 = vld [vmem:[%s3522 + $0x20c] sm:$0xf]
  %v3641 = vld [vmem:[%s3522 + $0x210] sm:$0xf]
  %v3642 = vld [vmem:[%s3522 + $0x214] sm:$0xf]
  %v3643 = vld [vmem:[%s3522 + $0x218] sm:$0xf]
  %v3644 = vld [vmem:[%s3522 + $0x21c] sm:$0xf]
  %v3645 = vld [vmem:[%s3522 + $0x220] sm:$0xf]
  %v3646 = vld [vmem:[%s3522 + $0x224] sm:$0xf]
  %v3647 = vld [vmem:[%s3522 + $0x228] sm:$0xf]
  %v3648 = vld [vmem:[%s3522 + $0x22c] sm:$0xf]
  %v3649 = vld [vmem:[%s3522 + $0x230] sm:$0xf]
  %v3650 = vld [vmem:[%s3522 + $0x234] sm:$0xf]
  %s3651 = scalar_lea.vmem %s1, 192
  %v3652 = vld [vmem:[%s3651] sm:$0xf]
  %v3653 = vld [vmem:[%s3651 + $0x4] sm:$0xf]
  %v3654 = vld [vmem:[%s3651 + $0x8] sm:$0xf]
  %v3655 = vld [vmem:[%s3651 + $0xc] sm:$0xf]
  %v3656 = vld [vmem:[%s3651 + $0x10] sm:$0xf]
  %v3657 = vld [vmem:[%s3651 + $0x14] sm:$0xf]
  %v3658 = vld [vmem:[%s3651 + $0x18] sm:$0xf]
  %v3659 = vld [vmem:[%s3651 + $0x1c] sm:$0xf]
  %v3660 = vld [vmem:[%s3651 + $0x20] sm:$0xf]
  %v3661 = vld [vmem:[%s3651 + $0x24] sm:$0xf]
  %v3662 = vld [vmem:[%s3651 + $0x28] sm:$0xf]
  %v3663 = vld [vmem:[%s3651 + $0x2c] sm:$0xf]
  %v3664 = vld [vmem:[%s3651 + $0x30] sm:$0xf]
  %v3665 = vld [vmem:[%s3651 + $0x34] sm:$0xf]
  %v3666 = vld [vmem:[%s3651 + $0x38] sm:$0xf]
  %v3667 = vld [vmem:[%s3651 + $0x3c] sm:$0xf]
  %v3796 = vunpack.c.l.b16 %v3523
  %v3797 = vunpack.c.l.b16 %v3524
  %v3798 = vunpack.c.l.b16 %v3525
  %v3799 = vunpack.c.l.b16 %v3526
  %v3800 = vunpack.c.l.b16 %v3527
  %v3801 = vunpack.c.l.b16 %v3528
  %v3802 = vunpack.c.l.b16 %v3529
  %v3803 = vunpack.c.l.b16 %v3530
  %v3804 = vunpack.c.l.b16 %v3531
  %v3805 = vunpack.c.l.b16 %v3532
  %v3806 = vunpack.c.l.b16 %v3533
  %v3807 = vunpack.c.l.b16 %v3534
  %v3808 = vunpack.c.l.b16 %v3535
  %v3809 = vunpack.c.l.b16 %v3536
  %v3810 = vunpack.c.l.b16 %v3537
  %v3811 = vunpack.c.l.b16 %v3538
  %v3812 = vunpack.c.l.b16 %v3539
  %v3813 = vunpack.c.l.b16 %v3540
  %v3814 = vunpack.c.l.b16 %v3541
  %v3815 = vunpack.c.l.b16 %v3542
  %v3816 = vunpack.c.l.b16 %v3543
  %v3817 = vunpack.c.l.b16 %v3544
  %v3818 = vunpack.c.l.b16 %v3545
  %v3819 = vunpack.c.l.b16 %v3546
  %v3820 = vunpack.c.l.b16 %v3547
  %v3821 = vunpack.c.l.b16 %v3548
  %v3822 = vunpack.c.l.b16 %v3549
  %v3823 = vunpack.c.l.b16 %v3550
  %v3824 = vunpack.c.l.b16 %v3551
  %v3825 = vunpack.c.l.b16 %v3552
  %v3826 = vunpack.c.l.b16 %v3553
  %v3827 = vunpack.c.l.b16 %v3554
  %v3828 = vunpack.c.l.b16 %v3555
  %v3829 = vunpack.c.l.b16 %v3556
  %v3830 = vunpack.c.l.b16 %v3557
  %v3831 = vunpack.c.l.b16 %v3558
  %v3832 = vunpack.c.l.b16 %v3559
  %v3833 = vunpack.c.l.b16 %v3560
  %v3834 = vunpack.c.l.b16 %v3561
  %v3835 = vunpack.c.l.b16 %v3562
  %v3836 = vunpack.c.l.b16 %v3563
  %v3837 = vunpack.c.l.b16 %v3564
  %v3838 = vunpack.c.l.b16 %v3565
  %v3839 = vunpack.c.l.b16 %v3566
  %v3840 = vunpack.c.l.b16 %v3567
  %v3841 = vunpack.c.l.b16 %v3568
  %v3842 = vunpack.c.l.b16 %v3569
  %v3843 = vunpack.c.l.b16 %v3570
  %v3844 = vunpack.c.l.b16 %v3571
  %v3845 = vunpack.c.l.b16 %v3572
  %v3846 = vunpack.c.l.b16 %v3573
  %v3847 = vunpack.c.l.b16 %v3574
  %v3848 = vunpack.c.l.b16 %v3575
  %v3849 = vunpack.c.l.b16 %v3576
  %v3850 = vunpack.c.l.b16 %v3577
  %v3851 = vunpack.c.l.b16 %v3578
  %v3852 = vunpack.c.l.b16 %v3579
  %v3853 = vunpack.c.l.b16 %v3580
  %v3854 = vunpack.c.l.b16 %v3581
  %v3855 = vunpack.c.l.b16 %v3582
  %v3856 = vunpack.c.l.b16 %v3583
  %v3857 = vunpack.c.l.b16 %v3584
  %v3858 = vunpack.c.l.b16 %v3585
  %v3859 = vunpack.c.l.b16 %v3586
  %v3860 = vunpack.c.l.b16 %v3587
  %v3861 = vunpack.c.l.b16 %v3588
  %v3862 = vunpack.c.l.b16 %v3589
  %v3863 = vunpack.c.l.b16 %v3590
  %v3864 = vunpack.c.l.b16 %v3591
  %v3865 = vunpack.c.l.b16 %v3592
  %v3866 = vunpack.c.l.b16 %v3593
  %v3867 = vunpack.c.l.b16 %v3594
  %v3868 = vunpack.c.l.b16 %v3595
  %v3869 = vunpack.c.l.b16 %v3596
  %v3870 = vunpack.c.l.b16 %v3597
  %v3871 = vunpack.c.l.b16 %v3598
  %v3872 = vunpack.c.l.b16 %v3599
  %v3873 = vunpack.c.l.b16 %v3600
  %v3874 = vunpack.c.l.b16 %v3601
  %v3875 = vunpack.c.l.b16 %v3602
  %v3876 = vunpack.c.l.b16 %v3603
  %v3877 = vunpack.c.l.b16 %v3604
  %v3878 = vunpack.c.l.b16 %v3605
  %v3879 = vunpack.c.l.b16 %v3606
  %v3880 = vunpack.c.l.b16 %v3607
  %v3881 = vunpack.c.l.b16 %v3608
  %v3882 = vunpack.c.l.b16 %v3609
  %v3883 = vunpack.c.l.b16 %v3610
  %v3884 = vunpack.c.l.b16 %v3611
  %v3885 = vunpack.c.l.b16 %v3612
  %v3886 = vunpack.c.l.b16 %v3613
  %v3887 = vunpack.c.l.b16 %v3614
  %v3888 = vunpack.c.l.b16 %v3615
  %v3889 = vunpack.c.l.b16 %v3616
  %v3890 = vunpack.c.l.b16 %v3617
  %v3891 = vunpack.c.l.b16 %v3618
  %v3892 = vunpack.c.l.b16 %v3619
  %v3893 = vunpack.c.l.b16 %v3620
  %v3894 = vunpack.c.l.b16 %v3621
  %v3895 = vunpack.c.l.b16 %v3622
  %v3896 = vunpack.c.l.b16 %v3623
  %v3897 = vunpack.c.l.b16 %v3624
  %v3898 = vunpack.c.l.b16 %v3625
  %v3899 = vunpack.c.l.b16 %v3626
  %v3900 = vunpack.c.l.b16 %v3627
  %v3901 = vunpack.c.l.b16 %v3628
  %v3902 = vunpack.c.l.b16 %v3629
  %v3903 = vunpack.c.l.b16 %v3630
  %v3904 = vunpack.c.l.b16 %v3631
  %v3905 = vunpack.c.l.b16 %v3632
  %v3906 = vunpack.c.l.b16 %v3633
  %v3907 = vunpack.c.l.b16 %v3634
  %v3908 = vunpack.c.l.b16 %v3635
  %v3909 = vunpack.c.l.b16 %v3636
  %v3910 = vunpack.c.l.b16 %v3637
  %v3911 = vunpack.c.l.b16 %v3638
  %v3912 = vunpack.c.l.b16 %v3639
  %v3913 = vunpack.c.l.b16 %v3640
  %v3914 = vunpack.c.l.b16 %v3641
  %v3915 = vunpack.c.l.b16 %v3642
  %v3916 = vunpack.c.l.b16 %v3643
  %v3917 = vunpack.c.l.b16 %v3644
  %v3918 = vunpack.c.l.b16 %v3645
  %v3919 = vunpack.c.l.b16 %v3646
  %v3920 = vunpack.c.l.b16 %v3647
  %v3921 = vunpack.c.l.b16 %v3648
  %v3922 = vunpack.c.l.b16 %v3649
  %v3923 = vunpack.c.l.b16 %v3650
  %v3924 = vpack.c.b16 %v3797, %v3796
  %v3925 = vpack.c.b16 %v3799, %v3798
  %v3926 = vpack.c.b16 %v3801, %v3800
  %v3927 = vpack.c.b16 %v3803, %v3802
  %v3928 = vpack.c.b16 %v3805, %v3804
  %v3929 = vpack.c.b16 %v3807, %v3806
  %v3930 = vpack.c.b16 %v3809, %v3808
  %v3931 = vpack.c.b16 %v3811, %v3810
  %v3932 = vpack.c.b16 %v3813, %v3812
  %v3933 = vpack.c.b16 %v3815, %v3814
  %v3934 = vpack.c.b16 %v3817, %v3816
  %v3935 = vpack.c.b16 %v3819, %v3818
  %v3936 = vpack.c.b16 %v3821, %v3820
  %v3937 = vpack.c.b16 %v3823, %v3822
  %v3938 = vpack.c.b16 %v3825, %v3824
  %v3939 = vpack.c.b16 %v3827, %v3826
  %v3940 = vpack.c.b16 %v3829, %v3828
  %v3941 = vpack.c.b16 %v3831, %v3830
  %v3942 = vpack.c.b16 %v3833, %v3832
  %v3943 = vpack.c.b16 %v3835, %v3834
  %v3944 = vpack.c.b16 %v3837, %v3836
  %v3945 = vpack.c.b16 %v3839, %v3838
  %v3946 = vpack.c.b16 %v3841, %v3840
  %v3947 = vpack.c.b16 %v3843, %v3842
  %v3948 = vpack.c.b16 %v3845, %v3844
  %v3949 = vpack.c.b16 %v3847, %v3846
  %v3950 = vpack.c.b16 %v3849, %v3848
  %v3951 = vpack.c.b16 %v3851, %v3850
  %v3952 = vpack.c.b16 %v3853, %v3852
  %v3953 = vpack.c.b16 %v3855, %v3854
  %v3954 = vpack.c.b16 %v3857, %v3856
  %v3955 = vpack.c.b16 %v3859, %v3858
  %v3956 = vpack.c.b16 %v3861, %v3860
  %v3957 = vpack.c.b16 %v3863, %v3862
  %v3958 = vpack.c.b16 %v3865, %v3864
  %v3959 = vpack.c.b16 %v3867, %v3866
  %v3960 = vpack.c.b16 %v3869, %v3868
  %v3961 = vpack.c.b16 %v3871, %v3870
  %v3962 = vpack.c.b16 %v3873, %v3872
  %v3963 = vpack.c.b16 %v3875, %v3874
  %v3964 = vpack.c.b16 %v3877, %v3876
  %v3965 = vpack.c.b16 %v3879, %v3878
  %v3966 = vpack.c.b16 %v3881, %v3880
  %v3967 = vpack.c.b16 %v3883, %v3882
  %v3968 = vpack.c.b16 %v3885, %v3884
  %v3969 = vpack.c.b16 %v3887, %v3886
  %v3970 = vpack.c.b16 %v3889, %v3888
  %v3971 = vpack.c.b16 %v3891, %v3890
  %v3972 = vpack.c.b16 %v3893, %v3892
  %v3973 = vpack.c.b16 %v3895, %v3894
  %v3974 = vpack.c.b16 %v3897, %v3896
  %v3975 = vpack.c.b16 %v3899, %v3898
  %v3976 = vpack.c.b16 %v3901, %v3900
  %v3977 = vpack.c.b16 %v3903, %v3902
  %v3978 = vpack.c.b16 %v3905, %v3904
  %v3979 = vpack.c.b16 %v3907, %v3906
  %v3980 = vpack.c.b16 %v3909, %v3908
  %v3981 = vpack.c.b16 %v3911, %v3910
  %v3982 = vpack.c.b16 %v3913, %v3912
  %v3983 = vpack.c.b16 %v3915, %v3914
  %v3984 = vpack.c.b16 %v3917, %v3916
  %v3985 = vpack.c.b16 %v3919, %v3918
  %v3986 = vpack.c.b16 %v3921, %v3920
  %v3987 = vpack.c.b16 %v3923, %v3922
  %v4068 = vunpack.c.l.b16 %v3652
  %v4069 = vunpack.c.l.b16 %v3653
  %v4070 = vunpack.c.l.b16 %v3654
  %v4071 = vunpack.c.l.b16 %v3655
  %v4072 = vunpack.c.l.b16 %v3656
  %v4073 = vunpack.c.l.b16 %v3657
  %v4074 = vunpack.c.l.b16 %v3658
  %v4075 = vunpack.c.l.b16 %v3659
  %v4076 = vunpack.c.l.b16 %v3660
  %v4077 = vunpack.c.l.b16 %v3661
  %v4078 = vunpack.c.l.b16 %v3662
  %v4079 = vunpack.c.l.b16 %v3663
  %v4080 = vunpack.c.l.b16 %v3664
  %v4081 = vunpack.c.l.b16 %v3665
  %v4082 = vunpack.c.l.b16 %v3666
  %v4083 = vunpack.c.l.b16 %v3667
  %v4084 = vpack.c.b16 %v4069, %v4068
  %v4085 = vpack.c.b16 %v4071, %v4070
  %v4086 = vpack.c.b16 %v4073, %v4072
  %v4087 = vpack.c.b16 %v4075, %v4074
  %v4088 = vpack.c.b16 %v4077, %v4076
  %v4089 = vpack.c.b16 %v4079, %v4078
  %v4090 = vpack.c.b16 %v4081, %v4080
  %v4091 = vpack.c.b16 %v4083, %v4082
  %4100 = vmatprep.subr.bf16.mxu0 0
  %4101 = vmatpush1.bf16.msra.mxu0 %v4084
  %4102 = vmatprep.subr.bf16.mxu0 0
  %4103 = vmatpush1.bf16.msra.mxu0 %v4085
  %4104 = vmatprep.subr.bf16.mxu0 0
  %4105 = vmatpush1.bf16.msra.mxu0 %v4086
  %4106 = vmatprep.subr.bf16.mxu0 0
  %4107 = vmatpush1.bf16.msra.mxu0 %v4087
  %4108 = vmatprep.subr.bf16.mxu0 0
  %4109 = vmatpush1.bf16.msra.mxu0 %v4088
  %4110 = vmatprep.subr.bf16.mxu0 0
  %4111 = vmatpush1.bf16.msra.mxu0 %v4089
  %4112 = vmatprep.subr.bf16.mxu0 0
  %4113 = vmatpush1.bf16.msra.mxu0 %v4090
  %4114 = vmatprep.subr.bf16.mxu0 0
  %4115 = vmatpush1.bf16.msra.mxu0 %v4091
  %4116 = vmatprep.subr.bf16.mxu0 0
  %4117 = vmatpush1.bf16.msra.mxu0 0
  %4118 = vmatprep.subr.bf16.mxu0 0
  %4119 = vmatpush1.bf16.msra.mxu0 0
  %4120 = vmatprep.subr.bf16.mxu0 0
  %4121 = vmatpush1.bf16.msra.mxu0 0
  %4122 = vmatprep.subr.bf16.mxu0 0
  %4123 = vmatpush1.bf16.msra.mxu0 0
  %4124 = vmatprep.subr.bf16.mxu0 0
  %4125 = vmatpush1.bf16.msra.mxu0 0
  %4126 = vmatprep.subr.bf16.mxu0 0
  %4127 = vmatpush1.bf16.msra.mxu0 0
  %4128 = vmatprep.subr.bf16.mxu0 0
  %4129 = vmatpush1.bf16.msra.mxu0 0
  %4130 = vmatprep.subr.bf16.mxu0 0
  %4131 = vmatpush1.bf16.msra.mxu0 0
  %4132 = vmatprep.mubr.bf16.mxu0 0
  %4133 = vmatmul.mubr.bf16.gmra.mrb[0].mxu0 %v3924
  %v4134 = vpop.f32.mrb[0].mxu0
  %v4135 = vadd.f32 0.0, %v4134
  %v4136 = vpop.f32.mrb[0].mxu0
  %v4137 = vpop.f32.mrb[0].mxu0
  %v4138 = vadd.f32 0.0, %v4137
  %v4139 = vpop.f32.mrb[0].mxu0
  %4140 = vmatprep.mubr.bf16.mxu0 0
  %4141 = vmatmul.mubr.bf16.gmra.mrb[0].mxu0 %v3925
  %v4142 = vpop.f32.mrb[0].mxu0
  %v4143 = vadd.f32 0.0, %v4142
  %v4144 = vpop.f32.mrb[0].mxu0
  %v4145 = vpop.f32.mrb[0].mxu0
  %v4146 = vadd.f32 0.0, %v4145
  %v4147 = vpop.f32.mrb[0].mxu0
  %4148 = vmatprep.mubr.bf16.mxu0 0
  %4149 = vmatmul.mubr.bf16.gmra.mrb[0].mxu0 %v3926
  %v4150 = vpop.f32.mrb[0].mxu0
  %v4151 = vadd.f32 0.0, %v4150
  %v4152 = vpop.f32.mrb[0].mxu0
  %v4153 = vpop.f32.mrb[0].mxu0
  %v4154 = vadd.f32 0.0, %v4153
  %v4155 = vpop.f32.mrb[0].mxu0
  %4156 = vmatprep.mubr.bf16.mxu0 0
  %4157 = vmatmul.mubr.bf16.gmra.mrb[0].mxu0 %v3927
  %v4158 = vpop.f32.mrb[0].mxu0
  %v4159 = vadd.f32 0.0, %v4158
  %v4160 = vpop.f32.mrb[0].mxu0
  %v4161 = vpop.f32.mrb[0].mxu0
  %v4162 = vadd.f32 0.0, %v4161
  %v4163 = vpop.f32.mrb[0].mxu0
  %4164 = vmatprep.mubr.bf16.mxu0 0
  %4165 = vmatmul.mubr.bf16.gmra.mrb[0].mxu0 %v3928
  %v4166 = vpop.f32.mrb[0].mxu0
  %v4167 = vadd.f32 0.0, %v4166
  %v4168 = vpop.f32.mrb[0].mxu0
  %v4169 = vpop.f32.mrb[0].mxu0
  %v4170 = vadd.f32 0.0, %v4169
  %v4171 = vpop.f32.mrb[0].mxu0
  %4172 = vmatprep.mubr.bf16.mxu0 0
  %4173 = vmatmul.mubr.bf16.gmra.mrb[0].mxu0 %v3929
  %v4174 = vpop.f32.mrb[0].mxu0
  %v4175 = vadd.f32 0.0, %v4174
  %v4176 = vpop.f32.mrb[0].mxu0
  %v4177 = vpop.f32.mrb[0].mxu0
  %v4178 = vadd.f32 0.0, %v4177
  %v4179 = vpop.f32.mrb[0].mxu0
  %4180 = vmatprep.mubr.bf16.mxu0 0
  %4181 = vmatmul.mubr.bf16.gmra.mrb[0].mxu0 %v3930
  %v4182 = vpop.f32.mrb[0].mxu0
  %v4183 = vadd.f32 0.0, %v4182
  %v4184 = vpop.f32.mrb[0].mxu0
  %v4185 = vpop.f32.mrb[0].mxu0
  %v4186 = vadd.f32 0.0, %v4185
  %v4187 = vpop.f32.mrb[0].mxu0
  %4188 = vmatprep.mubr.bf16.mxu0 0
  %4189 = vmatmul.mubr.bf16.gmra.mrb[0].mxu0 %v3931
  %v4190 = vpop.f32.mrb[0].mxu0
  %v4191 = vadd.f32 0.0, %v4190
  %v4192 = vpop.f32.mrb[0].mxu0
  %v4193 = vpop.f32.mrb[0].mxu0
  %v4194 = vadd.f32 0.0, %v4193
  %v4195 = vpop.f32.mrb[0].mxu0
  %4196 = vmatprep.mubr.bf16.mxu0 0
  %4197 = vmatmul.mubr.bf16.gmra.mrb[0].mxu0 %v3932
  %v4198 = vpop.f32.mrb[0].mxu0
  %v4199 = vadd.f32 0.0, %v4198
  %v4200 = vpop.f32.mrb[0].mxu0
  %v4201 = vpop.f32.mrb[0].mxu0
  %v4202 = vadd.f32 0.0, %v4201
  %v4203 = vpop.f32.mrb[0].mxu0
  %4204 = vmatprep.mubr.bf16.mxu0 0
  %4205 = vmatmul.mubr.bf16.gmra.mrb[0].mxu0 %v3933
  %v4206 = vpop.f32.mrb[0].mxu0
  %v4207 = vadd.f32 0.0, %v4206
  %v4208 = vpop.f32.mrb[0].mxu0
  %v4209 = vpop.f32.mrb[0].mxu0
  %v4210 = vadd.f32 0.0, %v4209
  %v4211 = vpop.f32.mrb[0].mxu0
  %4212 = vmatprep.mubr.bf16.mxu0 0
  %4213 = vmatmul.mubr.bf16.gmra.mrb[0].mxu0 %v3934
  %v4214 = vpop.f32.mrb[0].mxu0
  %v4215 = vadd.f32 0.0, %v4214
  %v4216 = vpop.f32.mrb[0].mxu0
  %v4217 = vpop.f32.mrb[0].mxu0
  %v4218 = vadd.f32 0.0, %v4217
  %v4219 = vpop.f32.mrb[0].mxu0
  %4220 = vmatprep.mubr.bf16.mxu0 0
  %4221 = vmatmul.mubr.bf16.gmra.mrb[0].mxu0 %v3935
  %v4222 = vpop.f32.mrb[0].mxu0
  %v4223 = vadd.f32 0.0, %v4222
  %v4224 = vpop.f32.mrb[0].mxu0
  %v4225 = vpop.f32.mrb[0].mxu0
  %v4226 = vadd.f32 0.0, %v4225
  %v4227 = vpop.f32.mrb[0].mxu0
  %4228 = vmatprep.mubr.bf16.mxu0 0
  %4229 = vmatmul.mubr.bf16.gmra.mrb[0].mxu0 %v3936
  %v4230 = vpop.f32.mrb[0].mxu0
  %v4231 = vadd.f32 0.0, %v4230
  %v4232 = vpop.f32.mrb[0].mxu0
  %v4233 = vpop.f32.mrb[0].mxu0
  %v4234 = vadd.f32 0.0, %v4233
  %v4235 = vpop.f32.mrb[0].mxu0
  %4236 = vmatprep.mubr.bf16.mxu0 0
  %4237 = vmatmul.mubr.bf16.gmra.mrb[0].mxu0 %v3937
  %v4238 = vpop.f32.mrb[0].mxu0
  %v4239 = vadd.f32 0.0, %v4238
  %v4240 = vpop.f32.mrb[0].mxu0
  %v4241 = vpop.f32.mrb[0].mxu0
  %v4242 = vadd.f32 0.0, %v4241
  %v4243 = vpop.f32.mrb[0].mxu0
  %4244 = vmatprep.mubr.bf16.mxu0 0
  %4245 = vmatmul.mubr.bf16.gmra.mrb[0].mxu0 %v3938
  %v4246 = vpop.f32.mrb[0].mxu0
  %v4247 = vadd.f32 0.0, %v4246
  %v4248 = vpop.f32.mrb[0].mxu0
  %v4249 = vpop.f32.mrb[0].mxu0
  %v4250 = vadd.f32 0.0, %v4249
  %v4251 = vpop.f32.mrb[0].mxu0
  %4252 = vmatprep.mubr.bf16.mxu0 0
  %4253 = vmatmul.mubr.bf16.gmra.mrb[0].mxu0 %v3939
  %v4254 = vpop.f32.mrb[0].mxu0
  %v4255 = vadd.f32 0.0, %v4254
  %v4256 = vpop.f32.mrb[0].mxu0
  %v4257 = vpop.f32.mrb[0].mxu0
  %v4258 = vadd.f32 0.0, %v4257
  %v4259 = vpop.f32.mrb[0].mxu0
  %4260 = vmatprep.mubr.bf16.mxu0 0
  %4261 = vmatmul.mubr.bf16.gmra.mrb[0].mxu0 %v3940
  %v4262 = vpop.f32.mrb[0].mxu0
  %v4263 = vadd.f32 0.0, %v4262
  %v4264 = vpop.f32.mrb[0].mxu0
  %v4265 = vpop.f32.mrb[0].mxu0
  %v4266 = vadd.f32 0.0, %v4265
  %v4267 = vpop.f32.mrb[0].mxu0
  %4268 = vmatprep.mubr.bf16.mxu0 0
  %4269 = vmatmul.mubr.bf16.gmra.mrb[0].mxu0 %v3941
  %v4270 = vpop.f32.mrb[0].mxu0
  %v4271 = vadd.f32 0.0, %v4270
  %v4272 = vpop.f32.mrb[0].mxu0
  %v4273 = vpop.f32.mrb[0].mxu0
  %v4274 = vadd.f32 0.0, %v4273
  %v4275 = vpop.f32.mrb[0].mxu0
  %4276 = vmatprep.mubr.bf16.mxu0 0
  %4277 = vmatmul.mubr.bf16.gmra.mrb[0].mxu0 %v3942
  %v4278 = vpop.f32.mrb[0].mxu0
  %v4279 = vadd.f32 0.0, %v4278
  %v4280 = vpop.f32.mrb[0].mxu0
  %v4281 = vpop.f32.mrb[0].mxu0
  %v4282 = vadd.f32 0.0, %v4281
  %v4283 = vpop.f32.mrb[0].mxu0
  %4284 = vmatprep.mubr.bf16.mxu0 0
  %4285 = vmatmul.mubr.bf16.gmra.mrb[0].mxu0 %v3943
  %v4286 = vpop.f32.mrb[0].mxu0
  %v4287 = vadd.f32 0.0, %v4286
  %v4288 = vpop.f32.mrb[0].mxu0
  %v4289 = vpop.f32.mrb[0].mxu0
  %v4290 = vadd.f32 0.0, %v4289
  %v4291 = vpop.f32.mrb[0].mxu0
  %4292 = vmatprep.mubr.bf16.mxu0 0
  %4293 = vmatmul.mubr.bf16.gmra.mrb[0].mxu0 %v3944
  %v4294 = vpop.f32.mrb[0].mxu0
  %v4295 = vadd.f32 0.0, %v4294
  %v4296 = vpop.f32.mrb[0].mxu0
  %v4297 = vpop.f32.mrb[0].mxu0
  %v4298 = vadd.f32 0.0, %v4297
  %v4299 = vpop.f32.mrb[0].mxu0
  %4300 = vmatprep.mubr.bf16.mxu0 0
  %4301 = vmatmul.mubr.bf16.gmra.mrb[0].mxu0 %v3945
  %v4302 = vpop.f32.mrb[0].mxu0
  %v4303 = vadd.f32 0.0, %v4302
  %v4304 = vpop.f32.mrb[0].mxu0
  %v4305 = vpop.f32.mrb[0].mxu0
  %v4306 = vadd.f32 0.0, %v4305
  %v4307 = vpop.f32.mrb[0].mxu0
  %4308 = vmatprep.mubr.bf16.mxu0 0
  %4309 = vmatmul.mubr.bf16.gmra.mrb[0].mxu0 %v3946
  %v4310 = vpop.f32.mrb[0].mxu0
  %v4311 = vadd.f32 0.0, %v4310
  %v4312 = vpop.f32.mrb[0].mxu0
  %v4313 = vpop.f32.mrb[0].mxu0
  %v4314 = vadd.f32 0.0, %v4313
  %v4315 = vpop.f32.mrb[0].mxu0
  %4316 = vmatprep.mubr.bf16.mxu0 0
  %4317 = vmatmul.mubr.bf16.gmra.mrb[0].mxu0 %v3947
  %v4318 = vpop.f32.mrb[0].mxu0
  %v4319 = vadd.f32 0.0, %v4318
  %v4320 = vpop.f32.mrb[0].mxu0
  %v4321 = vpop.f32.mrb[0].mxu0
  %v4322 = vadd.f32 0.0, %v4321
  %v4323 = vpop.f32.mrb[0].mxu0
  %4324 = vmatprep.mubr.bf16.mxu0 0
  %4325 = vmatmul.mubr.bf16.gmra.mrb[0].mxu0 %v3948
  %v4326 = vpop.f32.mrb[0].mxu0
  %v4327 = vadd.f32 0.0, %v4326
  %v4328 = vpop.f32.mrb[0].mxu0
  %v4329 = vpop.f32.mrb[0].mxu0
  %v4330 = vadd.f32 0.0, %v4329
  %v4331 = vpop.f32.mrb[0].mxu0
  %4332 = vmatprep.mubr.bf16.mxu0 0
  %4333 = vmatmul.mubr.bf16.gmra.mrb[0].mxu0 %v3949
  %v4334 = vpop.f32.mrb[0].mxu0
  %v4335 = vadd.f32 0.0, %v4334
  %v4336 = vpop.f32.mrb[0].mxu0
  %v4337 = vpop.f32.mrb[0].mxu0
  %v4338 = vadd.f32 0.0, %v4337
  %v4339 = vpop.f32.mrb[0].mxu0
  %4340 = vmatprep.mubr.bf16.mxu0 0
  %4341 = vmatmul.mubr.bf16.gmra.mrb[0].mxu0 %v3950
  %v4342 = vpop.f32.mrb[0].mxu0
  %v4343 = vadd.f32 0.0, %v4342
  %v4344 = vpop.f32.mrb[0].mxu0
  %v4345 = vpop.f32.mrb[0].mxu0
  %v4346 = vadd.f32 0.0, %v4345
  %v4347 = vpop.f32.mrb[0].mxu0
  %4348 = vmatprep.mubr.bf16.mxu0 0
  %4349 = vmatmul.mubr.bf16.gmra.mrb[0].mxu0 %v3951
  %v4350 = vpop.f32.mrb[0].mxu0
  %v4351 = vadd.f32 0.0, %v4350
  %v4352 = vpop.f32.mrb[0].mxu0
  %v4353 = vpop.f32.mrb[0].mxu0
  %v4354 = vadd.f32 0.0, %v4353
  %v4355 = vpop.f32.mrb[0].mxu0
  %4356 = vmatprep.mubr.bf16.mxu0 0
  %4357 = vmatmul.mubr.bf16.gmra.mrb[0].mxu0 %v3952
  %v4358 = vpop.f32.mrb[0].mxu0
  %v4359 = vadd.f32 0.0, %v4358
  %v4360 = vpop.f32.mrb[0].mxu0
  %v4361 = vpop.f32.mrb[0].mxu0
  %v4362 = vadd.f32 0.0, %v4361
  %v4363 = vpop.f32.mrb[0].mxu0
  %4364 = vmatprep.mubr.bf16.mxu0 0
  %4365 = vmatmul.mubr.bf16.gmra.mrb[0].mxu0 %v3953
  %v4366 = vpop.f32.mrb[0].mxu0
  %v4367 = vadd.f32 0.0, %v4366
  %v4368 = vpop.f32.mrb[0].mxu0
  %v4369 = vpop.f32.mrb[0].mxu0
  %v4370 = vadd.f32 0.0, %v4369
  %v4371 = vpop.f32.mrb[0].mxu0
  %4372 = vmatprep.mubr.bf16.mxu0 0
  %4373 = vmatmul.mubr.bf16.gmra.mrb[0].mxu0 %v3954
  %v4374 = vpop.f32.mrb[0].mxu0
  %v4375 = vadd.f32 0.0, %v4374
  %v4376 = vpop.f32.mrb[0].mxu0
  %v4377 = vpop.f32.mrb[0].mxu0
  %v4378 = vadd.f32 0.0, %v4377
  %v4379 = vpop.f32.mrb[0].mxu0
  %4380 = vmatprep.mubr.bf16.mxu0 0
  %4381 = vmatmul.mubr.bf16.gmra.mrb[0].mxu0 %v3955
  %v4382 = vpop.f32.mrb[0].mxu0
  %v4383 = vadd.f32 0.0, %v4382
  %v4384 = vpop.f32.mrb[0].mxu0
  %v4385 = vpop.f32.mrb[0].mxu0
  %v4386 = vadd.f32 0.0, %v4385
  %v4387 = vpop.f32.mrb[0].mxu0
  %4388 = vmatprep.mubr.bf16.mxu0 0
  %4389 = vmatmul.mubr.bf16.gmra.mrb[0].mxu0 %v3956
  %v4390 = vpop.f32.mrb[0].mxu0
  %v4391 = vadd.f32 0.0, %v4390
  %v4392 = vpop.f32.mrb[0].mxu0
  %v4393 = vpop.f32.mrb[0].mxu0
  %v4394 = vadd.f32 0.0, %v4393
  %v4395 = vpop.f32.mrb[0].mxu0
  %4396 = vmatprep.mubr.bf16.mxu0 0
  %4397 = vmatmul.mubr.bf16.gmra.mrb[0].mxu0 %v3957
  %v4398 = vpop.f32.mrb[0].mxu0
  %v4399 = vadd.f32 0.0, %v4398
  %v4400 = vpop.f32.mrb[0].mxu0
  %v4401 = vpop.f32.mrb[0].mxu0
  %v4402 = vadd.f32 0.0, %v4401
  %v4403 = vpop.f32.mrb[0].mxu0
  %4404 = vmatprep.mubr.bf16.mxu0 0
  %4405 = vmatmul.mubr.bf16.gmra.mrb[0].mxu0 %v3958
  %v4406 = vpop.f32.mrb[0].mxu0
  %v4407 = vadd.f32 0.0, %v4406
  %v4408 = vpop.f32.mrb[0].mxu0
  %v4409 = vpop.f32.mrb[0].mxu0
  %v4410 = vadd.f32 0.0, %v4409
  %v4411 = vpop.f32.mrb[0].mxu0
  %4412 = vmatprep.mubr.bf16.mxu0 0
  %4413 = vmatmul.mubr.bf16.gmra.mrb[0].mxu0 %v3959
  %v4414 = vpop.f32.mrb[0].mxu0
  %v4415 = vadd.f32 0.0, %v4414
  %v4416 = vpop.f32.mrb[0].mxu0
  %v4417 = vpop.f32.mrb[0].mxu0
  %v4418 = vadd.f32 0.0, %v4417
  %v4419 = vpop.f32.mrb[0].mxu0
  %4420 = vmatprep.mubr.bf16.mxu0 0
  %4421 = vmatmul.mubr.bf16.gmra.mrb[0].mxu0 %v3960
  %v4422 = vpop.f32.mrb[0].mxu0
  %v4423 = vadd.f32 0.0, %v4422
  %v4424 = vpop.f32.mrb[0].mxu0
  %v4425 = vpop.f32.mrb[0].mxu0
  %v4426 = vadd.f32 0.0, %v4425
  %v4427 = vpop.f32.mrb[0].mxu0
  %4428 = vmatprep.mubr.bf16.mxu0 0
  %4429 = vmatmul.mubr.bf16.gmra.mrb[0].mxu0 %v3961
  %v4430 = vpop.f32.mrb[0].mxu0
  %v4431 = vadd.f32 0.0, %v4430
  %v4432 = vpop.f32.mrb[0].mxu0
  %v4433 = vpop.f32.mrb[0].mxu0
  %v4434 = vadd.f32 0.0, %v4433
  %v4435 = vpop.f32.mrb[0].mxu0
  %4436 = vmatprep.mubr.bf16.mxu0 0
  %4437 = vmatmul.mubr.bf16.gmra.mrb[0].mxu0 %v3962
  %v4438 = vpop.f32.mrb[0].mxu0
  %v4439 = vadd.f32 0.0, %v4438
  %v4440 = vpop.f32.mrb[0].mxu0
  %v4441 = vpop.f32.mrb[0].mxu0
  %v4442 = vadd.f32 0.0, %v4441
  %v4443 = vpop.f32.mrb[0].mxu0
  %4444 = vmatprep.mubr.bf16.mxu0 0
  %4445 = vmatmul.mubr.bf16.gmra.mrb[0].mxu0 %v3963
  %v4446 = vpop.f32.mrb[0].mxu0
  %v4447 = vadd.f32 0.0, %v4446
  %v4448 = vpop.f32.mrb[0].mxu0
  %v4449 = vpop.f32.mrb[0].mxu0
  %v4450 = vadd.f32 0.0, %v4449
  %v4451 = vpop.f32.mrb[0].mxu0
  %4452 = vmatprep.mubr.bf16.mxu0 0
  %4453 = vmatmul.mubr.bf16.gmra.mrb[0].mxu0 %v3964
  %v4454 = vpop.f32.mrb[0].mxu0
  %v4455 = vadd.f32 0.0, %v4454
  %v4456 = vpop.f32.mrb[0].mxu0
  %v4457 = vpop.f32.mrb[0].mxu0
  %v4458 = vadd.f32 0.0, %v4457
  %v4459 = vpop.f32.mrb[0].mxu0
  %4460 = vmatprep.mubr.bf16.mxu0 0
  %4461 = vmatmul.mubr.bf16.gmra.mrb[0].mxu0 %v3965
  %v4462 = vpop.f32.mrb[0].mxu0
  %v4463 = vadd.f32 0.0, %v4462
  %v4464 = vpop.f32.mrb[0].mxu0
  %v4465 = vpop.f32.mrb[0].mxu0
  %v4466 = vadd.f32 0.0, %v4465
  %v4467 = vpop.f32.mrb[0].mxu0
  %4468 = vmatprep.mubr.bf16.mxu0 0
  %4469 = vmatmul.mubr.bf16.gmra.mrb[0].mxu0 %v3966
  %v4470 = vpop.f32.mrb[0].mxu0
  %v4471 = vadd.f32 0.0, %v4470
  %v4472 = vpop.f32.mrb[0].mxu0
  %v4473 = vpop.f32.mrb[0].mxu0
  %v4474 = vadd.f32 0.0, %v4473
  %v4475 = vpop.f32.mrb[0].mxu0
  %4476 = vmatprep.mubr.bf16.mxu0 0
  %4477 = vmatmul.mubr.bf16.gmra.mrb[0].mxu0 %v3967
  %v4478 = vpop.f32.mrb[0].mxu0
  %v4479 = vadd.f32 0.0, %v4478
  %v4480 = vpop.f32.mrb[0].mxu0
  %v4481 = vpop.f32.mrb[0].mxu0
  %v4482 = vadd.f32 0.0, %v4481
  %v4483 = vpop.f32.mrb[0].mxu0
  %4484 = vmatprep.mubr.bf16.mxu0 0
  %4485 = vmatmul.mubr.bf16.gmra.mrb[0].mxu0 %v3968
  %v4486 = vpop.f32.mrb[0].mxu0
  %v4487 = vadd.f32 0.0, %v4486
  %v4488 = vpop.f32.mrb[0].mxu0
  %v4489 = vpop.f32.mrb[0].mxu0
  %v4490 = vadd.f32 0.0, %v4489
  %v4491 = vpop.f32.mrb[0].mxu0
  %4492 = vmatprep.mubr.bf16.mxu0 0
  %4493 = vmatmul.mubr.bf16.gmra.mrb[0].mxu0 %v3969
  %v4494 = vpop.f32.mrb[0].mxu0
  %v4495 = vadd.f32 0.0, %v4494
  %v4496 = vpop.f32.mrb[0].mxu0
  %v4497 = vpop.f32.mrb[0].mxu0
  %v4498 = vadd.f32 0.0, %v4497
  %v4499 = vpop.f32.mrb[0].mxu0
  %4500 = vmatprep.mubr.bf16.mxu0 0
  %4501 = vmatmul.mubr.bf16.gmra.mrb[0].mxu0 %v3970
  %v4502 = vpop.f32.mrb[0].mxu0
  %v4503 = vadd.f32 0.0, %v4502
  %v4504 = vpop.f32.mrb[0].mxu0
  %v4505 = vpop.f32.mrb[0].mxu0
  %v4506 = vadd.f32 0.0, %v4505
  %v4507 = vpop.f32.mrb[0].mxu0
  %4508 = vmatprep.mubr.bf16.mxu0 0
  %4509 = vmatmul.mubr.bf16.gmra.mrb[0].mxu0 %v3971
  %v4510 = vpop.f32.mrb[0].mxu0
  %v4511 = vadd.f32 0.0, %v4510
  %v4512 = vpop.f32.mrb[0].mxu0
  %v4513 = vpop.f32.mrb[0].mxu0
  %v4514 = vadd.f32 0.0, %v4513
  %v4515 = vpop.f32.mrb[0].mxu0
  %4516 = vmatprep.mubr.bf16.mxu0 0
  %4517 = vmatmul.mubr.bf16.gmra.mrb[0].mxu0 %v3972
  %v4518 = vpop.f32.mrb[0].mxu0
  %v4519 = vadd.f32 0.0, %v4518
  %v4520 = vpop.f32.mrb[0].mxu0
  %v4521 = vpop.f32.mrb[0].mxu0
  %v4522 = vadd.f32 0.0, %v4521
  %v4523 = vpop.f32.mrb[0].mxu0
  %4524 = vmatprep.mubr.bf16.mxu0 0
  %4525 = vmatmul.mubr.bf16.gmra.mrb[0].mxu0 %v3973
  %v4526 = vpop.f32.mrb[0].mxu0
  %v4527 = vadd.f32 0.0, %v4526
  %v4528 = vpop.f32.mrb[0].mxu0
  %v4529 = vpop.f32.mrb[0].mxu0
  %v4530 = vadd.f32 0.0, %v4529
  %v4531 = vpop.f32.mrb[0].mxu0
  %4532 = vmatprep.mubr.bf16.mxu0 0
  %4533 = vmatmul.mubr.bf16.gmra.mrb[0].mxu0 %v3974
  %v4534 = vpop.f32.mrb[0].mxu0
  %v4535 = vadd.f32 0.0, %v4534
  %v4536 = vpop.f32.mrb[0].mxu0
  %v4537 = vpop.f32.mrb[0].mxu0
  %v4538 = vadd.f32 0.0, %v4537
  %v4539 = vpop.f32.mrb[0].mxu0
  %4540 = vmatprep.mubr.bf16.mxu0 0
  %4541 = vmatmul.mubr.bf16.gmra.mrb[0].mxu0 %v3975
  %v4542 = vpop.f32.mrb[0].mxu0
  %v4543 = vadd.f32 0.0, %v4542
  %v4544 = vpop.f32.mrb[0].mxu0
  %v4545 = vpop.f32.mrb[0].mxu0
  %v4546 = vadd.f32 0.0, %v4545
  %v4547 = vpop.f32.mrb[0].mxu0
  %4548 = vmatprep.mubr.bf16.mxu0 0
  %4549 = vmatmul.mubr.bf16.gmra.mrb[0].mxu0 %v3976
  %v4550 = vpop.f32.mrb[0].mxu0
  %v4551 = vadd.f32 0.0, %v4550
  %v4552 = vpop.f32.mrb[0].mxu0
  %v4553 = vpop.f32.mrb[0].mxu0
  %v4554 = vadd.f32 0.0, %v4553
  %v4555 = vpop.f32.mrb[0].mxu0
  %4556 = vmatprep.mubr.bf16.mxu0 0
  %4557 = vmatmul.mubr.bf16.gmra.mrb[0].mxu0 %v3977
  %v4558 = vpop.f32.mrb[0].mxu0
  %v4559 = vadd.f32 0.0, %v4558
  %v4560 = vpop.f32.mrb[0].mxu0
  %v4561 = vpop.f32.mrb[0].mxu0
  %v4562 = vadd.f32 0.0, %v4561
  %v4563 = vpop.f32.mrb[0].mxu0
  %4564 = vmatprep.mubr.bf16.mxu0 0
  %4565 = vmatmul.mubr.bf16.gmra.mrb[0].mxu0 %v3978
  %v4566 = vpop.f32.mrb[0].mxu0
  %v4567 = vadd.f32 0.0, %v4566
  %v4568 = vpop.f32.mrb[0].mxu0
  %v4569 = vpop.f32.mrb[0].mxu0
  %v4570 = vadd.f32 0.0, %v4569
  %v4571 = vpop.f32.mrb[0].mxu0
  %4572 = vmatprep.mubr.bf16.mxu0 0
  %4573 = vmatmul.mubr.bf16.gmra.mrb[0].mxu0 %v3979
  %v4574 = vpop.f32.mrb[0].mxu0
  %v4575 = vadd.f32 0.0, %v4574
  %v4576 = vpop.f32.mrb[0].mxu0
  %v4577 = vpop.f32.mrb[0].mxu0
  %v4578 = vadd.f32 0.0, %v4577
  %v4579 = vpop.f32.mrb[0].mxu0
  %4580 = vmatprep.mubr.bf16.mxu0 0
  %4581 = vmatmul.mubr.bf16.gmra.mrb[0].mxu0 %v3980
  %v4582 = vpop.f32.mrb[0].mxu0
  %v4583 = vadd.f32 0.0, %v4582
  %v4584 = vpop.f32.mrb[0].mxu0
  %v4585 = vpop.f32.mrb[0].mxu0
  %v4586 = vadd.f32 0.0, %v4585
  %v4587 = vpop.f32.mrb[0].mxu0
  %4588 = vmatprep.mubr.bf16.mxu0 0
  %4589 = vmatmul.mubr.bf16.gmra.mrb[0].mxu0 %v3981
  %v4590 = vpop.f32.mrb[0].mxu0
  %v4591 = vadd.f32 0.0, %v4590
  %v4592 = vpop.f32.mrb[0].mxu0
  %v4593 = vpop.f32.mrb[0].mxu0
  %v4594 = vadd.f32 0.0, %v4593
  %v4595 = vpop.f32.mrb[0].mxu0
  %4596 = vmatprep.mubr.bf16.mxu0 0
  %4597 = vmatmul.mubr.bf16.gmra.mrb[0].mxu0 %v3982
  %v4598 = vpop.f32.mrb[0].mxu0
  %v4599 = vadd.f32 0.0, %v4598
  %v4600 = vpop.f32.mrb[0].mxu0
  %v4601 = vpop.f32.mrb[0].mxu0
  %v4602 = vadd.f32 0.0, %v4601
  %v4603 = vpop.f32.mrb[0].mxu0
  %4604 = vmatprep.mubr.bf16.mxu0 0
  %4605 = vmatmul.mubr.bf16.gmra.mrb[0].mxu0 %v3983
  %v4606 = vpop.f32.mrb[0].mxu0
  %v4607 = vadd.f32 0.0, %v4606
  %v4608 = vpop.f32.mrb[0].mxu0
  %v4609 = vpop.f32.mrb[0].mxu0
  %v4610 = vadd.f32 0.0, %v4609
  %v4611 = vpop.f32.mrb[0].mxu0
  %4612 = vmatprep.mubr.bf16.mxu0 0
  %4613 = vmatmul.mubr.bf16.gmra.mrb[0].mxu0 %v3984
  %v4614 = vpop.f32.mrb[0].mxu0
  %v4615 = vadd.f32 0.0, %v4614
  %v4616 = vpop.f32.mrb[0].mxu0
  %v4617 = vpop.f32.mrb[0].mxu0
  %v4618 = vadd.f32 0.0, %v4617
  %v4619 = vpop.f32.mrb[0].mxu0
  %4620 = vmatprep.mubr.bf16.mxu0 0
  %4621 = vmatmul.mubr.bf16.gmra.mrb[0].mxu0 %v3985
  %v4622 = vpop.f32.mrb[0].mxu0
  %v4623 = vadd.f32 0.0, %v4622
  %v4624 = vpop.f32.mrb[0].mxu0
  %v4625 = vpop.f32.mrb[0].mxu0
  %v4626 = vadd.f32 0.0, %v4625
  %v4627 = vpop.f32.mrb[0].mxu0
  %4628 = vmatprep.mubr.bf16.mxu0 0
  %4629 = vmatmul.mubr.bf16.gmra.mrb[0].mxu0 %v3986
  %v4630 = vpop.f32.mrb[0].mxu0
  %v4631 = vadd.f32 0.0, %v4630
  %v4632 = vpop.f32.mrb[0].mxu0
  %v4633 = vpop.f32.mrb[0].mxu0
  %v4634 = vadd.f32 0.0, %v4633
  %v4635 = vpop.f32.mrb[0].mxu0
  %4636 = vmatprep.mubr.bf16.mxu0 0
  %4637 = vmatmul.mubr.bf16.gmra.mrb[0].mxu0 %v3987
  %v4638 = vpop.f32.mrb[0].mxu0
  %v4639 = vadd.f32 0.0, %v4638
  %v4640 = vpop.f32.mrb[0].mxu0
  %v4641 = vpop.f32.mrb[0].mxu0
  %v4642 = vadd.f32 0.0, %v4641
  %v4643 = vpop.f32.mrb[0].mxu0
  %4644 = vdwg.mxu0
  %v4645 = vadd.f32 %v3394, %v4135
  %v4646 = vadd.f32 %v3395, %v4138
  %v4647 = vadd.f32 %v3396, %v4143
  %v4648 = vadd.f32 %v3397, %v4146
  %v4649 = vadd.f32 %v3398, %v4151
  %v4650 = vadd.f32 %v3399, %v4154
  %v4651 = vadd.f32 %v3400, %v4159
  %v4652 = vadd.f32 %v3401, %v4162
  %v4653 = vadd.f32 %v3402, %v4167
  %v4654 = vadd.f32 %v3403, %v4170
  %v4655 = vadd.f32 %v3404, %v4175
  %v4656 = vadd.f32 %v3405, %v4178
  %v4657 = vadd.f32 %v3406, %v4183
  %v4658 = vadd.f32 %v3407, %v4186
  %v4659 = vadd.f32 %v3408, %v4191
  %v4660 = vadd.f32 %v3409, %v4194
  %v4661 = vadd.f32 %v3410, %v4199
  %v4662 = vadd.f32 %v3411, %v4202
  %v4663 = vadd.f32 %v3412, %v4207
  %v4664 = vadd.f32 %v3413, %v4210
  %v4665 = vadd.f32 %v3414, %v4215
  %v4666 = vadd.f32 %v3415, %v4218
  %v4667 = vadd.f32 %v3416, %v4223
  %v4668 = vadd.f32 %v3417, %v4226
  %v4669 = vadd.f32 %v3418, %v4231
  %v4670 = vadd.f32 %v3419, %v4234
  %v4671 = vadd.f32 %v3420, %v4239
  %v4672 = vadd.f32 %v3421, %v4242
  %v4673 = vadd.f32 %v3422, %v4247
  %v4674 = vadd.f32 %v3423, %v4250
  %v4675 = vadd.f32 %v3424, %v4255
  %v4676 = vadd.f32 %v3425, %v4258
  %v4677 = vadd.f32 %v3426, %v4263
  %v4678 = vadd.f32 %v3427, %v4266
  %v4679 = vadd.f32 %v3428, %v4271
  %v4680 = vadd.f32 %v3429, %v4274
  %v4681 = vadd.f32 %v3430, %v4279
  %v4682 = vadd.f32 %v3431, %v4282
  %v4683 = vadd.f32 %v3432, %v4287
  %v4684 = vadd.f32 %v3433, %v4290
  %v4685 = vadd.f32 %v3434, %v4295
  %v4686 = vadd.f32 %v3435, %v4298
  %v4687 = vadd.f32 %v3436, %v4303
  %v4688 = vadd.f32 %v3437, %v4306
  %v4689 = vadd.f32 %v3438, %v4311
  %v4690 = vadd.f32 %v3439, %v4314
  %v4691 = vadd.f32 %v3440, %v4319
  %v4692 = vadd.f32 %v3441, %v4322
  %v4693 = vadd.f32 %v3442, %v4327
  %v4694 = vadd.f32 %v3443, %v4330
  %v4695 = vadd.f32 %v3444, %v4335
  %v4696 = vadd.f32 %v3445, %v4338
  %v4697 = vadd.f32 %v3446, %v4343
  %v4698 = vadd.f32 %v3447, %v4346
  %v4699 = vadd.f32 %v3448, %v4351
  %v4700 = vadd.f32 %v3449, %v4354
  %v4701 = vadd.f32 %v3450, %v4359
  %v4702 = vadd.f32 %v3451, %v4362
  %v4703 = vadd.f32 %v3452, %v4367
  %v4704 = vadd.f32 %v3453, %v4370
  %v4705 = vadd.f32 %v3454, %v4375
  %v4706 = vadd.f32 %v3455, %v4378
  %v4707 = vadd.f32 %v3456, %v4383
  %v4708 = vadd.f32 %v3457, %v4386
  %v4709 = vadd.f32 %v3458, %v4391
  %v4710 = vadd.f32 %v3459, %v4394
  %v4711 = vadd.f32 %v3460, %v4399
  %v4712 = vadd.f32 %v3461, %v4402
  %v4713 = vadd.f32 %v3462, %v4407
  %v4714 = vadd.f32 %v3463, %v4410
  %v4715 = vadd.f32 %v3464, %v4415
  %v4716 = vadd.f32 %v3465, %v4418
  %v4717 = vadd.f32 %v3466, %v4423
  %v4718 = vadd.f32 %v3467, %v4426
  %v4719 = vadd.f32 %v3468, %v4431
  %v4720 = vadd.f32 %v3469, %v4434
  %v4721 = vadd.f32 %v3470, %v4439
  %v4722 = vadd.f32 %v3471, %v4442
  %v4723 = vadd.f32 %v3472, %v4447
  %v4724 = vadd.f32 %v3473, %v4450
  %v4725 = vadd.f32 %v3474, %v4455
  %v4726 = vadd.f32 %v3475, %v4458
  %v4727 = vadd.f32 %v3476, %v4463
  %v4728 = vadd.f32 %v3477, %v4466
  %v4729 = vadd.f32 %v3478, %v4471
  %v4730 = vadd.f32 %v3479, %v4474
  %v4731 = vadd.f32 %v3480, %v4479
  %v4732 = vadd.f32 %v3481, %v4482
  %v4733 = vadd.f32 %v3482, %v4487
  %v4734 = vadd.f32 %v3483, %v4490
  %v4735 = vadd.f32 %v3484, %v4495
  %v4736 = vadd.f32 %v3485, %v4498
  %v4737 = vadd.f32 %v3486, %v4503
  %v4738 = vadd.f32 %v3487, %v4506
  %v4739 = vadd.f32 %v3488, %v4511
  %v4740 = vadd.f32 %v3489, %v4514
  %v4741 = vadd.f32 %v3490, %v4519
  %v4742 = vadd.f32 %v3491, %v4522
  %v4743 = vadd.f32 %v3492, %v4527
  %v4744 = vadd.f32 %v3493, %v4530
  %v4745 = vadd.f32 %v3494, %v4535
  %v4746 = vadd.f32 %v3495, %v4538
  %v4747 = vadd.f32 %v3496, %v4543
  %v4748 = vadd.f32 %v3497, %v4546
  %v4749 = vadd.f32 %v3498, %v4551
  %v4750 = vadd.f32 %v3499, %v4554
  %v4751 = vadd.f32 %v3500, %v4559
  %v4752 = vadd.f32 %v3501, %v4562
  %v4753 = vadd.f32 %v3502, %v4567
  %v4754 = vadd.f32 %v3503, %v4570
  %v4755 = vadd.f32 %v3504, %v4575
  %v4756 = vadd.f32 %v3505, %v4578
  %v4757 = vadd.f32 %v3506, %v4583
  %v4758 = vadd.f32 %v3507, %v4586
  %v4759 = vadd.f32 %v3508, %v4591
  %v4760 = vadd.f32 %v3509, %v4594
  %v4761 = vadd.f32 %v3510, %v4599
  %v4762 = vadd.f32 %v3511, %v4602
  %v4763 = vadd.f32 %v3512, %v4607
  %v4764 = vadd.f32 %v3513, %v4610
  %v4765 = vadd.f32 %v3514, %v4615
  %v4766 = vadd.f32 %v3515, %v4618
  %v4767 = vadd.f32 %v3516, %v4623
  %v4768 = vadd.f32 %v3517, %v4626
  %v4769 = vadd.f32 %v3518, %v4631
  %v4770 = vadd.f32 %v3519, %v4634
  %v4771 = vadd.f32 %v3520, %v4639
  %v4772 = vadd.f32 %v3521, %v4642
  %v4773 = vld [vmem:[%s6] sm:$0xff]
  %v4774 = vlaneseq
  %v4775 = vshrl.u32 %v4774, 7
  %v4776 = vsub.s32 0, %v4775
  %v4777 = vrot.slane %v4773, %v4776
  %v4778 = vadd.f32 %v4645, %v4777
  %v4779 = vadd.f32 %v4646, %v4777
  %v4780 = vadd.f32 %v4647, %v4777
  %v4781 = vadd.f32 %v4648, %v4777
  %v4782 = vadd.f32 %v4649, %v4777
  %v4783 = vadd.f32 %v4650, %v4777
  %v4784 = vadd.f32 %v4651, %v4777
  %v4785 = vadd.f32 %v4652, %v4777
  %v4786 = vadd.f32 %v4653, %v4777
  %v4787 = vadd.f32 %v4654, %v4777
  %v4788 = vadd.f32 %v4655, %v4777
  %v4789 = vadd.f32 %v4656, %v4777
  %v4790 = vadd.f32 %v4657, %v4777
  %v4791 = vadd.f32 %v4658, %v4777
  %v4792 = vadd.f32 %v4659, %v4777
  %v4793 = vadd.f32 %v4660, %v4777
  %v4794 = vadd.f32 %v4661, %v4777
  %v4795 = vadd.f32 %v4662, %v4777
  %v4796 = vadd.f32 %v4663, %v4777
  %v4797 = vadd.f32 %v4664, %v4777
  %v4798 = vadd.f32 %v4665, %v4777
  %v4799 = vadd.f32 %v4666, %v4777
  %v4800 = vadd.f32 %v4667, %v4777
  %v4801 = vadd.f32 %v4668, %v4777
  %v4802 = vadd.f32 %v4669, %v4777
  %v4803 = vadd.f32 %v4670, %v4777
  %v4804 = vadd.f32 %v4671, %v4777
  %v4805 = vadd.f32 %v4672, %v4777
  %v4806 = vadd.f32 %v4673, %v4777
  %v4807 = vadd.f32 %v4674, %v4777
  %v4808 = vadd.f32 %v4675, %v4777
  %v4809 = vadd.f32 %v4676, %v4777
  %v4810 = vadd.f32 %v4677, %v4777
  %v4811 = vadd.f32 %v4678, %v4777
  %v4812 = vadd.f32 %v4679, %v4777
  %v4813 = vadd.f32 %v4680, %v4777
  %v4814 = vadd.f32 %v4681, %v4777
  %v4815 = vadd.f32 %v4682, %v4777
  %v4816 = vadd.f32 %v4683, %v4777
  %v4817 = vadd.f32 %v4684, %v4777
  %v4818 = vadd.f32 %v4685, %v4777
  %v4819 = vadd.f32 %v4686, %v4777
  %v4820 = vadd.f32 %v4687, %v4777
  %v4821 = vadd.f32 %v4688, %v4777
  %v4822 = vadd.f32 %v4689, %v4777
  %v4823 = vadd.f32 %v4690, %v4777
  %v4824 = vadd.f32 %v4691, %v4777
  %v4825 = vadd.f32 %v4692, %v4777
  %v4826 = vadd.f32 %v4693, %v4777
  %v4827 = vadd.f32 %v4694, %v4777
  %v4828 = vadd.f32 %v4695, %v4777
  %v4829 = vadd.f32 %v4696, %v4777
  %v4830 = vadd.f32 %v4697, %v4777
  %v4831 = vadd.f32 %v4698, %v4777
  %v4832 = vadd.f32 %v4699, %v4777
  %v4833 = vadd.f32 %v4700, %v4777
  %v4834 = vadd.f32 %v4701, %v4777
  %v4835 = vadd.f32 %v4702, %v4777
  %v4836 = vadd.f32 %v4703, %v4777
  %v4837 = vadd.f32 %v4704, %v4777
  %v4838 = vadd.f32 %v4705, %v4777
  %v4839 = vadd.f32 %v4706, %v4777
  %v4840 = vadd.f32 %v4707, %v4777
  %v4841 = vadd.f32 %v4708, %v4777
  %v4842 = vadd.f32 %v4709, %v4777
  %v4843 = vadd.f32 %v4710, %v4777
  %v4844 = vadd.f32 %v4711, %v4777
  %v4845 = vadd.f32 %v4712, %v4777
  %v4846 = vadd.f32 %v4713, %v4777
  %v4847 = vadd.f32 %v4714, %v4777
  %v4848 = vadd.f32 %v4715, %v4777
  %v4849 = vadd.f32 %v4716, %v4777
  %v4850 = vadd.f32 %v4717, %v4777
  %v4851 = vadd.f32 %v4718, %v4777
  %v4852 = vadd.f32 %v4719, %v4777
  %v4853 = vadd.f32 %v4720, %v4777
  %v4854 = vadd.f32 %v4721, %v4777
  %v4855 = vadd.f32 %v4722, %v4777
  %v4856 = vadd.f32 %v4723, %v4777
  %v4857 = vadd.f32 %v4724, %v4777
  %v4858 = vadd.f32 %v4725, %v4777
  %v4859 = vadd.f32 %v4726, %v4777
  %v4860 = vadd.f32 %v4727, %v4777
  %v4861 = vadd.f32 %v4728, %v4777
  %v4862 = vadd.f32 %v4729, %v4777
  %v4863 = vadd.f32 %v4730, %v4777
  %v4864 = vadd.f32 %v4731, %v4777
  %v4865 = vadd.f32 %v4732, %v4777
  %v4866 = vadd.f32 %v4733, %v4777
  %v4867 = vadd.f32 %v4734, %v4777
  %v4868 = vadd.f32 %v4735, %v4777
  %v4869 = vadd.f32 %v4736, %v4777
  %v4870 = vadd.f32 %v4737, %v4777
  %v4871 = vadd.f32 %v4738, %v4777
  %v4872 = vadd.f32 %v4739, %v4777
  %v4873 = vadd.f32 %v4740, %v4777
  %v4874 = vadd.f32 %v4741, %v4777
  %v4875 = vadd.f32 %v4742, %v4777
  %v4876 = vadd.f32 %v4743, %v4777
  %v4877 = vadd.f32 %v4744, %v4777
  %v4878 = vadd.f32 %v4745, %v4777
  %v4879 = vadd.f32 %v4746, %v4777
  %v4880 = vadd.f32 %v4747, %v4777
  %v4881 = vadd.f32 %v4748, %v4777
  %v4882 = vadd.f32 %v4749, %v4777
  %v4883 = vadd.f32 %v4750, %v4777
  %v4884 = vadd.f32 %v4751, %v4777
  %v4885 = vadd.f32 %v4752, %v4777
  %v4886 = vadd.f32 %v4753, %v4777
  %v4887 = vadd.f32 %v4754, %v4777
  %v4888 = vadd.f32 %v4755, %v4777
  %v4889 = vadd.f32 %v4756, %v4777
  %v4890 = vadd.f32 %v4757, %v4777
  %v4891 = vadd.f32 %v4758, %v4777
  %v4892 = vadd.f32 %v4759, %v4777
  %v4893 = vadd.f32 %v4760, %v4777
  %v4894 = vadd.f32 %v4761, %v4777
  %v4895 = vadd.f32 %v4762, %v4777
  %v4896 = vadd.f32 %v4763, %v4777
  %v4897 = vadd.f32 %v4764, %v4777
  %v4898 = vadd.f32 %v4765, %v4777
  %v4899 = vadd.f32 %v4766, %v4777
  %v4900 = vadd.f32 %v4767, %v4777
  %v4901 = vadd.f32 %v4768, %v4777
  %v4902 = vadd.f32 %v4769, %v4777
  %v4903 = vadd.f32 %v4770, %v4777
  %v4904 = vadd.f32 %v4771, %v4777
  %v4905 = vadd.f32 %v4772, %v4777
  %v4906 = vmax.f32 %v4778, 0.0
  %v4907 = vmax.f32 %v4779, 0.0
  %v4908 = vmax.f32 %v4780, 0.0
  %v4909 = vmax.f32 %v4781, 0.0
  %v4910 = vmax.f32 %v4782, 0.0
  %v4911 = vmax.f32 %v4783, 0.0
  %v4912 = vmax.f32 %v4784, 0.0
  %v4913 = vmax.f32 %v4785, 0.0
  %v4914 = vmax.f32 %v4786, 0.0
  %v4915 = vmax.f32 %v4787, 0.0
  %v4916 = vmax.f32 %v4788, 0.0
  %v4917 = vmax.f32 %v4789, 0.0
  %v4918 = vmax.f32 %v4790, 0.0
  %v4919 = vmax.f32 %v4791, 0.0
  %v4920 = vmax.f32 %v4792, 0.0
  %v4921 = vmax.f32 %v4793, 0.0
  %v4922 = vmax.f32 %v4794, 0.0
  %v4923 = vmax.f32 %v4795, 0.0
  %v4924 = vmax.f32 %v4796, 0.0
  %v4925 = vmax.f32 %v4797, 0.0
  %v4926 = vmax.f32 %v4798, 0.0
  %v4927 = vmax.f32 %v4799, 0.0
  %v4928 = vmax.f32 %v4800, 0.0
  %v4929 = vmax.f32 %v4801, 0.0
  %v4930 = vmax.f32 %v4802, 0.0
  %v4931 = vmax.f32 %v4803, 0.0
  %v4932 = vmax.f32 %v4804, 0.0
  %v4933 = vmax.f32 %v4805, 0.0
  %v4934 = vmax.f32 %v4806, 0.0
  %v4935 = vmax.f32 %v4807, 0.0
  %v4936 = vmax.f32 %v4808, 0.0
  %v4937 = vmax.f32 %v4809, 0.0
  %v4938 = vmax.f32 %v4810, 0.0
  %v4939 = vmax.f32 %v4811, 0.0
  %v4940 = vmax.f32 %v4812, 0.0
  %v4941 = vmax.f32 %v4813, 0.0
  %v4942 = vmax.f32 %v4814, 0.0
  %v4943 = vmax.f32 %v4815, 0.0
  %v4944 = vmax.f32 %v4816, 0.0
  %v4945 = vmax.f32 %v4817, 0.0
  %v4946 = vmax.f32 %v4818, 0.0
  %v4947 = vmax.f32 %v4819, 0.0
  %v4948 = vmax.f32 %v4820, 0.0
  %v4949 = vmax.f32 %v4821, 0.0
  %v4950 = vmax.f32 %v4822, 0.0
  %v4951 = vmax.f32 %v4823, 0.0
  %v4952 = vmax.f32 %v4824, 0.0
  %v4953 = vmax.f32 %v4825, 0.0
  %v4954 = vmax.f32 %v4826, 0.0
  %v4955 = vmax.f32 %v4827, 0.0
  %v4956 = vmax.f32 %v4828, 0.0
  %v4957 = vmax.f32 %v4829, 0.0
  %v4958 = vmax.f32 %v4830, 0.0
  %v4959 = vmax.f32 %v4831, 0.0
  %v4960 = vmax.f32 %v4832, 0.0
  %v4961 = vmax.f32 %v4833, 0.0
  %v4962 = vmax.f32 %v4834, 0.0
  %v4963 = vmax.f32 %v4835, 0.0
  %v4964 = vmax.f32 %v4836, 0.0
  %v4965 = vmax.f32 %v4837, 0.0
  %v4966 = vmax.f32 %v4838, 0.0
  %v4967 = vmax.f32 %v4839, 0.0
  %v4968 = vmax.f32 %v4840, 0.0
  %v4969 = vmax.f32 %v4841, 0.0
  %v4970 = vmax.f32 %v4842, 0.0
  %v4971 = vmax.f32 %v4843, 0.0
  %v4972 = vmax.f32 %v4844, 0.0
  %v4973 = vmax.f32 %v4845, 0.0
  %v4974 = vmax.f32 %v4846, 0.0
  %v4975 = vmax.f32 %v4847, 0.0
  %v4976 = vmax.f32 %v4848, 0.0
  %v4977 = vmax.f32 %v4849, 0.0
  %v4978 = vmax.f32 %v4850, 0.0
  %v4979 = vmax.f32 %v4851, 0.0
  %v4980 = vmax.f32 %v4852, 0.0
  %v4981 = vmax.f32 %v4853, 0.0
  %v4982 = vmax.f32 %v4854, 0.0
  %v4983 = vmax.f32 %v4855, 0.0
  %v4984 = vmax.f32 %v4856, 0.0
  %v4985 = vmax.f32 %v4857, 0.0
  %v4986 = vmax.f32 %v4858, 0.0
  %v4987 = vmax.f32 %v4859, 0.0
  %v4988 = vmax.f32 %v4860, 0.0
  %v4989 = vmax.f32 %v4861, 0.0
  %v4990 = vmax.f32 %v4862, 0.0
  %v4991 = vmax.f32 %v4863, 0.0
  %v4992 = vmax.f32 %v4864, 0.0
  %v4993 = vmax.f32 %v4865, 0.0
  %v4994 = vmax.f32 %v4866, 0.0
  %v4995 = vmax.f32 %v4867, 0.0
  %v4996 = vmax.f32 %v4868, 0.0
  %v4997 = vmax.f32 %v4869, 0.0
  %v4998 = vmax.f32 %v4870, 0.0
  %v4999 = vmax.f32 %v4871, 0.0
  %v5000 = vmax.f32 %v4872, 0.0
  %v5001 = vmax.f32 %v4873, 0.0
  %v5002 = vmax.f32 %v4874, 0.0
  %v5003 = vmax.f32 %v4875, 0.0
  %v5004 = vmax.f32 %v4876, 0.0
  %v5005 = vmax.f32 %v4877, 0.0
  %v5006 = vmax.f32 %v4878, 0.0
  %v5007 = vmax.f32 %v4879, 0.0
  %v5008 = vmax.f32 %v4880, 0.0
  %v5009 = vmax.f32 %v4881, 0.0
  %v5010 = vmax.f32 %v4882, 0.0
  %v5011 = vmax.f32 %v4883, 0.0
  %v5012 = vmax.f32 %v4884, 0.0
  %v5013 = vmax.f32 %v4885, 0.0
  %v5014 = vmax.f32 %v4886, 0.0
  %v5015 = vmax.f32 %v4887, 0.0
  %v5016 = vmax.f32 %v4888, 0.0
  %v5017 = vmax.f32 %v4889, 0.0
  %v5018 = vmax.f32 %v4890, 0.0
  %v5019 = vmax.f32 %v4891, 0.0
  %v5020 = vmax.f32 %v4892, 0.0
  %v5021 = vmax.f32 %v4893, 0.0
  %v5022 = vmax.f32 %v4894, 0.0
  %v5023 = vmax.f32 %v4895, 0.0
  %v5024 = vmax.f32 %v4896, 0.0
  %v5025 = vmax.f32 %v4897, 0.0
  %v5026 = vmax.f32 %v4898, 0.0
  %v5027 = vmax.f32 %v4899, 0.0
  %v5028 = vmax.f32 %v4900, 0.0
  %v5029 = vmax.f32 %v4901, 0.0
  %v5030 = vmax.f32 %v4902, 0.0
  %v5031 = vmax.f32 %v4903, 0.0
  %v5032 = vmax.f32 %v4904, 0.0
  %v5033 = vmax.f32 %v4905, 0.0
  %v5034 = vlaneseq
  %v5035 = vshrl.u32 %v5034, 7
  %v5036 = vsub.s32 1, %v5035
  %v5037 = vrot.slane %v4773, %v5036
  %v5038 = vmul.f32 %v4906, %v5037
  %v5039 = vmul.f32 %v4907, %v5037
  %v5040 = vmul.f32 %v4908, %v5037
  %v5041 = vmul.f32 %v4909, %v5037
  %v5042 = vmul.f32 %v4910, %v5037
  %v5043 = vmul.f32 %v4911, %v5037
  %v5044 = vmul.f32 %v4912, %v5037
  %v5045 = vmul.f32 %v4913, %v5037
  %v5046 = vmul.f32 %v4914, %v5037
  %v5047 = vmul.f32 %v4915, %v5037
  %v5048 = vmul.f32 %v4916, %v5037
  %v5049 = vmul.f32 %v4917, %v5037
  %v5050 = vmul.f32 %v4918, %v5037
  %v5051 = vmul.f32 %v4919, %v5037
  %v5052 = vmul.f32 %v4920, %v5037
  %v5053 = vmul.f32 %v4921, %v5037
  %v5054 = vmul.f32 %v4922, %v5037
  %v5055 = vmul.f32 %v4923, %v5037
  %v5056 = vmul.f32 %v4924, %v5037
  %v5057 = vmul.f32 %v4925, %v5037
  %v5058 = vmul.f32 %v4926, %v5037
  %v5059 = vmul.f32 %v4927, %v5037
  %v5060 = vmul.f32 %v4928, %v5037
  %v5061 = vmul.f32 %v4929, %v5037
  %v5062 = vmul.f32 %v4930, %v5037
  %v5063 = vmul.f32 %v4931, %v5037
  %v5064 = vmul.f32 %v4932, %v5037
  %v5065 = vmul.f32 %v4933, %v5037
  %v5066 = vmul.f32 %v4934, %v5037
  %v5067 = vmul.f32 %v4935, %v5037
  %v5068 = vmul.f32 %v4936, %v5037
  %v5069 = vmul.f32 %v4937, %v5037
  %v5070 = vmul.f32 %v4938, %v5037
  %v5071 = vmul.f32 %v4939, %v5037
  %v5072 = vmul.f32 %v4940, %v5037
  %v5073 = vmul.f32 %v4941, %v5037
  %v5074 = vmul.f32 %v4942, %v5037
  %v5075 = vmul.f32 %v4943, %v5037
  %v5076 = vmul.f32 %v4944, %v5037
  %v5077 = vmul.f32 %v4945, %v5037
  %v5078 = vmul.f32 %v4946, %v5037
  %v5079 = vmul.f32 %v4947, %v5037
  %v5080 = vmul.f32 %v4948, %v5037
  %v5081 = vmul.f32 %v4949, %v5037
  %v5082 = vmul.f32 %v4950, %v5037
  %v5083 = vmul.f32 %v4951, %v5037
  %v5084 = vmul.f32 %v4952, %v5037
  %v5085 = vmul.f32 %v4953, %v5037
  %v5086 = vmul.f32 %v4954, %v5037
  %v5087 = vmul.f32 %v4955, %v5037
  %v5088 = vmul.f32 %v4956, %v5037
  %v5089 = vmul.f32 %v4957, %v5037
  %v5090 = vmul.f32 %v4958, %v5037
  %v5091 = vmul.f32 %v4959, %v5037
  %v5092 = vmul.f32 %v4960, %v5037
  %v5093 = vmul.f32 %v4961, %v5037
  %v5094 = vmul.f32 %v4962, %v5037
  %v5095 = vmul.f32 %v4963, %v5037
  %v5096 = vmul.f32 %v4964, %v5037
  %v5097 = vmul.f32 %v4965, %v5037
  %v5098 = vmul.f32 %v4966, %v5037
  %v5099 = vmul.f32 %v4967, %v5037
  %v5100 = vmul.f32 %v4968, %v5037
  %v5101 = vmul.f32 %v4969, %v5037
  %v5102 = vmul.f32 %v4970, %v5037
  %v5103 = vmul.f32 %v4971, %v5037
  %v5104 = vmul.f32 %v4972, %v5037
  %v5105 = vmul.f32 %v4973, %v5037
  %v5106 = vmul.f32 %v4974, %v5037
  %v5107 = vmul.f32 %v4975, %v5037
  %v5108 = vmul.f32 %v4976, %v5037
  %v5109 = vmul.f32 %v4977, %v5037
  %v5110 = vmul.f32 %v4978, %v5037
  %v5111 = vmul.f32 %v4979, %v5037
  %v5112 = vmul.f32 %v4980, %v5037
  %v5113 = vmul.f32 %v4981, %v5037
  %v5114 = vmul.f32 %v4982, %v5037
  %v5115 = vmul.f32 %v4983, %v5037
  %v5116 = vmul.f32 %v4984, %v5037
  %v5117 = vmul.f32 %v4985, %v5037
  %v5118 = vmul.f32 %v4986, %v5037
  %v5119 = vmul.f32 %v4987, %v5037
  %v5120 = vmul.f32 %v4988, %v5037
  %v5121 = vmul.f32 %v4989, %v5037
  %v5122 = vmul.f32 %v4990, %v5037
  %v5123 = vmul.f32 %v4991, %v5037
  %v5124 = vmul.f32 %v4992, %v5037
  %v5125 = vmul.f32 %v4993, %v5037
  %v5126 = vmul.f32 %v4994, %v5037
  %v5127 = vmul.f32 %v4995, %v5037
  %v5128 = vmul.f32 %v4996, %v5037
  %v5129 = vmul.f32 %v4997, %v5037
  %v5130 = vmul.f32 %v4998, %v5037
  %v5131 = vmul.f32 %v4999, %v5037
  %v5132 = vmul.f32 %v5000, %v5037
  %v5133 = vmul.f32 %v5001, %v5037
  %v5134 = vmul.f32 %v5002, %v5037
  %v5135 = vmul.f32 %v5003, %v5037
  %v5136 = vmul.f32 %v5004, %v5037
  %v5137 = vmul.f32 %v5005, %v5037
  %v5138 = vmul.f32 %v5006, %v5037
  %v5139 = vmul.f32 %v5007, %v5037
  %v5140 = vmul.f32 %v5008, %v5037
  %v5141 = vmul.f32 %v5009, %v5037
  %v5142 = vmul.f32 %v5010, %v5037
  %v5143 = vmul.f32 %v5011, %v5037
  %v5144 = vmul.f32 %v5012, %v5037
  %v5145 = vmul.f32 %v5013, %v5037
  %v5146 = vmul.f32 %v5014, %v5037
  %v5147 = vmul.f32 %v5015, %v5037
  %v5148 = vmul.f32 %v5016, %v5037
  %v5149 = vmul.f32 %v5017, %v5037
  %v5150 = vmul.f32 %v5018, %v5037
  %v5151 = vmul.f32 %v5019, %v5037
  %v5152 = vmul.f32 %v5020, %v5037
  %v5153 = vmul.f32 %v5021, %v5037
  %v5154 = vmul.f32 %v5022, %v5037
  %v5155 = vmul.f32 %v5023, %v5037
  %v5156 = vmul.f32 %v5024, %v5037
  %v5157 = vmul.f32 %v5025, %v5037
  %v5158 = vmul.f32 %v5026, %v5037
  %v5159 = vmul.f32 %v5027, %v5037
  %v5160 = vmul.f32 %v5028, %v5037
  %v5161 = vmul.f32 %v5029, %v5037
  %v5162 = vmul.f32 %v5030, %v5037
  %v5163 = vmul.f32 %v5031, %v5037
  %v5164 = vmul.f32 %v5032, %v5037
  %v5165 = vmul.f32 %v5033, %v5037
  %v5166 = vlaneseq
  %v5167 = vshrl.u32 %v5166, 7
  %v5168 = vsub.s32 2, %v5167
  %v5169 = vrot.slane %v4773, %v5168
  %v5170 = vadd.f32 %v5038, %v5169
  %v5171 = vadd.f32 %v5039, %v5169
  %v5172 = vadd.f32 %v5040, %v5169
  %v5173 = vadd.f32 %v5041, %v5169
  %v5174 = vadd.f32 %v5042, %v5169
  %v5175 = vadd.f32 %v5043, %v5169
  %v5176 = vadd.f32 %v5044, %v5169
  %v5177 = vadd.f32 %v5045, %v5169
  %v5178 = vadd.f32 %v5046, %v5169
  %v5179 = vadd.f32 %v5047, %v5169
  %v5180 = vadd.f32 %v5048, %v5169
  %v5181 = vadd.f32 %v5049, %v5169
  %v5182 = vadd.f32 %v5050, %v5169
  %v5183 = vadd.f32 %v5051, %v5169
  %v5184 = vadd.f32 %v5052, %v5169
  %v5185 = vadd.f32 %v5053, %v5169
  %v5186 = vadd.f32 %v5054, %v5169
  %v5187 = vadd.f32 %v5055, %v5169
  %v5188 = vadd.f32 %v5056, %v5169
  %v5189 = vadd.f32 %v5057, %v5169
  %v5190 = vadd.f32 %v5058, %v5169
  %v5191 = vadd.f32 %v5059, %v5169
  %v5192 = vadd.f32 %v5060, %v5169
  %v5193 = vadd.f32 %v5061, %v5169
  %v5194 = vadd.f32 %v5062, %v5169
  %v5195 = vadd.f32 %v5063, %v5169
  %v5196 = vadd.f32 %v5064, %v5169
  %v5197 = vadd.f32 %v5065, %v5169
  %v5198 = vadd.f32 %v5066, %v5169
  %v5199 = vadd.f32 %v5067, %v5169
  %v5200 = vadd.f32 %v5068, %v5169
  %v5201 = vadd.f32 %v5069, %v5169
  %v5202 = vadd.f32 %v5070, %v5169
  %v5203 = vadd.f32 %v5071, %v5169
  %v5204 = vadd.f32 %v5072, %v5169
  %v5205 = vadd.f32 %v5073, %v5169
  %v5206 = vadd.f32 %v5074, %v5169
  %v5207 = vadd.f32 %v5075, %v5169
  %v5208 = vadd.f32 %v5076, %v5169
  %v5209 = vadd.f32 %v5077, %v5169
  %v5210 = vadd.f32 %v5078, %v5169
  %v5211 = vadd.f32 %v5079, %v5169
  %v5212 = vadd.f32 %v5080, %v5169
  %v5213 = vadd.f32 %v5081, %v5169
  %v5214 = vadd.f32 %v5082, %v5169
  %v5215 = vadd.f32 %v5083, %v5169
  %v5216 = vadd.f32 %v5084, %v5169
  %v5217 = vadd.f32 %v5085, %v5169
  %v5218 = vadd.f32 %v5086, %v5169
  %v5219 = vadd.f32 %v5087, %v5169
  %v5220 = vadd.f32 %v5088, %v5169
  %v5221 = vadd.f32 %v5089, %v5169
  %v5222 = vadd.f32 %v5090, %v5169
  %v5223 = vadd.f32 %v5091, %v5169
  %v5224 = vadd.f32 %v5092, %v5169
  %v5225 = vadd.f32 %v5093, %v5169
  %v5226 = vadd.f32 %v5094, %v5169
  %v5227 = vadd.f32 %v5095, %v5169
  %v5228 = vadd.f32 %v5096, %v5169
  %v5229 = vadd.f32 %v5097, %v5169
  %v5230 = vadd.f32 %v5098, %v5169
  %v5231 = vadd.f32 %v5099, %v5169
  %v5232 = vadd.f32 %v5100, %v5169
  %v5233 = vadd.f32 %v5101, %v5169
  %v5234 = vadd.f32 %v5102, %v5169
  %v5235 = vadd.f32 %v5103, %v5169
  %v5236 = vadd.f32 %v5104, %v5169
  %v5237 = vadd.f32 %v5105, %v5169
  %v5238 = vadd.f32 %v5106, %v5169
  %v5239 = vadd.f32 %v5107, %v5169
  %v5240 = vadd.f32 %v5108, %v5169
  %v5241 = vadd.f32 %v5109, %v5169
  %v5242 = vadd.f32 %v5110, %v5169
  %v5243 = vadd.f32 %v5111, %v5169
  %v5244 = vadd.f32 %v5112, %v5169
  %v5245 = vadd.f32 %v5113, %v5169
  %v5246 = vadd.f32 %v5114, %v5169
  %v5247 = vadd.f32 %v5115, %v5169
  %v5248 = vadd.f32 %v5116, %v5169
  %v5249 = vadd.f32 %v5117, %v5169
  %v5250 = vadd.f32 %v5118, %v5169
  %v5251 = vadd.f32 %v5119, %v5169
  %v5252 = vadd.f32 %v5120, %v5169
  %v5253 = vadd.f32 %v5121, %v5169
  %v5254 = vadd.f32 %v5122, %v5169
  %v5255 = vadd.f32 %v5123, %v5169
  %v5256 = vadd.f32 %v5124, %v5169
  %v5257 = vadd.f32 %v5125, %v5169
  %v5258 = vadd.f32 %v5126, %v5169
  %v5259 = vadd.f32 %v5127, %v5169
  %v5260 = vadd.f32 %v5128, %v5169
  %v5261 = vadd.f32 %v5129, %v5169
  %v5262 = vadd.f32 %v5130, %v5169
  %v5263 = vadd.f32 %v5131, %v5169
  %v5264 = vadd.f32 %v5132, %v5169
  %v5265 = vadd.f32 %v5133, %v5169
  %v5266 = vadd.f32 %v5134, %v5169
  %v5267 = vadd.f32 %v5135, %v5169
  %v5268 = vadd.f32 %v5136, %v5169
  %v5269 = vadd.f32 %v5137, %v5169
  %v5270 = vadd.f32 %v5138, %v5169
  %v5271 = vadd.f32 %v5139, %v5169
  %v5272 = vadd.f32 %v5140, %v5169
  %v5273 = vadd.f32 %v5141, %v5169
  %v5274 = vadd.f32 %v5142, %v5169
  %v5275 = vadd.f32 %v5143, %v5169
  %v5276 = vadd.f32 %v5144, %v5169
  %v5277 = vadd.f32 %v5145, %v5169
  %v5278 = vadd.f32 %v5146, %v5169
  %v5279 = vadd.f32 %v5147, %v5169
  %v5280 = vadd.f32 %v5148, %v5169
  %v5281 = vadd.f32 %v5149, %v5169
  %v5282 = vadd.f32 %v5150, %v5169
  %v5283 = vadd.f32 %v5151, %v5169
  %v5284 = vadd.f32 %v5152, %v5169
  %v5285 = vadd.f32 %v5153, %v5169
  %v5286 = vadd.f32 %v5154, %v5169
  %v5287 = vadd.f32 %v5155, %v5169
  %v5288 = vadd.f32 %v5156, %v5169
  %v5289 = vadd.f32 %v5157, %v5169
  %v5290 = vadd.f32 %v5158, %v5169
  %v5291 = vadd.f32 %v5159, %v5169
  %v5292 = vadd.f32 %v5160, %v5169
  %v5293 = vadd.f32 %v5161, %v5169
  %v5294 = vadd.f32 %v5162, %v5169
  %v5295 = vadd.f32 %v5163, %v5169
  %v5296 = vadd.f32 %v5164, %v5169
  %v5297 = vadd.f32 %v5165, %v5169
  %v5298 = vpack.c.bf16 %v5171, %v5170
  %v5299 = vpack.c.bf16 %v5173, %v5172
  %v5300 = vpack.c.bf16 %v5175, %v5174
  %v5301 = vpack.c.bf16 %v5177, %v5176
  %v5302 = vpack.c.bf16 %v5179, %v5178
  %v5303 = vpack.c.bf16 %v5181, %v5180
  %v5304 = vpack.c.bf16 %v5183, %v5182
  %v5305 = vpack.c.bf16 %v5185, %v5184
  %v5306 = vpack.c.bf16 %v5187, %v5186
  %v5307 = vpack.c.bf16 %v5189, %v5188
  %v5308 = vpack.c.bf16 %v5191, %v5190
  %v5309 = vpack.c.bf16 %v5193, %v5192
  %v5310 = vpack.c.bf16 %v5195, %v5194
  %v5311 = vpack.c.bf16 %v5197, %v5196
  %v5312 = vpack.c.bf16 %v5199, %v5198
  %v5313 = vpack.c.bf16 %v5201, %v5200
  %v5314 = vpack.c.bf16 %v5203, %v5202
  %v5315 = vpack.c.bf16 %v5205, %v5204
  %v5316 = vpack.c.bf16 %v5207, %v5206
  %v5317 = vpack.c.bf16 %v5209, %v5208
  %v5318 = vpack.c.bf16 %v5211, %v5210
  %v5319 = vpack.c.bf16 %v5213, %v5212
  %v5320 = vpack.c.bf16 %v5215, %v5214
  %v5321 = vpack.c.bf16 %v5217, %v5216
  %v5322 = vpack.c.bf16 %v5219, %v5218
  %v5323 = vpack.c.bf16 %v5221, %v5220
  %v5324 = vpack.c.bf16 %v5223, %v5222
  %v5325 = vpack.c.bf16 %v5225, %v5224
  %v5326 = vpack.c.bf16 %v5227, %v5226
  %v5327 = vpack.c.bf16 %v5229, %v5228
  %v5328 = vpack.c.bf16 %v5231, %v5230
  %v5329 = vpack.c.bf16 %v5233, %v5232
  %v5330 = vpack.c.bf16 %v5235, %v5234
  %v5331 = vpack.c.bf16 %v5237, %v5236
  %v5332 = vpack.c.bf16 %v5239, %v5238
  %v5333 = vpack.c.bf16 %v5241, %v5240
  %v5334 = vpack.c.bf16 %v5243, %v5242
  %v5335 = vpack.c.bf16 %v5245, %v5244
  %v5336 = vpack.c.bf16 %v5247, %v5246
  %v5337 = vpack.c.bf16 %v5249, %v5248
  %v5338 = vpack.c.bf16 %v5251, %v5250
  %v5339 = vpack.c.bf16 %v5253, %v5252
  %v5340 = vpack.c.bf16 %v5255, %v5254
  %v5341 = vpack.c.bf16 %v5257, %v5256
  %v5342 = vpack.c.bf16 %v5259, %v5258
  %v5343 = vpack.c.bf16 %v5261, %v5260
  %v5344 = vpack.c.bf16 %v5263, %v5262
  %v5345 = vpack.c.bf16 %v5265, %v5264
  %v5346 = vpack.c.bf16 %v5267, %v5266
  %v5347 = vpack.c.bf16 %v5269, %v5268
  %v5348 = vpack.c.bf16 %v5271, %v5270
  %v5349 = vpack.c.bf16 %v5273, %v5272
  %v5350 = vpack.c.bf16 %v5275, %v5274
  %v5351 = vpack.c.bf16 %v5277, %v5276
  %v5352 = vpack.c.bf16 %v5279, %v5278
  %v5353 = vpack.c.bf16 %v5281, %v5280
  %v5354 = vpack.c.bf16 %v5283, %v5282
  %v5355 = vpack.c.bf16 %v5285, %v5284
  %v5356 = vpack.c.bf16 %v5287, %v5286
  %v5357 = vpack.c.bf16 %v5289, %v5288
  %v5358 = vpack.c.bf16 %v5291, %v5290
  %v5359 = vpack.c.bf16 %v5293, %v5292
  %v5360 = vpack.c.bf16 %v5295, %v5294
  %v5361 = vpack.c.bf16 %v5297, %v5296
  %v5362 = vld [vmem:[%s2] sm:$0xf]
  %v5363 = vld [vmem:[%s2 + $0x4] sm:$0xf]
  %v5364 = vld [vmem:[%s2 + $0x8] sm:$0xf]
  %v5365 = vld [vmem:[%s2 + $0xc] sm:$0xf]
  %v5366 = vld [vmem:[%s2 + $0x10] sm:$0xf]
  %v5367 = vld [vmem:[%s2 + $0x14] sm:$0xf]
  %v5368 = vld [vmem:[%s2 + $0x18] sm:$0xf]
  %v5369 = vld [vmem:[%s2 + $0x1c] sm:$0xf]
  %v5370 = vld [vmem:[%s2 + $0x20] sm:$0xf]
  %v5371 = vld [vmem:[%s2 + $0x24] sm:$0xf]
  %v5372 = vld [vmem:[%s2 + $0x28] sm:$0xf]
  %v5373 = vld [vmem:[%s2 + $0x2c] sm:$0xf]
  %v5374 = vld [vmem:[%s2 + $0x30] sm:$0xf]
  %v5375 = vld [vmem:[%s2 + $0x34] sm:$0xf]
  %v5376 = vld [vmem:[%s2 + $0x38] sm:$0xf]
  %v5377 = vld [vmem:[%s2 + $0x3c] sm:$0xf]
  %s5378 = scalar_lea.vmem %s2, 64
  %v5379 = vld [vmem:[%s5378] sm:$0xf]
  %v5380 = vld [vmem:[%s5378 + $0x4] sm:$0xf]
  %v5381 = vld [vmem:[%s5378 + $0x8] sm:$0xf]
  %v5382 = vld [vmem:[%s5378 + $0xc] sm:$0xf]
  %v5383 = vld [vmem:[%s5378 + $0x10] sm:$0xf]
  %v5384 = vld [vmem:[%s5378 + $0x14] sm:$0xf]
  %v5385 = vld [vmem:[%s5378 + $0x18] sm:$0xf]
  %v5386 = vld [vmem:[%s5378 + $0x1c] sm:$0xf]
  %v5387 = vld [vmem:[%s5378 + $0x20] sm:$0xf]
  %v5388 = vld [vmem:[%s5378 + $0x24] sm:$0xf]
  %v5389 = vld [vmem:[%s5378 + $0x28] sm:$0xf]
  %v5390 = vld [vmem:[%s5378 + $0x2c] sm:$0xf]
  %v5391 = vld [vmem:[%s5378 + $0x30] sm:$0xf]
  %v5392 = vld [vmem:[%s5378 + $0x34] sm:$0xf]
  %v5393 = vld [vmem:[%s5378 + $0x38] sm:$0xf]
  %v5394 = vld [vmem:[%s5378 + $0x3c] sm:$0xf]
  %v5411 = vunpack.c.l.b16 %v5379
  %v5412 = vunpack.c.l.b16 %v5380
  %v5413 = vunpack.c.l.b16 %v5381
  %v5414 = vunpack.c.l.b16 %v5382
  %v5415 = vunpack.c.l.b16 %v5383
  %v5416 = vunpack.c.l.b16 %v5384
  %v5417 = vunpack.c.l.b16 %v5385
  %v5418 = vunpack.c.l.b16 %v5386
  %v5419 = vunpack.c.l.b16 %v5387
  %v5420 = vunpack.c.l.b16 %v5388
  %v5421 = vunpack.c.l.b16 %v5389
  %v5422 = vunpack.c.l.b16 %v5390
  %v5423 = vunpack.c.l.b16 %v5391
  %v5424 = vunpack.c.l.b16 %v5392
  %v5425 = vunpack.c.l.b16 %v5393
  %v5426 = vunpack.c.l.b16 %v5394
  %v5427 = vpack.c.b16 %v5412, %v5411
  %v5428 = vpack.c.b16 %v5414, %v5413
  %v5429 = vpack.c.b16 %v5416, %v5415
  %v5430 = vpack.c.b16 %v5418, %v5417
  %v5431 = vpack.c.b16 %v5420, %v5419
  %v5432 = vpack.c.b16 %v5422, %v5421
  %v5433 = vpack.c.b16 %v5424, %v5423
  %v5434 = vpack.c.b16 %v5426, %v5425
  %5443 = vmatprep.subr.bf16.mxu0 0
  %5444 = vmatpush1.bf16.msra.mxu0 %v5427
  %5445 = vmatprep.subr.bf16.mxu0 0
  %5446 = vmatpush1.bf16.msra.mxu0 %v5428
  %5447 = vmatprep.subr.bf16.mxu0 0
  %5448 = vmatpush1.bf16.msra.mxu0 %v5429
  %5449 = vmatprep.subr.bf16.mxu0 0
  %5450 = vmatpush1.bf16.msra.mxu0 %v5430
  %5451 = vmatprep.subr.bf16.mxu0 0
  %5452 = vmatpush1.bf16.msra.mxu0 %v5431
  %5453 = vmatprep.subr.bf16.mxu0 0
  %5454 = vmatpush1.bf16.msra.mxu0 %v5432
  %5455 = vmatprep.subr.bf16.mxu0 0
  %5456 = vmatpush1.bf16.msra.mxu0 %v5433
  %5457 = vmatprep.subr.bf16.mxu0 0
  %5458 = vmatpush1.bf16.msra.mxu0 %v5434
  %5459 = vmatprep.subr.bf16.mxu0 0
  %5460 = vmatpush1.bf16.msra.mxu0 0
  %5461 = vmatprep.subr.bf16.mxu0 0
  %5462 = vmatpush1.bf16.msra.mxu0 0
  %5463 = vmatprep.subr.bf16.mxu0 0
  %5464 = vmatpush1.bf16.msra.mxu0 0
  %5465 = vmatprep.subr.bf16.mxu0 0
  %5466 = vmatpush1.bf16.msra.mxu0 0
  %5467 = vmatprep.subr.bf16.mxu0 0
  %5468 = vmatpush1.bf16.msra.mxu0 0
  %5469 = vmatprep.subr.bf16.mxu0 0
  %5470 = vmatpush1.bf16.msra.mxu0 0
  %5471 = vmatprep.subr.bf16.mxu0 0
  %5472 = vmatpush1.bf16.msra.mxu0 0
  %5473 = vmatprep.subr.bf16.mxu0 0
  %5474 = vmatpush1.bf16.msra.mxu0 0
  %5475 = vmatprep.mubr.bf16.mxu0 0
  %5476 = vmatmul.mubr.bf16.gmra.mrb[0].mxu0 %v5299
  %v5477 = vpop.f32.mrb[0].mxu0
  %v5478 = vadd.f32 0.0, %v5477
  %v5479 = vpop.f32.mrb[0].mxu0
  %v5480 = vpop.f32.mrb[0].mxu0
  %v5481 = vadd.f32 0.0, %v5480
  %v5482 = vpop.f32.mrb[0].mxu0
  %5483 = vmatprep.mubr.bf16.mxu0 0
  %5484 = vmatmul.mubr.bf16.gmra.mrb[0].mxu0 %v5301
  %v5485 = vpop.f32.mrb[0].mxu0
  %v5486 = vadd.f32 0.0, %v5485
  %v5487 = vpop.f32.mrb[0].mxu0
  %v5488 = vpop.f32.mrb[0].mxu0
  %v5489 = vadd.f32 0.0, %v5488
  %v5490 = vpop.f32.mrb[0].mxu0
  %5491 = vmatprep.mubr.bf16.mxu0 0
  %5492 = vmatmul.mubr.bf16.gmra.mrb[0].mxu0 %v5303
  %v5493 = vpop.f32.mrb[0].mxu0
  %v5494 = vadd.f32 0.0, %v5493
  %v5495 = vpop.f32.mrb[0].mxu0
  %v5496 = vpop.f32.mrb[0].mxu0
  %v5497 = vadd.f32 0.0, %v5496
  %v5498 = vpop.f32.mrb[0].mxu0
  %5499 = vmatprep.mubr.bf16.mxu0 0
  %5500 = vmatmul.mubr.bf16.gmra.mrb[0].mxu0 %v5315
  %v5501 = vpop.f32.mrb[0].mxu0
  %v5502 = vadd.f32 0.0, %v5501
  %v5503 = vpop.f32.mrb[0].mxu0
  %v5504 = vpop.f32.mrb[0].mxu0
  %v5505 = vadd.f32 0.0, %v5504
  %v5506 = vpop.f32.mrb[0].mxu0
  %5507 = vmatprep.mubr.bf16.mxu0 0
  %5508 = vmatmul.mubr.bf16.gmra.mrb[0].mxu0 %v5317
  %v5509 = vpop.f32.mrb[0].mxu0
  %v5510 = vadd.f32 0.0, %v5509
  %v5511 = vpop.f32.mrb[0].mxu0
  %v5512 = vpop.f32.mrb[0].mxu0
  %v5513 = vadd.f32 0.0, %v5512
  %v5514 = vpop.f32.mrb[0].mxu0
  %5515 = vmatprep.mubr.bf16.mxu0 0
  %5516 = vmatmul.mubr.bf16.gmra.mrb[0].mxu0 %v5319
  %v5517 = vpop.f32.mrb[0].mxu0
  %v5518 = vadd.f32 0.0, %v5517
  %v5519 = vpop.f32.mrb[0].mxu0
  %v5520 = vpop.f32.mrb[0].mxu0
  %v5521 = vadd.f32 0.0, %v5520
  %v5522 = vpop.f32.mrb[0].mxu0
  %5523 = vmatprep.mubr.bf16.mxu0 0
  %5524 = vmatmul.mubr.bf16.gmra.mrb[0].mxu0 %v5331
  %v5525 = vpop.f32.mrb[0].mxu0
  %v5526 = vadd.f32 0.0, %v5525
  %v5527 = vpop.f32.mrb[0].mxu0
  %v5528 = vpop.f32.mrb[0].mxu0
  %v5529 = vadd.f32 0.0, %v5528
  %v5530 = vpop.f32.mrb[0].mxu0
  %5531 = vmatprep.mubr.bf16.mxu0 0
  %5532 = vmatmul.mubr.bf16.gmra.mrb[0].mxu0 %v5333
  %v5533 = vpop.f32.mrb[0].mxu0
  %v5534 = vadd.f32 0.0, %v5533
  %v5535 = vpop.f32.mrb[0].mxu0
  %v5536 = vpop.f32.mrb[0].mxu0
  %v5537 = vadd.f32 0.0, %v5536
  %v5538 = vpop.f32.mrb[0].mxu0
  %5539 = vmatprep.mubr.bf16.mxu0 0
  %5540 = vmatmul.mubr.bf16.gmra.mrb[0].mxu0 %v5335
  %v5541 = vpop.f32.mrb[0].mxu0
  %v5542 = vadd.f32 0.0, %v5541
  %v5543 = vpop.f32.mrb[0].mxu0
  %v5544 = vpop.f32.mrb[0].mxu0
  %v5545 = vadd.f32 0.0, %v5544
  %v5546 = vpop.f32.mrb[0].mxu0
  %5547 = vdwg.mxu0
  %v5564 = vunpack.c.l.b16 %v5362
  %v5565 = vunpack.c.l.b16 %v5363
  %v5566 = vunpack.c.l.b16 %v5364
  %v5567 = vunpack.c.l.b16 %v5365
  %v5568 = vunpack.c.l.b16 %v5366
  %v5569 = vunpack.c.l.b16 %v5367
  %v5570 = vunpack.c.l.b16 %v5368
  %v5571 = vunpack.c.l.b16 %v5369
  %v5572 = vunpack.c.l.b16 %v5370
  %v5573 = vunpack.c.l.b16 %v5371
  %v5574 = vunpack.c.l.b16 %v5372
  %v5575 = vunpack.c.l.b16 %v5373
  %v5576 = vunpack.c.l.b16 %v5374
  %v5577 = vunpack.c.l.b16 %v5375
  %v5578 = vunpack.c.l.b16 %v5376
  %v5579 = vunpack.c.l.b16 %v5377
  %v5580 = vpack.c.b16 %v5565, %v5564
  %v5581 = vpack.c.b16 %v5567, %v5566
  %v5582 = vpack.c.b16 %v5569, %v5568
  %v5583 = vpack.c.b16 %v5571, %v5570
  %v5584 = vpack.c.b16 %v5573, %v5572
  %v5585 = vpack.c.b16 %v5575, %v5574
  %v5586 = vpack.c.b16 %v5577, %v5576
  %v5587 = vpack.c.b16 %v5579, %v5578
  %5596 = vmatprep.subr.bf16.mxu0 0
  %5597 = vmatpush1.bf16.msra.mxu0 %v5580
  %5598 = vmatprep.subr.bf16.mxu0 0
  %5599 = vmatpush1.bf16.msra.mxu0 %v5581
  %5600 = vmatprep.subr.bf16.mxu0 0
  %5601 = vmatpush1.bf16.msra.mxu0 %v5582
  %5602 = vmatprep.subr.bf16.mxu0 0
  %5603 = vmatpush1.bf16.msra.mxu0 %v5583
  %5604 = vmatprep.subr.bf16.mxu0 0
  %5605 = vmatpush1.bf16.msra.mxu0 %v5584
  %5606 = vmatprep.subr.bf16.mxu0 0
  %5607 = vmatpush1.bf16.msra.mxu0 %v5585
  %5608 = vmatprep.subr.bf16.mxu0 0
  %5609 = vmatpush1.bf16.msra.mxu0 %v5586
  %5610 = vmatprep.subr.bf16.mxu0 0
  %5611 = vmatpush1.bf16.msra.mxu0 %v5587
  %5612 = vmatprep.subr.bf16.mxu0 0
  %5613 = vmatpush1.bf16.msra.mxu0 0
  %5614 = vmatprep.subr.bf16.mxu0 0
  %5615 = vmatpush1.bf16.msra.mxu0 0
  %5616 = vmatprep.subr.bf16.mxu0 0
  %5617 = vmatpush1.bf16.msra.mxu0 0
  %5618 = vmatprep.subr.bf16.mxu0 0
  %5619 = vmatpush1.bf16.msra.mxu0 0
  %5620 = vmatprep.subr.bf16.mxu0 0
  %5621 = vmatpush1.bf16.msra.mxu0 0
  %5622 = vmatprep.subr.bf16.mxu0 0
  %5623 = vmatpush1.bf16.msra.mxu0 0
  %5624 = vmatprep.subr.bf16.mxu0 0
  %5625 = vmatpush1.bf16.msra.mxu0 0
  %5626 = vmatprep.subr.bf16.mxu0 0
  %5627 = vmatpush1.bf16.msra.mxu0 0
  %5628 = vmatprep.mubr.bf16.mxu0 0
  %5629 = vmatmul.mubr.bf16.gmra.mrb[0].mxu0 %v5298
  %v5630 = vpop.f32.mrb[0].mxu0
  %v5631 = vadd.f32 %v5478, %v5630
  %v5632 = vpop.f32.mrb[0].mxu0
  %v5633 = vpop.f32.mrb[0].mxu0
  %v5634 = vadd.f32 %v5481, %v5633
  %v5635 = vpop.f32.mrb[0].mxu0
  %5636 = vmatprep.mubr.bf16.mxu0 0
  %5637 = vmatmul.mubr.bf16.gmra.mrb[0].mxu0 %v5300
  %v5638 = vpop.f32.mrb[0].mxu0
  %v5639 = vadd.f32 %v5486, %v5638
  %v5640 = vpop.f32.mrb[0].mxu0
  %v5641 = vpop.f32.mrb[0].mxu0
  %v5642 = vadd.f32 %v5489, %v5641
  %v5643 = vpop.f32.mrb[0].mxu0
  %5644 = vmatprep.mubr.bf16.mxu0 0
  %5645 = vmatmul.mubr.bf16.gmra.mrb[0].mxu0 %v5302
  %v5646 = vpop.f32.mrb[0].mxu0
  %v5647 = vadd.f32 %v5494, %v5646
  %v5648 = vpop.f32.mrb[0].mxu0
  %v5649 = vpop.f32.mrb[0].mxu0
  %v5650 = vadd.f32 %v5497, %v5649
  %v5651 = vpop.f32.mrb[0].mxu0
  %5652 = vmatprep.mubr.bf16.mxu0 0
  %5653 = vmatmul.mubr.bf16.gmra.mrb[0].mxu0 %v5314
  %v5654 = vpop.f32.mrb[0].mxu0
  %v5655 = vadd.f32 %v5502, %v5654
  %v5656 = vpop.f32.mrb[0].mxu0
  %v5657 = vpop.f32.mrb[0].mxu0
  %v5658 = vadd.f32 %v5505, %v5657
  %v5659 = vpop.f32.mrb[0].mxu0
  %5660 = vmatprep.mubr.bf16.mxu0 0
  %5661 = vmatmul.mubr.bf16.gmra.mrb[0].mxu0 %v5316
  %v5662 = vpop.f32.mrb[0].mxu0
  %v5663 = vadd.f32 %v5510, %v5662
  %v5664 = vpop.f32.mrb[0].mxu0
  %v5665 = vpop.f32.mrb[0].mxu0
  %v5666 = vadd.f32 %v5513, %v5665
  %v5667 = vpop.f32.mrb[0].mxu0
  %5668 = vmatprep.mubr.bf16.mxu0 0
  %5669 = vmatmul.mubr.bf16.gmra.mrb[0].mxu0 %v5318
  %v5670 = vpop.f32.mrb[0].mxu0
  %v5671 = vadd.f32 %v5518, %v5670
  %v5672 = vpop.f32.mrb[0].mxu0
  %v5673 = vpop.f32.mrb[0].mxu0
  %v5674 = vadd.f32 %v5521, %v5673
  %v5675 = vpop.f32.mrb[0].mxu0
  %5676 = vmatprep.mubr.bf16.mxu0 0
  %5677 = vmatmul.mubr.bf16.gmra.mrb[0].mxu0 %v5330
  %v5678 = vpop.f32.mrb[0].mxu0
  %v5679 = vadd.f32 %v5526, %v5678
  %v5680 = vpop.f32.mrb[0].mxu0
  %v5681 = vpop.f32.mrb[0].mxu0
  %v5682 = vadd.f32 %v5529, %v5681
  %v5683 = vpop.f32.mrb[0].mxu0
  %5684 = vmatprep.mubr.bf16.mxu0 0
  %5685 = vmatmul.mubr.bf16.gmra.mrb[0].mxu0 %v5332
  %v5686 = vpop.f32.mrb[0].mxu0
  %v5687 = vadd.f32 %v5534, %v5686
  %v5688 = vpop.f32.mrb[0].mxu0
  %v5689 = vpop.f32.mrb[0].mxu0
  %v5690 = vadd.f32 %v5537, %v5689
  %v5691 = vpop.f32.mrb[0].mxu0
  %5692 = vmatprep.mubr.bf16.mxu0 0
  %5693 = vmatmul.mubr.bf16.gmra.mrb[0].mxu0 %v5334
  %v5694 = vpop.f32.mrb[0].mxu0
  %v5695 = vadd.f32 %v5542, %v5694
  %v5696 = vpop.f32.mrb[0].mxu0
  %v5697 = vpop.f32.mrb[0].mxu0
  %v5698 = vadd.f32 %v5545, %v5697
  %v5699 = vpop.f32.mrb[0].mxu0
  %5700 = vdwg.mxu0
  %s5701 = scalar_lea.vmem %s2, 128
  %v5702 = vld [vmem:[%s5701] sm:$0xf]
  %v5703 = vld [vmem:[%s5701 + $0x4] sm:$0xf]
  %v5704 = vld [vmem:[%s5701 + $0x8] sm:$0xf]
  %v5705 = vld [vmem:[%s5701 + $0xc] sm:$0xf]
  %v5706 = vld [vmem:[%s5701 + $0x10] sm:$0xf]
  %v5707 = vld [vmem:[%s5701 + $0x14] sm:$0xf]
  %v5708 = vld [vmem:[%s5701 + $0x18] sm:$0xf]
  %v5709 = vld [vmem:[%s5701 + $0x1c] sm:$0xf]
  %v5710 = vld [vmem:[%s5701 + $0x20] sm:$0xf]
  %v5711 = vld [vmem:[%s5701 + $0x24] sm:$0xf]
  %v5712 = vld [vmem:[%s5701 + $0x28] sm:$0xf]
  %v5713 = vld [vmem:[%s5701 + $0x2c] sm:$0xf]
  %v5714 = vld [vmem:[%s5701 + $0x30] sm:$0xf]
  %v5715 = vld [vmem:[%s5701 + $0x34] sm:$0xf]
  %v5716 = vld [vmem:[%s5701 + $0x38] sm:$0xf]
  %v5717 = vld [vmem:[%s5701 + $0x3c] sm:$0xf]
  %v5734 = vunpack.c.l.b16 %v5702
  %v5735 = vunpack.c.l.b16 %v5703
  %v5736 = vunpack.c.l.b16 %v5704
  %v5737 = vunpack.c.l.b16 %v5705
  %v5738 = vunpack.c.l.b16 %v5706
  %v5739 = vunpack.c.l.b16 %v5707
  %v5740 = vunpack.c.l.b16 %v5708
  %v5741 = vunpack.c.l.b16 %v5709
  %v5742 = vunpack.c.l.b16 %v5710
  %v5743 = vunpack.c.l.b16 %v5711
  %v5744 = vunpack.c.l.b16 %v5712
  %v5745 = vunpack.c.l.b16 %v5713
  %v5746 = vunpack.c.l.b16 %v5714
  %v5747 = vunpack.c.l.b16 %v5715
  %v5748 = vunpack.c.l.b16 %v5716
  %v5749 = vunpack.c.l.b16 %v5717
  %v5750 = vpack.c.b16 %v5735, %v5734
  %v5751 = vpack.c.b16 %v5737, %v5736
  %v5752 = vpack.c.b16 %v5739, %v5738
  %v5753 = vpack.c.b16 %v5741, %v5740
  %v5754 = vpack.c.b16 %v5743, %v5742
  %v5755 = vpack.c.b16 %v5745, %v5744
  %v5756 = vpack.c.b16 %v5747, %v5746
  %v5757 = vpack.c.b16 %v5749, %v5748
  %5766 = vmatprep.subr.bf16.mxu0 0
  %5767 = vmatpush1.bf16.msra.mxu0 %v5750
  %5768 = vmatprep.subr.bf16.mxu0 0
  %5769 = vmatpush1.bf16.msra.mxu0 %v5751
  %5770 = vmatprep.subr.bf16.mxu0 0
  %5771 = vmatpush1.bf16.msra.mxu0 %v5752
  %5772 = vmatprep.subr.bf16.mxu0 0
  %5773 = vmatpush1.bf16.msra.mxu0 %v5753
  %5774 = vmatprep.subr.bf16.mxu0 0
  %5775 = vmatpush1.bf16.msra.mxu0 %v5754
  %5776 = vmatprep.subr.bf16.mxu0 0
  %5777 = vmatpush1.bf16.msra.mxu0 %v5755
  %5778 = vmatprep.subr.bf16.mxu0 0
  %5779 = vmatpush1.bf16.msra.mxu0 %v5756
  %5780 = vmatprep.subr.bf16.mxu0 0
  %5781 = vmatpush1.bf16.msra.mxu0 %v5757
  %5782 = vmatprep.subr.bf16.mxu0 0
  %5783 = vmatpush1.bf16.msra.mxu0 0
  %5784 = vmatprep.subr.bf16.mxu0 0
  %5785 = vmatpush1.bf16.msra.mxu0 0
  %5786 = vmatprep.subr.bf16.mxu0 0
  %5787 = vmatpush1.bf16.msra.mxu0 0
  %5788 = vmatprep.subr.bf16.mxu0 0
  %5789 = vmatpush1.bf16.msra.mxu0 0
  %5790 = vmatprep.subr.bf16.mxu0 0
  %5791 = vmatpush1.bf16.msra.mxu0 0
  %5792 = vmatprep.subr.bf16.mxu0 0
  %5793 = vmatpush1.bf16.msra.mxu0 0
  %5794 = vmatprep.subr.bf16.mxu0 0
  %5795 = vmatpush1.bf16.msra.mxu0 0
  %5796 = vmatprep.subr.bf16.mxu0 0
  %5797 = vmatpush1.bf16.msra.mxu0 0
  %5798 = vmatprep.mubr.bf16.mxu0 0
  %5799 = vmatmul.mubr.bf16.gmra.mrb[0].mxu0 %v5300
  %v5800 = vpop.f32.mrb[0].mxu0
  %v5801 = vadd.f32 0.0, %v5800
  %v5802 = vpop.f32.mrb[0].mxu0
  %v5803 = vpop.f32.mrb[0].mxu0
  %v5804 = vadd.f32 0.0, %v5803
  %v5805 = vpop.f32.mrb[0].mxu0
  %5806 = vmatprep.mubr.bf16.mxu0 0
  %5807 = vmatmul.mubr.bf16.gmra.mrb[0].mxu0 %v5302
  %v5808 = vpop.f32.mrb[0].mxu0
  %v5809 = vadd.f32 0.0, %v5808
  %v5810 = vpop.f32.mrb[0].mxu0
  %v5811 = vpop.f32.mrb[0].mxu0
  %v5812 = vadd.f32 0.0, %v5811
  %v5813 = vpop.f32.mrb[0].mxu0
  %5814 = vmatprep.mubr.bf16.mxu0 0
  %5815 = vmatmul.mubr.bf16.gmra.mrb[0].mxu0 %v5304
  %v5816 = vpop.f32.mrb[0].mxu0
  %v5817 = vadd.f32 0.0, %v5816
  %v5818 = vpop.f32.mrb[0].mxu0
  %v5819 = vpop.f32.mrb[0].mxu0
  %v5820 = vadd.f32 0.0, %v5819
  %v5821 = vpop.f32.mrb[0].mxu0
  %5822 = vmatprep.mubr.bf16.mxu0 0
  %5823 = vmatmul.mubr.bf16.gmra.mrb[0].mxu0 %v5316
  %v5824 = vpop.f32.mrb[0].mxu0
  %v5825 = vadd.f32 0.0, %v5824
  %v5826 = vpop.f32.mrb[0].mxu0
  %v5827 = vpop.f32.mrb[0].mxu0
  %v5828 = vadd.f32 0.0, %v5827
  %v5829 = vpop.f32.mrb[0].mxu0
  %5830 = vmatprep.mubr.bf16.mxu0 0
  %5831 = vmatmul.mubr.bf16.gmra.mrb[0].mxu0 %v5318
  %v5832 = vpop.f32.mrb[0].mxu0
  %v5833 = vadd.f32 0.0, %v5832
  %v5834 = vpop.f32.mrb[0].mxu0
  %v5835 = vpop.f32.mrb[0].mxu0
  %v5836 = vadd.f32 0.0, %v5835
  %v5837 = vpop.f32.mrb[0].mxu0
  %5838 = vmatprep.mubr.bf16.mxu0 0
  %5839 = vmatmul.mubr.bf16.gmra.mrb[0].mxu0 %v5320
  %v5840 = vpop.f32.mrb[0].mxu0
  %v5841 = vadd.f32 0.0, %v5840
  %v5842 = vpop.f32.mrb[0].mxu0
  %v5843 = vpop.f32.mrb[0].mxu0
  %v5844 = vadd.f32 0.0, %v5843
  %v5845 = vpop.f32.mrb[0].mxu0
  %5846 = vmatprep.mubr.bf16.mxu0 0
  %5847 = vmatmul.mubr.bf16.gmra.mrb[0].mxu0 %v5332
  %v5848 = vpop.f32.mrb[0].mxu0
  %v5849 = vadd.f32 0.0, %v5848
  %v5850 = vpop.f32.mrb[0].mxu0
  %v5851 = vpop.f32.mrb[0].mxu0
  %v5852 = vadd.f32 0.0, %v5851
  %v5853 = vpop.f32.mrb[0].mxu0
  %5854 = vmatprep.mubr.bf16.mxu0 0
  %5855 = vmatmul.mubr.bf16.gmra.mrb[0].mxu0 %v5334
  %v5856 = vpop.f32.mrb[0].mxu0
  %v5857 = vadd.f32 0.0, %v5856
  %v5858 = vpop.f32.mrb[0].mxu0
  %v5859 = vpop.f32.mrb[0].mxu0
  %v5860 = vadd.f32 0.0, %v5859
  %v5861 = vpop.f32.mrb[0].mxu0
  %5862 = vmatprep.mubr.bf16.mxu0 0
  %5863 = vmatmul.mubr.bf16.gmra.mrb[0].mxu0 %v5336
  %v5864 = vpop.f32.mrb[0].mxu0
  %v5865 = vadd.f32 0.0, %v5864
  %v5866 = vpop.f32.mrb[0].mxu0
  %v5867 = vpop.f32.mrb[0].mxu0
  %v5868 = vadd.f32 0.0, %v5867
  %v5869 = vpop.f32.mrb[0].mxu0
  %5870 = vdwg.mxu0
  %v5871 = vadd.f32 %v5631, %v5801
  %v5872 = vadd.f32 %v5634, %v5804
  %v5873 = vadd.f32 %v5639, %v5809
  %v5874 = vadd.f32 %v5642, %v5812
  %v5875 = vadd.f32 %v5647, %v5817
  %v5876 = vadd.f32 %v5650, %v5820
  %v5877 = vadd.f32 %v5655, %v5825
  %v5878 = vadd.f32 %v5658, %v5828
  %v5879 = vadd.f32 %v5663, %v5833
  %v5880 = vadd.f32 %v5666, %v5836
  %v5881 = vadd.f32 %v5671, %v5841
  %v5882 = vadd.f32 %v5674, %v5844
  %v5883 = vadd.f32 %v5679, %v5849
  %v5884 = vadd.f32 %v5682, %v5852
  %v5885 = vadd.f32 %v5687, %v5857
  %v5886 = vadd.f32 %v5690, %v5860
  %v5887 = vadd.f32 %v5695, %v5865
  %v5888 = vadd.f32 %v5698, %v5868
  %s5889 = scalar_lea.vmem %s2, 192
  %v5890 = vld [vmem:[%s5889] sm:$0xf]
  %v5891 = vld [vmem:[%s5889 + $0x4] sm:$0xf]
  %v5892 = vld [vmem:[%s5889 + $0x8] sm:$0xf]
  %v5893 = vld [vmem:[%s5889 + $0xc] sm:$0xf]
  %v5894 = vld [vmem:[%s5889 + $0x10] sm:$0xf]
  %v5895 = vld [vmem:[%s5889 + $0x14] sm:$0xf]
  %v5896 = vld [vmem:[%s5889 + $0x18] sm:$0xf]
  %v5897 = vld [vmem:[%s5889 + $0x1c] sm:$0xf]
  %v5898 = vld [vmem:[%s5889 + $0x20] sm:$0xf]
  %v5899 = vld [vmem:[%s5889 + $0x24] sm:$0xf]
  %v5900 = vld [vmem:[%s5889 + $0x28] sm:$0xf]
  %v5901 = vld [vmem:[%s5889 + $0x2c] sm:$0xf]
  %v5902 = vld [vmem:[%s5889 + $0x30] sm:$0xf]
  %v5903 = vld [vmem:[%s5889 + $0x34] sm:$0xf]
  %v5904 = vld [vmem:[%s5889 + $0x38] sm:$0xf]
  %v5905 = vld [vmem:[%s5889 + $0x3c] sm:$0xf]
  %v5922 = vunpack.c.l.b16 %v5890
  %v5923 = vunpack.c.l.b16 %v5891
  %v5924 = vunpack.c.l.b16 %v5892
  %v5925 = vunpack.c.l.b16 %v5893
  %v5926 = vunpack.c.l.b16 %v5894
  %v5927 = vunpack.c.l.b16 %v5895
  %v5928 = vunpack.c.l.b16 %v5896
  %v5929 = vunpack.c.l.b16 %v5897
  %v5930 = vunpack.c.l.b16 %v5898
  %v5931 = vunpack.c.l.b16 %v5899
  %v5932 = vunpack.c.l.b16 %v5900
  %v5933 = vunpack.c.l.b16 %v5901
  %v5934 = vunpack.c.l.b16 %v5902
  %v5935 = vunpack.c.l.b16 %v5903
  %v5936 = vunpack.c.l.b16 %v5904
  %v5937 = vunpack.c.l.b16 %v5905
  %v5938 = vpack.c.b16 %v5923, %v5922
  %v5939 = vpack.c.b16 %v5925, %v5924
  %v5940 = vpack.c.b16 %v5927, %v5926
  %v5941 = vpack.c.b16 %v5929, %v5928
  %v5942 = vpack.c.b16 %v5931, %v5930
  %v5943 = vpack.c.b16 %v5933, %v5932
  %v5944 = vpack.c.b16 %v5935, %v5934
  %v5945 = vpack.c.b16 %v5937, %v5936
  %5954 = vmatprep.subr.bf16.mxu0 0
  %5955 = vmatpush1.bf16.msra.mxu0 %v5938
  %5956 = vmatprep.subr.bf16.mxu0 0
  %5957 = vmatpush1.bf16.msra.mxu0 %v5939
  %5958 = vmatprep.subr.bf16.mxu0 0
  %5959 = vmatpush1.bf16.msra.mxu0 %v5940
  %5960 = vmatprep.subr.bf16.mxu0 0
  %5961 = vmatpush1.bf16.msra.mxu0 %v5941
  %5962 = vmatprep.subr.bf16.mxu0 0
  %5963 = vmatpush1.bf16.msra.mxu0 %v5942
  %5964 = vmatprep.subr.bf16.mxu0 0
  %5965 = vmatpush1.bf16.msra.mxu0 %v5943
  %5966 = vmatprep.subr.bf16.mxu0 0
  %5967 = vmatpush1.bf16.msra.mxu0 %v5944
  %5968 = vmatprep.subr.bf16.mxu0 0
  %5969 = vmatpush1.bf16.msra.mxu0 %v5945
  %5970 = vmatprep.subr.bf16.mxu0 0
  %5971 = vmatpush1.bf16.msra.mxu0 0
  %5972 = vmatprep.subr.bf16.mxu0 0
  %5973 = vmatpush1.bf16.msra.mxu0 0
  %5974 = vmatprep.subr.bf16.mxu0 0
  %5975 = vmatpush1.bf16.msra.mxu0 0
  %5976 = vmatprep.subr.bf16.mxu0 0
  %5977 = vmatpush1.bf16.msra.mxu0 0
  %5978 = vmatprep.subr.bf16.mxu0 0
  %5979 = vmatpush1.bf16.msra.mxu0 0
  %5980 = vmatprep.subr.bf16.mxu0 0
  %5981 = vmatpush1.bf16.msra.mxu0 0
  %5982 = vmatprep.subr.bf16.mxu0 0
  %5983 = vmatpush1.bf16.msra.mxu0 0
  %5984 = vmatprep.subr.bf16.mxu0 0
  %5985 = vmatpush1.bf16.msra.mxu0 0
  %5986 = vmatprep.mubr.bf16.mxu0 0
  %5987 = vmatmul.mubr.bf16.gmra.mrb[0].mxu0 %v5301
  %v5988 = vpop.f32.mrb[0].mxu0
  %v5989 = vadd.f32 0.0, %v5988
  %v5990 = vpop.f32.mrb[0].mxu0
  %v5991 = vpop.f32.mrb[0].mxu0
  %v5992 = vadd.f32 0.0, %v5991
  %v5993 = vpop.f32.mrb[0].mxu0
  %5994 = vmatprep.mubr.bf16.mxu0 0
  %5995 = vmatmul.mubr.bf16.gmra.mrb[0].mxu0 %v5303
  %v5996 = vpop.f32.mrb[0].mxu0
  %v5997 = vadd.f32 0.0, %v5996
  %v5998 = vpop.f32.mrb[0].mxu0
  %v5999 = vpop.f32.mrb[0].mxu0
  %v6000 = vadd.f32 0.0, %v5999
  %v6001 = vpop.f32.mrb[0].mxu0
  %6002 = vmatprep.mubr.bf16.mxu0 0
  %6003 = vmatmul.mubr.bf16.gmra.mrb[0].mxu0 %v5305
  %v6004 = vpop.f32.mrb[0].mxu0
  %v6005 = vadd.f32 0.0, %v6004
  %v6006 = vpop.f32.mrb[0].mxu0
  %v6007 = vpop.f32.mrb[0].mxu0
  %v6008 = vadd.f32 0.0, %v6007
  %v6009 = vpop.f32.mrb[0].mxu0
  %6010 = vmatprep.mubr.bf16.mxu0 0
  %6011 = vmatmul.mubr.bf16.gmra.mrb[0].mxu0 %v5317
  %v6012 = vpop.f32.mrb[0].mxu0
  %v6013 = vadd.f32 0.0, %v6012
  %v6014 = vpop.f32.mrb[0].mxu0
  %v6015 = vpop.f32.mrb[0].mxu0
  %v6016 = vadd.f32 0.0, %v6015
  %v6017 = vpop.f32.mrb[0].mxu0
  %6018 = vmatprep.mubr.bf16.mxu0 0
  %6019 = vmatmul.mubr.bf16.gmra.mrb[0].mxu0 %v5319
  %v6020 = vpop.f32.mrb[0].mxu0
  %v6021 = vadd.f32 0.0, %v6020
  %v6022 = vpop.f32.mrb[0].mxu0
  %v6023 = vpop.f32.mrb[0].mxu0
  %v6024 = vadd.f32 0.0, %v6023
  %v6025 = vpop.f32.mrb[0].mxu0
  %6026 = vmatprep.mubr.bf16.mxu0 0
  %6027 = vmatmul.mubr.bf16.gmra.mrb[0].mxu0 %v5321
  %v6028 = vpop.f32.mrb[0].mxu0
  %v6029 = vadd.f32 0.0, %v6028
  %v6030 = vpop.f32.mrb[0].mxu0
  %v6031 = vpop.f32.mrb[0].mxu0
  %v6032 = vadd.f32 0.0, %v6031
  %v6033 = vpop.f32.mrb[0].mxu0
  %6034 = vmatprep.mubr.bf16.mxu0 0
  %6035 = vmatmul.mubr.bf16.gmra.mrb[0].mxu0 %v5333
  %v6036 = vpop.f32.mrb[0].mxu0
  %v6037 = vadd.f32 0.0, %v6036
  %v6038 = vpop.f32.mrb[0].mxu0
  %v6039 = vpop.f32.mrb[0].mxu0
  %v6040 = vadd.f32 0.0, %v6039
  %v6041 = vpop.f32.mrb[0].mxu0
  %6042 = vmatprep.mubr.bf16.mxu0 0
  %6043 = vmatmul.mubr.bf16.gmra.mrb[0].mxu0 %v5335
  %v6044 = vpop.f32.mrb[0].mxu0
  %v6045 = vadd.f32 0.0, %v6044
  %v6046 = vpop.f32.mrb[0].mxu0
  %v6047 = vpop.f32.mrb[0].mxu0
  %v6048 = vadd.f32 0.0, %v6047
  %v6049 = vpop.f32.mrb[0].mxu0
  %6050 = vmatprep.mubr.bf16.mxu0 0
  %6051 = vmatmul.mubr.bf16.gmra.mrb[0].mxu0 %v5337
  %v6052 = vpop.f32.mrb[0].mxu0
  %v6053 = vadd.f32 0.0, %v6052
  %v6054 = vpop.f32.mrb[0].mxu0
  %v6055 = vpop.f32.mrb[0].mxu0
  %v6056 = vadd.f32 0.0, %v6055
  %v6057 = vpop.f32.mrb[0].mxu0
  %6058 = vdwg.mxu0
  %v6059 = vadd.f32 %v5871, %v5989
  %v6060 = vadd.f32 %v5872, %v5992
  %v6061 = vadd.f32 %v5873, %v5997
  %v6062 = vadd.f32 %v5874, %v6000
  %v6063 = vadd.f32 %v5875, %v6005
  %v6064 = vadd.f32 %v5876, %v6008
  %v6065 = vadd.f32 %v5877, %v6013
  %v6066 = vadd.f32 %v5878, %v6016
  %v6067 = vadd.f32 %v5879, %v6021
  %v6068 = vadd.f32 %v5880, %v6024
  %v6069 = vadd.f32 %v5881, %v6029
  %v6070 = vadd.f32 %v5882, %v6032
  %v6071 = vadd.f32 %v5883, %v6037
  %v6072 = vadd.f32 %v5884, %v6040
  %v6073 = vadd.f32 %v5885, %v6045
  %v6074 = vadd.f32 %v5886, %v6048
  %v6075 = vadd.f32 %v5887, %v6053
  %v6076 = vadd.f32 %v5888, %v6056
  %s6077 = scalar_lea.vmem %s2, 256
  %v6078 = vld [vmem:[%s6077] sm:$0xf]
  %v6079 = vld [vmem:[%s6077 + $0x4] sm:$0xf]
  %v6080 = vld [vmem:[%s6077 + $0x8] sm:$0xf]
  %v6081 = vld [vmem:[%s6077 + $0xc] sm:$0xf]
  %v6082 = vld [vmem:[%s6077 + $0x10] sm:$0xf]
  %v6083 = vld [vmem:[%s6077 + $0x14] sm:$0xf]
  %v6084 = vld [vmem:[%s6077 + $0x18] sm:$0xf]
  %v6085 = vld [vmem:[%s6077 + $0x1c] sm:$0xf]
  %v6086 = vld [vmem:[%s6077 + $0x20] sm:$0xf]
  %v6087 = vld [vmem:[%s6077 + $0x24] sm:$0xf]
  %v6088 = vld [vmem:[%s6077 + $0x28] sm:$0xf]
  %v6089 = vld [vmem:[%s6077 + $0x2c] sm:$0xf]
  %v6090 = vld [vmem:[%s6077 + $0x30] sm:$0xf]
  %v6091 = vld [vmem:[%s6077 + $0x34] sm:$0xf]
  %v6092 = vld [vmem:[%s6077 + $0x38] sm:$0xf]
  %v6093 = vld [vmem:[%s6077 + $0x3c] sm:$0xf]
  %v6110 = vunpack.c.l.b16 %v6078
  %v6111 = vunpack.c.l.b16 %v6079
  %v6112 = vunpack.c.l.b16 %v6080
  %v6113 = vunpack.c.l.b16 %v6081
  %v6114 = vunpack.c.l.b16 %v6082
  %v6115 = vunpack.c.l.b16 %v6083
  %v6116 = vunpack.c.l.b16 %v6084
  %v6117 = vunpack.c.l.b16 %v6085
  %v6118 = vunpack.c.l.b16 %v6086
  %v6119 = vunpack.c.l.b16 %v6087
  %v6120 = vunpack.c.l.b16 %v6088
  %v6121 = vunpack.c.l.b16 %v6089
  %v6122 = vunpack.c.l.b16 %v6090
  %v6123 = vunpack.c.l.b16 %v6091
  %v6124 = vunpack.c.l.b16 %v6092
  %v6125 = vunpack.c.l.b16 %v6093
  %v6126 = vpack.c.b16 %v6111, %v6110
  %v6127 = vpack.c.b16 %v6113, %v6112
  %v6128 = vpack.c.b16 %v6115, %v6114
  %v6129 = vpack.c.b16 %v6117, %v6116
  %v6130 = vpack.c.b16 %v6119, %v6118
  %v6131 = vpack.c.b16 %v6121, %v6120
  %v6132 = vpack.c.b16 %v6123, %v6122
  %v6133 = vpack.c.b16 %v6125, %v6124
  %6142 = vmatprep.subr.bf16.mxu0 0
  %6143 = vmatpush1.bf16.msra.mxu0 %v6126
  %6144 = vmatprep.subr.bf16.mxu0 0
  %6145 = vmatpush1.bf16.msra.mxu0 %v6127
  %6146 = vmatprep.subr.bf16.mxu0 0
  %6147 = vmatpush1.bf16.msra.mxu0 %v6128
  %6148 = vmatprep.subr.bf16.mxu0 0
  %6149 = vmatpush1.bf16.msra.mxu0 %v6129
  %6150 = vmatprep.subr.bf16.mxu0 0
  %6151 = vmatpush1.bf16.msra.mxu0 %v6130
  %6152 = vmatprep.subr.bf16.mxu0 0
  %6153 = vmatpush1.bf16.msra.mxu0 %v6131
  %6154 = vmatprep.subr.bf16.mxu0 0
  %6155 = vmatpush1.bf16.msra.mxu0 %v6132
  %6156 = vmatprep.subr.bf16.mxu0 0
  %6157 = vmatpush1.bf16.msra.mxu0 %v6133
  %6158 = vmatprep.subr.bf16.mxu0 0
  %6159 = vmatpush1.bf16.msra.mxu0 0
  %6160 = vmatprep.subr.bf16.mxu0 0
  %6161 = vmatpush1.bf16.msra.mxu0 0
  %6162 = vmatprep.subr.bf16.mxu0 0
  %6163 = vmatpush1.bf16.msra.mxu0 0
  %6164 = vmatprep.subr.bf16.mxu0 0
  %6165 = vmatpush1.bf16.msra.mxu0 0
  %6166 = vmatprep.subr.bf16.mxu0 0
  %6167 = vmatpush1.bf16.msra.mxu0 0
  %6168 = vmatprep.subr.bf16.mxu0 0
  %6169 = vmatpush1.bf16.msra.mxu0 0
  %6170 = vmatprep.subr.bf16.mxu0 0
  %6171 = vmatpush1.bf16.msra.mxu0 0
  %6172 = vmatprep.subr.bf16.mxu0 0
  %6173 = vmatpush1.bf16.msra.mxu0 0
  %6174 = vmatprep.mubr.bf16.mxu0 0
  %6175 = vmatmul.mubr.bf16.gmra.mrb[0].mxu0 %v5306
  %v6176 = vpop.f32.mrb[0].mxu0
  %v6177 = vadd.f32 0.0, %v6176
  %v6178 = vpop.f32.mrb[0].mxu0
  %v6179 = vpop.f32.mrb[0].mxu0
  %v6180 = vadd.f32 0.0, %v6179
  %v6181 = vpop.f32.mrb[0].mxu0
  %6182 = vmatprep.mubr.bf16.mxu0 0
  %6183 = vmatmul.mubr.bf16.gmra.mrb[0].mxu0 %v5308
  %v6184 = vpop.f32.mrb[0].mxu0
  %v6185 = vadd.f32 0.0, %v6184
  %v6186 = vpop.f32.mrb[0].mxu0
  %v6187 = vpop.f32.mrb[0].mxu0
  %v6188 = vadd.f32 0.0, %v6187
  %v6189 = vpop.f32.mrb[0].mxu0
  %6190 = vmatprep.mubr.bf16.mxu0 0
  %6191 = vmatmul.mubr.bf16.gmra.mrb[0].mxu0 %v5310
  %v6192 = vpop.f32.mrb[0].mxu0
  %v6193 = vadd.f32 0.0, %v6192
  %v6194 = vpop.f32.mrb[0].mxu0
  %v6195 = vpop.f32.mrb[0].mxu0
  %v6196 = vadd.f32 0.0, %v6195
  %v6197 = vpop.f32.mrb[0].mxu0
  %6198 = vmatprep.mubr.bf16.mxu0 0
  %6199 = vmatmul.mubr.bf16.gmra.mrb[0].mxu0 %v5322
  %v6200 = vpop.f32.mrb[0].mxu0
  %v6201 = vadd.f32 0.0, %v6200
  %v6202 = vpop.f32.mrb[0].mxu0
  %v6203 = vpop.f32.mrb[0].mxu0
  %v6204 = vadd.f32 0.0, %v6203
  %v6205 = vpop.f32.mrb[0].mxu0
  %6206 = vmatprep.mubr.bf16.mxu0 0
  %6207 = vmatmul.mubr.bf16.gmra.mrb[0].mxu0 %v5324
  %v6208 = vpop.f32.mrb[0].mxu0
  %v6209 = vadd.f32 0.0, %v6208
  %v6210 = vpop.f32.mrb[0].mxu0
  %v6211 = vpop.f32.mrb[0].mxu0
  %v6212 = vadd.f32 0.0, %v6211
  %v6213 = vpop.f32.mrb[0].mxu0
  %6214 = vmatprep.mubr.bf16.mxu0 0
  %6215 = vmatmul.mubr.bf16.gmra.mrb[0].mxu0 %v5326
  %v6216 = vpop.f32.mrb[0].mxu0
  %v6217 = vadd.f32 0.0, %v6216
  %v6218 = vpop.f32.mrb[0].mxu0
  %v6219 = vpop.f32.mrb[0].mxu0
  %v6220 = vadd.f32 0.0, %v6219
  %v6221 = vpop.f32.mrb[0].mxu0
  %6222 = vmatprep.mubr.bf16.mxu0 0
  %6223 = vmatmul.mubr.bf16.gmra.mrb[0].mxu0 %v5338
  %v6224 = vpop.f32.mrb[0].mxu0
  %v6225 = vadd.f32 0.0, %v6224
  %v6226 = vpop.f32.mrb[0].mxu0
  %v6227 = vpop.f32.mrb[0].mxu0
  %v6228 = vadd.f32 0.0, %v6227
  %v6229 = vpop.f32.mrb[0].mxu0
  %6230 = vmatprep.mubr.bf16.mxu0 0
  %6231 = vmatmul.mubr.bf16.gmra.mrb[0].mxu0 %v5340
  %v6232 = vpop.f32.mrb[0].mxu0
  %v6233 = vadd.f32 0.0, %v6232
  %v6234 = vpop.f32.mrb[0].mxu0
  %v6235 = vpop.f32.mrb[0].mxu0
  %v6236 = vadd.f32 0.0, %v6235
  %v6237 = vpop.f32.mrb[0].mxu0
  %6238 = vmatprep.mubr.bf16.mxu0 0
  %6239 = vmatmul.mubr.bf16.gmra.mrb[0].mxu0 %v5342
  %v6240 = vpop.f32.mrb[0].mxu0
  %v6241 = vadd.f32 0.0, %v6240
  %v6242 = vpop.f32.mrb[0].mxu0
  %v6243 = vpop.f32.mrb[0].mxu0
  %v6244 = vadd.f32 0.0, %v6243
  %v6245 = vpop.f32.mrb[0].mxu0
  %6246 = vdwg.mxu0
  %v6247 = vadd.f32 %v6059, %v6177
  %v6248 = vadd.f32 %v6060, %v6180
  %v6249 = vadd.f32 %v6061, %v6185
  %v6250 = vadd.f32 %v6062, %v6188
  %v6251 = vadd.f32 %v6063, %v6193
  %v6252 = vadd.f32 %v6064, %v6196
  %v6253 = vadd.f32 %v6065, %v6201
  %v6254 = vadd.f32 %v6066, %v6204
  %v6255 = vadd.f32 %v6067, %v6209
  %v6256 = vadd.f32 %v6068, %v6212
  %v6257 = vadd.f32 %v6069, %v6217
  %v6258 = vadd.f32 %v6070, %v6220
  %v6259 = vadd.f32 %v6071, %v6225
  %v6260 = vadd.f32 %v6072, %v6228
  %v6261 = vadd.f32 %v6073, %v6233
  %v6262 = vadd.f32 %v6074, %v6236
  %v6263 = vadd.f32 %v6075, %v6241
  %v6264 = vadd.f32 %v6076, %v6244
  %s6265 = scalar_lea.vmem %s2, 320
  %v6266 = vld [vmem:[%s6265] sm:$0xf]
  %v6267 = vld [vmem:[%s6265 + $0x4] sm:$0xf]
  %v6268 = vld [vmem:[%s6265 + $0x8] sm:$0xf]
  %v6269 = vld [vmem:[%s6265 + $0xc] sm:$0xf]
  %v6270 = vld [vmem:[%s6265 + $0x10] sm:$0xf]
  %v6271 = vld [vmem:[%s6265 + $0x14] sm:$0xf]
  %v6272 = vld [vmem:[%s6265 + $0x18] sm:$0xf]
  %v6273 = vld [vmem:[%s6265 + $0x1c] sm:$0xf]
  %v6274 = vld [vmem:[%s6265 + $0x20] sm:$0xf]
  %v6275 = vld [vmem:[%s6265 + $0x24] sm:$0xf]
  %v6276 = vld [vmem:[%s6265 + $0x28] sm:$0xf]
  %v6277 = vld [vmem:[%s6265 + $0x2c] sm:$0xf]
  %v6278 = vld [vmem:[%s6265 + $0x30] sm:$0xf]
  %v6279 = vld [vmem:[%s6265 + $0x34] sm:$0xf]
  %v6280 = vld [vmem:[%s6265 + $0x38] sm:$0xf]
  %v6281 = vld [vmem:[%s6265 + $0x3c] sm:$0xf]
  %v6298 = vunpack.c.l.b16 %v6266
  %v6299 = vunpack.c.l.b16 %v6267
  %v6300 = vunpack.c.l.b16 %v6268
  %v6301 = vunpack.c.l.b16 %v6269
  %v6302 = vunpack.c.l.b16 %v6270
  %v6303 = vunpack.c.l.b16 %v6271
  %v6304 = vunpack.c.l.b16 %v6272
  %v6305 = vunpack.c.l.b16 %v6273
  %v6306 = vunpack.c.l.b16 %v6274
  %v6307 = vunpack.c.l.b16 %v6275
  %v6308 = vunpack.c.l.b16 %v6276
  %v6309 = vunpack.c.l.b16 %v6277
  %v6310 = vunpack.c.l.b16 %v6278
  %v6311 = vunpack.c.l.b16 %v6279
  %v6312 = vunpack.c.l.b16 %v6280
  %v6313 = vunpack.c.l.b16 %v6281
  %v6314 = vpack.c.b16 %v6299, %v6298
  %v6315 = vpack.c.b16 %v6301, %v6300
  %v6316 = vpack.c.b16 %v6303, %v6302
  %v6317 = vpack.c.b16 %v6305, %v6304
  %v6318 = vpack.c.b16 %v6307, %v6306
  %v6319 = vpack.c.b16 %v6309, %v6308
  %v6320 = vpack.c.b16 %v6311, %v6310
  %v6321 = vpack.c.b16 %v6313, %v6312
  %6330 = vmatprep.subr.bf16.mxu0 0
  %6331 = vmatpush1.bf16.msra.mxu0 %v6314
  %6332 = vmatprep.subr.bf16.mxu0 0
  %6333 = vmatpush1.bf16.msra.mxu0 %v6315
  %6334 = vmatprep.subr.bf16.mxu0 0
  %6335 = vmatpush1.bf16.msra.mxu0 %v6316
  %6336 = vmatprep.subr.bf16.mxu0 0
  %6337 = vmatpush1.bf16.msra.mxu0 %v6317
  %6338 = vmatprep.subr.bf16.mxu0 0
  %6339 = vmatpush1.bf16.msra.mxu0 %v6318
  %6340 = vmatprep.subr.bf16.mxu0 0
  %6341 = vmatpush1.bf16.msra.mxu0 %v6319
  %6342 = vmatprep.subr.bf16.mxu0 0
  %6343 = vmatpush1.bf16.msra.mxu0 %v6320
  %6344 = vmatprep.subr.bf16.mxu0 0
  %6345 = vmatpush1.bf16.msra.mxu0 %v6321
  %6346 = vmatprep.subr.bf16.mxu0 0
  %6347 = vmatpush1.bf16.msra.mxu0 0
  %6348 = vmatprep.subr.bf16.mxu0 0
  %6349 = vmatpush1.bf16.msra.mxu0 0
  %6350 = vmatprep.subr.bf16.mxu0 0
  %6351 = vmatpush1.bf16.msra.mxu0 0
  %6352 = vmatprep.subr.bf16.mxu0 0
  %6353 = vmatpush1.bf16.msra.mxu0 0
  %6354 = vmatprep.subr.bf16.mxu0 0
  %6355 = vmatpush1.bf16.msra.mxu0 0
  %6356 = vmatprep.subr.bf16.mxu0 0
  %6357 = vmatpush1.bf16.msra.mxu0 0
  %6358 = vmatprep.subr.bf16.mxu0 0
  %6359 = vmatpush1.bf16.msra.mxu0 0
  %6360 = vmatprep.subr.bf16.mxu0 0
  %6361 = vmatpush1.bf16.msra.mxu0 0
  %6362 = vmatprep.mubr.bf16.mxu0 0
  %6363 = vmatmul.mubr.bf16.gmra.mrb[0].mxu0 %v5307
  %v6364 = vpop.f32.mrb[0].mxu0
  %v6365 = vadd.f32 0.0, %v6364
  %v6366 = vpop.f32.mrb[0].mxu0
  %v6367 = vpop.f32.mrb[0].mxu0
  %v6368 = vadd.f32 0.0, %v6367
  %v6369 = vpop.f32.mrb[0].mxu0
  %6370 = vmatprep.mubr.bf16.mxu0 0
  %6371 = vmatmul.mubr.bf16.gmra.mrb[0].mxu0 %v5309
  %v6372 = vpop.f32.mrb[0].mxu0
  %v6373 = vadd.f32 0.0, %v6372
  %v6374 = vpop.f32.mrb[0].mxu0
  %v6375 = vpop.f32.mrb[0].mxu0
  %v6376 = vadd.f32 0.0, %v6375
  %v6377 = vpop.f32.mrb[0].mxu0
  %6378 = vmatprep.mubr.bf16.mxu0 0
  %6379 = vmatmul.mubr.bf16.gmra.mrb[0].mxu0 %v5311
  %v6380 = vpop.f32.mrb[0].mxu0
  %v6381 = vadd.f32 0.0, %v6380
  %v6382 = vpop.f32.mrb[0].mxu0
  %v6383 = vpop.f32.mrb[0].mxu0
  %v6384 = vadd.f32 0.0, %v6383
  %v6385 = vpop.f32.mrb[0].mxu0
  %6386 = vmatprep.mubr.bf16.mxu0 0
  %6387 = vmatmul.mubr.bf16.gmra.mrb[0].mxu0 %v5323
  %v6388 = vpop.f32.mrb[0].mxu0
  %v6389 = vadd.f32 0.0, %v6388
  %v6390 = vpop.f32.mrb[0].mxu0
  %v6391 = vpop.f32.mrb[0].mxu0
  %v6392 = vadd.f32 0.0, %v6391
  %v6393 = vpop.f32.mrb[0].mxu0
  %6394 = vmatprep.mubr.bf16.mxu0 0
  %6395 = vmatmul.mubr.bf16.gmra.mrb[0].mxu0 %v5325
  %v6396 = vpop.f32.mrb[0].mxu0
  %v6397 = vadd.f32 0.0, %v6396
  %v6398 = vpop.f32.mrb[0].mxu0
  %v6399 = vpop.f32.mrb[0].mxu0
  %v6400 = vadd.f32 0.0, %v6399
  %v6401 = vpop.f32.mrb[0].mxu0
  %6402 = vmatprep.mubr.bf16.mxu0 0
  %6403 = vmatmul.mubr.bf16.gmra.mrb[0].mxu0 %v5327
  %v6404 = vpop.f32.mrb[0].mxu0
  %v6405 = vadd.f32 0.0, %v6404
  %v6406 = vpop.f32.mrb[0].mxu0
  %v6407 = vpop.f32.mrb[0].mxu0
  %v6408 = vadd.f32 0.0, %v6407
  %v6409 = vpop.f32.mrb[0].mxu0
  %6410 = vmatprep.mubr.bf16.mxu0 0
  %6411 = vmatmul.mubr.bf16.gmra.mrb[0].mxu0 %v5339
  %v6412 = vpop.f32.mrb[0].mxu0
  %v6413 = vadd.f32 0.0, %v6412
  %v6414 = vpop.f32.mrb[0].mxu0
  %v6415 = vpop.f32.mrb[0].mxu0
  %v6416 = vadd.f32 0.0, %v6415
  %v6417 = vpop.f32.mrb[0].mxu0
  %6418 = vmatprep.mubr.bf16.mxu0 0
  %6419 = vmatmul.mubr.bf16.gmra.mrb[0].mxu0 %v5341
  %v6420 = vpop.f32.mrb[0].mxu0
  %v6421 = vadd.f32 0.0, %v6420
  %v6422 = vpop.f32.mrb[0].mxu0
  %v6423 = vpop.f32.mrb[0].mxu0
  %v6424 = vadd.f32 0.0, %v6423
  %v6425 = vpop.f32.mrb[0].mxu0
  %6426 = vmatprep.mubr.bf16.mxu0 0
  %6427 = vmatmul.mubr.bf16.gmra.mrb[0].mxu0 %v5343
  %v6428 = vpop.f32.mrb[0].mxu0
  %v6429 = vadd.f32 0.0, %v6428
  %v6430 = vpop.f32.mrb[0].mxu0
  %v6431 = vpop.f32.mrb[0].mxu0
  %v6432 = vadd.f32 0.0, %v6431
  %v6433 = vpop.f32.mrb[0].mxu0
  %6434 = vdwg.mxu0
  %v6435 = vadd.f32 %v6247, %v6365
  %v6436 = vadd.f32 %v6248, %v6368
  %v6437 = vadd.f32 %v6249, %v6373
  %v6438 = vadd.f32 %v6250, %v6376
  %v6439 = vadd.f32 %v6251, %v6381
  %v6440 = vadd.f32 %v6252, %v6384
  %v6441 = vadd.f32 %v6253, %v6389
  %v6442 = vadd.f32 %v6254, %v6392
  %v6443 = vadd.f32 %v6255, %v6397
  %v6444 = vadd.f32 %v6256, %v6400
  %v6445 = vadd.f32 %v6257, %v6405
  %v6446 = vadd.f32 %v6258, %v6408
  %v6447 = vadd.f32 %v6259, %v6413
  %v6448 = vadd.f32 %v6260, %v6416
  %v6449 = vadd.f32 %v6261, %v6421
  %v6450 = vadd.f32 %v6262, %v6424
  %v6451 = vadd.f32 %v6263, %v6429
  %v6452 = vadd.f32 %v6264, %v6432
  %s6453 = scalar_lea.vmem %s2, 384
  %v6454 = vld [vmem:[%s6453] sm:$0xf]
  %v6455 = vld [vmem:[%s6453 + $0x4] sm:$0xf]
  %v6456 = vld [vmem:[%s6453 + $0x8] sm:$0xf]
  %v6457 = vld [vmem:[%s6453 + $0xc] sm:$0xf]
  %v6458 = vld [vmem:[%s6453 + $0x10] sm:$0xf]
  %v6459 = vld [vmem:[%s6453 + $0x14] sm:$0xf]
  %v6460 = vld [vmem:[%s6453 + $0x18] sm:$0xf]
  %v6461 = vld [vmem:[%s6453 + $0x1c] sm:$0xf]
  %v6462 = vld [vmem:[%s6453 + $0x20] sm:$0xf]
  %v6463 = vld [vmem:[%s6453 + $0x24] sm:$0xf]
  %v6464 = vld [vmem:[%s6453 + $0x28] sm:$0xf]
  %v6465 = vld [vmem:[%s6453 + $0x2c] sm:$0xf]
  %v6466 = vld [vmem:[%s6453 + $0x30] sm:$0xf]
  %v6467 = vld [vmem:[%s6453 + $0x34] sm:$0xf]
  %v6468 = vld [vmem:[%s6453 + $0x38] sm:$0xf]
  %v6469 = vld [vmem:[%s6453 + $0x3c] sm:$0xf]
  %v6486 = vunpack.c.l.b16 %v6454
  %v6487 = vunpack.c.l.b16 %v6455
  %v6488 = vunpack.c.l.b16 %v6456
  %v6489 = vunpack.c.l.b16 %v6457
  %v6490 = vunpack.c.l.b16 %v6458
  %v6491 = vunpack.c.l.b16 %v6459
  %v6492 = vunpack.c.l.b16 %v6460
  %v6493 = vunpack.c.l.b16 %v6461
  %v6494 = vunpack.c.l.b16 %v6462
  %v6495 = vunpack.c.l.b16 %v6463
  %v6496 = vunpack.c.l.b16 %v6464
  %v6497 = vunpack.c.l.b16 %v6465
  %v6498 = vunpack.c.l.b16 %v6466
  %v6499 = vunpack.c.l.b16 %v6467
  %v6500 = vunpack.c.l.b16 %v6468
  %v6501 = vunpack.c.l.b16 %v6469
  %v6502 = vpack.c.b16 %v6487, %v6486
  %v6503 = vpack.c.b16 %v6489, %v6488
  %v6504 = vpack.c.b16 %v6491, %v6490
  %v6505 = vpack.c.b16 %v6493, %v6492
  %v6506 = vpack.c.b16 %v6495, %v6494
  %v6507 = vpack.c.b16 %v6497, %v6496
  %v6508 = vpack.c.b16 %v6499, %v6498
  %v6509 = vpack.c.b16 %v6501, %v6500
  %6518 = vmatprep.subr.bf16.mxu0 0
  %6519 = vmatpush1.bf16.msra.mxu0 %v6502
  %6520 = vmatprep.subr.bf16.mxu0 0
  %6521 = vmatpush1.bf16.msra.mxu0 %v6503
  %6522 = vmatprep.subr.bf16.mxu0 0
  %6523 = vmatpush1.bf16.msra.mxu0 %v6504
  %6524 = vmatprep.subr.bf16.mxu0 0
  %6525 = vmatpush1.bf16.msra.mxu0 %v6505
  %6526 = vmatprep.subr.bf16.mxu0 0
  %6527 = vmatpush1.bf16.msra.mxu0 %v6506
  %6528 = vmatprep.subr.bf16.mxu0 0
  %6529 = vmatpush1.bf16.msra.mxu0 %v6507
  %6530 = vmatprep.subr.bf16.mxu0 0
  %6531 = vmatpush1.bf16.msra.mxu0 %v6508
  %6532 = vmatprep.subr.bf16.mxu0 0
  %6533 = vmatpush1.bf16.msra.mxu0 %v6509
  %6534 = vmatprep.subr.bf16.mxu0 0
  %6535 = vmatpush1.bf16.msra.mxu0 0
  %6536 = vmatprep.subr.bf16.mxu0 0
  %6537 = vmatpush1.bf16.msra.mxu0 0
  %6538 = vmatprep.subr.bf16.mxu0 0
  %6539 = vmatpush1.bf16.msra.mxu0 0
  %6540 = vmatprep.subr.bf16.mxu0 0
  %6541 = vmatpush1.bf16.msra.mxu0 0
  %6542 = vmatprep.subr.bf16.mxu0 0
  %6543 = vmatpush1.bf16.msra.mxu0 0
  %6544 = vmatprep.subr.bf16.mxu0 0
  %6545 = vmatpush1.bf16.msra.mxu0 0
  %6546 = vmatprep.subr.bf16.mxu0 0
  %6547 = vmatpush1.bf16.msra.mxu0 0
  %6548 = vmatprep.subr.bf16.mxu0 0
  %6549 = vmatpush1.bf16.msra.mxu0 0
  %6550 = vmatprep.mubr.bf16.mxu0 0
  %6551 = vmatmul.mubr.bf16.gmra.mrb[0].mxu0 %v5308
  %v6552 = vpop.f32.mrb[0].mxu0
  %v6553 = vadd.f32 0.0, %v6552
  %v6554 = vpop.f32.mrb[0].mxu0
  %v6555 = vpop.f32.mrb[0].mxu0
  %v6556 = vadd.f32 0.0, %v6555
  %v6557 = vpop.f32.mrb[0].mxu0
  %6558 = vmatprep.mubr.bf16.mxu0 0
  %6559 = vmatmul.mubr.bf16.gmra.mrb[0].mxu0 %v5310
  %v6560 = vpop.f32.mrb[0].mxu0
  %v6561 = vadd.f32 0.0, %v6560
  %v6562 = vpop.f32.mrb[0].mxu0
  %v6563 = vpop.f32.mrb[0].mxu0
  %v6564 = vadd.f32 0.0, %v6563
  %v6565 = vpop.f32.mrb[0].mxu0
  %6566 = vmatprep.mubr.bf16.mxu0 0
  %6567 = vmatmul.mubr.bf16.gmra.mrb[0].mxu0 %v5312
  %v6568 = vpop.f32.mrb[0].mxu0
  %v6569 = vadd.f32 0.0, %v6568
  %v6570 = vpop.f32.mrb[0].mxu0
  %v6571 = vpop.f32.mrb[0].mxu0
  %v6572 = vadd.f32 0.0, %v6571
  %v6573 = vpop.f32.mrb[0].mxu0
  %6574 = vmatprep.mubr.bf16.mxu0 0
  %6575 = vmatmul.mubr.bf16.gmra.mrb[0].mxu0 %v5324
  %v6576 = vpop.f32.mrb[0].mxu0
  %v6577 = vadd.f32 0.0, %v6576
  %v6578 = vpop.f32.mrb[0].mxu0
  %v6579 = vpop.f32.mrb[0].mxu0
  %v6580 = vadd.f32 0.0, %v6579
  %v6581 = vpop.f32.mrb[0].mxu0
  %6582 = vmatprep.mubr.bf16.mxu0 0
  %6583 = vmatmul.mubr.bf16.gmra.mrb[0].mxu0 %v5326
  %v6584 = vpop.f32.mrb[0].mxu0
  %v6585 = vadd.f32 0.0, %v6584
  %v6586 = vpop.f32.mrb[0].mxu0
  %v6587 = vpop.f32.mrb[0].mxu0
  %v6588 = vadd.f32 0.0, %v6587
  %v6589 = vpop.f32.mrb[0].mxu0
  %6590 = vmatprep.mubr.bf16.mxu0 0
  %6591 = vmatmul.mubr.bf16.gmra.mrb[0].mxu0 %v5328
  %v6592 = vpop.f32.mrb[0].mxu0
  %v6593 = vadd.f32 0.0, %v6592
  %v6594 = vpop.f32.mrb[0].mxu0
  %v6595 = vpop.f32.mrb[0].mxu0
  %v6596 = vadd.f32 0.0, %v6595
  %v6597 = vpop.f32.mrb[0].mxu0
  %6598 = vmatprep.mubr.bf16.mxu0 0
  %6599 = vmatmul.mubr.bf16.gmra.mrb[0].mxu0 %v5340
  %v6600 = vpop.f32.mrb[0].mxu0
  %v6601 = vadd.f32 0.0, %v6600
  %v6602 = vpop.f32.mrb[0].mxu0
  %v6603 = vpop.f32.mrb[0].mxu0
  %v6604 = vadd.f32 0.0, %v6603
  %v6605 = vpop.f32.mrb[0].mxu0
  %6606 = vmatprep.mubr.bf16.mxu0 0
  %6607 = vmatmul.mubr.bf16.gmra.mrb[0].mxu0 %v5342
  %v6608 = vpop.f32.mrb[0].mxu0
  %v6609 = vadd.f32 0.0, %v6608
  %v6610 = vpop.f32.mrb[0].mxu0
  %v6611 = vpop.f32.mrb[0].mxu0
  %v6612 = vadd.f32 0.0, %v6611
  %v6613 = vpop.f32.mrb[0].mxu0
  %6614 = vmatprep.mubr.bf16.mxu0 0
  %6615 = vmatmul.mubr.bf16.gmra.mrb[0].mxu0 %v5344
  %v6616 = vpop.f32.mrb[0].mxu0
  %v6617 = vadd.f32 0.0, %v6616
  %v6618 = vpop.f32.mrb[0].mxu0
  %v6619 = vpop.f32.mrb[0].mxu0
  %v6620 = vadd.f32 0.0, %v6619
  %v6621 = vpop.f32.mrb[0].mxu0
  %6622 = vdwg.mxu0
  %v6623 = vadd.f32 %v6435, %v6553
  %v6624 = vadd.f32 %v6436, %v6556
  %v6625 = vadd.f32 %v6437, %v6561
  %v6626 = vadd.f32 %v6438, %v6564
  %v6627 = vadd.f32 %v6439, %v6569
  %v6628 = vadd.f32 %v6440, %v6572
  %v6629 = vadd.f32 %v6441, %v6577
  %v6630 = vadd.f32 %v6442, %v6580
  %v6631 = vadd.f32 %v6443, %v6585
  %v6632 = vadd.f32 %v6444, %v6588
  %v6633 = vadd.f32 %v6445, %v6593
  %v6634 = vadd.f32 %v6446, %v6596
  %v6635 = vadd.f32 %v6447, %v6601
  %v6636 = vadd.f32 %v6448, %v6604
  %v6637 = vadd.f32 %v6449, %v6609
  %v6638 = vadd.f32 %v6450, %v6612
  %v6639 = vadd.f32 %v6451, %v6617
  %v6640 = vadd.f32 %v6452, %v6620
  %s6641 = scalar_lea.vmem %s2, 448
  %v6642 = vld [vmem:[%s6641] sm:$0xf]
  %v6643 = vld [vmem:[%s6641 + $0x4] sm:$0xf]
  %v6644 = vld [vmem:[%s6641 + $0x8] sm:$0xf]
  %v6645 = vld [vmem:[%s6641 + $0xc] sm:$0xf]
  %v6646 = vld [vmem:[%s6641 + $0x10] sm:$0xf]
  %v6647 = vld [vmem:[%s6641 + $0x14] sm:$0xf]
  %v6648 = vld [vmem:[%s6641 + $0x18] sm:$0xf]
  %v6649 = vld [vmem:[%s6641 + $0x1c] sm:$0xf]
  %v6650 = vld [vmem:[%s6641 + $0x20] sm:$0xf]
  %v6651 = vld [vmem:[%s6641 + $0x24] sm:$0xf]
  %v6652 = vld [vmem:[%s6641 + $0x28] sm:$0xf]
  %v6653 = vld [vmem:[%s6641 + $0x2c] sm:$0xf]
  %v6654 = vld [vmem:[%s6641 + $0x30] sm:$0xf]
  %v6655 = vld [vmem:[%s6641 + $0x34] sm:$0xf]
  %v6656 = vld [vmem:[%s6641 + $0x38] sm:$0xf]
  %v6657 = vld [vmem:[%s6641 + $0x3c] sm:$0xf]
  %v6674 = vunpack.c.l.b16 %v6642
  %v6675 = vunpack.c.l.b16 %v6643
  %v6676 = vunpack.c.l.b16 %v6644
  %v6677 = vunpack.c.l.b16 %v6645
  %v6678 = vunpack.c.l.b16 %v6646
  %v6679 = vunpack.c.l.b16 %v6647
  %v6680 = vunpack.c.l.b16 %v6648
  %v6681 = vunpack.c.l.b16 %v6649
  %v6682 = vunpack.c.l.b16 %v6650
  %v6683 = vunpack.c.l.b16 %v6651
  %v6684 = vunpack.c.l.b16 %v6652
  %v6685 = vunpack.c.l.b16 %v6653
  %v6686 = vunpack.c.l.b16 %v6654
  %v6687 = vunpack.c.l.b16 %v6655
  %v6688 = vunpack.c.l.b16 %v6656
  %v6689 = vunpack.c.l.b16 %v6657
  %v6690 = vpack.c.b16 %v6675, %v6674
  %v6691 = vpack.c.b16 %v6677, %v6676
  %v6692 = vpack.c.b16 %v6679, %v6678
  %v6693 = vpack.c.b16 %v6681, %v6680
  %v6694 = vpack.c.b16 %v6683, %v6682
  %v6695 = vpack.c.b16 %v6685, %v6684
  %v6696 = vpack.c.b16 %v6687, %v6686
  %v6697 = vpack.c.b16 %v6689, %v6688
  %6706 = vmatprep.subr.bf16.mxu0 0
  %6707 = vmatpush1.bf16.msra.mxu0 %v6690
  %6708 = vmatprep.subr.bf16.mxu0 0
  %6709 = vmatpush1.bf16.msra.mxu0 %v6691
  %6710 = vmatprep.subr.bf16.mxu0 0
  %6711 = vmatpush1.bf16.msra.mxu0 %v6692
  %6712 = vmatprep.subr.bf16.mxu0 0
  %6713 = vmatpush1.bf16.msra.mxu0 %v6693
  %6714 = vmatprep.subr.bf16.mxu0 0
  %6715 = vmatpush1.bf16.msra.mxu0 %v6694
  %6716 = vmatprep.subr.bf16.mxu0 0
  %6717 = vmatpush1.bf16.msra.mxu0 %v6695
  %6718 = vmatprep.subr.bf16.mxu0 0
  %6719 = vmatpush1.bf16.msra.mxu0 %v6696
  %6720 = vmatprep.subr.bf16.mxu0 0
  %6721 = vmatpush1.bf16.msra.mxu0 %v6697
  %6722 = vmatprep.subr.bf16.mxu0 0
  %6723 = vmatpush1.bf16.msra.mxu0 0
  %6724 = vmatprep.subr.bf16.mxu0 0
  %6725 = vmatpush1.bf16.msra.mxu0 0
  %6726 = vmatprep.subr.bf16.mxu0 0
  %6727 = vmatpush1.bf16.msra.mxu0 0
  %6728 = vmatprep.subr.bf16.mxu0 0
  %6729 = vmatpush1.bf16.msra.mxu0 0
  %6730 = vmatprep.subr.bf16.mxu0 0
  %6731 = vmatpush1.bf16.msra.mxu0 0
  %6732 = vmatprep.subr.bf16.mxu0 0
  %6733 = vmatpush1.bf16.msra.mxu0 0
  %6734 = vmatprep.subr.bf16.mxu0 0
  %6735 = vmatpush1.bf16.msra.mxu0 0
  %6736 = vmatprep.subr.bf16.mxu0 0
  %6737 = vmatpush1.bf16.msra.mxu0 0
  %6738 = vmatprep.mubr.bf16.mxu0 0
  %6739 = vmatmul.mubr.bf16.gmra.mrb[0].mxu0 %v5309
  %v6740 = vpop.f32.mrb[0].mxu0
  %v6741 = vadd.f32 0.0, %v6740
  %v6742 = vpop.f32.mrb[0].mxu0
  %v6743 = vpop.f32.mrb[0].mxu0
  %v6744 = vadd.f32 0.0, %v6743
  %v6745 = vpop.f32.mrb[0].mxu0
  %6746 = vmatprep.mubr.bf16.mxu0 0
  %6747 = vmatmul.mubr.bf16.gmra.mrb[0].mxu0 %v5311
  %v6748 = vpop.f32.mrb[0].mxu0
  %v6749 = vadd.f32 0.0, %v6748
  %v6750 = vpop.f32.mrb[0].mxu0
  %v6751 = vpop.f32.mrb[0].mxu0
  %v6752 = vadd.f32 0.0, %v6751
  %v6753 = vpop.f32.mrb[0].mxu0
  %6754 = vmatprep.mubr.bf16.mxu0 0
  %6755 = vmatmul.mubr.bf16.gmra.mrb[0].mxu0 %v5313
  %v6756 = vpop.f32.mrb[0].mxu0
  %v6757 = vadd.f32 0.0, %v6756
  %v6758 = vpop.f32.mrb[0].mxu0
  %v6759 = vpop.f32.mrb[0].mxu0
  %v6760 = vadd.f32 0.0, %v6759
  %v6761 = vpop.f32.mrb[0].mxu0
  %6762 = vmatprep.mubr.bf16.mxu0 0
  %6763 = vmatmul.mubr.bf16.gmra.mrb[0].mxu0 %v5325
  %v6764 = vpop.f32.mrb[0].mxu0
  %v6765 = vadd.f32 0.0, %v6764
  %v6766 = vpop.f32.mrb[0].mxu0
  %v6767 = vpop.f32.mrb[0].mxu0
  %v6768 = vadd.f32 0.0, %v6767
  %v6769 = vpop.f32.mrb[0].mxu0
  %6770 = vmatprep.mubr.bf16.mxu0 0
  %6771 = vmatmul.mubr.bf16.gmra.mrb[0].mxu0 %v5327
  %v6772 = vpop.f32.mrb[0].mxu0
  %v6773 = vadd.f32 0.0, %v6772
  %v6774 = vpop.f32.mrb[0].mxu0
  %v6775 = vpop.f32.mrb[0].mxu0
  %v6776 = vadd.f32 0.0, %v6775
  %v6777 = vpop.f32.mrb[0].mxu0
  %6778 = vmatprep.mubr.bf16.mxu0 0
  %6779 = vmatmul.mubr.bf16.gmra.mrb[0].mxu0 %v5329
  %v6780 = vpop.f32.mrb[0].mxu0
  %v6781 = vadd.f32 0.0, %v6780
  %v6782 = vpop.f32.mrb[0].mxu0
  %v6783 = vpop.f32.mrb[0].mxu0
  %v6784 = vadd.f32 0.0, %v6783
  %v6785 = vpop.f32.mrb[0].mxu0
  %6786 = vmatprep.mubr.bf16.mxu0 0
  %6787 = vmatmul.mubr.bf16.gmra.mrb[0].mxu0 %v5341
  %v6788 = vpop.f32.mrb[0].mxu0
  %v6789 = vadd.f32 0.0, %v6788
  %v6790 = vpop.f32.mrb[0].mxu0
  %v6791 = vpop.f32.mrb[0].mxu0
  %v6792 = vadd.f32 0.0, %v6791
  %v6793 = vpop.f32.mrb[0].mxu0
  %6794 = vmatprep.mubr.bf16.mxu0 0
  %6795 = vmatmul.mubr.bf16.gmra.mrb[0].mxu0 %v5343
  %v6796 = vpop.f32.mrb[0].mxu0
  %v6797 = vadd.f32 0.0, %v6796
  %v6798 = vpop.f32.mrb[0].mxu0
  %v6799 = vpop.f32.mrb[0].mxu0
  %v6800 = vadd.f32 0.0, %v6799
  %v6801 = vpop.f32.mrb[0].mxu0
  %6802 = vmatprep.mubr.bf16.mxu0 0
  %6803 = vmatmul.mubr.bf16.gmra.mrb[0].mxu0 %v5345
  %v6804 = vpop.f32.mrb[0].mxu0
  %v6805 = vadd.f32 0.0, %v6804
  %v6806 = vpop.f32.mrb[0].mxu0
  %v6807 = vpop.f32.mrb[0].mxu0
  %v6808 = vadd.f32 0.0, %v6807
  %v6809 = vpop.f32.mrb[0].mxu0
  %6810 = vdwg.mxu0
  %v6811 = vadd.f32 %v6623, %v6741
  %v6812 = vadd.f32 %v6624, %v6744
  %v6813 = vadd.f32 %v6625, %v6749
  %v6814 = vadd.f32 %v6626, %v6752
  %v6815 = vadd.f32 %v6627, %v6757
  %v6816 = vadd.f32 %v6628, %v6760
  %v6817 = vadd.f32 %v6629, %v6765
  %v6818 = vadd.f32 %v6630, %v6768
  %v6819 = vadd.f32 %v6631, %v6773
  %v6820 = vadd.f32 %v6632, %v6776
  %v6821 = vadd.f32 %v6633, %v6781
  %v6822 = vadd.f32 %v6634, %v6784
  %v6823 = vadd.f32 %v6635, %v6789
  %v6824 = vadd.f32 %v6636, %v6792
  %v6825 = vadd.f32 %v6637, %v6797
  %v6826 = vadd.f32 %v6638, %v6800
  %v6827 = vadd.f32 %v6639, %v6805
  %v6828 = vadd.f32 %v6640, %v6808
  %s6829 = scalar_lea.vmem %s2, 512
  %v6830 = vld [vmem:[%s6829] sm:$0xf]
  %v6831 = vld [vmem:[%s6829 + $0x4] sm:$0xf]
  %v6832 = vld [vmem:[%s6829 + $0x8] sm:$0xf]
  %v6833 = vld [vmem:[%s6829 + $0xc] sm:$0xf]
  %v6834 = vld [vmem:[%s6829 + $0x10] sm:$0xf]
  %v6835 = vld [vmem:[%s6829 + $0x14] sm:$0xf]
  %v6836 = vld [vmem:[%s6829 + $0x18] sm:$0xf]
  %v6837 = vld [vmem:[%s6829 + $0x1c] sm:$0xf]
  %v6838 = vld [vmem:[%s6829 + $0x20] sm:$0xf]
  %v6839 = vld [vmem:[%s6829 + $0x24] sm:$0xf]
  %v6840 = vld [vmem:[%s6829 + $0x28] sm:$0xf]
  %v6841 = vld [vmem:[%s6829 + $0x2c] sm:$0xf]
  %v6842 = vld [vmem:[%s6829 + $0x30] sm:$0xf]
  %v6843 = vld [vmem:[%s6829 + $0x34] sm:$0xf]
  %v6844 = vld [vmem:[%s6829 + $0x38] sm:$0xf]
  %v6845 = vld [vmem:[%s6829 + $0x3c] sm:$0xf]
  %v6862 = vunpack.c.l.b16 %v6830
  %v6863 = vunpack.c.l.b16 %v6831
  %v6864 = vunpack.c.l.b16 %v6832
  %v6865 = vunpack.c.l.b16 %v6833
  %v6866 = vunpack.c.l.b16 %v6834
  %v6867 = vunpack.c.l.b16 %v6835
  %v6868 = vunpack.c.l.b16 %v6836
  %v6869 = vunpack.c.l.b16 %v6837
  %v6870 = vunpack.c.l.b16 %v6838
  %v6871 = vunpack.c.l.b16 %v6839
  %v6872 = vunpack.c.l.b16 %v6840
  %v6873 = vunpack.c.l.b16 %v6841
  %v6874 = vunpack.c.l.b16 %v6842
  %v6875 = vunpack.c.l.b16 %v6843
  %v6876 = vunpack.c.l.b16 %v6844
  %v6877 = vunpack.c.l.b16 %v6845
  %v6878 = vpack.c.b16 %v6863, %v6862
  %v6879 = vpack.c.b16 %v6865, %v6864
  %v6880 = vpack.c.b16 %v6867, %v6866
  %v6881 = vpack.c.b16 %v6869, %v6868
  %v6882 = vpack.c.b16 %v6871, %v6870
  %v6883 = vpack.c.b16 %v6873, %v6872
  %v6884 = vpack.c.b16 %v6875, %v6874
  %v6885 = vpack.c.b16 %v6877, %v6876
  %6894 = vmatprep.subr.bf16.mxu0 0
  %6895 = vmatpush1.bf16.msra.mxu0 %v6878
  %6896 = vmatprep.subr.bf16.mxu0 0
  %6897 = vmatpush1.bf16.msra.mxu0 %v6879
  %6898 = vmatprep.subr.bf16.mxu0 0
  %6899 = vmatpush1.bf16.msra.mxu0 %v6880
  %6900 = vmatprep.subr.bf16.mxu0 0
  %6901 = vmatpush1.bf16.msra.mxu0 %v6881
  %6902 = vmatprep.subr.bf16.mxu0 0
  %6903 = vmatpush1.bf16.msra.mxu0 %v6882
  %6904 = vmatprep.subr.bf16.mxu0 0
  %6905 = vmatpush1.bf16.msra.mxu0 %v6883
  %6906 = vmatprep.subr.bf16.mxu0 0
  %6907 = vmatpush1.bf16.msra.mxu0 %v6884
  %6908 = vmatprep.subr.bf16.mxu0 0
  %6909 = vmatpush1.bf16.msra.mxu0 %v6885
  %6910 = vmatprep.subr.bf16.mxu0 0
  %6911 = vmatpush1.bf16.msra.mxu0 0
  %6912 = vmatprep.subr.bf16.mxu0 0
  %6913 = vmatpush1.bf16.msra.mxu0 0
  %6914 = vmatprep.subr.bf16.mxu0 0
  %6915 = vmatpush1.bf16.msra.mxu0 0
  %6916 = vmatprep.subr.bf16.mxu0 0
  %6917 = vmatpush1.bf16.msra.mxu0 0
  %6918 = vmatprep.subr.bf16.mxu0 0
  %6919 = vmatpush1.bf16.msra.mxu0 0
  %6920 = vmatprep.subr.bf16.mxu0 0
  %6921 = vmatpush1.bf16.msra.mxu0 0
  %6922 = vmatprep.subr.bf16.mxu0 0
  %6923 = vmatpush1.bf16.msra.mxu0 0
  %6924 = vmatprep.subr.bf16.mxu0 0
  %6925 = vmatpush1.bf16.msra.mxu0 0
  %6926 = vmatprep.mubr.bf16.mxu0 0
  %6927 = vmatmul.mubr.bf16.gmra.mrb[0].mxu0 %v5314
  %v6928 = vpop.f32.mrb[0].mxu0
  %v6929 = vadd.f32 0.0, %v6928
  %v6930 = vpop.f32.mrb[0].mxu0
  %v6931 = vpop.f32.mrb[0].mxu0
  %v6932 = vadd.f32 0.0, %v6931
  %v6933 = vpop.f32.mrb[0].mxu0
  %6934 = vmatprep.mubr.bf16.mxu0 0
  %6935 = vmatmul.mubr.bf16.gmra.mrb[0].mxu0 %v5316
  %v6936 = vpop.f32.mrb[0].mxu0
  %v6937 = vadd.f32 0.0, %v6936
  %v6938 = vpop.f32.mrb[0].mxu0
  %v6939 = vpop.f32.mrb[0].mxu0
  %v6940 = vadd.f32 0.0, %v6939
  %v6941 = vpop.f32.mrb[0].mxu0
  %6942 = vmatprep.mubr.bf16.mxu0 0
  %6943 = vmatmul.mubr.bf16.gmra.mrb[0].mxu0 %v5318
  %v6944 = vpop.f32.mrb[0].mxu0
  %v6945 = vadd.f32 0.0, %v6944
  %v6946 = vpop.f32.mrb[0].mxu0
  %v6947 = vpop.f32.mrb[0].mxu0
  %v6948 = vadd.f32 0.0, %v6947
  %v6949 = vpop.f32.mrb[0].mxu0
  %6950 = vmatprep.mubr.bf16.mxu0 0
  %6951 = vmatmul.mubr.bf16.gmra.mrb[0].mxu0 %v5330
  %v6952 = vpop.f32.mrb[0].mxu0
  %v6953 = vadd.f32 0.0, %v6952
  %v6954 = vpop.f32.mrb[0].mxu0
  %v6955 = vpop.f32.mrb[0].mxu0
  %v6956 = vadd.f32 0.0, %v6955
  %v6957 = vpop.f32.mrb[0].mxu0
  %6958 = vmatprep.mubr.bf16.mxu0 0
  %6959 = vmatmul.mubr.bf16.gmra.mrb[0].mxu0 %v5332
  %v6960 = vpop.f32.mrb[0].mxu0
  %v6961 = vadd.f32 0.0, %v6960
  %v6962 = vpop.f32.mrb[0].mxu0
  %v6963 = vpop.f32.mrb[0].mxu0
  %v6964 = vadd.f32 0.0, %v6963
  %v6965 = vpop.f32.mrb[0].mxu0
  %6966 = vmatprep.mubr.bf16.mxu0 0
  %6967 = vmatmul.mubr.bf16.gmra.mrb[0].mxu0 %v5334
  %v6968 = vpop.f32.mrb[0].mxu0
  %v6969 = vadd.f32 0.0, %v6968
  %v6970 = vpop.f32.mrb[0].mxu0
  %v6971 = vpop.f32.mrb[0].mxu0
  %v6972 = vadd.f32 0.0, %v6971
  %v6973 = vpop.f32.mrb[0].mxu0
  %6974 = vmatprep.mubr.bf16.mxu0 0
  %6975 = vmatmul.mubr.bf16.gmra.mrb[0].mxu0 %v5346
  %v6976 = vpop.f32.mrb[0].mxu0
  %v6977 = vadd.f32 0.0, %v6976
  %v6978 = vpop.f32.mrb[0].mxu0
  %v6979 = vpop.f32.mrb[0].mxu0
  %v6980 = vadd.f32 0.0, %v6979
  %v6981 = vpop.f32.mrb[0].mxu0
  %6982 = vmatprep.mubr.bf16.mxu0 0
  %6983 = vmatmul.mubr.bf16.gmra.mrb[0].mxu0 %v5348
  %v6984 = vpop.f32.mrb[0].mxu0
  %v6985 = vadd.f32 0.0, %v6984
  %v6986 = vpop.f32.mrb[0].mxu0
  %v6987 = vpop.f32.mrb[0].mxu0
  %v6988 = vadd.f32 0.0, %v6987
  %v6989 = vpop.f32.mrb[0].mxu0
  %6990 = vmatprep.mubr.bf16.mxu0 0
  %6991 = vmatmul.mubr.bf16.gmra.mrb[0].mxu0 %v5350
  %v6992 = vpop.f32.mrb[0].mxu0
  %v6993 = vadd.f32 0.0, %v6992
  %v6994 = vpop.f32.mrb[0].mxu0
  %v6995 = vpop.f32.mrb[0].mxu0
  %v6996 = vadd.f32 0.0, %v6995
  %v6997 = vpop.f32.mrb[0].mxu0
  %6998 = vdwg.mxu0
  %v6999 = vadd.f32 %v6811, %v6929
  %v7000 = vadd.f32 %v6812, %v6932
  %v7001 = vadd.f32 %v6813, %v6937
  %v7002 = vadd.f32 %v6814, %v6940
  %v7003 = vadd.f32 %v6815, %v6945
  %v7004 = vadd.f32 %v6816, %v6948
  %v7005 = vadd.f32 %v6817, %v6953
  %v7006 = vadd.f32 %v6818, %v6956
  %v7007 = vadd.f32 %v6819, %v6961
  %v7008 = vadd.f32 %v6820, %v6964
  %v7009 = vadd.f32 %v6821, %v6969
  %v7010 = vadd.f32 %v6822, %v6972
  %v7011 = vadd.f32 %v6823, %v6977
  %v7012 = vadd.f32 %v6824, %v6980
  %v7013 = vadd.f32 %v6825, %v6985
  %v7014 = vadd.f32 %v6826, %v6988
  %v7015 = vadd.f32 %v6827, %v6993
  %v7016 = vadd.f32 %v6828, %v6996
  %s7017 = scalar_lea.vmem %s2, 576
  %v7018 = vld [vmem:[%s7017] sm:$0xf]
  %v7019 = vld [vmem:[%s7017 + $0x4] sm:$0xf]
  %v7020 = vld [vmem:[%s7017 + $0x8] sm:$0xf]
  %v7021 = vld [vmem:[%s7017 + $0xc] sm:$0xf]
  %v7022 = vld [vmem:[%s7017 + $0x10] sm:$0xf]
  %v7023 = vld [vmem:[%s7017 + $0x14] sm:$0xf]
  %v7024 = vld [vmem:[%s7017 + $0x18] sm:$0xf]
  %v7025 = vld [vmem:[%s7017 + $0x1c] sm:$0xf]
  %v7026 = vld [vmem:[%s7017 + $0x20] sm:$0xf]
  %v7027 = vld [vmem:[%s7017 + $0x24] sm:$0xf]
  %v7028 = vld [vmem:[%s7017 + $0x28] sm:$0xf]
  %v7029 = vld [vmem:[%s7017 + $0x2c] sm:$0xf]
  %v7030 = vld [vmem:[%s7017 + $0x30] sm:$0xf]
  %v7031 = vld [vmem:[%s7017 + $0x34] sm:$0xf]
  %v7032 = vld [vmem:[%s7017 + $0x38] sm:$0xf]
  %v7033 = vld [vmem:[%s7017 + $0x3c] sm:$0xf]
  %v7050 = vunpack.c.l.b16 %v7018
  %v7051 = vunpack.c.l.b16 %v7019
  %v7052 = vunpack.c.l.b16 %v7020
  %v7053 = vunpack.c.l.b16 %v7021
  %v7054 = vunpack.c.l.b16 %v7022
  %v7055 = vunpack.c.l.b16 %v7023
  %v7056 = vunpack.c.l.b16 %v7024
  %v7057 = vunpack.c.l.b16 %v7025
  %v7058 = vunpack.c.l.b16 %v7026
  %v7059 = vunpack.c.l.b16 %v7027
  %v7060 = vunpack.c.l.b16 %v7028
  %v7061 = vunpack.c.l.b16 %v7029
  %v7062 = vunpack.c.l.b16 %v7030
  %v7063 = vunpack.c.l.b16 %v7031
  %v7064 = vunpack.c.l.b16 %v7032
  %v7065 = vunpack.c.l.b16 %v7033
  %v7066 = vpack.c.b16 %v7051, %v7050
  %v7067 = vpack.c.b16 %v7053, %v7052
  %v7068 = vpack.c.b16 %v7055, %v7054
  %v7069 = vpack.c.b16 %v7057, %v7056
  %v7070 = vpack.c.b16 %v7059, %v7058
  %v7071 = vpack.c.b16 %v7061, %v7060
  %v7072 = vpack.c.b16 %v7063, %v7062
  %v7073 = vpack.c.b16 %v7065, %v7064
  %7082 = vmatprep.subr.bf16.mxu0 0
  %7083 = vmatpush1.bf16.msra.mxu0 %v7066
  %7084 = vmatprep.subr.bf16.mxu0 0
  %7085 = vmatpush1.bf16.msra.mxu0 %v7067
  %7086 = vmatprep.subr.bf16.mxu0 0
  %7087 = vmatpush1.bf16.msra.mxu0 %v7068
  %7088 = vmatprep.subr.bf16.mxu0 0
  %7089 = vmatpush1.bf16.msra.mxu0 %v7069
  %7090 = vmatprep.subr.bf16.mxu0 0
  %7091 = vmatpush1.bf16.msra.mxu0 %v7070
  %7092 = vmatprep.subr.bf16.mxu0 0
  %7093 = vmatpush1.bf16.msra.mxu0 %v7071
  %7094 = vmatprep.subr.bf16.mxu0 0
  %7095 = vmatpush1.bf16.msra.mxu0 %v7072
  %7096 = vmatprep.subr.bf16.mxu0 0
  %7097 = vmatpush1.bf16.msra.mxu0 %v7073
  %7098 = vmatprep.subr.bf16.mxu0 0
  %7099 = vmatpush1.bf16.msra.mxu0 0
  %7100 = vmatprep.subr.bf16.mxu0 0
  %7101 = vmatpush1.bf16.msra.mxu0 0
  %7102 = vmatprep.subr.bf16.mxu0 0
  %7103 = vmatpush1.bf16.msra.mxu0 0
  %7104 = vmatprep.subr.bf16.mxu0 0
  %7105 = vmatpush1.bf16.msra.mxu0 0
  %7106 = vmatprep.subr.bf16.mxu0 0
  %7107 = vmatpush1.bf16.msra.mxu0 0
  %7108 = vmatprep.subr.bf16.mxu0 0
  %7109 = vmatpush1.bf16.msra.mxu0 0
  %7110 = vmatprep.subr.bf16.mxu0 0
  %7111 = vmatpush1.bf16.msra.mxu0 0
  %7112 = vmatprep.subr.bf16.mxu0 0
  %7113 = vmatpush1.bf16.msra.mxu0 0
  %7114 = vmatprep.mubr.bf16.mxu0 0
  %7115 = vmatmul.mubr.bf16.gmra.mrb[0].mxu0 %v5315
  %v7116 = vpop.f32.mrb[0].mxu0
  %v7117 = vadd.f32 0.0, %v7116
  %v7118 = vpop.f32.mrb[0].mxu0
  %v7119 = vpop.f32.mrb[0].mxu0
  %v7120 = vadd.f32 0.0, %v7119
  %v7121 = vpop.f32.mrb[0].mxu0
  %7122 = vmatprep.mubr.bf16.mxu0 0
  %7123 = vmatmul.mubr.bf16.gmra.mrb[0].mxu0 %v5317
  %v7124 = vpop.f32.mrb[0].mxu0
  %v7125 = vadd.f32 0.0, %v7124
  %v7126 = vpop.f32.mrb[0].mxu0
  %v7127 = vpop.f32.mrb[0].mxu0
  %v7128 = vadd.f32 0.0, %v7127
  %v7129 = vpop.f32.mrb[0].mxu0
  %7130 = vmatprep.mubr.bf16.mxu0 0
  %7131 = vmatmul.mubr.bf16.gmra.mrb[0].mxu0 %v5319
  %v7132 = vpop.f32.mrb[0].mxu0
  %v7133 = vadd.f32 0.0, %v7132
  %v7134 = vpop.f32.mrb[0].mxu0
  %v7135 = vpop.f32.mrb[0].mxu0
  %v7136 = vadd.f32 0.0, %v7135
  %v7137 = vpop.f32.mrb[0].mxu0
  %7138 = vmatprep.mubr.bf16.mxu0 0
  %7139 = vmatmul.mubr.bf16.gmra.mrb[0].mxu0 %v5331
  %v7140 = vpop.f32.mrb[0].mxu0
  %v7141 = vadd.f32 0.0, %v7140
  %v7142 = vpop.f32.mrb[0].mxu0
  %v7143 = vpop.f32.mrb[0].mxu0
  %v7144 = vadd.f32 0.0, %v7143
  %v7145 = vpop.f32.mrb[0].mxu0
  %7146 = vmatprep.mubr.bf16.mxu0 0
  %7147 = vmatmul.mubr.bf16.gmra.mrb[0].mxu0 %v5333
  %v7148 = vpop.f32.mrb[0].mxu0
  %v7149 = vadd.f32 0.0, %v7148
  %v7150 = vpop.f32.mrb[0].mxu0
  %v7151 = vpop.f32.mrb[0].mxu0
  %v7152 = vadd.f32 0.0, %v7151
  %v7153 = vpop.f32.mrb[0].mxu0
  %7154 = vmatprep.mubr.bf16.mxu0 0
  %7155 = vmatmul.mubr.bf16.gmra.mrb[0].mxu0 %v5335
  %v7156 = vpop.f32.mrb[0].mxu0
  %v7157 = vadd.f32 0.0, %v7156
  %v7158 = vpop.f32.mrb[0].mxu0
  %v7159 = vpop.f32.mrb[0].mxu0
  %v7160 = vadd.f32 0.0, %v7159
  %v7161 = vpop.f32.mrb[0].mxu0
  %7162 = vmatprep.mubr.bf16.mxu0 0
  %7163 = vmatmul.mubr.bf16.gmra.mrb[0].mxu0 %v5347
  %v7164 = vpop.f32.mrb[0].mxu0
  %v7165 = vadd.f32 0.0, %v7164
  %v7166 = vpop.f32.mrb[0].mxu0
  %v7167 = vpop.f32.mrb[0].mxu0
  %v7168 = vadd.f32 0.0, %v7167
  %v7169 = vpop.f32.mrb[0].mxu0
  %7170 = vmatprep.mubr.bf16.mxu0 0
  %7171 = vmatmul.mubr.bf16.gmra.mrb[0].mxu0 %v5349
  %v7172 = vpop.f32.mrb[0].mxu0
  %v7173 = vadd.f32 0.0, %v7172
  %v7174 = vpop.f32.mrb[0].mxu0
  %v7175 = vpop.f32.mrb[0].mxu0
  %v7176 = vadd.f32 0.0, %v7175
  %v7177 = vpop.f32.mrb[0].mxu0
  %7178 = vmatprep.mubr.bf16.mxu0 0
  %7179 = vmatmul.mubr.bf16.gmra.mrb[0].mxu0 %v5351
  %v7180 = vpop.f32.mrb[0].mxu0
  %v7181 = vadd.f32 0.0, %v7180
  %v7182 = vpop.f32.mrb[0].mxu0
  %v7183 = vpop.f32.mrb[0].mxu0
  %v7184 = vadd.f32 0.0, %v7183
  %v7185 = vpop.f32.mrb[0].mxu0
  %7186 = vdwg.mxu0
  %v7187 = vadd.f32 %v6999, %v7117
  %v7188 = vadd.f32 %v7000, %v7120
  %v7189 = vadd.f32 %v7001, %v7125
  %v7190 = vadd.f32 %v7002, %v7128
  %v7191 = vadd.f32 %v7003, %v7133
  %v7192 = vadd.f32 %v7004, %v7136
  %v7193 = vadd.f32 %v7005, %v7141
  %v7194 = vadd.f32 %v7006, %v7144
  %v7195 = vadd.f32 %v7007, %v7149
  %v7196 = vadd.f32 %v7008, %v7152
  %v7197 = vadd.f32 %v7009, %v7157
  %v7198 = vadd.f32 %v7010, %v7160
  %v7199 = vadd.f32 %v7011, %v7165
  %v7200 = vadd.f32 %v7012, %v7168
  %v7201 = vadd.f32 %v7013, %v7173
  %v7202 = vadd.f32 %v7014, %v7176
  %v7203 = vadd.f32 %v7015, %v7181
  %v7204 = vadd.f32 %v7016, %v7184
  %s7205 = scalar_lea.vmem %s2, 640
  %v7206 = vld [vmem:[%s7205] sm:$0xf]
  %v7207 = vld [vmem:[%s7205 + $0x4] sm:$0xf]
  %v7208 = vld [vmem:[%s7205 + $0x8] sm:$0xf]
  %v7209 = vld [vmem:[%s7205 + $0xc] sm:$0xf]
  %v7210 = vld [vmem:[%s7205 + $0x10] sm:$0xf]
  %v7211 = vld [vmem:[%s7205 + $0x14] sm:$0xf]
  %v7212 = vld [vmem:[%s7205 + $0x18] sm:$0xf]
  %v7213 = vld [vmem:[%s7205 + $0x1c] sm:$0xf]
  %v7214 = vld [vmem:[%s7205 + $0x20] sm:$0xf]
  %v7215 = vld [vmem:[%s7205 + $0x24] sm:$0xf]
  %v7216 = vld [vmem:[%s7205 + $0x28] sm:$0xf]
  %v7217 = vld [vmem:[%s7205 + $0x2c] sm:$0xf]
  %v7218 = vld [vmem:[%s7205 + $0x30] sm:$0xf]
  %v7219 = vld [vmem:[%s7205 + $0x34] sm:$0xf]
  %v7220 = vld [vmem:[%s7205 + $0x38] sm:$0xf]
  %v7221 = vld [vmem:[%s7205 + $0x3c] sm:$0xf]
  %v7238 = vunpack.c.l.b16 %v7206
  %v7239 = vunpack.c.l.b16 %v7207
  %v7240 = vunpack.c.l.b16 %v7208
  %v7241 = vunpack.c.l.b16 %v7209
  %v7242 = vunpack.c.l.b16 %v7210
  %v7243 = vunpack.c.l.b16 %v7211
  %v7244 = vunpack.c.l.b16 %v7212
  %v7245 = vunpack.c.l.b16 %v7213
  %v7246 = vunpack.c.l.b16 %v7214
  %v7247 = vunpack.c.l.b16 %v7215
  %v7248 = vunpack.c.l.b16 %v7216
  %v7249 = vunpack.c.l.b16 %v7217
  %v7250 = vunpack.c.l.b16 %v7218
  %v7251 = vunpack.c.l.b16 %v7219
  %v7252 = vunpack.c.l.b16 %v7220
  %v7253 = vunpack.c.l.b16 %v7221
  %v7254 = vpack.c.b16 %v7239, %v7238
  %v7255 = vpack.c.b16 %v7241, %v7240
  %v7256 = vpack.c.b16 %v7243, %v7242
  %v7257 = vpack.c.b16 %v7245, %v7244
  %v7258 = vpack.c.b16 %v7247, %v7246
  %v7259 = vpack.c.b16 %v7249, %v7248
  %v7260 = vpack.c.b16 %v7251, %v7250
  %v7261 = vpack.c.b16 %v7253, %v7252
  %7270 = vmatprep.subr.bf16.mxu0 0
  %7271 = vmatpush1.bf16.msra.mxu0 %v7254
  %7272 = vmatprep.subr.bf16.mxu0 0
  %7273 = vmatpush1.bf16.msra.mxu0 %v7255
  %7274 = vmatprep.subr.bf16.mxu0 0
  %7275 = vmatpush1.bf16.msra.mxu0 %v7256
  %7276 = vmatprep.subr.bf16.mxu0 0
  %7277 = vmatpush1.bf16.msra.mxu0 %v7257
  %7278 = vmatprep.subr.bf16.mxu0 0
  %7279 = vmatpush1.bf16.msra.mxu0 %v7258
  %7280 = vmatprep.subr.bf16.mxu0 0
  %7281 = vmatpush1.bf16.msra.mxu0 %v7259
  %7282 = vmatprep.subr.bf16.mxu0 0
  %7283 = vmatpush1.bf16.msra.mxu0 %v7260
  %7284 = vmatprep.subr.bf16.mxu0 0
  %7285 = vmatpush1.bf16.msra.mxu0 %v7261
  %7286 = vmatprep.subr.bf16.mxu0 0
  %7287 = vmatpush1.bf16.msra.mxu0 0
  %7288 = vmatprep.subr.bf16.mxu0 0
  %7289 = vmatpush1.bf16.msra.mxu0 0
  %7290 = vmatprep.subr.bf16.mxu0 0
  %7291 = vmatpush1.bf16.msra.mxu0 0
  %7292 = vmatprep.subr.bf16.mxu0 0
  %7293 = vmatpush1.bf16.msra.mxu0 0
  %7294 = vmatprep.subr.bf16.mxu0 0
  %7295 = vmatpush1.bf16.msra.mxu0 0
  %7296 = vmatprep.subr.bf16.mxu0 0
  %7297 = vmatpush1.bf16.msra.mxu0 0
  %7298 = vmatprep.subr.bf16.mxu0 0
  %7299 = vmatpush1.bf16.msra.mxu0 0
  %7300 = vmatprep.subr.bf16.mxu0 0
  %7301 = vmatpush1.bf16.msra.mxu0 0
  %7302 = vmatprep.mubr.bf16.mxu0 0
  %7303 = vmatmul.mubr.bf16.gmra.mrb[0].mxu0 %v5316
  %v7304 = vpop.f32.mrb[0].mxu0
  %v7305 = vadd.f32 0.0, %v7304
  %v7306 = vpop.f32.mrb[0].mxu0
  %v7307 = vpop.f32.mrb[0].mxu0
  %v7308 = vadd.f32 0.0, %v7307
  %v7309 = vpop.f32.mrb[0].mxu0
  %7310 = vmatprep.mubr.bf16.mxu0 0
  %7311 = vmatmul.mubr.bf16.gmra.mrb[0].mxu0 %v5318
  %v7312 = vpop.f32.mrb[0].mxu0
  %v7313 = vadd.f32 0.0, %v7312
  %v7314 = vpop.f32.mrb[0].mxu0
  %v7315 = vpop.f32.mrb[0].mxu0
  %v7316 = vadd.f32 0.0, %v7315
  %v7317 = vpop.f32.mrb[0].mxu0
  %7318 = vmatprep.mubr.bf16.mxu0 0
  %7319 = vmatmul.mubr.bf16.gmra.mrb[0].mxu0 %v5320
  %v7320 = vpop.f32.mrb[0].mxu0
  %v7321 = vadd.f32 0.0, %v7320
  %v7322 = vpop.f32.mrb[0].mxu0
  %v7323 = vpop.f32.mrb[0].mxu0
  %v7324 = vadd.f32 0.0, %v7323
  %v7325 = vpop.f32.mrb[0].mxu0
  %7326 = vmatprep.mubr.bf16.mxu0 0
  %7327 = vmatmul.mubr.bf16.gmra.mrb[0].mxu0 %v5332
  %v7328 = vpop.f32.mrb[0].mxu0
  %v7329 = vadd.f32 0.0, %v7328
  %v7330 = vpop.f32.mrb[0].mxu0
  %v7331 = vpop.f32.mrb[0].mxu0
  %v7332 = vadd.f32 0.0, %v7331
  %v7333 = vpop.f32.mrb[0].mxu0
  %7334 = vmatprep.mubr.bf16.mxu0 0
  %7335 = vmatmul.mubr.bf16.gmra.mrb[0].mxu0 %v5334
  %v7336 = vpop.f32.mrb[0].mxu0
  %v7337 = vadd.f32 0.0, %v7336
  %v7338 = vpop.f32.mrb[0].mxu0
  %v7339 = vpop.f32.mrb[0].mxu0
  %v7340 = vadd.f32 0.0, %v7339
  %v7341 = vpop.f32.mrb[0].mxu0
  %7342 = vmatprep.mubr.bf16.mxu0 0
  %7343 = vmatmul.mubr.bf16.gmra.mrb[0].mxu0 %v5336
  %v7344 = vpop.f32.mrb[0].mxu0
  %v7345 = vadd.f32 0.0, %v7344
  %v7346 = vpop.f32.mrb[0].mxu0
  %v7347 = vpop.f32.mrb[0].mxu0
  %v7348 = vadd.f32 0.0, %v7347
  %v7349 = vpop.f32.mrb[0].mxu0
  %7350 = vmatprep.mubr.bf16.mxu0 0
  %7351 = vmatmul.mubr.bf16.gmra.mrb[0].mxu0 %v5348
  %v7352 = vpop.f32.mrb[0].mxu0
  %v7353 = vadd.f32 0.0, %v7352
  %v7354 = vpop.f32.mrb[0].mxu0
  %v7355 = vpop.f32.mrb[0].mxu0
  %v7356 = vadd.f32 0.0, %v7355
  %v7357 = vpop.f32.mrb[0].mxu0
  %7358 = vmatprep.mubr.bf16.mxu0 0
  %7359 = vmatmul.mubr.bf16.gmra.mrb[0].mxu0 %v5350
  %v7360 = vpop.f32.mrb[0].mxu0
  %v7361 = vadd.f32 0.0, %v7360
  %v7362 = vpop.f32.mrb[0].mxu0
  %v7363 = vpop.f32.mrb[0].mxu0
  %v7364 = vadd.f32 0.0, %v7363
  %v7365 = vpop.f32.mrb[0].mxu0
  %7366 = vmatprep.mubr.bf16.mxu0 0
  %7367 = vmatmul.mubr.bf16.gmra.mrb[0].mxu0 %v5352
  %v7368 = vpop.f32.mrb[0].mxu0
  %v7369 = vadd.f32 0.0, %v7368
  %v7370 = vpop.f32.mrb[0].mxu0
  %v7371 = vpop.f32.mrb[0].mxu0
  %v7372 = vadd.f32 0.0, %v7371
  %v7373 = vpop.f32.mrb[0].mxu0
  %7374 = vdwg.mxu0
  %v7375 = vadd.f32 %v7187, %v7305
  %v7376 = vadd.f32 %v7188, %v7308
  %v7377 = vadd.f32 %v7189, %v7313
  %v7378 = vadd.f32 %v7190, %v7316
  %v7379 = vadd.f32 %v7191, %v7321
  %v7380 = vadd.f32 %v7192, %v7324
  %v7381 = vadd.f32 %v7193, %v7329
  %v7382 = vadd.f32 %v7194, %v7332
  %v7383 = vadd.f32 %v7195, %v7337
  %v7384 = vadd.f32 %v7196, %v7340
  %v7385 = vadd.f32 %v7197, %v7345
  %v7386 = vadd.f32 %v7198, %v7348
  %v7387 = vadd.f32 %v7199, %v7353
  %v7388 = vadd.f32 %v7200, %v7356
  %v7389 = vadd.f32 %v7201, %v7361
  %v7390 = vadd.f32 %v7202, %v7364
  %v7391 = vadd.f32 %v7203, %v7369
  %v7392 = vadd.f32 %v7204, %v7372
  %s7393 = scalar_lea.vmem %s2, 704
  %v7394 = vld [vmem:[%s7393] sm:$0xf]
  %v7395 = vld [vmem:[%s7393 + $0x4] sm:$0xf]
  %v7396 = vld [vmem:[%s7393 + $0x8] sm:$0xf]
  %v7397 = vld [vmem:[%s7393 + $0xc] sm:$0xf]
  %v7398 = vld [vmem:[%s7393 + $0x10] sm:$0xf]
  %v7399 = vld [vmem:[%s7393 + $0x14] sm:$0xf]
  %v7400 = vld [vmem:[%s7393 + $0x18] sm:$0xf]
  %v7401 = vld [vmem:[%s7393 + $0x1c] sm:$0xf]
  %v7402 = vld [vmem:[%s7393 + $0x20] sm:$0xf]
  %v7403 = vld [vmem:[%s7393 + $0x24] sm:$0xf]
  %v7404 = vld [vmem:[%s7393 + $0x28] sm:$0xf]
  %v7405 = vld [vmem:[%s7393 + $0x2c] sm:$0xf]
  %v7406 = vld [vmem:[%s7393 + $0x30] sm:$0xf]
  %v7407 = vld [vmem:[%s7393 + $0x34] sm:$0xf]
  %v7408 = vld [vmem:[%s7393 + $0x38] sm:$0xf]
  %v7409 = vld [vmem:[%s7393 + $0x3c] sm:$0xf]
  %v7426 = vunpack.c.l.b16 %v7394
  %v7427 = vunpack.c.l.b16 %v7395
  %v7428 = vunpack.c.l.b16 %v7396
  %v7429 = vunpack.c.l.b16 %v7397
  %v7430 = vunpack.c.l.b16 %v7398
  %v7431 = vunpack.c.l.b16 %v7399
  %v7432 = vunpack.c.l.b16 %v7400
  %v7433 = vunpack.c.l.b16 %v7401
  %v7434 = vunpack.c.l.b16 %v7402
  %v7435 = vunpack.c.l.b16 %v7403
  %v7436 = vunpack.c.l.b16 %v7404
  %v7437 = vunpack.c.l.b16 %v7405
  %v7438 = vunpack.c.l.b16 %v7406
  %v7439 = vunpack.c.l.b16 %v7407
  %v7440 = vunpack.c.l.b16 %v7408
  %v7441 = vunpack.c.l.b16 %v7409
  %v7442 = vpack.c.b16 %v7427, %v7426
  %v7443 = vpack.c.b16 %v7429, %v7428
  %v7444 = vpack.c.b16 %v7431, %v7430
  %v7445 = vpack.c.b16 %v7433, %v7432
  %v7446 = vpack.c.b16 %v7435, %v7434
  %v7447 = vpack.c.b16 %v7437, %v7436
  %v7448 = vpack.c.b16 %v7439, %v7438
  %v7449 = vpack.c.b16 %v7441, %v7440
  %7458 = vmatprep.subr.bf16.mxu0 0
  %7459 = vmatpush1.bf16.msra.mxu0 %v7442
  %7460 = vmatprep.subr.bf16.mxu0 0
  %7461 = vmatpush1.bf16.msra.mxu0 %v7443
  %7462 = vmatprep.subr.bf16.mxu0 0
  %7463 = vmatpush1.bf16.msra.mxu0 %v7444
  %7464 = vmatprep.subr.bf16.mxu0 0
  %7465 = vmatpush1.bf16.msra.mxu0 %v7445
  %7466 = vmatprep.subr.bf16.mxu0 0
  %7467 = vmatpush1.bf16.msra.mxu0 %v7446
  %7468 = vmatprep.subr.bf16.mxu0 0
  %7469 = vmatpush1.bf16.msra.mxu0 %v7447
  %7470 = vmatprep.subr.bf16.mxu0 0
  %7471 = vmatpush1.bf16.msra.mxu0 %v7448
  %7472 = vmatprep.subr.bf16.mxu0 0
  %7473 = vmatpush1.bf16.msra.mxu0 %v7449
  %7474 = vmatprep.subr.bf16.mxu0 0
  %7475 = vmatpush1.bf16.msra.mxu0 0
  %7476 = vmatprep.subr.bf16.mxu0 0
  %7477 = vmatpush1.bf16.msra.mxu0 0
  %7478 = vmatprep.subr.bf16.mxu0 0
  %7479 = vmatpush1.bf16.msra.mxu0 0
  %7480 = vmatprep.subr.bf16.mxu0 0
  %7481 = vmatpush1.bf16.msra.mxu0 0
  %7482 = vmatprep.subr.bf16.mxu0 0
  %7483 = vmatpush1.bf16.msra.mxu0 0
  %7484 = vmatprep.subr.bf16.mxu0 0
  %7485 = vmatpush1.bf16.msra.mxu0 0
  %7486 = vmatprep.subr.bf16.mxu0 0
  %7487 = vmatpush1.bf16.msra.mxu0 0
  %7488 = vmatprep.subr.bf16.mxu0 0
  %7489 = vmatpush1.bf16.msra.mxu0 0
  %7490 = vmatprep.mubr.bf16.mxu0 0
  %7491 = vmatmul.mubr.bf16.gmra.mrb[0].mxu0 %v5317
  %v7492 = vpop.f32.mrb[0].mxu0
  %v7493 = vadd.f32 0.0, %v7492
  %v7494 = vpop.f32.mrb[0].mxu0
  %v7495 = vpop.f32.mrb[0].mxu0
  %v7496 = vadd.f32 0.0, %v7495
  %v7497 = vpop.f32.mrb[0].mxu0
  %7498 = vmatprep.mubr.bf16.mxu0 0
  %7499 = vmatmul.mubr.bf16.gmra.mrb[0].mxu0 %v5319
  %v7500 = vpop.f32.mrb[0].mxu0
  %v7501 = vadd.f32 0.0, %v7500
  %v7502 = vpop.f32.mrb[0].mxu0
  %v7503 = vpop.f32.mrb[0].mxu0
  %v7504 = vadd.f32 0.0, %v7503
  %v7505 = vpop.f32.mrb[0].mxu0
  %7506 = vmatprep.mubr.bf16.mxu0 0
  %7507 = vmatmul.mubr.bf16.gmra.mrb[0].mxu0 %v5321
  %v7508 = vpop.f32.mrb[0].mxu0
  %v7509 = vadd.f32 0.0, %v7508
  %v7510 = vpop.f32.mrb[0].mxu0
  %v7511 = vpop.f32.mrb[0].mxu0
  %v7512 = vadd.f32 0.0, %v7511
  %v7513 = vpop.f32.mrb[0].mxu0
  %7514 = vmatprep.mubr.bf16.mxu0 0
  %7515 = vmatmul.mubr.bf16.gmra.mrb[0].mxu0 %v5333
  %v7516 = vpop.f32.mrb[0].mxu0
  %v7517 = vadd.f32 0.0, %v7516
  %v7518 = vpop.f32.mrb[0].mxu0
  %v7519 = vpop.f32.mrb[0].mxu0
  %v7520 = vadd.f32 0.0, %v7519
  %v7521 = vpop.f32.mrb[0].mxu0
  %7522 = vmatprep.mubr.bf16.mxu0 0
  %7523 = vmatmul.mubr.bf16.gmra.mrb[0].mxu0 %v5335
  %v7524 = vpop.f32.mrb[0].mxu0
  %v7525 = vadd.f32 0.0, %v7524
  %v7526 = vpop.f32.mrb[0].mxu0
  %v7527 = vpop.f32.mrb[0].mxu0
  %v7528 = vadd.f32 0.0, %v7527
  %v7529 = vpop.f32.mrb[0].mxu0
  %7530 = vmatprep.mubr.bf16.mxu0 0
  %7531 = vmatmul.mubr.bf16.gmra.mrb[0].mxu0 %v5337
  %v7532 = vpop.f32.mrb[0].mxu0
  %v7533 = vadd.f32 0.0, %v7532
  %v7534 = vpop.f32.mrb[0].mxu0
  %v7535 = vpop.f32.mrb[0].mxu0
  %v7536 = vadd.f32 0.0, %v7535
  %v7537 = vpop.f32.mrb[0].mxu0
  %7538 = vmatprep.mubr.bf16.mxu0 0
  %7539 = vmatmul.mubr.bf16.gmra.mrb[0].mxu0 %v5349
  %v7540 = vpop.f32.mrb[0].mxu0
  %v7541 = vadd.f32 0.0, %v7540
  %v7542 = vpop.f32.mrb[0].mxu0
  %v7543 = vpop.f32.mrb[0].mxu0
  %v7544 = vadd.f32 0.0, %v7543
  %v7545 = vpop.f32.mrb[0].mxu0
  %7546 = vmatprep.mubr.bf16.mxu0 0
  %7547 = vmatmul.mubr.bf16.gmra.mrb[0].mxu0 %v5351
  %v7548 = vpop.f32.mrb[0].mxu0
  %v7549 = vadd.f32 0.0, %v7548
  %v7550 = vpop.f32.mrb[0].mxu0
  %v7551 = vpop.f32.mrb[0].mxu0
  %v7552 = vadd.f32 0.0, %v7551
  %v7553 = vpop.f32.mrb[0].mxu0
  %7554 = vmatprep.mubr.bf16.mxu0 0
  %7555 = vmatmul.mubr.bf16.gmra.mrb[0].mxu0 %v5353
  %v7556 = vpop.f32.mrb[0].mxu0
  %v7557 = vadd.f32 0.0, %v7556
  %v7558 = vpop.f32.mrb[0].mxu0
  %v7559 = vpop.f32.mrb[0].mxu0
  %v7560 = vadd.f32 0.0, %v7559
  %v7561 = vpop.f32.mrb[0].mxu0
  %7562 = vdwg.mxu0
  %v7563 = vadd.f32 %v7375, %v7493
  %v7564 = vadd.f32 %v7376, %v7496
  %v7565 = vadd.f32 %v7377, %v7501
  %v7566 = vadd.f32 %v7378, %v7504
  %v7567 = vadd.f32 %v7379, %v7509
  %v7568 = vadd.f32 %v7380, %v7512
  %v7569 = vadd.f32 %v7381, %v7517
  %v7570 = vadd.f32 %v7382, %v7520
  %v7571 = vadd.f32 %v7383, %v7525
  %v7572 = vadd.f32 %v7384, %v7528
  %v7573 = vadd.f32 %v7385, %v7533
  %v7574 = vadd.f32 %v7386, %v7536
  %v7575 = vadd.f32 %v7387, %v7541
  %v7576 = vadd.f32 %v7388, %v7544
  %v7577 = vadd.f32 %v7389, %v7549
  %v7578 = vadd.f32 %v7390, %v7552
  %v7579 = vadd.f32 %v7391, %v7557
  %v7580 = vadd.f32 %v7392, %v7560
  %s7581 = scalar_lea.vmem %s2, 768
  %v7582 = vld [vmem:[%s7581] sm:$0xf]
  %v7583 = vld [vmem:[%s7581 + $0x4] sm:$0xf]
  %v7584 = vld [vmem:[%s7581 + $0x8] sm:$0xf]
  %v7585 = vld [vmem:[%s7581 + $0xc] sm:$0xf]
  %v7586 = vld [vmem:[%s7581 + $0x10] sm:$0xf]
  %v7587 = vld [vmem:[%s7581 + $0x14] sm:$0xf]
  %v7588 = vld [vmem:[%s7581 + $0x18] sm:$0xf]
  %v7589 = vld [vmem:[%s7581 + $0x1c] sm:$0xf]
  %v7590 = vld [vmem:[%s7581 + $0x20] sm:$0xf]
  %v7591 = vld [vmem:[%s7581 + $0x24] sm:$0xf]
  %v7592 = vld [vmem:[%s7581 + $0x28] sm:$0xf]
  %v7593 = vld [vmem:[%s7581 + $0x2c] sm:$0xf]
  %v7594 = vld [vmem:[%s7581 + $0x30] sm:$0xf]
  %v7595 = vld [vmem:[%s7581 + $0x34] sm:$0xf]
  %v7596 = vld [vmem:[%s7581 + $0x38] sm:$0xf]
  %v7597 = vld [vmem:[%s7581 + $0x3c] sm:$0xf]
  %v7614 = vunpack.c.l.b16 %v7582
  %v7615 = vunpack.c.l.b16 %v7583
  %v7616 = vunpack.c.l.b16 %v7584
  %v7617 = vunpack.c.l.b16 %v7585
  %v7618 = vunpack.c.l.b16 %v7586
  %v7619 = vunpack.c.l.b16 %v7587
  %v7620 = vunpack.c.l.b16 %v7588
  %v7621 = vunpack.c.l.b16 %v7589
  %v7622 = vunpack.c.l.b16 %v7590
  %v7623 = vunpack.c.l.b16 %v7591
  %v7624 = vunpack.c.l.b16 %v7592
  %v7625 = vunpack.c.l.b16 %v7593
  %v7626 = vunpack.c.l.b16 %v7594
  %v7627 = vunpack.c.l.b16 %v7595
  %v7628 = vunpack.c.l.b16 %v7596
  %v7629 = vunpack.c.l.b16 %v7597
  %v7630 = vpack.c.b16 %v7615, %v7614
  %v7631 = vpack.c.b16 %v7617, %v7616
  %v7632 = vpack.c.b16 %v7619, %v7618
  %v7633 = vpack.c.b16 %v7621, %v7620
  %v7634 = vpack.c.b16 %v7623, %v7622
  %v7635 = vpack.c.b16 %v7625, %v7624
  %v7636 = vpack.c.b16 %v7627, %v7626
  %v7637 = vpack.c.b16 %v7629, %v7628
  %7646 = vmatprep.subr.bf16.mxu0 0
  %7647 = vmatpush1.bf16.msra.mxu0 %v7630
  %7648 = vmatprep.subr.bf16.mxu0 0
  %7649 = vmatpush1.bf16.msra.mxu0 %v7631
  %7650 = vmatprep.subr.bf16.mxu0 0
  %7651 = vmatpush1.bf16.msra.mxu0 %v7632
  %7652 = vmatprep.subr.bf16.mxu0 0
  %7653 = vmatpush1.bf16.msra.mxu0 %v7633
  %7654 = vmatprep.subr.bf16.mxu0 0
  %7655 = vmatpush1.bf16.msra.mxu0 %v7634
  %7656 = vmatprep.subr.bf16.mxu0 0
  %7657 = vmatpush1.bf16.msra.mxu0 %v7635
  %7658 = vmatprep.subr.bf16.mxu0 0
  %7659 = vmatpush1.bf16.msra.mxu0 %v7636
  %7660 = vmatprep.subr.bf16.mxu0 0
  %7661 = vmatpush1.bf16.msra.mxu0 %v7637
  %7662 = vmatprep.subr.bf16.mxu0 0
  %7663 = vmatpush1.bf16.msra.mxu0 0
  %7664 = vmatprep.subr.bf16.mxu0 0
  %7665 = vmatpush1.bf16.msra.mxu0 0
  %7666 = vmatprep.subr.bf16.mxu0 0
  %7667 = vmatpush1.bf16.msra.mxu0 0
  %7668 = vmatprep.subr.bf16.mxu0 0
  %7669 = vmatpush1.bf16.msra.mxu0 0
  %7670 = vmatprep.subr.bf16.mxu0 0
  %7671 = vmatpush1.bf16.msra.mxu0 0
  %7672 = vmatprep.subr.bf16.mxu0 0
  %7673 = vmatpush1.bf16.msra.mxu0 0
  %7674 = vmatprep.subr.bf16.mxu0 0
  %7675 = vmatpush1.bf16.msra.mxu0 0
  %7676 = vmatprep.subr.bf16.mxu0 0
  %7677 = vmatpush1.bf16.msra.mxu0 0
  %7678 = vmatprep.mubr.bf16.mxu0 0
  %7679 = vmatmul.mubr.bf16.gmra.mrb[0].mxu0 %v5322
  %v7680 = vpop.f32.mrb[0].mxu0
  %v7681 = vadd.f32 0.0, %v7680
  %v7682 = vpop.f32.mrb[0].mxu0
  %v7683 = vpop.f32.mrb[0].mxu0
  %v7684 = vadd.f32 0.0, %v7683
  %v7685 = vpop.f32.mrb[0].mxu0
  %7686 = vmatprep.mubr.bf16.mxu0 0
  %7687 = vmatmul.mubr.bf16.gmra.mrb[0].mxu0 %v5324
  %v7688 = vpop.f32.mrb[0].mxu0
  %v7689 = vadd.f32 0.0, %v7688
  %v7690 = vpop.f32.mrb[0].mxu0
  %v7691 = vpop.f32.mrb[0].mxu0
  %v7692 = vadd.f32 0.0, %v7691
  %v7693 = vpop.f32.mrb[0].mxu0
  %7694 = vmatprep.mubr.bf16.mxu0 0
  %7695 = vmatmul.mubr.bf16.gmra.mrb[0].mxu0 %v5326
  %v7696 = vpop.f32.mrb[0].mxu0
  %v7697 = vadd.f32 0.0, %v7696
  %v7698 = vpop.f32.mrb[0].mxu0
  %v7699 = vpop.f32.mrb[0].mxu0
  %v7700 = vadd.f32 0.0, %v7699
  %v7701 = vpop.f32.mrb[0].mxu0
  %7702 = vmatprep.mubr.bf16.mxu0 0
  %7703 = vmatmul.mubr.bf16.gmra.mrb[0].mxu0 %v5338
  %v7704 = vpop.f32.mrb[0].mxu0
  %v7705 = vadd.f32 0.0, %v7704
  %v7706 = vpop.f32.mrb[0].mxu0
  %v7707 = vpop.f32.mrb[0].mxu0
  %v7708 = vadd.f32 0.0, %v7707
  %v7709 = vpop.f32.mrb[0].mxu0
  %7710 = vmatprep.mubr.bf16.mxu0 0
  %7711 = vmatmul.mubr.bf16.gmra.mrb[0].mxu0 %v5340
  %v7712 = vpop.f32.mrb[0].mxu0
  %v7713 = vadd.f32 0.0, %v7712
  %v7714 = vpop.f32.mrb[0].mxu0
  %v7715 = vpop.f32.mrb[0].mxu0
  %v7716 = vadd.f32 0.0, %v7715
  %v7717 = vpop.f32.mrb[0].mxu0
  %7718 = vmatprep.mubr.bf16.mxu0 0
  %7719 = vmatmul.mubr.bf16.gmra.mrb[0].mxu0 %v5342
  %v7720 = vpop.f32.mrb[0].mxu0
  %v7721 = vadd.f32 0.0, %v7720
  %v7722 = vpop.f32.mrb[0].mxu0
  %v7723 = vpop.f32.mrb[0].mxu0
  %v7724 = vadd.f32 0.0, %v7723
  %v7725 = vpop.f32.mrb[0].mxu0
  %7726 = vmatprep.mubr.bf16.mxu0 0
  %7727 = vmatmul.mubr.bf16.gmra.mrb[0].mxu0 %v5354
  %v7728 = vpop.f32.mrb[0].mxu0
  %v7729 = vadd.f32 0.0, %v7728
  %v7730 = vpop.f32.mrb[0].mxu0
  %v7731 = vpop.f32.mrb[0].mxu0
  %v7732 = vadd.f32 0.0, %v7731
  %v7733 = vpop.f32.mrb[0].mxu0
  %7734 = vmatprep.mubr.bf16.mxu0 0
  %7735 = vmatmul.mubr.bf16.gmra.mrb[0].mxu0 %v5356
  %v7736 = vpop.f32.mrb[0].mxu0
  %v7737 = vadd.f32 0.0, %v7736
  %v7738 = vpop.f32.mrb[0].mxu0
  %v7739 = vpop.f32.mrb[0].mxu0
  %v7740 = vadd.f32 0.0, %v7739
  %v7741 = vpop.f32.mrb[0].mxu0
  %7742 = vmatprep.mubr.bf16.mxu0 0
  %7743 = vmatmul.mubr.bf16.gmra.mrb[0].mxu0 %v5358
  %v7744 = vpop.f32.mrb[0].mxu0
  %v7745 = vadd.f32 0.0, %v7744
  %v7746 = vpop.f32.mrb[0].mxu0
  %v7747 = vpop.f32.mrb[0].mxu0
  %v7748 = vadd.f32 0.0, %v7747
  %v7749 = vpop.f32.mrb[0].mxu0
  %7750 = vdwg.mxu0
  %v7751 = vadd.f32 %v7563, %v7681
  %v7752 = vadd.f32 %v7564, %v7684
  %v7753 = vadd.f32 %v7565, %v7689
  %v7754 = vadd.f32 %v7566, %v7692
  %v7755 = vadd.f32 %v7567, %v7697
  %v7756 = vadd.f32 %v7568, %v7700
  %v7757 = vadd.f32 %v7569, %v7705
  %v7758 = vadd.f32 %v7570, %v7708
  %v7759 = vadd.f32 %v7571, %v7713
  %v7760 = vadd.f32 %v7572, %v7716
  %v7761 = vadd.f32 %v7573, %v7721
  %v7762 = vadd.f32 %v7574, %v7724
  %v7763 = vadd.f32 %v7575, %v7729
  %v7764 = vadd.f32 %v7576, %v7732
  %v7765 = vadd.f32 %v7577, %v7737
  %v7766 = vadd.f32 %v7578, %v7740
  %v7767 = vadd.f32 %v7579, %v7745
  %v7768 = vadd.f32 %v7580, %v7748
  %s7769 = scalar_lea.vmem %s2, 832
  %v7770 = vld [vmem:[%s7769] sm:$0xf]
  %v7771 = vld [vmem:[%s7769 + $0x4] sm:$0xf]
  %v7772 = vld [vmem:[%s7769 + $0x8] sm:$0xf]
  %v7773 = vld [vmem:[%s7769 + $0xc] sm:$0xf]
  %v7774 = vld [vmem:[%s7769 + $0x10] sm:$0xf]
  %v7775 = vld [vmem:[%s7769 + $0x14] sm:$0xf]
  %v7776 = vld [vmem:[%s7769 + $0x18] sm:$0xf]
  %v7777 = vld [vmem:[%s7769 + $0x1c] sm:$0xf]
  %v7778 = vld [vmem:[%s7769 + $0x20] sm:$0xf]
  %v7779 = vld [vmem:[%s7769 + $0x24] sm:$0xf]
  %v7780 = vld [vmem:[%s7769 + $0x28] sm:$0xf]
  %v7781 = vld [vmem:[%s7769 + $0x2c] sm:$0xf]
  %v7782 = vld [vmem:[%s7769 + $0x30] sm:$0xf]
  %v7783 = vld [vmem:[%s7769 + $0x34] sm:$0xf]
  %v7784 = vld [vmem:[%s7769 + $0x38] sm:$0xf]
  %v7785 = vld [vmem:[%s7769 + $0x3c] sm:$0xf]
  %v7802 = vunpack.c.l.b16 %v7770
  %v7803 = vunpack.c.l.b16 %v7771
  %v7804 = vunpack.c.l.b16 %v7772
  %v7805 = vunpack.c.l.b16 %v7773
  %v7806 = vunpack.c.l.b16 %v7774
  %v7807 = vunpack.c.l.b16 %v7775
  %v7808 = vunpack.c.l.b16 %v7776
  %v7809 = vunpack.c.l.b16 %v7777
  %v7810 = vunpack.c.l.b16 %v7778
  %v7811 = vunpack.c.l.b16 %v7779
  %v7812 = vunpack.c.l.b16 %v7780
  %v7813 = vunpack.c.l.b16 %v7781
  %v7814 = vunpack.c.l.b16 %v7782
  %v7815 = vunpack.c.l.b16 %v7783
  %v7816 = vunpack.c.l.b16 %v7784
  %v7817 = vunpack.c.l.b16 %v7785
  %v7818 = vpack.c.b16 %v7803, %v7802
  %v7819 = vpack.c.b16 %v7805, %v7804
  %v7820 = vpack.c.b16 %v7807, %v7806
  %v7821 = vpack.c.b16 %v7809, %v7808
  %v7822 = vpack.c.b16 %v7811, %v7810
  %v7823 = vpack.c.b16 %v7813, %v7812
  %v7824 = vpack.c.b16 %v7815, %v7814
  %v7825 = vpack.c.b16 %v7817, %v7816
  %7834 = vmatprep.subr.bf16.mxu0 0
  %7835 = vmatpush1.bf16.msra.mxu0 %v7818
  %7836 = vmatprep.subr.bf16.mxu0 0
  %7837 = vmatpush1.bf16.msra.mxu0 %v7819
  %7838 = vmatprep.subr.bf16.mxu0 0
  %7839 = vmatpush1.bf16.msra.mxu0 %v7820
  %7840 = vmatprep.subr.bf16.mxu0 0
  %7841 = vmatpush1.bf16.msra.mxu0 %v7821
  %7842 = vmatprep.subr.bf16.mxu0 0
  %7843 = vmatpush1.bf16.msra.mxu0 %v7822
  %7844 = vmatprep.subr.bf16.mxu0 0
  %7845 = vmatpush1.bf16.msra.mxu0 %v7823
  %7846 = vmatprep.subr.bf16.mxu0 0
  %7847 = vmatpush1.bf16.msra.mxu0 %v7824
  %7848 = vmatprep.subr.bf16.mxu0 0
  %7849 = vmatpush1.bf16.msra.mxu0 %v7825
  %7850 = vmatprep.subr.bf16.mxu0 0
  %7851 = vmatpush1.bf16.msra.mxu0 0
  %7852 = vmatprep.subr.bf16.mxu0 0
  %7853 = vmatpush1.bf16.msra.mxu0 0
  %7854 = vmatprep.subr.bf16.mxu0 0
  %7855 = vmatpush1.bf16.msra.mxu0 0
  %7856 = vmatprep.subr.bf16.mxu0 0
  %7857 = vmatpush1.bf16.msra.mxu0 0
  %7858 = vmatprep.subr.bf16.mxu0 0
  %7859 = vmatpush1.bf16.msra.mxu0 0
  %7860 = vmatprep.subr.bf16.mxu0 0
  %7861 = vmatpush1.bf16.msra.mxu0 0
  %7862 = vmatprep.subr.bf16.mxu0 0
  %7863 = vmatpush1.bf16.msra.mxu0 0
  %7864 = vmatprep.subr.bf16.mxu0 0
  %7865 = vmatpush1.bf16.msra.mxu0 0
  %7866 = vmatprep.mubr.bf16.mxu0 0
  %7867 = vmatmul.mubr.bf16.gmra.mrb[0].mxu0 %v5323
  %v7868 = vpop.f32.mrb[0].mxu0
  %v7869 = vadd.f32 0.0, %v7868
  %v7870 = vpop.f32.mrb[0].mxu0
  %v7871 = vpop.f32.mrb[0].mxu0
  %v7872 = vadd.f32 0.0, %v7871
  %v7873 = vpop.f32.mrb[0].mxu0
  %7874 = vmatprep.mubr.bf16.mxu0 0
  %7875 = vmatmul.mubr.bf16.gmra.mrb[0].mxu0 %v5325
  %v7876 = vpop.f32.mrb[0].mxu0
  %v7877 = vadd.f32 0.0, %v7876
  %v7878 = vpop.f32.mrb[0].mxu0
  %v7879 = vpop.f32.mrb[0].mxu0
  %v7880 = vadd.f32 0.0, %v7879
  %v7881 = vpop.f32.mrb[0].mxu0
  %7882 = vmatprep.mubr.bf16.mxu0 0
  %7883 = vmatmul.mubr.bf16.gmra.mrb[0].mxu0 %v5327
  %v7884 = vpop.f32.mrb[0].mxu0
  %v7885 = vadd.f32 0.0, %v7884
  %v7886 = vpop.f32.mrb[0].mxu0
  %v7887 = vpop.f32.mrb[0].mxu0
  %v7888 = vadd.f32 0.0, %v7887
  %v7889 = vpop.f32.mrb[0].mxu0
  %7890 = vmatprep.mubr.bf16.mxu0 0
  %7891 = vmatmul.mubr.bf16.gmra.mrb[0].mxu0 %v5339
  %v7892 = vpop.f32.mrb[0].mxu0
  %v7893 = vadd.f32 0.0, %v7892
  %v7894 = vpop.f32.mrb[0].mxu0
  %v7895 = vpop.f32.mrb[0].mxu0
  %v7896 = vadd.f32 0.0, %v7895
  %v7897 = vpop.f32.mrb[0].mxu0
  %7898 = vmatprep.mubr.bf16.mxu0 0
  %7899 = vmatmul.mubr.bf16.gmra.mrb[0].mxu0 %v5341
  %v7900 = vpop.f32.mrb[0].mxu0
  %v7901 = vadd.f32 0.0, %v7900
  %v7902 = vpop.f32.mrb[0].mxu0
  %v7903 = vpop.f32.mrb[0].mxu0
  %v7904 = vadd.f32 0.0, %v7903
  %v7905 = vpop.f32.mrb[0].mxu0
  %7906 = vmatprep.mubr.bf16.mxu0 0
  %7907 = vmatmul.mubr.bf16.gmra.mrb[0].mxu0 %v5343
  %v7908 = vpop.f32.mrb[0].mxu0
  %v7909 = vadd.f32 0.0, %v7908
  %v7910 = vpop.f32.mrb[0].mxu0
  %v7911 = vpop.f32.mrb[0].mxu0
  %v7912 = vadd.f32 0.0, %v7911
  %v7913 = vpop.f32.mrb[0].mxu0
  %7914 = vmatprep.mubr.bf16.mxu0 0
  %7915 = vmatmul.mubr.bf16.gmra.mrb[0].mxu0 %v5355
  %v7916 = vpop.f32.mrb[0].mxu0
  %v7917 = vadd.f32 0.0, %v7916
  %v7918 = vpop.f32.mrb[0].mxu0
  %v7919 = vpop.f32.mrb[0].mxu0
  %v7920 = vadd.f32 0.0, %v7919
  %v7921 = vpop.f32.mrb[0].mxu0
  %7922 = vmatprep.mubr.bf16.mxu0 0
  %7923 = vmatmul.mubr.bf16.gmra.mrb[0].mxu0 %v5357
  %v7924 = vpop.f32.mrb[0].mxu0
  %v7925 = vadd.f32 0.0, %v7924
  %v7926 = vpop.f32.mrb[0].mxu0
  %v7927 = vpop.f32.mrb[0].mxu0
  %v7928 = vadd.f32 0.0, %v7927
  %v7929 = vpop.f32.mrb[0].mxu0
  %7930 = vmatprep.mubr.bf16.mxu0 0
  %7931 = vmatmul.mubr.bf16.gmra.mrb[0].mxu0 %v5359
  %v7932 = vpop.f32.mrb[0].mxu0
  %v7933 = vadd.f32 0.0, %v7932
  %v7934 = vpop.f32.mrb[0].mxu0
  %v7935 = vpop.f32.mrb[0].mxu0
  %v7936 = vadd.f32 0.0, %v7935
  %v7937 = vpop.f32.mrb[0].mxu0
  %7938 = vdwg.mxu0
  %v7939 = vadd.f32 %v7751, %v7869
  %v7940 = vadd.f32 %v7752, %v7872
  %v7941 = vadd.f32 %v7753, %v7877
  %v7942 = vadd.f32 %v7754, %v7880
  %v7943 = vadd.f32 %v7755, %v7885
  %v7944 = vadd.f32 %v7756, %v7888
  %v7945 = vadd.f32 %v7757, %v7893
  %v7946 = vadd.f32 %v7758, %v7896
  %v7947 = vadd.f32 %v7759, %v7901
  %v7948 = vadd.f32 %v7760, %v7904
  %v7949 = vadd.f32 %v7761, %v7909
  %v7950 = vadd.f32 %v7762, %v7912
  %v7951 = vadd.f32 %v7763, %v7917
  %v7952 = vadd.f32 %v7764, %v7920
  %v7953 = vadd.f32 %v7765, %v7925
  %v7954 = vadd.f32 %v7766, %v7928
  %v7955 = vadd.f32 %v7767, %v7933
  %v7956 = vadd.f32 %v7768, %v7936
  %s7957 = scalar_lea.vmem %s2, 896
  %v7958 = vld [vmem:[%s7957] sm:$0xf]
  %v7959 = vld [vmem:[%s7957 + $0x4] sm:$0xf]
  %v7960 = vld [vmem:[%s7957 + $0x8] sm:$0xf]
  %v7961 = vld [vmem:[%s7957 + $0xc] sm:$0xf]
  %v7962 = vld [vmem:[%s7957 + $0x10] sm:$0xf]
  %v7963 = vld [vmem:[%s7957 + $0x14] sm:$0xf]
  %v7964 = vld [vmem:[%s7957 + $0x18] sm:$0xf]
  %v7965 = vld [vmem:[%s7957 + $0x1c] sm:$0xf]
  %v7966 = vld [vmem:[%s7957 + $0x20] sm:$0xf]
  %v7967 = vld [vmem:[%s7957 + $0x24] sm:$0xf]
  %v7968 = vld [vmem:[%s7957 + $0x28] sm:$0xf]
  %v7969 = vld [vmem:[%s7957 + $0x2c] sm:$0xf]
  %v7970 = vld [vmem:[%s7957 + $0x30] sm:$0xf]
  %v7971 = vld [vmem:[%s7957 + $0x34] sm:$0xf]
  %v7972 = vld [vmem:[%s7957 + $0x38] sm:$0xf]
  %v7973 = vld [vmem:[%s7957 + $0x3c] sm:$0xf]
  %v7990 = vunpack.c.l.b16 %v7958
  %v7991 = vunpack.c.l.b16 %v7959
  %v7992 = vunpack.c.l.b16 %v7960
  %v7993 = vunpack.c.l.b16 %v7961
  %v7994 = vunpack.c.l.b16 %v7962
  %v7995 = vunpack.c.l.b16 %v7963
  %v7996 = vunpack.c.l.b16 %v7964
  %v7997 = vunpack.c.l.b16 %v7965
  %v7998 = vunpack.c.l.b16 %v7966
  %v7999 = vunpack.c.l.b16 %v7967
  %v8000 = vunpack.c.l.b16 %v7968
  %v8001 = vunpack.c.l.b16 %v7969
  %v8002 = vunpack.c.l.b16 %v7970
  %v8003 = vunpack.c.l.b16 %v7971
  %v8004 = vunpack.c.l.b16 %v7972
  %v8005 = vunpack.c.l.b16 %v7973
  %v8006 = vpack.c.b16 %v7991, %v7990
  %v8007 = vpack.c.b16 %v7993, %v7992
  %v8008 = vpack.c.b16 %v7995, %v7994
  %v8009 = vpack.c.b16 %v7997, %v7996
  %v8010 = vpack.c.b16 %v7999, %v7998
  %v8011 = vpack.c.b16 %v8001, %v8000
  %v8012 = vpack.c.b16 %v8003, %v8002
  %v8013 = vpack.c.b16 %v8005, %v8004
  %8022 = vmatprep.subr.bf16.mxu0 0
  %8023 = vmatpush1.bf16.msra.mxu0 %v8006
  %8024 = vmatprep.subr.bf16.mxu0 0
  %8025 = vmatpush1.bf16.msra.mxu0 %v8007
  %8026 = vmatprep.subr.bf16.mxu0 0
  %8027 = vmatpush1.bf16.msra.mxu0 %v8008
  %8028 = vmatprep.subr.bf16.mxu0 0
  %8029 = vmatpush1.bf16.msra.mxu0 %v8009
  %8030 = vmatprep.subr.bf16.mxu0 0
  %8031 = vmatpush1.bf16.msra.mxu0 %v8010
  %8032 = vmatprep.subr.bf16.mxu0 0
  %8033 = vmatpush1.bf16.msra.mxu0 %v8011
  %8034 = vmatprep.subr.bf16.mxu0 0
  %8035 = vmatpush1.bf16.msra.mxu0 %v8012
  %8036 = vmatprep.subr.bf16.mxu0 0
  %8037 = vmatpush1.bf16.msra.mxu0 %v8013
  %8038 = vmatprep.subr.bf16.mxu0 0
  %8039 = vmatpush1.bf16.msra.mxu0 0
  %8040 = vmatprep.subr.bf16.mxu0 0
  %8041 = vmatpush1.bf16.msra.mxu0 0
  %8042 = vmatprep.subr.bf16.mxu0 0
  %8043 = vmatpush1.bf16.msra.mxu0 0
  %8044 = vmatprep.subr.bf16.mxu0 0
  %8045 = vmatpush1.bf16.msra.mxu0 0
  %8046 = vmatprep.subr.bf16.mxu0 0
  %8047 = vmatpush1.bf16.msra.mxu0 0
  %8048 = vmatprep.subr.bf16.mxu0 0
  %8049 = vmatpush1.bf16.msra.mxu0 0
  %8050 = vmatprep.subr.bf16.mxu0 0
  %8051 = vmatpush1.bf16.msra.mxu0 0
  %8052 = vmatprep.subr.bf16.mxu0 0
  %8053 = vmatpush1.bf16.msra.mxu0 0
  %8054 = vmatprep.mubr.bf16.mxu0 0
  %8055 = vmatmul.mubr.bf16.gmra.mrb[0].mxu0 %v5324
  %v8056 = vpop.f32.mrb[0].mxu0
  %v8057 = vadd.f32 0.0, %v8056
  %v8058 = vpop.f32.mrb[0].mxu0
  %v8059 = vpop.f32.mrb[0].mxu0
  %v8060 = vadd.f32 0.0, %v8059
  %v8061 = vpop.f32.mrb[0].mxu0
  %8062 = vmatprep.mubr.bf16.mxu0 0
  %8063 = vmatmul.mubr.bf16.gmra.mrb[0].mxu0 %v5326
  %v8064 = vpop.f32.mrb[0].mxu0
  %v8065 = vadd.f32 0.0, %v8064
  %v8066 = vpop.f32.mrb[0].mxu0
  %v8067 = vpop.f32.mrb[0].mxu0
  %v8068 = vadd.f32 0.0, %v8067
  %v8069 = vpop.f32.mrb[0].mxu0
  %8070 = vmatprep.mubr.bf16.mxu0 0
  %8071 = vmatmul.mubr.bf16.gmra.mrb[0].mxu0 %v5328
  %v8072 = vpop.f32.mrb[0].mxu0
  %v8073 = vadd.f32 0.0, %v8072
  %v8074 = vpop.f32.mrb[0].mxu0
  %v8075 = vpop.f32.mrb[0].mxu0
  %v8076 = vadd.f32 0.0, %v8075
  %v8077 = vpop.f32.mrb[0].mxu0
  %8078 = vmatprep.mubr.bf16.mxu0 0
  %8079 = vmatmul.mubr.bf16.gmra.mrb[0].mxu0 %v5340
  %v8080 = vpop.f32.mrb[0].mxu0
  %v8081 = vadd.f32 0.0, %v8080
  %v8082 = vpop.f32.mrb[0].mxu0
  %v8083 = vpop.f32.mrb[0].mxu0
  %v8084 = vadd.f32 0.0, %v8083
  %v8085 = vpop.f32.mrb[0].mxu0
  %8086 = vmatprep.mubr.bf16.mxu0 0
  %8087 = vmatmul.mubr.bf16.gmra.mrb[0].mxu0 %v5342
  %v8088 = vpop.f32.mrb[0].mxu0
  %v8089 = vadd.f32 0.0, %v8088
  %v8090 = vpop.f32.mrb[0].mxu0
  %v8091 = vpop.f32.mrb[0].mxu0
  %v8092 = vadd.f32 0.0, %v8091
  %v8093 = vpop.f32.mrb[0].mxu0
  %8094 = vmatprep.mubr.bf16.mxu0 0
  %8095 = vmatmul.mubr.bf16.gmra.mrb[0].mxu0 %v5344
  %v8096 = vpop.f32.mrb[0].mxu0
  %v8097 = vadd.f32 0.0, %v8096
  %v8098 = vpop.f32.mrb[0].mxu0
  %v8099 = vpop.f32.mrb[0].mxu0
  %v8100 = vadd.f32 0.0, %v8099
  %v8101 = vpop.f32.mrb[0].mxu0
  %8102 = vmatprep.mubr.bf16.mxu0 0
  %8103 = vmatmul.mubr.bf16.gmra.mrb[0].mxu0 %v5356
  %v8104 = vpop.f32.mrb[0].mxu0
  %v8105 = vadd.f32 0.0, %v8104
  %v8106 = vpop.f32.mrb[0].mxu0
  %v8107 = vpop.f32.mrb[0].mxu0
  %v8108 = vadd.f32 0.0, %v8107
  %v8109 = vpop.f32.mrb[0].mxu0
  %8110 = vmatprep.mubr.bf16.mxu0 0
  %8111 = vmatmul.mubr.bf16.gmra.mrb[0].mxu0 %v5358
  %v8112 = vpop.f32.mrb[0].mxu0
  %v8113 = vadd.f32 0.0, %v8112
  %v8114 = vpop.f32.mrb[0].mxu0
  %v8115 = vpop.f32.mrb[0].mxu0
  %v8116 = vadd.f32 0.0, %v8115
  %v8117 = vpop.f32.mrb[0].mxu0
  %8118 = vmatprep.mubr.bf16.mxu0 0
  %8119 = vmatmul.mubr.bf16.gmra.mrb[0].mxu0 %v5360
  %v8120 = vpop.f32.mrb[0].mxu0
  %v8121 = vadd.f32 0.0, %v8120
  %v8122 = vpop.f32.mrb[0].mxu0
  %v8123 = vpop.f32.mrb[0].mxu0
  %v8124 = vadd.f32 0.0, %v8123
  %v8125 = vpop.f32.mrb[0].mxu0
  %8126 = vdwg.mxu0
  %v8127 = vadd.f32 %v7939, %v8057
  %v8128 = vadd.f32 %v7940, %v8060
  %v8129 = vadd.f32 %v7941, %v8065
  %v8130 = vadd.f32 %v7942, %v8068
  %v8131 = vadd.f32 %v7943, %v8073
  %v8132 = vadd.f32 %v7944, %v8076
  %v8133 = vadd.f32 %v7945, %v8081
  %v8134 = vadd.f32 %v7946, %v8084
  %v8135 = vadd.f32 %v7947, %v8089
  %v8136 = vadd.f32 %v7948, %v8092
  %v8137 = vadd.f32 %v7949, %v8097
  %v8138 = vadd.f32 %v7950, %v8100
  %v8139 = vadd.f32 %v7951, %v8105
  %v8140 = vadd.f32 %v7952, %v8108
  %v8141 = vadd.f32 %v7953, %v8113
  %v8142 = vadd.f32 %v7954, %v8116
  %v8143 = vadd.f32 %v7955, %v8121
  %v8144 = vadd.f32 %v7956, %v8124
  %s8145 = scalar_lea.vmem %s2, 960
  %v8146 = vld [vmem:[%s8145] sm:$0xf]
  %v8147 = vld [vmem:[%s8145 + $0x4] sm:$0xf]
  %v8148 = vld [vmem:[%s8145 + $0x8] sm:$0xf]
  %v8149 = vld [vmem:[%s8145 + $0xc] sm:$0xf]
  %v8150 = vld [vmem:[%s8145 + $0x10] sm:$0xf]
  %v8151 = vld [vmem:[%s8145 + $0x14] sm:$0xf]
  %v8152 = vld [vmem:[%s8145 + $0x18] sm:$0xf]
  %v8153 = vld [vmem:[%s8145 + $0x1c] sm:$0xf]
  %v8154 = vld [vmem:[%s8145 + $0x20] sm:$0xf]
  %v8155 = vld [vmem:[%s8145 + $0x24] sm:$0xf]
  %v8156 = vld [vmem:[%s8145 + $0x28] sm:$0xf]
  %v8157 = vld [vmem:[%s8145 + $0x2c] sm:$0xf]
  %v8158 = vld [vmem:[%s8145 + $0x30] sm:$0xf]
  %v8159 = vld [vmem:[%s8145 + $0x34] sm:$0xf]
  %v8160 = vld [vmem:[%s8145 + $0x38] sm:$0xf]
  %v8161 = vld [vmem:[%s8145 + $0x3c] sm:$0xf]
  %v8178 = vunpack.c.l.b16 %v8146
  %v8179 = vunpack.c.l.b16 %v8147
  %v8180 = vunpack.c.l.b16 %v8148
  %v8181 = vunpack.c.l.b16 %v8149
  %v8182 = vunpack.c.l.b16 %v8150
  %v8183 = vunpack.c.l.b16 %v8151
  %v8184 = vunpack.c.l.b16 %v8152
  %v8185 = vunpack.c.l.b16 %v8153
  %v8186 = vunpack.c.l.b16 %v8154
  %v8187 = vunpack.c.l.b16 %v8155
  %v8188 = vunpack.c.l.b16 %v8156
  %v8189 = vunpack.c.l.b16 %v8157
  %v8190 = vunpack.c.l.b16 %v8158
  %v8191 = vunpack.c.l.b16 %v8159
  %v8192 = vunpack.c.l.b16 %v8160
  %v8193 = vunpack.c.l.b16 %v8161
  %v8194 = vpack.c.b16 %v8179, %v8178
  %v8195 = vpack.c.b16 %v8181, %v8180
  %v8196 = vpack.c.b16 %v8183, %v8182
  %v8197 = vpack.c.b16 %v8185, %v8184
  %v8198 = vpack.c.b16 %v8187, %v8186
  %v8199 = vpack.c.b16 %v8189, %v8188
  %v8200 = vpack.c.b16 %v8191, %v8190
  %v8201 = vpack.c.b16 %v8193, %v8192
  %8210 = vmatprep.subr.bf16.mxu0 0
  %8211 = vmatpush1.bf16.msra.mxu0 %v8194
  %8212 = vmatprep.subr.bf16.mxu0 0
  %8213 = vmatpush1.bf16.msra.mxu0 %v8195
  %8214 = vmatprep.subr.bf16.mxu0 0
  %8215 = vmatpush1.bf16.msra.mxu0 %v8196
  %8216 = vmatprep.subr.bf16.mxu0 0
  %8217 = vmatpush1.bf16.msra.mxu0 %v8197
  %8218 = vmatprep.subr.bf16.mxu0 0
  %8219 = vmatpush1.bf16.msra.mxu0 %v8198
  %8220 = vmatprep.subr.bf16.mxu0 0
  %8221 = vmatpush1.bf16.msra.mxu0 %v8199
  %8222 = vmatprep.subr.bf16.mxu0 0
  %8223 = vmatpush1.bf16.msra.mxu0 %v8200
  %8224 = vmatprep.subr.bf16.mxu0 0
  %8225 = vmatpush1.bf16.msra.mxu0 %v8201
  %8226 = vmatprep.subr.bf16.mxu0 0
  %8227 = vmatpush1.bf16.msra.mxu0 0
  %8228 = vmatprep.subr.bf16.mxu0 0
  %8229 = vmatpush1.bf16.msra.mxu0 0
  %8230 = vmatprep.subr.bf16.mxu0 0
  %8231 = vmatpush1.bf16.msra.mxu0 0
  %8232 = vmatprep.subr.bf16.mxu0 0
  %8233 = vmatpush1.bf16.msra.mxu0 0
  %8234 = vmatprep.subr.bf16.mxu0 0
  %8235 = vmatpush1.bf16.msra.mxu0 0
  %8236 = vmatprep.subr.bf16.mxu0 0
  %8237 = vmatpush1.bf16.msra.mxu0 0
  %8238 = vmatprep.subr.bf16.mxu0 0
  %8239 = vmatpush1.bf16.msra.mxu0 0
  %8240 = vmatprep.subr.bf16.mxu0 0
  %8241 = vmatpush1.bf16.msra.mxu0 0
  %8242 = vmatprep.mubr.bf16.mxu0 0
  %8243 = vmatmul.mubr.bf16.gmra.mrb[0].mxu0 %v5325
  %v8244 = vpop.f32.mrb[0].mxu0
  %v8245 = vadd.f32 0.0, %v8244
  %v8246 = vpop.f32.mrb[0].mxu0
  %v8247 = vpop.f32.mrb[0].mxu0
  %v8248 = vadd.f32 0.0, %v8247
  %v8249 = vpop.f32.mrb[0].mxu0
  %8250 = vmatprep.mubr.bf16.mxu0 0
  %8251 = vmatmul.mubr.bf16.gmra.mrb[0].mxu0 %v5327
  %v8252 = vpop.f32.mrb[0].mxu0
  %v8253 = vadd.f32 0.0, %v8252
  %v8254 = vpop.f32.mrb[0].mxu0
  %v8255 = vpop.f32.mrb[0].mxu0
  %v8256 = vadd.f32 0.0, %v8255
  %v8257 = vpop.f32.mrb[0].mxu0
  %8258 = vmatprep.mubr.bf16.mxu0 0
  %8259 = vmatmul.mubr.bf16.gmra.mrb[0].mxu0 %v5329
  %v8260 = vpop.f32.mrb[0].mxu0
  %v8261 = vadd.f32 0.0, %v8260
  %v8262 = vpop.f32.mrb[0].mxu0
  %v8263 = vpop.f32.mrb[0].mxu0
  %v8264 = vadd.f32 0.0, %v8263
  %v8265 = vpop.f32.mrb[0].mxu0
  %8266 = vmatprep.mubr.bf16.mxu0 0
  %8267 = vmatmul.mubr.bf16.gmra.mrb[0].mxu0 %v5341
  %v8268 = vpop.f32.mrb[0].mxu0
  %v8269 = vadd.f32 0.0, %v8268
  %v8270 = vpop.f32.mrb[0].mxu0
  %v8271 = vpop.f32.mrb[0].mxu0
  %v8272 = vadd.f32 0.0, %v8271
  %v8273 = vpop.f32.mrb[0].mxu0
  %8274 = vmatprep.mubr.bf16.mxu0 0
  %8275 = vmatmul.mubr.bf16.gmra.mrb[0].mxu0 %v5343
  %v8276 = vpop.f32.mrb[0].mxu0
  %v8277 = vadd.f32 0.0, %v8276
  %v8278 = vpop.f32.mrb[0].mxu0
  %v8279 = vpop.f32.mrb[0].mxu0
  %v8280 = vadd.f32 0.0, %v8279
  %v8281 = vpop.f32.mrb[0].mxu0
  %8282 = vmatprep.mubr.bf16.mxu0 0
  %8283 = vmatmul.mubr.bf16.gmra.mrb[0].mxu0 %v5345
  %v8284 = vpop.f32.mrb[0].mxu0
  %v8285 = vadd.f32 0.0, %v8284
  %v8286 = vpop.f32.mrb[0].mxu0
  %v8287 = vpop.f32.mrb[0].mxu0
  %v8288 = vadd.f32 0.0, %v8287
  %v8289 = vpop.f32.mrb[0].mxu0
  %8290 = vmatprep.mubr.bf16.mxu0 0
  %8291 = vmatmul.mubr.bf16.gmra.mrb[0].mxu0 %v5357
  %v8292 = vpop.f32.mrb[0].mxu0
  %v8293 = vadd.f32 0.0, %v8292
  %v8294 = vpop.f32.mrb[0].mxu0
  %v8295 = vpop.f32.mrb[0].mxu0
  %v8296 = vadd.f32 0.0, %v8295
  %v8297 = vpop.f32.mrb[0].mxu0
  %8298 = vmatprep.mubr.bf16.mxu0 0
  %8299 = vmatmul.mubr.bf16.gmra.mrb[0].mxu0 %v5359
  %v8300 = vpop.f32.mrb[0].mxu0
  %v8301 = vadd.f32 0.0, %v8300
  %v8302 = vpop.f32.mrb[0].mxu0
  %v8303 = vpop.f32.mrb[0].mxu0
  %v8304 = vadd.f32 0.0, %v8303
  %v8305 = vpop.f32.mrb[0].mxu0
  %8306 = vmatprep.mubr.bf16.mxu0 0
  %8307 = vmatmul.mubr.bf16.gmra.mrb[0].mxu0 %v5361
  %v8308 = vpop.f32.mrb[0].mxu0
  %v8309 = vadd.f32 0.0, %v8308
  %v8310 = vpop.f32.mrb[0].mxu0
  %v8311 = vpop.f32.mrb[0].mxu0
  %v8312 = vadd.f32 0.0, %v8311
  %v8313 = vpop.f32.mrb[0].mxu0
  %8314 = vdwg.mxu0
  %v8315 = vadd.f32 %v8127, %v8245
  %v8316 = vadd.f32 %v8128, %v8248
  %v8317 = vadd.f32 %v8129, %v8253
  %v8318 = vadd.f32 %v8130, %v8256
  %v8319 = vadd.f32 %v8131, %v8261
  %v8320 = vadd.f32 %v8132, %v8264
  %v8321 = vadd.f32 %v8133, %v8269
  %v8322 = vadd.f32 %v8134, %v8272
  %v8323 = vadd.f32 %v8135, %v8277
  %v8324 = vadd.f32 %v8136, %v8280
  %v8325 = vadd.f32 %v8137, %v8285
  %v8326 = vadd.f32 %v8138, %v8288
  %v8327 = vadd.f32 %v8139, %v8293
  %v8328 = vadd.f32 %v8140, %v8296
  %v8329 = vadd.f32 %v8141, %v8301
  %v8330 = vadd.f32 %v8142, %v8304
  %v8331 = vadd.f32 %v8143, %v8309
  %v8332 = vadd.f32 %v8144, %v8312
  %s8333 = scalar_lea.vmem %s6, 8
  %v8334 = vld [vmem:[%s8333] sm:$0xff]
  %v8335 = vlaneseq
  %v8336 = vshrl.u32 %v8335, 7
  %v8337 = vsub.s32 0, %v8336
  %v8338 = vrot.slane %v8334, %v8337
  %v8339 = vadd.f32 %v8315, %v8338
  %v8340 = vadd.f32 %v8316, %v8338
  %v8341 = vadd.f32 %v8317, %v8338
  %v8342 = vadd.f32 %v8318, %v8338
  %v8343 = vadd.f32 %v8319, %v8338
  %v8344 = vadd.f32 %v8320, %v8338
  %v8345 = vadd.f32 %v8321, %v8338
  %v8346 = vadd.f32 %v8322, %v8338
  %v8347 = vadd.f32 %v8323, %v8338
  %v8348 = vadd.f32 %v8324, %v8338
  %v8349 = vadd.f32 %v8325, %v8338
  %v8350 = vadd.f32 %v8326, %v8338
  %v8351 = vadd.f32 %v8327, %v8338
  %v8352 = vadd.f32 %v8328, %v8338
  %v8353 = vadd.f32 %v8329, %v8338
  %v8354 = vadd.f32 %v8330, %v8338
  %v8355 = vadd.f32 %v8331, %v8338
  %v8356 = vadd.f32 %v8332, %v8338
  %v8357 = vmax.f32 %v8339, 0.0
  %v8358 = vmax.f32 %v8340, 0.0
  %v8359 = vmax.f32 %v8341, 0.0
  %v8360 = vmax.f32 %v8342, 0.0
  %v8361 = vmax.f32 %v8343, 0.0
  %v8362 = vmax.f32 %v8344, 0.0
  %v8363 = vmax.f32 %v8345, 0.0
  %v8364 = vmax.f32 %v8346, 0.0
  %v8365 = vmax.f32 %v8347, 0.0
  %v8366 = vmax.f32 %v8348, 0.0
  %v8367 = vmax.f32 %v8349, 0.0
  %v8368 = vmax.f32 %v8350, 0.0
  %v8369 = vmax.f32 %v8351, 0.0
  %v8370 = vmax.f32 %v8352, 0.0
  %v8371 = vmax.f32 %v8353, 0.0
  %v8372 = vmax.f32 %v8354, 0.0
  %v8373 = vmax.f32 %v8355, 0.0
  %v8374 = vmax.f32 %v8356, 0.0
  %v8375 = vlaneseq
  %v8376 = vshrl.u32 %v8375, 7
  %v8377 = vsub.s32 1, %v8376
  %v8378 = vrot.slane %v8334, %v8377
  %v8379 = vmul.f32 %v8357, %v8378
  %v8380 = vmul.f32 %v8358, %v8378
  %v8381 = vmul.f32 %v8359, %v8378
  %v8382 = vmul.f32 %v8360, %v8378
  %v8383 = vmul.f32 %v8361, %v8378
  %v8384 = vmul.f32 %v8362, %v8378
  %v8385 = vmul.f32 %v8363, %v8378
  %v8386 = vmul.f32 %v8364, %v8378
  %v8387 = vmul.f32 %v8365, %v8378
  %v8388 = vmul.f32 %v8366, %v8378
  %v8389 = vmul.f32 %v8367, %v8378
  %v8390 = vmul.f32 %v8368, %v8378
  %v8391 = vmul.f32 %v8369, %v8378
  %v8392 = vmul.f32 %v8370, %v8378
  %v8393 = vmul.f32 %v8371, %v8378
  %v8394 = vmul.f32 %v8372, %v8378
  %v8395 = vmul.f32 %v8373, %v8378
  %v8396 = vmul.f32 %v8374, %v8378
  %v8397 = vlaneseq
  %v8398 = vshrl.u32 %v8397, 7
  %v8399 = vsub.s32 2, %v8398
  %v8400 = vrot.slane %v8334, %v8399
  %v8401 = vadd.f32 %v8379, %v8400
  %v8402 = vadd.f32 %v8380, %v8400
  %v8403 = vadd.f32 %v8381, %v8400
  %v8404 = vadd.f32 %v8382, %v8400
  %v8405 = vadd.f32 %v8383, %v8400
  %v8406 = vadd.f32 %v8384, %v8400
  %v8407 = vadd.f32 %v8385, %v8400
  %v8408 = vadd.f32 %v8386, %v8400
  %v8409 = vadd.f32 %v8387, %v8400
  %v8410 = vadd.f32 %v8388, %v8400
  %v8411 = vadd.f32 %v8389, %v8400
  %v8412 = vadd.f32 %v8390, %v8400
  %v8413 = vadd.f32 %v8391, %v8400
  %v8414 = vadd.f32 %v8392, %v8400
  %v8415 = vadd.f32 %v8393, %v8400
  %v8416 = vadd.f32 %v8394, %v8400
  %v8417 = vadd.f32 %v8395, %v8400
  %v8418 = vadd.f32 %v8396, %v8400
  %v8419 = vpack.c.bf16 %v8402, %v8401
  %v8420 = vpack.c.bf16 %v8404, %v8403
  %v8421 = vpack.c.bf16 %v8406, %v8405
  %v8422 = vpack.c.bf16 %v8408, %v8407
  %v8423 = vpack.c.bf16 %v8410, %v8409
  %v8424 = vpack.c.bf16 %v8412, %v8411
  %v8425 = vpack.c.bf16 %v8414, %v8413
  %v8426 = vpack.c.bf16 %v8416, %v8415
  %v8427 = vpack.c.bf16 %v8418, %v8417
  %v8428 = vld [vmem:[%s3] sm:$0xf]
  %v8429 = vld [vmem:[%s3 + $0x4] sm:$0xf]
  %v8430 = vld [vmem:[%s3 + $0x8] sm:$0xf]
  %v8431 = vld [vmem:[%s3 + $0xc] sm:$0xf]
  %v8432 = vld [vmem:[%s3 + $0x10] sm:$0xf]
  %v8433 = vld [vmem:[%s3 + $0x14] sm:$0xf]
  %v8434 = vld [vmem:[%s3 + $0x18] sm:$0xf]
  %v8435 = vld [vmem:[%s3 + $0x1c] sm:$0xf]
  %v8436 = vld [vmem:[%s3 + $0x20] sm:$0xf]
  %v8437 = vld [vmem:[%s3 + $0x24] sm:$0xf]
  %v8438 = vld [vmem:[%s3 + $0x28] sm:$0xf]
  %v8439 = vld [vmem:[%s3 + $0x2c] sm:$0xf]
  %v8440 = vld [vmem:[%s3 + $0x30] sm:$0xf]
  %v8441 = vld [vmem:[%s3 + $0x34] sm:$0xf]
  %v8442 = vld [vmem:[%s3 + $0x38] sm:$0xf]
  %v8443 = vld [vmem:[%s3 + $0x3c] sm:$0xf]
  %s8444 = scalar_lea.vmem %s3, 64
  %v8445 = vld [vmem:[%s8444] sm:$0xf]
  %v8446 = vld [vmem:[%s8444 + $0x4] sm:$0xf]
  %v8447 = vld [vmem:[%s8444 + $0x8] sm:$0xf]
  %v8448 = vld [vmem:[%s8444 + $0xc] sm:$0xf]
  %v8449 = vld [vmem:[%s8444 + $0x10] sm:$0xf]
  %v8450 = vld [vmem:[%s8444 + $0x14] sm:$0xf]
  %v8451 = vld [vmem:[%s8444 + $0x18] sm:$0xf]
  %v8452 = vld [vmem:[%s8444 + $0x1c] sm:$0xf]
  %v8453 = vld [vmem:[%s8444 + $0x20] sm:$0xf]
  %v8454 = vld [vmem:[%s8444 + $0x24] sm:$0xf]
  %v8455 = vld [vmem:[%s8444 + $0x28] sm:$0xf]
  %v8456 = vld [vmem:[%s8444 + $0x2c] sm:$0xf]
  %v8457 = vld [vmem:[%s8444 + $0x30] sm:$0xf]
  %v8458 = vld [vmem:[%s8444 + $0x34] sm:$0xf]
  %v8459 = vld [vmem:[%s8444 + $0x38] sm:$0xf]
  %v8460 = vld [vmem:[%s8444 + $0x3c] sm:$0xf]
  %v8477 = vunpack.c.l.b16 %v8445
  %v8478 = vunpack.c.l.b16 %v8446
  %v8479 = vunpack.c.l.b16 %v8447
  %v8480 = vunpack.c.l.b16 %v8448
  %v8481 = vunpack.c.l.b16 %v8449
  %v8482 = vunpack.c.l.b16 %v8450
  %v8483 = vunpack.c.l.b16 %v8451
  %v8484 = vunpack.c.l.b16 %v8452
  %v8485 = vunpack.c.l.b16 %v8453
  %v8486 = vunpack.c.l.b16 %v8454
  %v8487 = vunpack.c.l.b16 %v8455
  %v8488 = vunpack.c.l.b16 %v8456
  %v8489 = vunpack.c.l.b16 %v8457
  %v8490 = vunpack.c.l.b16 %v8458
  %v8491 = vunpack.c.l.b16 %v8459
  %v8492 = vunpack.c.l.b16 %v8460
  %v8493 = vpack.c.b16 %v8478, %v8477
  %v8494 = vpack.c.b16 %v8480, %v8479
  %v8495 = vpack.c.b16 %v8482, %v8481
  %v8496 = vpack.c.b16 %v8484, %v8483
  %v8497 = vpack.c.b16 %v8486, %v8485
  %v8498 = vpack.c.b16 %v8488, %v8487
  %v8499 = vpack.c.b16 %v8490, %v8489
  %v8500 = vpack.c.b16 %v8492, %v8491
  %8509 = vmatprep.subr.bf16.mxu0 0
  %8510 = vmatpush1.bf16.msra.mxu0 %v8493
  %8511 = vmatprep.subr.bf16.mxu0 0
  %8512 = vmatpush1.bf16.msra.mxu0 %v8494
  %8513 = vmatprep.subr.bf16.mxu0 0
  %8514 = vmatpush1.bf16.msra.mxu0 %v8495
  %8515 = vmatprep.subr.bf16.mxu0 0
  %8516 = vmatpush1.bf16.msra.mxu0 %v8496
  %8517 = vmatprep.subr.bf16.mxu0 0
  %8518 = vmatpush1.bf16.msra.mxu0 %v8497
  %8519 = vmatprep.subr.bf16.mxu0 0
  %8520 = vmatpush1.bf16.msra.mxu0 %v8498
  %8521 = vmatprep.subr.bf16.mxu0 0
  %8522 = vmatpush1.bf16.msra.mxu0 %v8499
  %8523 = vmatprep.subr.bf16.mxu0 0
  %8524 = vmatpush1.bf16.msra.mxu0 %v8500
  %8525 = vmatprep.subr.bf16.mxu0 0
  %8526 = vmatpush1.bf16.msra.mxu0 0
  %8527 = vmatprep.subr.bf16.mxu0 0
  %8528 = vmatpush1.bf16.msra.mxu0 0
  %8529 = vmatprep.subr.bf16.mxu0 0
  %8530 = vmatpush1.bf16.msra.mxu0 0
  %8531 = vmatprep.subr.bf16.mxu0 0
  %8532 = vmatpush1.bf16.msra.mxu0 0
  %8533 = vmatprep.subr.bf16.mxu0 0
  %8534 = vmatpush1.bf16.msra.mxu0 0
  %8535 = vmatprep.subr.bf16.mxu0 0
  %8536 = vmatpush1.bf16.msra.mxu0 0
  %8537 = vmatprep.subr.bf16.mxu0 0
  %8538 = vmatpush1.bf16.msra.mxu0 0
  %8539 = vmatprep.subr.bf16.mxu0 0
  %8540 = vmatpush1.bf16.msra.mxu0 0
  %8541 = vmatprep.mubr.bf16.mxu0 0
  %8542 = vmatmul.mubr.bf16.gmra.mrb[0].mxu0 %v8420
  %v8543 = vpop.f32.mrb[0].mxu0
  %v8544 = vadd.f32 0.0, %v8543
  %v8545 = vpop.f32.mrb[0].mxu0
  %v8546 = vpop.f32.mrb[0].mxu0
  %v8547 = vadd.f32 0.0, %v8546
  %v8548 = vpop.f32.mrb[0].mxu0
  %8549 = vdwg.mxu0
  %v8566 = vunpack.c.l.b16 %v8428
  %v8567 = vunpack.c.l.b16 %v8429
  %v8568 = vunpack.c.l.b16 %v8430
  %v8569 = vunpack.c.l.b16 %v8431
  %v8570 = vunpack.c.l.b16 %v8432
  %v8571 = vunpack.c.l.b16 %v8433
  %v8572 = vunpack.c.l.b16 %v8434
  %v8573 = vunpack.c.l.b16 %v8435
  %v8574 = vunpack.c.l.b16 %v8436
  %v8575 = vunpack.c.l.b16 %v8437
  %v8576 = vunpack.c.l.b16 %v8438
  %v8577 = vunpack.c.l.b16 %v8439
  %v8578 = vunpack.c.l.b16 %v8440
  %v8579 = vunpack.c.l.b16 %v8441
  %v8580 = vunpack.c.l.b16 %v8442
  %v8581 = vunpack.c.l.b16 %v8443
  %v8582 = vpack.c.b16 %v8567, %v8566
  %v8583 = vpack.c.b16 %v8569, %v8568
  %v8584 = vpack.c.b16 %v8571, %v8570
  %v8585 = vpack.c.b16 %v8573, %v8572
  %v8586 = vpack.c.b16 %v8575, %v8574
  %v8587 = vpack.c.b16 %v8577, %v8576
  %v8588 = vpack.c.b16 %v8579, %v8578
  %v8589 = vpack.c.b16 %v8581, %v8580
  %8598 = vmatprep.subr.bf16.mxu0 0
  %8599 = vmatpush1.bf16.msra.mxu0 %v8582
  %8600 = vmatprep.subr.bf16.mxu0 0
  %8601 = vmatpush1.bf16.msra.mxu0 %v8583
  %8602 = vmatprep.subr.bf16.mxu0 0
  %8603 = vmatpush1.bf16.msra.mxu0 %v8584
  %8604 = vmatprep.subr.bf16.mxu0 0
  %8605 = vmatpush1.bf16.msra.mxu0 %v8585
  %8606 = vmatprep.subr.bf16.mxu0 0
  %8607 = vmatpush1.bf16.msra.mxu0 %v8586
  %8608 = vmatprep.subr.bf16.mxu0 0
  %8609 = vmatpush1.bf16.msra.mxu0 %v8587
  %8610 = vmatprep.subr.bf16.mxu0 0
  %8611 = vmatpush1.bf16.msra.mxu0 %v8588
  %8612 = vmatprep.subr.bf16.mxu0 0
  %8613 = vmatpush1.bf16.msra.mxu0 %v8589
  %8614 = vmatprep.subr.bf16.mxu0 0
  %8615 = vmatpush1.bf16.msra.mxu0 0
  %8616 = vmatprep.subr.bf16.mxu0 0
  %8617 = vmatpush1.bf16.msra.mxu0 0
  %8618 = vmatprep.subr.bf16.mxu0 0
  %8619 = vmatpush1.bf16.msra.mxu0 0
  %8620 = vmatprep.subr.bf16.mxu0 0
  %8621 = vmatpush1.bf16.msra.mxu0 0
  %8622 = vmatprep.subr.bf16.mxu0 0
  %8623 = vmatpush1.bf16.msra.mxu0 0
  %8624 = vmatprep.subr.bf16.mxu0 0
  %8625 = vmatpush1.bf16.msra.mxu0 0
  %8626 = vmatprep.subr.bf16.mxu0 0
  %8627 = vmatpush1.bf16.msra.mxu0 0
  %8628 = vmatprep.subr.bf16.mxu0 0
  %8629 = vmatpush1.bf16.msra.mxu0 0
  %8630 = vmatprep.mubr.bf16.mxu0 0
  %8631 = vmatmul.mubr.bf16.gmra.mrb[0].mxu0 %v8419
  %v8632 = vpop.f32.mrb[0].mxu0
  %v8633 = vadd.f32 %v8544, %v8632
  %v8634 = vpop.f32.mrb[0].mxu0
  %v8635 = vpop.f32.mrb[0].mxu0
  %v8636 = vadd.f32 %v8547, %v8635
  %v8637 = vpop.f32.mrb[0].mxu0
  %8638 = vdwg.mxu0
  %s8639 = scalar_lea.vmem %s3, 128
  %v8640 = vld [vmem:[%s8639] sm:$0xf]
  %v8641 = vld [vmem:[%s8639 + $0x4] sm:$0xf]
  %v8642 = vld [vmem:[%s8639 + $0x8] sm:$0xf]
  %v8643 = vld [vmem:[%s8639 + $0xc] sm:$0xf]
  %v8644 = vld [vmem:[%s8639 + $0x10] sm:$0xf]
  %v8645 = vld [vmem:[%s8639 + $0x14] sm:$0xf]
  %v8646 = vld [vmem:[%s8639 + $0x18] sm:$0xf]
  %v8647 = vld [vmem:[%s8639 + $0x1c] sm:$0xf]
  %v8648 = vld [vmem:[%s8639 + $0x20] sm:$0xf]
  %v8649 = vld [vmem:[%s8639 + $0x24] sm:$0xf]
  %v8650 = vld [vmem:[%s8639 + $0x28] sm:$0xf]
  %v8651 = vld [vmem:[%s8639 + $0x2c] sm:$0xf]
  %v8652 = vld [vmem:[%s8639 + $0x30] sm:$0xf]
  %v8653 = vld [vmem:[%s8639 + $0x34] sm:$0xf]
  %v8654 = vld [vmem:[%s8639 + $0x38] sm:$0xf]
  %v8655 = vld [vmem:[%s8639 + $0x3c] sm:$0xf]
  %v8672 = vunpack.c.l.b16 %v8640
  %v8673 = vunpack.c.l.b16 %v8641
  %v8674 = vunpack.c.l.b16 %v8642
  %v8675 = vunpack.c.l.b16 %v8643
  %v8676 = vunpack.c.l.b16 %v8644
  %v8677 = vunpack.c.l.b16 %v8645
  %v8678 = vunpack.c.l.b16 %v8646
  %v8679 = vunpack.c.l.b16 %v8647
  %v8680 = vunpack.c.l.b16 %v8648
  %v8681 = vunpack.c.l.b16 %v8649
  %v8682 = vunpack.c.l.b16 %v8650
  %v8683 = vunpack.c.l.b16 %v8651
  %v8684 = vunpack.c.l.b16 %v8652
  %v8685 = vunpack.c.l.b16 %v8653
  %v8686 = vunpack.c.l.b16 %v8654
  %v8687 = vunpack.c.l.b16 %v8655
  %v8688 = vpack.c.b16 %v8673, %v8672
  %v8689 = vpack.c.b16 %v8675, %v8674
  %v8690 = vpack.c.b16 %v8677, %v8676
  %v8691 = vpack.c.b16 %v8679, %v8678
  %v8692 = vpack.c.b16 %v8681, %v8680
  %v8693 = vpack.c.b16 %v8683, %v8682
  %v8694 = vpack.c.b16 %v8685, %v8684
  %v8695 = vpack.c.b16 %v8687, %v8686
  %8704 = vmatprep.subr.bf16.mxu0 0
  %8705 = vmatpush1.bf16.msra.mxu0 %v8688
  %8706 = vmatprep.subr.bf16.mxu0 0
  %8707 = vmatpush1.bf16.msra.mxu0 %v8689
  %8708 = vmatprep.subr.bf16.mxu0 0
  %8709 = vmatpush1.bf16.msra.mxu0 %v8690
  %8710 = vmatprep.subr.bf16.mxu0 0
  %8711 = vmatpush1.bf16.msra.mxu0 %v8691
  %8712 = vmatprep.subr.bf16.mxu0 0
  %8713 = vmatpush1.bf16.msra.mxu0 %v8692
  %8714 = vmatprep.subr.bf16.mxu0 0
  %8715 = vmatpush1.bf16.msra.mxu0 %v8693
  %8716 = vmatprep.subr.bf16.mxu0 0
  %8717 = vmatpush1.bf16.msra.mxu0 %v8694
  %8718 = vmatprep.subr.bf16.mxu0 0
  %8719 = vmatpush1.bf16.msra.mxu0 %v8695
  %8720 = vmatprep.subr.bf16.mxu0 0
  %8721 = vmatpush1.bf16.msra.mxu0 0
  %8722 = vmatprep.subr.bf16.mxu0 0
  %8723 = vmatpush1.bf16.msra.mxu0 0
  %8724 = vmatprep.subr.bf16.mxu0 0
  %8725 = vmatpush1.bf16.msra.mxu0 0
  %8726 = vmatprep.subr.bf16.mxu0 0
  %8727 = vmatpush1.bf16.msra.mxu0 0
  %8728 = vmatprep.subr.bf16.mxu0 0
  %8729 = vmatpush1.bf16.msra.mxu0 0
  %8730 = vmatprep.subr.bf16.mxu0 0
  %8731 = vmatpush1.bf16.msra.mxu0 0
  %8732 = vmatprep.subr.bf16.mxu0 0
  %8733 = vmatpush1.bf16.msra.mxu0 0
  %8734 = vmatprep.subr.bf16.mxu0 0
  %8735 = vmatpush1.bf16.msra.mxu0 0
  %8736 = vmatprep.mubr.bf16.mxu0 0
  %8737 = vmatmul.mubr.bf16.gmra.mrb[0].mxu0 %v8421
  %v8738 = vpop.f32.mrb[0].mxu0
  %v8739 = vadd.f32 0.0, %v8738
  %v8740 = vpop.f32.mrb[0].mxu0
  %v8741 = vpop.f32.mrb[0].mxu0
  %v8742 = vadd.f32 0.0, %v8741
  %v8743 = vpop.f32.mrb[0].mxu0
  %8744 = vdwg.mxu0
  %v8745 = vadd.f32 %v8633, %v8739
  %v8746 = vadd.f32 %v8636, %v8742
  %s8747 = scalar_lea.vmem %s3, 192
  %v8748 = vld [vmem:[%s8747] sm:$0xf]
  %v8749 = vld [vmem:[%s8747 + $0x4] sm:$0xf]
  %v8750 = vld [vmem:[%s8747 + $0x8] sm:$0xf]
  %v8751 = vld [vmem:[%s8747 + $0xc] sm:$0xf]
  %v8752 = vld [vmem:[%s8747 + $0x10] sm:$0xf]
  %v8753 = vld [vmem:[%s8747 + $0x14] sm:$0xf]
  %v8754 = vld [vmem:[%s8747 + $0x18] sm:$0xf]
  %v8755 = vld [vmem:[%s8747 + $0x1c] sm:$0xf]
  %v8756 = vld [vmem:[%s8747 + $0x20] sm:$0xf]
  %v8757 = vld [vmem:[%s8747 + $0x24] sm:$0xf]
  %v8758 = vld [vmem:[%s8747 + $0x28] sm:$0xf]
  %v8759 = vld [vmem:[%s8747 + $0x2c] sm:$0xf]
  %v8760 = vld [vmem:[%s8747 + $0x30] sm:$0xf]
  %v8761 = vld [vmem:[%s8747 + $0x34] sm:$0xf]
  %v8762 = vld [vmem:[%s8747 + $0x38] sm:$0xf]
  %v8763 = vld [vmem:[%s8747 + $0x3c] sm:$0xf]
  %v8780 = vunpack.c.l.b16 %v8748
  %v8781 = vunpack.c.l.b16 %v8749
  %v8782 = vunpack.c.l.b16 %v8750
  %v8783 = vunpack.c.l.b16 %v8751
  %v8784 = vunpack.c.l.b16 %v8752
  %v8785 = vunpack.c.l.b16 %v8753
  %v8786 = vunpack.c.l.b16 %v8754
  %v8787 = vunpack.c.l.b16 %v8755
  %v8788 = vunpack.c.l.b16 %v8756
  %v8789 = vunpack.c.l.b16 %v8757
  %v8790 = vunpack.c.l.b16 %v8758
  %v8791 = vunpack.c.l.b16 %v8759
  %v8792 = vunpack.c.l.b16 %v8760
  %v8793 = vunpack.c.l.b16 %v8761
  %v8794 = vunpack.c.l.b16 %v8762
  %v8795 = vunpack.c.l.b16 %v8763
  %v8796 = vpack.c.b16 %v8781, %v8780
  %v8797 = vpack.c.b16 %v8783, %v8782
  %v8798 = vpack.c.b16 %v8785, %v8784
  %v8799 = vpack.c.b16 %v8787, %v8786
  %v8800 = vpack.c.b16 %v8789, %v8788
  %v8801 = vpack.c.b16 %v8791, %v8790
  %v8802 = vpack.c.b16 %v8793, %v8792
  %v8803 = vpack.c.b16 %v8795, %v8794
  %8812 = vmatprep.subr.bf16.mxu0 0
  %8813 = vmatpush1.bf16.msra.mxu0 %v8796
  %8814 = vmatprep.subr.bf16.mxu0 0
  %8815 = vmatpush1.bf16.msra.mxu0 %v8797
  %8816 = vmatprep.subr.bf16.mxu0 0
  %8817 = vmatpush1.bf16.msra.mxu0 %v8798
  %8818 = vmatprep.subr.bf16.mxu0 0
  %8819 = vmatpush1.bf16.msra.mxu0 %v8799
  %8820 = vmatprep.subr.bf16.mxu0 0
  %8821 = vmatpush1.bf16.msra.mxu0 %v8800
  %8822 = vmatprep.subr.bf16.mxu0 0
  %8823 = vmatpush1.bf16.msra.mxu0 %v8801
  %8824 = vmatprep.subr.bf16.mxu0 0
  %8825 = vmatpush1.bf16.msra.mxu0 %v8802
  %8826 = vmatprep.subr.bf16.mxu0 0
  %8827 = vmatpush1.bf16.msra.mxu0 %v8803
  %8828 = vmatprep.subr.bf16.mxu0 0
  %8829 = vmatpush1.bf16.msra.mxu0 0
  %8830 = vmatprep.subr.bf16.mxu0 0
  %8831 = vmatpush1.bf16.msra.mxu0 0
  %8832 = vmatprep.subr.bf16.mxu0 0
  %8833 = vmatpush1.bf16.msra.mxu0 0
  %8834 = vmatprep.subr.bf16.mxu0 0
  %8835 = vmatpush1.bf16.msra.mxu0 0
  %8836 = vmatprep.subr.bf16.mxu0 0
  %8837 = vmatpush1.bf16.msra.mxu0 0
  %8838 = vmatprep.subr.bf16.mxu0 0
  %8839 = vmatpush1.bf16.msra.mxu0 0
  %8840 = vmatprep.subr.bf16.mxu0 0
  %8841 = vmatpush1.bf16.msra.mxu0 0
  %8842 = vmatprep.subr.bf16.mxu0 0
  %8843 = vmatpush1.bf16.msra.mxu0 0
  %8844 = vmatprep.mubr.bf16.mxu0 0
  %8845 = vmatmul.mubr.bf16.gmra.mrb[0].mxu0 %v8422
  %v8846 = vpop.f32.mrb[0].mxu0
  %v8847 = vadd.f32 0.0, %v8846
  %v8848 = vpop.f32.mrb[0].mxu0
  %v8849 = vpop.f32.mrb[0].mxu0
  %v8850 = vadd.f32 0.0, %v8849
  %v8851 = vpop.f32.mrb[0].mxu0
  %8852 = vdwg.mxu0
  %v8853 = vadd.f32 %v8745, %v8847
  %v8854 = vadd.f32 %v8746, %v8850
  %s8855 = scalar_lea.vmem %s3, 256
  %v8856 = vld [vmem:[%s8855] sm:$0xf]
  %v8857 = vld [vmem:[%s8855 + $0x4] sm:$0xf]
  %v8858 = vld [vmem:[%s8855 + $0x8] sm:$0xf]
  %v8859 = vld [vmem:[%s8855 + $0xc] sm:$0xf]
  %v8860 = vld [vmem:[%s8855 + $0x10] sm:$0xf]
  %v8861 = vld [vmem:[%s8855 + $0x14] sm:$0xf]
  %v8862 = vld [vmem:[%s8855 + $0x18] sm:$0xf]
  %v8863 = vld [vmem:[%s8855 + $0x1c] sm:$0xf]
  %v8864 = vld [vmem:[%s8855 + $0x20] sm:$0xf]
  %v8865 = vld [vmem:[%s8855 + $0x24] sm:$0xf]
  %v8866 = vld [vmem:[%s8855 + $0x28] sm:$0xf]
  %v8867 = vld [vmem:[%s8855 + $0x2c] sm:$0xf]
  %v8868 = vld [vmem:[%s8855 + $0x30] sm:$0xf]
  %v8869 = vld [vmem:[%s8855 + $0x34] sm:$0xf]
  %v8870 = vld [vmem:[%s8855 + $0x38] sm:$0xf]
  %v8871 = vld [vmem:[%s8855 + $0x3c] sm:$0xf]
  %v8888 = vunpack.c.l.b16 %v8856
  %v8889 = vunpack.c.l.b16 %v8857
  %v8890 = vunpack.c.l.b16 %v8858
  %v8891 = vunpack.c.l.b16 %v8859
  %v8892 = vunpack.c.l.b16 %v8860
  %v8893 = vunpack.c.l.b16 %v8861
  %v8894 = vunpack.c.l.b16 %v8862
  %v8895 = vunpack.c.l.b16 %v8863
  %v8896 = vunpack.c.l.b16 %v8864
  %v8897 = vunpack.c.l.b16 %v8865
  %v8898 = vunpack.c.l.b16 %v8866
  %v8899 = vunpack.c.l.b16 %v8867
  %v8900 = vunpack.c.l.b16 %v8868
  %v8901 = vunpack.c.l.b16 %v8869
  %v8902 = vunpack.c.l.b16 %v8870
  %v8903 = vunpack.c.l.b16 %v8871
  %v8904 = vpack.c.b16 %v8889, %v8888
  %v8905 = vpack.c.b16 %v8891, %v8890
  %v8906 = vpack.c.b16 %v8893, %v8892
  %v8907 = vpack.c.b16 %v8895, %v8894
  %v8908 = vpack.c.b16 %v8897, %v8896
  %v8909 = vpack.c.b16 %v8899, %v8898
  %v8910 = vpack.c.b16 %v8901, %v8900
  %v8911 = vpack.c.b16 %v8903, %v8902
  %8920 = vmatprep.subr.bf16.mxu0 0
  %8921 = vmatpush1.bf16.msra.mxu0 %v8904
  %8922 = vmatprep.subr.bf16.mxu0 0
  %8923 = vmatpush1.bf16.msra.mxu0 %v8905
  %8924 = vmatprep.subr.bf16.mxu0 0
  %8925 = vmatpush1.bf16.msra.mxu0 %v8906
  %8926 = vmatprep.subr.bf16.mxu0 0
  %8927 = vmatpush1.bf16.msra.mxu0 %v8907
  %8928 = vmatprep.subr.bf16.mxu0 0
  %8929 = vmatpush1.bf16.msra.mxu0 %v8908
  %8930 = vmatprep.subr.bf16.mxu0 0
  %8931 = vmatpush1.bf16.msra.mxu0 %v8909
  %8932 = vmatprep.subr.bf16.mxu0 0
  %8933 = vmatpush1.bf16.msra.mxu0 %v8910
  %8934 = vmatprep.subr.bf16.mxu0 0
  %8935 = vmatpush1.bf16.msra.mxu0 %v8911
  %8936 = vmatprep.subr.bf16.mxu0 0
  %8937 = vmatpush1.bf16.msra.mxu0 0
  %8938 = vmatprep.subr.bf16.mxu0 0
  %8939 = vmatpush1.bf16.msra.mxu0 0
  %8940 = vmatprep.subr.bf16.mxu0 0
  %8941 = vmatpush1.bf16.msra.mxu0 0
  %8942 = vmatprep.subr.bf16.mxu0 0
  %8943 = vmatpush1.bf16.msra.mxu0 0
  %8944 = vmatprep.subr.bf16.mxu0 0
  %8945 = vmatpush1.bf16.msra.mxu0 0
  %8946 = vmatprep.subr.bf16.mxu0 0
  %8947 = vmatpush1.bf16.msra.mxu0 0
  %8948 = vmatprep.subr.bf16.mxu0 0
  %8949 = vmatpush1.bf16.msra.mxu0 0
  %8950 = vmatprep.subr.bf16.mxu0 0
  %8951 = vmatpush1.bf16.msra.mxu0 0
  %8952 = vmatprep.mubr.bf16.mxu0 0
  %8953 = vmatmul.mubr.bf16.gmra.mrb[0].mxu0 %v8423
  %v8954 = vpop.f32.mrb[0].mxu0
  %v8955 = vadd.f32 0.0, %v8954
  %v8956 = vpop.f32.mrb[0].mxu0
  %v8957 = vpop.f32.mrb[0].mxu0
  %v8958 = vadd.f32 0.0, %v8957
  %v8959 = vpop.f32.mrb[0].mxu0
  %8960 = vdwg.mxu0
  %v8961 = vadd.f32 %v8853, %v8955
  %v8962 = vadd.f32 %v8854, %v8958
  %s8963 = scalar_lea.vmem %s3, 320
  %v8964 = vld [vmem:[%s8963] sm:$0xf]
  %v8965 = vld [vmem:[%s8963 + $0x4] sm:$0xf]
  %v8966 = vld [vmem:[%s8963 + $0x8] sm:$0xf]
  %v8967 = vld [vmem:[%s8963 + $0xc] sm:$0xf]
  %v8968 = vld [vmem:[%s8963 + $0x10] sm:$0xf]
  %v8969 = vld [vmem:[%s8963 + $0x14] sm:$0xf]
  %v8970 = vld [vmem:[%s8963 + $0x18] sm:$0xf]
  %v8971 = vld [vmem:[%s8963 + $0x1c] sm:$0xf]
  %v8972 = vld [vmem:[%s8963 + $0x20] sm:$0xf]
  %v8973 = vld [vmem:[%s8963 + $0x24] sm:$0xf]
  %v8974 = vld [vmem:[%s8963 + $0x28] sm:$0xf]
  %v8975 = vld [vmem:[%s8963 + $0x2c] sm:$0xf]
  %v8976 = vld [vmem:[%s8963 + $0x30] sm:$0xf]
  %v8977 = vld [vmem:[%s8963 + $0x34] sm:$0xf]
  %v8978 = vld [vmem:[%s8963 + $0x38] sm:$0xf]
  %v8979 = vld [vmem:[%s8963 + $0x3c] sm:$0xf]
  %v8996 = vunpack.c.l.b16 %v8964
  %v8997 = vunpack.c.l.b16 %v8965
  %v8998 = vunpack.c.l.b16 %v8966
  %v8999 = vunpack.c.l.b16 %v8967
  %v9000 = vunpack.c.l.b16 %v8968
  %v9001 = vunpack.c.l.b16 %v8969
  %v9002 = vunpack.c.l.b16 %v8970
  %v9003 = vunpack.c.l.b16 %v8971
  %v9004 = vunpack.c.l.b16 %v8972
  %v9005 = vunpack.c.l.b16 %v8973
  %v9006 = vunpack.c.l.b16 %v8974
  %v9007 = vunpack.c.l.b16 %v8975
  %v9008 = vunpack.c.l.b16 %v8976
  %v9009 = vunpack.c.l.b16 %v8977
  %v9010 = vunpack.c.l.b16 %v8978
  %v9011 = vunpack.c.l.b16 %v8979
  %v9012 = vpack.c.b16 %v8997, %v8996
  %v9013 = vpack.c.b16 %v8999, %v8998
  %v9014 = vpack.c.b16 %v9001, %v9000
  %v9015 = vpack.c.b16 %v9003, %v9002
  %v9016 = vpack.c.b16 %v9005, %v9004
  %v9017 = vpack.c.b16 %v9007, %v9006
  %v9018 = vpack.c.b16 %v9009, %v9008
  %v9019 = vpack.c.b16 %v9011, %v9010
  %9028 = vmatprep.subr.bf16.mxu0 0
  %9029 = vmatpush1.bf16.msra.mxu0 %v9012
  %9030 = vmatprep.subr.bf16.mxu0 0
  %9031 = vmatpush1.bf16.msra.mxu0 %v9013
  %9032 = vmatprep.subr.bf16.mxu0 0
  %9033 = vmatpush1.bf16.msra.mxu0 %v9014
  %9034 = vmatprep.subr.bf16.mxu0 0
  %9035 = vmatpush1.bf16.msra.mxu0 %v9015
  %9036 = vmatprep.subr.bf16.mxu0 0
  %9037 = vmatpush1.bf16.msra.mxu0 %v9016
  %9038 = vmatprep.subr.bf16.mxu0 0
  %9039 = vmatpush1.bf16.msra.mxu0 %v9017
  %9040 = vmatprep.subr.bf16.mxu0 0
  %9041 = vmatpush1.bf16.msra.mxu0 %v9018
  %9042 = vmatprep.subr.bf16.mxu0 0
  %9043 = vmatpush1.bf16.msra.mxu0 %v9019
  %9044 = vmatprep.subr.bf16.mxu0 0
  %9045 = vmatpush1.bf16.msra.mxu0 0
  %9046 = vmatprep.subr.bf16.mxu0 0
  %9047 = vmatpush1.bf16.msra.mxu0 0
  %9048 = vmatprep.subr.bf16.mxu0 0
  %9049 = vmatpush1.bf16.msra.mxu0 0
  %9050 = vmatprep.subr.bf16.mxu0 0
  %9051 = vmatpush1.bf16.msra.mxu0 0
  %9052 = vmatprep.subr.bf16.mxu0 0
  %9053 = vmatpush1.bf16.msra.mxu0 0
  %9054 = vmatprep.subr.bf16.mxu0 0
  %9055 = vmatpush1.bf16.msra.mxu0 0
  %9056 = vmatprep.subr.bf16.mxu0 0
  %9057 = vmatpush1.bf16.msra.mxu0 0
  %9058 = vmatprep.subr.bf16.mxu0 0
  %9059 = vmatpush1.bf16.msra.mxu0 0
  %9060 = vmatprep.mubr.bf16.mxu0 0
  %9061 = vmatmul.mubr.bf16.gmra.mrb[0].mxu0 %v8424
  %v9062 = vpop.f32.mrb[0].mxu0
  %v9063 = vadd.f32 0.0, %v9062
  %v9064 = vpop.f32.mrb[0].mxu0
  %v9065 = vpop.f32.mrb[0].mxu0
  %v9066 = vadd.f32 0.0, %v9065
  %v9067 = vpop.f32.mrb[0].mxu0
  %9068 = vdwg.mxu0
  %v9069 = vadd.f32 %v8961, %v9063
  %v9070 = vadd.f32 %v8962, %v9066
  %s9071 = scalar_lea.vmem %s3, 384
  %v9072 = vld [vmem:[%s9071] sm:$0xf]
  %v9073 = vld [vmem:[%s9071 + $0x4] sm:$0xf]
  %v9074 = vld [vmem:[%s9071 + $0x8] sm:$0xf]
  %v9075 = vld [vmem:[%s9071 + $0xc] sm:$0xf]
  %v9076 = vld [vmem:[%s9071 + $0x10] sm:$0xf]
  %v9077 = vld [vmem:[%s9071 + $0x14] sm:$0xf]
  %v9078 = vld [vmem:[%s9071 + $0x18] sm:$0xf]
  %v9079 = vld [vmem:[%s9071 + $0x1c] sm:$0xf]
  %v9080 = vld [vmem:[%s9071 + $0x20] sm:$0xf]
  %v9081 = vld [vmem:[%s9071 + $0x24] sm:$0xf]
  %v9082 = vld [vmem:[%s9071 + $0x28] sm:$0xf]
  %v9083 = vld [vmem:[%s9071 + $0x2c] sm:$0xf]
  %v9084 = vld [vmem:[%s9071 + $0x30] sm:$0xf]
  %v9085 = vld [vmem:[%s9071 + $0x34] sm:$0xf]
  %v9086 = vld [vmem:[%s9071 + $0x38] sm:$0xf]
  %v9087 = vld [vmem:[%s9071 + $0x3c] sm:$0xf]
  %v9104 = vunpack.c.l.b16 %v9072
  %v9105 = vunpack.c.l.b16 %v9073
  %v9106 = vunpack.c.l.b16 %v9074
  %v9107 = vunpack.c.l.b16 %v9075
  %v9108 = vunpack.c.l.b16 %v9076
  %v9109 = vunpack.c.l.b16 %v9077
  %v9110 = vunpack.c.l.b16 %v9078
  %v9111 = vunpack.c.l.b16 %v9079
  %v9112 = vunpack.c.l.b16 %v9080
  %v9113 = vunpack.c.l.b16 %v9081
  %v9114 = vunpack.c.l.b16 %v9082
  %v9115 = vunpack.c.l.b16 %v9083
  %v9116 = vunpack.c.l.b16 %v9084
  %v9117 = vunpack.c.l.b16 %v9085
  %v9118 = vunpack.c.l.b16 %v9086
  %v9119 = vunpack.c.l.b16 %v9087
  %v9120 = vpack.c.b16 %v9105, %v9104
  %v9121 = vpack.c.b16 %v9107, %v9106
  %v9122 = vpack.c.b16 %v9109, %v9108
  %v9123 = vpack.c.b16 %v9111, %v9110
  %v9124 = vpack.c.b16 %v9113, %v9112
  %v9125 = vpack.c.b16 %v9115, %v9114
  %v9126 = vpack.c.b16 %v9117, %v9116
  %v9127 = vpack.c.b16 %v9119, %v9118
  %9136 = vmatprep.subr.bf16.mxu0 0
  %9137 = vmatpush1.bf16.msra.mxu0 %v9120
  %9138 = vmatprep.subr.bf16.mxu0 0
  %9139 = vmatpush1.bf16.msra.mxu0 %v9121
  %9140 = vmatprep.subr.bf16.mxu0 0
  %9141 = vmatpush1.bf16.msra.mxu0 %v9122
  %9142 = vmatprep.subr.bf16.mxu0 0
  %9143 = vmatpush1.bf16.msra.mxu0 %v9123
  %9144 = vmatprep.subr.bf16.mxu0 0
  %9145 = vmatpush1.bf16.msra.mxu0 %v9124
  %9146 = vmatprep.subr.bf16.mxu0 0
  %9147 = vmatpush1.bf16.msra.mxu0 %v9125
  %9148 = vmatprep.subr.bf16.mxu0 0
  %9149 = vmatpush1.bf16.msra.mxu0 %v9126
  %9150 = vmatprep.subr.bf16.mxu0 0
  %9151 = vmatpush1.bf16.msra.mxu0 %v9127
  %9152 = vmatprep.subr.bf16.mxu0 0
  %9153 = vmatpush1.bf16.msra.mxu0 0
  %9154 = vmatprep.subr.bf16.mxu0 0
  %9155 = vmatpush1.bf16.msra.mxu0 0
  %9156 = vmatprep.subr.bf16.mxu0 0
  %9157 = vmatpush1.bf16.msra.mxu0 0
  %9158 = vmatprep.subr.bf16.mxu0 0
  %9159 = vmatpush1.bf16.msra.mxu0 0
  %9160 = vmatprep.subr.bf16.mxu0 0
  %9161 = vmatpush1.bf16.msra.mxu0 0
  %9162 = vmatprep.subr.bf16.mxu0 0
  %9163 = vmatpush1.bf16.msra.mxu0 0
  %9164 = vmatprep.subr.bf16.mxu0 0
  %9165 = vmatpush1.bf16.msra.mxu0 0
  %9166 = vmatprep.subr.bf16.mxu0 0
  %9167 = vmatpush1.bf16.msra.mxu0 0
  %9168 = vmatprep.mubr.bf16.mxu0 0
  %9169 = vmatmul.mubr.bf16.gmra.mrb[0].mxu0 %v8425
  %v9170 = vpop.f32.mrb[0].mxu0
  %v9171 = vadd.f32 0.0, %v9170
  %v9172 = vpop.f32.mrb[0].mxu0
  %v9173 = vpop.f32.mrb[0].mxu0
  %v9174 = vadd.f32 0.0, %v9173
  %v9175 = vpop.f32.mrb[0].mxu0
  %9176 = vdwg.mxu0
  %v9177 = vadd.f32 %v9069, %v9171
  %v9178 = vadd.f32 %v9070, %v9174
  %s9179 = scalar_lea.vmem %s3, 448
  %v9180 = vld [vmem:[%s9179] sm:$0xf]
  %v9181 = vld [vmem:[%s9179 + $0x4] sm:$0xf]
  %v9182 = vld [vmem:[%s9179 + $0x8] sm:$0xf]
  %v9183 = vld [vmem:[%s9179 + $0xc] sm:$0xf]
  %v9184 = vld [vmem:[%s9179 + $0x10] sm:$0xf]
  %v9185 = vld [vmem:[%s9179 + $0x14] sm:$0xf]
  %v9186 = vld [vmem:[%s9179 + $0x18] sm:$0xf]
  %v9187 = vld [vmem:[%s9179 + $0x1c] sm:$0xf]
  %v9188 = vld [vmem:[%s9179 + $0x20] sm:$0xf]
  %v9189 = vld [vmem:[%s9179 + $0x24] sm:$0xf]
  %v9190 = vld [vmem:[%s9179 + $0x28] sm:$0xf]
  %v9191 = vld [vmem:[%s9179 + $0x2c] sm:$0xf]
  %v9192 = vld [vmem:[%s9179 + $0x30] sm:$0xf]
  %v9193 = vld [vmem:[%s9179 + $0x34] sm:$0xf]
  %v9194 = vld [vmem:[%s9179 + $0x38] sm:$0xf]
  %v9195 = vld [vmem:[%s9179 + $0x3c] sm:$0xf]
  %v9212 = vunpack.c.l.b16 %v9180
  %v9213 = vunpack.c.l.b16 %v9181
  %v9214 = vunpack.c.l.b16 %v9182
  %v9215 = vunpack.c.l.b16 %v9183
  %v9216 = vunpack.c.l.b16 %v9184
  %v9217 = vunpack.c.l.b16 %v9185
  %v9218 = vunpack.c.l.b16 %v9186
  %v9219 = vunpack.c.l.b16 %v9187
  %v9220 = vunpack.c.l.b16 %v9188
  %v9221 = vunpack.c.l.b16 %v9189
  %v9222 = vunpack.c.l.b16 %v9190
  %v9223 = vunpack.c.l.b16 %v9191
  %v9224 = vunpack.c.l.b16 %v9192
  %v9225 = vunpack.c.l.b16 %v9193
  %v9226 = vunpack.c.l.b16 %v9194
  %v9227 = vunpack.c.l.b16 %v9195
  %v9228 = vpack.c.b16 %v9213, %v9212
  %v9229 = vpack.c.b16 %v9215, %v9214
  %v9230 = vpack.c.b16 %v9217, %v9216
  %v9231 = vpack.c.b16 %v9219, %v9218
  %v9232 = vpack.c.b16 %v9221, %v9220
  %v9233 = vpack.c.b16 %v9223, %v9222
  %v9234 = vpack.c.b16 %v9225, %v9224
  %v9235 = vpack.c.b16 %v9227, %v9226
  %9244 = vmatprep.subr.bf16.mxu0 0
  %9245 = vmatpush1.bf16.msra.mxu0 %v9228
  %9246 = vmatprep.subr.bf16.mxu0 0
  %9247 = vmatpush1.bf16.msra.mxu0 %v9229
  %9248 = vmatprep.subr.bf16.mxu0 0
  %9249 = vmatpush1.bf16.msra.mxu0 %v9230
  %9250 = vmatprep.subr.bf16.mxu0 0
  %9251 = vmatpush1.bf16.msra.mxu0 %v9231
  %9252 = vmatprep.subr.bf16.mxu0 0
  %9253 = vmatpush1.bf16.msra.mxu0 %v9232
  %9254 = vmatprep.subr.bf16.mxu0 0
  %9255 = vmatpush1.bf16.msra.mxu0 %v9233
  %9256 = vmatprep.subr.bf16.mxu0 0
  %9257 = vmatpush1.bf16.msra.mxu0 %v9234
  %9258 = vmatprep.subr.bf16.mxu0 0
  %9259 = vmatpush1.bf16.msra.mxu0 %v9235
  %9260 = vmatprep.subr.bf16.mxu0 0
  %9261 = vmatpush1.bf16.msra.mxu0 0
  %9262 = vmatprep.subr.bf16.mxu0 0
  %9263 = vmatpush1.bf16.msra.mxu0 0
  %9264 = vmatprep.subr.bf16.mxu0 0
  %9265 = vmatpush1.bf16.msra.mxu0 0
  %9266 = vmatprep.subr.bf16.mxu0 0
  %9267 = vmatpush1.bf16.msra.mxu0 0
  %9268 = vmatprep.subr.bf16.mxu0 0
  %9269 = vmatpush1.bf16.msra.mxu0 0
  %9270 = vmatprep.subr.bf16.mxu0 0
  %9271 = vmatpush1.bf16.msra.mxu0 0
  %9272 = vmatprep.subr.bf16.mxu0 0
  %9273 = vmatpush1.bf16.msra.mxu0 0
  %9274 = vmatprep.subr.bf16.mxu0 0
  %9275 = vmatpush1.bf16.msra.mxu0 0
  %9276 = vmatprep.mubr.bf16.mxu0 0
  %9277 = vmatmul.mubr.bf16.gmra.mrb[0].mxu0 %v8426
  %v9278 = vpop.f32.mrb[0].mxu0
  %v9279 = vadd.f32 0.0, %v9278
  %v9280 = vpop.f32.mrb[0].mxu0
  %v9281 = vpop.f32.mrb[0].mxu0
  %v9282 = vadd.f32 0.0, %v9281
  %v9283 = vpop.f32.mrb[0].mxu0
  %9284 = vdwg.mxu0
  %v9285 = vadd.f32 %v9177, %v9279
  %v9286 = vadd.f32 %v9178, %v9282
  %s9287 = scalar_lea.vmem %s3, 512
  %v9288 = vld [vmem:[%s9287] sm:$0xf]
  %v9289 = vld [vmem:[%s9287 + $0x4] sm:$0xf]
  %v9290 = vld [vmem:[%s9287 + $0x8] sm:$0xf]
  %v9291 = vld [vmem:[%s9287 + $0xc] sm:$0xf]
  %v9292 = vld [vmem:[%s9287 + $0x10] sm:$0xf]
  %v9293 = vld [vmem:[%s9287 + $0x14] sm:$0xf]
  %v9294 = vld [vmem:[%s9287 + $0x18] sm:$0xf]
  %v9295 = vld [vmem:[%s9287 + $0x1c] sm:$0xf]
  %v9296 = vld [vmem:[%s9287 + $0x20] sm:$0xf]
  %v9297 = vld [vmem:[%s9287 + $0x24] sm:$0xf]
  %v9298 = vld [vmem:[%s9287 + $0x28] sm:$0xf]
  %v9299 = vld [vmem:[%s9287 + $0x2c] sm:$0xf]
  %v9300 = vld [vmem:[%s9287 + $0x30] sm:$0xf]
  %v9301 = vld [vmem:[%s9287 + $0x34] sm:$0xf]
  %v9302 = vld [vmem:[%s9287 + $0x38] sm:$0xf]
  %v9303 = vld [vmem:[%s9287 + $0x3c] sm:$0xf]
  %v9320 = vunpack.c.l.b16 %v9288
  %v9321 = vunpack.c.l.b16 %v9289
  %v9322 = vunpack.c.l.b16 %v9290
  %v9323 = vunpack.c.l.b16 %v9291
  %v9324 = vunpack.c.l.b16 %v9292
  %v9325 = vunpack.c.l.b16 %v9293
  %v9326 = vunpack.c.l.b16 %v9294
  %v9327 = vunpack.c.l.b16 %v9295
  %v9328 = vunpack.c.l.b16 %v9296
  %v9329 = vunpack.c.l.b16 %v9297
  %v9330 = vunpack.c.l.b16 %v9298
  %v9331 = vunpack.c.l.b16 %v9299
  %v9332 = vunpack.c.l.b16 %v9300
  %v9333 = vunpack.c.l.b16 %v9301
  %v9334 = vunpack.c.l.b16 %v9302
  %v9335 = vunpack.c.l.b16 %v9303
  %v9336 = vpack.c.b16 %v9321, %v9320
  %v9337 = vpack.c.b16 %v9323, %v9322
  %v9338 = vpack.c.b16 %v9325, %v9324
  %v9339 = vpack.c.b16 %v9327, %v9326
  %v9340 = vpack.c.b16 %v9329, %v9328
  %v9341 = vpack.c.b16 %v9331, %v9330
  %v9342 = vpack.c.b16 %v9333, %v9332
  %v9343 = vpack.c.b16 %v9335, %v9334
  %9352 = vmatprep.subr.bf16.mxu0 0
  %9353 = vmatpush1.bf16.msra.mxu0 %v9336
  %9354 = vmatprep.subr.bf16.mxu0 0
  %9355 = vmatpush1.bf16.msra.mxu0 %v9337
  %9356 = vmatprep.subr.bf16.mxu0 0
  %9357 = vmatpush1.bf16.msra.mxu0 %v9338
  %9358 = vmatprep.subr.bf16.mxu0 0
  %9359 = vmatpush1.bf16.msra.mxu0 %v9339
  %9360 = vmatprep.subr.bf16.mxu0 0
  %9361 = vmatpush1.bf16.msra.mxu0 %v9340
  %9362 = vmatprep.subr.bf16.mxu0 0
  %9363 = vmatpush1.bf16.msra.mxu0 %v9341
  %9364 = vmatprep.subr.bf16.mxu0 0
  %9365 = vmatpush1.bf16.msra.mxu0 %v9342
  %9366 = vmatprep.subr.bf16.mxu0 0
  %9367 = vmatpush1.bf16.msra.mxu0 %v9343
  %9368 = vmatprep.subr.bf16.mxu0 0
  %9369 = vmatpush1.bf16.msra.mxu0 0
  %9370 = vmatprep.subr.bf16.mxu0 0
  %9371 = vmatpush1.bf16.msra.mxu0 0
  %9372 = vmatprep.subr.bf16.mxu0 0
  %9373 = vmatpush1.bf16.msra.mxu0 0
  %9374 = vmatprep.subr.bf16.mxu0 0
  %9375 = vmatpush1.bf16.msra.mxu0 0
  %9376 = vmatprep.subr.bf16.mxu0 0
  %9377 = vmatpush1.bf16.msra.mxu0 0
  %9378 = vmatprep.subr.bf16.mxu0 0
  %9379 = vmatpush1.bf16.msra.mxu0 0
  %9380 = vmatprep.subr.bf16.mxu0 0
  %9381 = vmatpush1.bf16.msra.mxu0 0
  %9382 = vmatprep.subr.bf16.mxu0 0
  %9383 = vmatpush1.bf16.msra.mxu0 0
  %9384 = vmatprep.mubr.bf16.mxu0 0
  %9385 = vmatmul.mubr.bf16.gmra.mrb[0].mxu0 %v8427
  %v9386 = vpop.f32.mrb[0].mxu0
  %v9387 = vadd.f32 0.0, %v9386
  %v9388 = vpop.f32.mrb[0].mxu0
  %v9389 = vpop.f32.mrb[0].mxu0
  %v9390 = vadd.f32 0.0, %v9389
  %v9391 = vpop.f32.mrb[0].mxu0
  %9392 = vdwg.mxu0
  %v9393 = vadd.f32 %v9285, %v9387
  %v9394 = vadd.f32 %v9286, %v9390
  %s9395 = scalar_lea.vmem %s6, 16
  %v9396 = vld [vmem:[%s9395] sm:$0xff]
  %v9397 = vlaneseq
  %v9398 = vshrl.u32 %v9397, 7
  %v9399 = vsub.s32 0, %v9398
  %v9400 = vrot.slane %v9396, %v9399
  %v9401 = vadd.f32 %v9393, %v9400
  %v9402 = vadd.f32 %v9394, %v9400
  %v9403 = vmax.f32 %v9401, 0.0
  %v9404 = vmax.f32 %v9402, 0.0
  %v9405 = vlaneseq
  %v9406 = vshrl.u32 %v9405, 7
  %v9407 = vsub.s32 1, %v9406
  %v9408 = vrot.slane %v9396, %v9407
  %v9409 = vmul.f32 %v9403, %v9408
  %v9410 = vmul.f32 %v9404, %v9408
  %v9411 = vlaneseq
  %v9412 = vshrl.u32 %v9411, 7
  %v9413 = vsub.s32 2, %v9412
  %v9414 = vrot.slane %v9396, %v9413
  %v9415 = vadd.f32 %v9409, %v9414
  %v9416 = vadd.f32 %v9410, %v9414
  %v9417 = vpack.c.bf16 %v9416, %v9415
  %s9418 = scalar_lea.vmem %s6, 24
  %v9419 = vld [vmem:[%s9418] sm:$0xff]
  %v9420 = vld [vmem:[%s4] sm:$0xf]
  %v9421 = vld [vmem:[%s4 + $0x4] sm:$0xf]
  %v9422 = vld [vmem:[%s4 + $0x8] sm:$0xf]
  %v9423 = vld [vmem:[%s4 + $0xc] sm:$0xf]
  %v9424 = vld [vmem:[%s4 + $0x10] sm:$0xf]
  %v9425 = vld [vmem:[%s4 + $0x14] sm:$0xf]
  %v9426 = vld [vmem:[%s4 + $0x18] sm:$0xf]
  %v9427 = vld [vmem:[%s4 + $0x1c] sm:$0xf]
  %v9428 = vld [vmem:[%s4 + $0x20] sm:$0xf]
  %v9429 = vld [vmem:[%s4 + $0x24] sm:$0xf]
  %v9430 = vld [vmem:[%s4 + $0x28] sm:$0xf]
  %v9431 = vld [vmem:[%s4 + $0x2c] sm:$0xf]
  %v9432 = vld [vmem:[%s4 + $0x30] sm:$0xf]
  %v9433 = vld [vmem:[%s4 + $0x34] sm:$0xf]
  %v9434 = vld [vmem:[%s4 + $0x38] sm:$0xf]
  %v9435 = vld [vmem:[%s4 + $0x3c] sm:$0xf]
  %v9436 = vlaneseq
  %v9437 = vshrl.u32 %v9436, 7
  %v9438 = vsub.s32 0, %v9437
  %v9439 = vrot.slane %v9419, %v9438
  %v9456 = vunpack.c.l.b16 %v9420
  %v9457 = vunpack.c.l.b16 %v9421
  %v9458 = vunpack.c.l.b16 %v9422
  %v9459 = vunpack.c.l.b16 %v9423
  %v9460 = vunpack.c.l.b16 %v9424
  %v9461 = vunpack.c.l.b16 %v9425
  %v9462 = vunpack.c.l.b16 %v9426
  %v9463 = vunpack.c.l.b16 %v9427
  %v9464 = vunpack.c.l.b16 %v9428
  %v9465 = vunpack.c.l.b16 %v9429
  %v9466 = vunpack.c.l.b16 %v9430
  %v9467 = vunpack.c.l.b16 %v9431
  %v9468 = vunpack.c.l.b16 %v9432
  %v9469 = vunpack.c.l.b16 %v9433
  %v9470 = vunpack.c.l.b16 %v9434
  %v9471 = vunpack.c.l.b16 %v9435
  %v9472 = vpack.c.b16 %v9457, %v9456
  %v9473 = vpack.c.b16 %v9459, %v9458
  %v9474 = vpack.c.b16 %v9461, %v9460
  %v9475 = vpack.c.b16 %v9463, %v9462
  %v9476 = vpack.c.b16 %v9465, %v9464
  %v9477 = vpack.c.b16 %v9467, %v9466
  %v9478 = vpack.c.b16 %v9469, %v9468
  %v9479 = vpack.c.b16 %v9471, %v9470
  %9488 = vmatprep.subr.bf16.mxu0 0
  %9489 = vmatpush1.bf16.msra.mxu0 %v9472
  %9490 = vmatprep.subr.bf16.mxu0 0
  %9491 = vmatpush1.bf16.msra.mxu0 %v9473
  %9492 = vmatprep.subr.bf16.mxu0 0
  %9493 = vmatpush1.bf16.msra.mxu0 %v9474
  %9494 = vmatprep.subr.bf16.mxu0 0
  %9495 = vmatpush1.bf16.msra.mxu0 %v9475
  %9496 = vmatprep.subr.bf16.mxu0 0
  %9497 = vmatpush1.bf16.msra.mxu0 %v9476
  %9498 = vmatprep.subr.bf16.mxu0 0
  %9499 = vmatpush1.bf16.msra.mxu0 %v9477
  %9500 = vmatprep.subr.bf16.mxu0 0
  %9501 = vmatpush1.bf16.msra.mxu0 %v9478
  %9502 = vmatprep.subr.bf16.mxu0 0
  %9503 = vmatpush1.bf16.msra.mxu0 %v9479
  %9504 = vmatprep.subr.bf16.mxu0 0
  %9505 = vmatpush1.bf16.msra.mxu0 0
  %9506 = vmatprep.subr.bf16.mxu0 0
  %9507 = vmatpush1.bf16.msra.mxu0 0
  %9508 = vmatprep.subr.bf16.mxu0 0
  %9509 = vmatpush1.bf16.msra.mxu0 0
  %9510 = vmatprep.subr.bf16.mxu0 0
  %9511 = vmatpush1.bf16.msra.mxu0 0
  %9512 = vmatprep.subr.bf16.mxu0 0
  %9513 = vmatpush1.bf16.msra.mxu0 0
  %9514 = vmatprep.subr.bf16.mxu0 0
  %9515 = vmatpush1.bf16.msra.mxu0 0
  %9516 = vmatprep.subr.bf16.mxu0 0
  %9517 = vmatpush1.bf16.msra.mxu0 0
  %9518 = vmatprep.subr.bf16.mxu0 0
  %9519 = vmatpush1.bf16.msra.mxu0 0
  %9520 = vmatprep.mubr.bf16.mxu0 0
  %9521 = vmatmul.mubr.bf16.gmra.mrb[0].mxu0 %v9417
  %v9522 = vpop.f32.mrb[0].mxu0
  %v9523 = vadd.f32 %v9439, %v9522
  %v9524 = vpop.f32.mrb[0].mxu0
  %v9525 = vpop.f32.mrb[0].mxu0
  %v9526 = vadd.f32 %v9439, %v9525
  %v9527 = vpop.f32.mrb[0].mxu0
  %9528 = vdwg.mxu0
  %v9529 = vmax.f32 %v9523, 0.0
  %v9530 = vmax.f32 %v9526, 0.0
  %v9531 = vpack.c.bf16 %v9530, %v9529
  %v9532 = vld [vmem:[%s5] sm:$0xf]
  %v9533 = vld [vmem:[%s5 + $0x4] sm:$0xf]
  %v9534 = vld [vmem:[%s5 + $0x8] sm:$0xf]
  %v9535 = vld [vmem:[%s5 + $0xc] sm:$0xf]
  %v9536 = vld [vmem:[%s5 + $0x10] sm:$0xf]
  %v9537 = vld [vmem:[%s5 + $0x14] sm:$0xf]
  %v9538 = vld [vmem:[%s5 + $0x18] sm:$0xf]
  %v9539 = vld [vmem:[%s5 + $0x1c] sm:$0xf]
  %v9540 = vld [vmem:[%s5 + $0x20] sm:$0xf]
  %v9541 = vld [vmem:[%s5 + $0x24] sm:$0xf]
  %v9542 = vld [vmem:[%s5 + $0x28] sm:$0xf]
  %v9543 = vld [vmem:[%s5 + $0x2c] sm:$0xf]
  %v9544 = vld [vmem:[%s5 + $0x30] sm:$0xf]
  %v9545 = vld [vmem:[%s5 + $0x34] sm:$0xf]
  %v9546 = vld [vmem:[%s5 + $0x38] sm:$0xf]
  %v9547 = vld [vmem:[%s5 + $0x3c] sm:$0xf]
  %v9548 = vlaneseq
  %v9549 = vshrl.u32 %v9548, 7
  %v9550 = vsub.s32 1, %v9549
  %v9551 = vrot.slane %v9419, %v9550
  %v9568 = vunpack.c.l.b16 %v9532
  %v9569 = vunpack.c.l.b16 %v9533
  %v9570 = vunpack.c.l.b16 %v9534
  %v9571 = vunpack.c.l.b16 %v9535
  %v9572 = vunpack.c.l.b16 %v9536
  %v9573 = vunpack.c.l.b16 %v9537
  %v9574 = vunpack.c.l.b16 %v9538
  %v9575 = vunpack.c.l.b16 %v9539
  %v9576 = vunpack.c.l.b16 %v9540
  %v9577 = vunpack.c.l.b16 %v9541
  %v9578 = vunpack.c.l.b16 %v9542
  %v9579 = vunpack.c.l.b16 %v9543
  %v9580 = vunpack.c.l.b16 %v9544
  %v9581 = vunpack.c.l.b16 %v9545
  %v9582 = vunpack.c.l.b16 %v9546
  %v9583 = vunpack.c.l.b16 %v9547
  %v9584 = vpack.c.b16 %v9569, %v9568
  %v9585 = vpack.c.b16 %v9571, %v9570
  %v9586 = vpack.c.b16 %v9573, %v9572
  %v9587 = vpack.c.b16 %v9575, %v9574
  %v9588 = vpack.c.b16 %v9577, %v9576
  %v9589 = vpack.c.b16 %v9579, %v9578
  %v9590 = vpack.c.b16 %v9581, %v9580
  %v9591 = vpack.c.b16 %v9583, %v9582
  %9600 = vmatprep.subr.bf16.mxu0 0
  %9601 = vmatpush1.bf16.msra.mxu0 %v9584
  %9602 = vmatprep.subr.bf16.mxu0 0
  %9603 = vmatpush1.bf16.msra.mxu0 %v9585
  %9604 = vmatprep.subr.bf16.mxu0 0
  %9605 = vmatpush1.bf16.msra.mxu0 %v9586
  %9606 = vmatprep.subr.bf16.mxu0 0
  %9607 = vmatpush1.bf16.msra.mxu0 %v9587
  %9608 = vmatprep.subr.bf16.mxu0 0
  %9609 = vmatpush1.bf16.msra.mxu0 %v9588
  %9610 = vmatprep.subr.bf16.mxu0 0
  %9611 = vmatpush1.bf16.msra.mxu0 %v9589
  %9612 = vmatprep.subr.bf16.mxu0 0
  %9613 = vmatpush1.bf16.msra.mxu0 %v9590
  %9614 = vmatprep.subr.bf16.mxu0 0
  %9615 = vmatpush1.bf16.msra.mxu0 %v9591
  %9616 = vmatprep.subr.bf16.mxu0 0
  %9617 = vmatpush1.bf16.msra.mxu0 0
  %9618 = vmatprep.subr.bf16.mxu0 0
  %9619 = vmatpush1.bf16.msra.mxu0 0
  %9620 = vmatprep.subr.bf16.mxu0 0
  %9621 = vmatpush1.bf16.msra.mxu0 0
  %9622 = vmatprep.subr.bf16.mxu0 0
  %9623 = vmatpush1.bf16.msra.mxu0 0
  %9624 = vmatprep.subr.bf16.mxu0 0
  %9625 = vmatpush1.bf16.msra.mxu0 0
  %9626 = vmatprep.subr.bf16.mxu0 0
  %9627 = vmatpush1.bf16.msra.mxu0 0
  %9628 = vmatprep.subr.bf16.mxu0 0
  %9629 = vmatpush1.bf16.msra.mxu0 0
  %9630 = vmatprep.subr.bf16.mxu0 0
  %9631 = vmatpush1.bf16.msra.mxu0 0
  %9632 = vmatprep.mubr.bf16.mxu0 0
  %9633 = vmatmul.mubr.bf16.gmra.mrb[0].mxu0 %v9531
  %v9634 = vpop.f32.mrb[0].mxu0
  %v9635 = vadd.f32 %v9551, %v9634
  %v9636 = vpop.f32.mrb[0].mxu0
  %v9637 = vpop.f32.mrb[0].mxu0
  %v9638 = vadd.f32 %v9551, %v9637
  %v9639 = vpop.f32.mrb[0].mxu0
  %9640 = vdwg.mxu0
  %9641 = vst [vmem:[%s7] sm:$0xff] %v9635
  %9642 = vst [vmem:[%s7 + $0x8] sm:$0xff] %v9638
  // Predicated region
  $region30: #{nature_cnn_forward.1} parent=0 // pred_check
    _
  $region31: #{nature_cnn_forward.1} parent=0 // pred_check_branch
    %9644 = sbr.rel (0) target = $region33
  $region32: #{nature_cnn_forward.1} parent=0 // pred_region
    _
  $region33: #{nature_cnn_forward.1} parent=0 // pred_fallthru
    _
  // Predicated region
  $region34: #{nature_cnn_forward.1} parent=0 // pred_check
    _
  $region35: #{nature_cnn_forward.1} parent=0 // pred_check_branch
    %9646 = sbr.rel (0) target = $region37
  $region36: #{nature_cnn_forward.1} parent=0 // pred_region
    _
  $region37: #{nature_cnn_forward.1} parent=0 // pred_fallthru
    _

</llo_original>
